<compile_context>
chip_gen: v7x
topology: tpu7x:2x2x1
jax: 0.10.0
libtpu: 0.0.40
codegen_flags: <defaults>
</compile_context>

<pallas_src>
import jax
import jax.numpy as jnp
from jax.experimental import pallas as pl
from jax.experimental.pallas import tpu as pltpu


N_ACTIONS = 8
N_TIMESTEPS = 10

# (name, in_channels, sensor/joint width W)
_BRANCHES = (("tactile", 2, 4), ("pose", 1, 4), ("jt", 1, 7))
_KH1, _C1 = 5, 16          # Conv2d(cin, 16, (5,1))
_KH2, _C2 = 2, 32          # Conv2d(16, 32, (2,1))
_EMB = 128
_HO1 = N_TIMESTEPS - _KH1 + 1          # 6
_HO2 = _HO1 - _KH2 + 1                 # 5

_IN_DIMS = tuple(cin * N_TIMESTEPS * w for _, cin, w in _BRANCHES)   # (80, 40, 70)
_C1_DIMS = tuple(_C1 * _HO1 * w for _, _, w in _BRANCHES)            # (384, 384, 672)
_C2_DIMS = tuple(_C2 * _HO2 * w for _, _, w in _BRANCHES)            # (640, 640, 1120)
_D0 = sum(_IN_DIMS)                    # 190  concatenated raw input
_D1 = sum(_C1_DIMS)                    # 1440 conv1 output
_D2 = sum(_C2_DIMS)                    # 2400 conv2 output
_DCAT = 3 * _EMB                       # 384  concatenated branch embedding
_DHEAD = 2 * _EMB                      # 256  [adv_hidden | val_hidden]
_QPAD = 128                            # lane-dense padded output width (>= A+1)

_C1_OFF = (0, _C1_DIMS[0], _C1_DIMS[0] + _C1_DIMS[1])   # (0, 384, 768)
_C2_OFF = (0, _C2_DIMS[0], _C2_DIMS[0] + _C2_DIMS[1])   # (0, 640, 1280)


def _round_up(x, m):
    return (x + m - 1) // m * m


# Packed-bias layout: one (1, _BIAS_LEN) f32 array, each segment 128-lane aligned.
_BIAS_SEGS = (_D1, _D2, _DCAT, _DCAT, _DHEAD, _QPAD)
_BIAS_OFFS = []
_o = 0
for _seg in _BIAS_SEGS:
    _BIAS_OFFS.append(_o)
    _o = _round_up(_o + _seg, 128)
_BIAS_OFFS = tuple(_BIAS_OFFS)
_BIAS_LEN = _o


# ------------------------------ fused kernel --------------------------------

def _fused_dqn_kernel(x_ref, w1_ref, w2tp_ref, w2jt_ref, w3_ref, w4_ref,
                      h1_ref, h2_ref, b_ref, y_ref):
    """One batch tile of the whole forward pass (8 MXU matmuls, bf16 weights,
    f32 accumulation; biases / ReLU in f32)."""

    def mm(a, w):
        return jnp.dot(a, w, preferred_element_type=jnp.float32)

    def bias(idx, off=0, n=None):
        base = _BIAS_OFFS[idx] + off
        n = _BIAS_SEGS[idx] if n is None else n
        return b_ref[:, base:base + n]                 # (1, n) f32, static slice

    x = x_ref[...]                                     # (TB, 190) bf16
    # conv1: block-diagonal Toeplitz over the three branches, + bias + ReLU
    h = jnp.maximum(mm(x, w1_ref[...]) + bias(0), 0.0)          # (TB, 1440) f32
    hb = h.astype(jnp.bfloat16)
    # conv2: per-branch Toeplitz (kept separate: block-diag would ~3x the
    # dominant weight-DMA payload), + bias + ReLU, cast to bf16 before concat
    s0, s1 = _C1_OFF[1], _C1_OFF[2]
    t2 = mm(hb[:, :s0], w2tp_ref[0]) + bias(1, _C2_OFF[0], _C2_DIMS[0])
    p2 = mm(hb[:, s0:s1], w2tp_ref[1]) + bias(1, _C2_OFF[1], _C2_DIMS[1])
    j2 = mm(hb[:, s1:], w2jt_ref[...]) + bias(1, _C2_OFF[2], _C2_DIMS[2])
    h = jnp.concatenate(
        [jnp.maximum(t2, 0.0).astype(jnp.bfloat16),
         jnp.maximum(p2, 0.0).astype(jnp.bfloat16),
         jnp.maximum(j2, 0.0).astype(jnp.bfloat16)], axis=-1)   # (TB, 2400) bf16
    # fc1: block-diagonal (2400, 384) -> output IS the concat of branch embeddings
    h = jnp.maximum(mm(h, w3_ref[...]) + bias(2), 0.0)
    # fc2: block-diagonal (384, 384)
    h = jnp.maximum(mm(h.astype(jnp.bfloat16), w4_ref[...]) + bias(3), 0.0)
    # dueling head layer 1: [wa1 | wv1] -> (TB, 256)
    h = jnp.maximum(mm(h.astype(jnp.bfloat16), h1_ref[...]) + bias(4), 0.0)
    # dueling head layer 2: blockdiag(wa2, wv2), lane-padded -> (TB, 128)
    y_ref[...] = mm(h.astype(jnp.bfloat16), h2_ref[...]) + bias(5)


def dueling_placenet_forward(kparams, myrmex_data, pose, j_pos, j_tau, j_vel,
                             *, block_b=256, n_actions=N_ACTIONS):
    """Forward pass.  j_pos / j_vel are accepted but unused (as in PyTorch)."""
    del j_pos, j_vel
    B = myrmex_data.shape[0]

    # NCHW contiguous -> (B, C*H*W) per branch (PyTorch flatten order), concat
    # and cast to bf16 once here (halves input DMA; the kernel consumes bf16).
    x = jnp.concatenate(
        [myrmex_data.reshape(B, -1), pose.reshape(B, -1), j_tau.reshape(B, -1)],
        axis=-1).astype(jnp.bfloat16)                            # (B, 190)

    # Batch grid: `tb` rows per step; pad B up so every block is full.
    tb = block_b if B > block_b else B
    bp = _round_up(B, tb)
    if bp != B:
        x = jnp.pad(x, ((0, bp - B), (0, 0)))
    nb = bp // tb

    weights = tuple(kparams)   # (w1, w2_tp, w2_jt, w3, w4, h1w, h2w, bias_packed)

    def resident(w):           # whole-array block, constant index -> stays in VMEM
        nd = w.ndim
        return pl.BlockSpec(w.shape, lambda i, _nd=nd: (0,) * _nd)

    macs = (_D0 * _D1 + sum(a * b for a, b in zip(_C1_DIMS, _C2_DIMS))
            + _D2 * _DCAT + _DCAT * _DCAT + _DCAT * _DHEAD + _DHEAD * _QPAD)
    cost = pl.CostEstimate(
        flops=2 * bp * macs,
        transcendentals=0,
        bytes_accessed=int(sum(w.size * w.dtype.itemsize for w in weights)
                           + x.size * x.dtype.itemsize + bp * _QPAD * 4))

    y = pl.pallas_call(
        _fused_dqn_kernel,
        out_shape=jax.ShapeDtypeStruct((bp, _QPAD), jnp.float32),
        grid=(nb,),
        in_specs=[pl.BlockSpec((tb, _D0), lambda i: (i, 0))]
                 + [resident(w) for w in weights],
        out_specs=pl.BlockSpec((tb, _QPAD), lambda i: (i, 0)),
        compiler_params=pltpu.CompilerParams(
            # batch axis parallel -> uses both v7x TensorCores; harmless on v5e/v6e
            dimension_semantics=("parallel",),
            # > v5e's 16 MiB default scoped VMEM, < v7x's 64 MiB physical VMEM
            vmem_limit_bytes=40 * 1024 * 1024),
        cost_estimate=cost,
    )(x, *weights)

    # Dueling combine in plain JAX.  NOTE: the PyTorch reference uses
    # advantage.mean() == GLOBAL mean over batch AND actions; doing it in the
    # kernel would couple batch blocks, so it lives here (padding rows are
    # sliced off before the mean).
    y = y[:B]
    adv = y[:, :n_actions]
    val = y[:, n_actions:n_actions + 1]
    return val + (adv - jnp.mean(adv))


# --------------------------- parameter creation ------------------------------

def _uniform(key, shape, fan_in):
    # PyTorch-style uniform(-1/sqrt(fan_in), 1/sqrt(fan_in)), deterministic.
    s = 1.0 / jnp.sqrt(jnp.float32(fan_in))
    return jax.random.uniform(key, shape, jnp.float32, -s, s)


def init_torch_params(key, n_actions):
    """Parameters in PyTorch layout: conv w (Cout,Cin,kh), linear w (in,out)."""
    params = {}
    keys = jax.random.split(key, len(_BRANCHES) + 1)
    for k, (name, cin, w) in zip(keys[:-1], _BRANCHES):
        flat = _C2 * _HO2 * w                         # 640 / 640 / 1120
        kk = jax.random.split(k, 8)
        params[name] = dict(
            c1w=_uniform(kk[0], (_C1, cin, _KH1), cin * _KH1),
            c1b=_uniform(kk[1], (_C1,), cin * _KH1),
            c2w=_uniform(kk[2], (_C2, _C1, _KH2), _C1 * _KH2),
            c2b=_uniform(kk[3], (_C2,), _C1 * _KH2),
            f1w=_uniform(kk[4], (flat, _EMB), flat),
            f1b=_uniform(kk[5], (_EMB,), flat),
            f2w=_uniform(kk[6], (_EMB, _EMB), _EMB),
            f2b=_uniform(kk[7], (_EMB,), _EMB),
        )
    kh = jax.random.split(keys[-1], 8)
    d = 3 * _EMB
    params["heads"] = dict(
        wa1=_uniform(kh[0], (d, _EMB), d), ba1=_uniform(kh[1], (_EMB,), d),
        wa2=_uniform(kh[2], (_EMB, n_actions), _EMB),
        ba2=_uniform(kh[3], (n_actions,), _EMB),
        wv1=_uniform(kh[4], (d, _EMB), d), bv1=_uniform(kh[5], (_EMB,), d),
        wv2=_uniform(kh[6], (_EMB, 1), _EMB), bv2=_uniform(kh[7], (1,), _EMB),
    )
    return params


def _conv_to_dense(w, bias, cin, H, W):
    """(kh,1) Conv2d -> dense matrix acting on the (c,h,w)-flattened activation.

    w: (Cout, Cin, kh) torch layout.  Returns (M, bflat, Ho) with
    M[(c,h,w), (o,ho,w')] = w[o,c,h-ho] * [w==w'] * [0 <= h-ho < kh].
    Both flatten orders are PyTorch's (channel, height, width).
    """
    cout, _, kh = w.shape
    ho = H - kh + 1
    hh = jnp.arange(H)[:, None]
    gg = jnp.arange(ho)[None, :]
    S = jnp.stack([(hh == gg + dh).astype(jnp.float32) for dh in range(kh)], 0)
    I = jnp.eye(W, dtype=jnp.float32)
    M = jnp.einsum("ocd,dhg,wv->chwogv", w, S, I)
    M = M.reshape(cin * H * W, cout * ho * W)
    bflat = jnp.broadcast_to(bias[:, None], (cout, ho * W)).reshape(1, -1)
    return M, bflat, ho


def prepare_kernel_params(params, n_actions=N_ACTIONS):
    """One-time conversion to the fused-kernel layout (bf16 weights, packed f32 bias)."""
    f32 = jnp.float32

    # conv1 -> one block-diagonal Toeplitz matrix on the concatenated input;
    # conv2 -> per-branch Toeplitz (tac/pose stacked, jt separate).
    w1 = jnp.zeros((_D0, _D1), f32)
    b1 = jnp.zeros((1, _D1), f32)
    w2_list, b2_list, f1_list, f1b_list = [], [], [], []
    r = c = 0
    for (name, cin, wdt), din, d1 in zip(_BRANCHES, _IN_DIMS, _C1_DIMS):
        p = params[name]
        m1, bb1, ho1 = _conv_to_dense(p["c1w"], p["c1b"], cin, N_TIMESTEPS, wdt)
        w1 = w1.at[r:r + din, c:c + d1].set(m1)
        b1 = b1.at[:, c:c + d1].set(bb1)
        m2, bb2, _ = _conv_to_dense(p["c2w"], p["c2b"], _C1, ho1, wdt)
        w2_list.append(m2)
        b2_list.append(bb2)
        f1_list.append(p["f1w"])
        f1b_list.append(p["f1b"])
        r += din
        c += d1
    w2_tp = jnp.stack(w2_list[:2], 0)                    # (2, 384, 640)
    w2_jt = w2_list[2]                                   # (672, 1120)
    b2 = jnp.concatenate(b2_list, axis=-1)               # (1, 2400)

    # fc1 -> block-diagonal (2400, 384): output columns ARE the concatenation
    # of the three 128-wide per-branch embeddings.
    w3 = jnp.zeros((_D2, _DCAT), f32)
    r = 0
    for i, (f1w, d2) in enumerate(zip(f1_list, _C2_DIMS)):
        w3 = w3.at[r:r + d2, i * _EMB:(i + 1) * _EMB].set(f1w)
        r += d2
    b3 = jnp.concatenate([b.reshape(1, -1) for b in f1b_list], axis=-1)

    # fc2 -> block-diagonal (384, 384)
    w4 = jnp.zeros((_DCAT, _DCAT), f32)
    b4 = []
    for i, (name, _, _) in enumerate(_BRANCHES):
        p = params[name]
        w4 = w4.at[i * _EMB:(i + 1) * _EMB, i * _EMB:(i + 1) * _EMB].set(p["f2w"])
        b4.append(p["f2b"])
    b4 = jnp.concatenate(b4).reshape(1, -1)

    # dueling head: layer1 = [wa1 | wv1]; layer2 = blockdiag(wa2, wv2),
    # lane-padded to 128 output columns for a lane-dense kernel output.
    h = params["heads"]
    h1w = jnp.concatenate([h["wa1"], h["wv1"]], axis=1)            # (384, 256)
    b5 = jnp.concatenate([h["ba1"], h["bv1"]]).reshape(1, -1)      # (1, 256)
    h2w = jnp.zeros((_DHEAD, _QPAD), f32)
    h2w = h2w.at[:_EMB, :n_actions].set(h["wa2"])
    h2w = h2w.at[_EMB:, n_actions:n_actions + 1].set(h["wv2"])
    b6 = jnp.zeros((1, _QPAD), f32)
    b6 = b6.at[:, :n_actions].set(h["ba2"].reshape(1, -1))
    b6 = b6.at[:, n_actions:n_actions + 1].set(h["bv2"].reshape(1, -1))

    # all biases packed into one (1, _BIAS_LEN) f32 array at 128-aligned offsets
    bias = jnp.zeros((1, _BIAS_LEN), f32)
    for off, seg in zip(_BIAS_OFFS, (b1, b2, b3, b4, b5, b6)):
        bias = bias.at[:, off:off + seg.shape[1]].set(seg)

    bf = lambda a: a.astype(jnp.bfloat16)
    return (bf(w1), bf(w2_tp), bf(w2_jt), bf(w3), bf(w4), bf(h1w), bf(h2w), bias)


# -------------------------- pure-JAX f32 reference ---------------------------

def _reference_forward(params, myrmex_data, pose, j_tau, n_actions):
    def conv(x, w, b):                       # valid (kh,1) conv, torch semantics
        _, _, H, _ = x.shape
        kh = w.shape[2]
        ho = H - kh + 1
        y = 0.0
        for dh in range(kh):
            y = y + jnp.einsum("bchw,oc->bohw", x[:, :, dh:dh + ho, :], w[:, :, dh])
        return y + b[None, :, None, None]

    def branch(x, p):
        h = jax.nn.relu(conv(x, p["c1w"], p["c1b"]))
        h = jax.nn.relu(conv(h, p["c2w"], p["c2b"]))
        h = h.reshape(h.shape[0], -1)
        h = jax.nn.relu(h @ p["f1w"] + p["f1b"])
        return jax.nn.relu(h @ p["f2w"] + p["f2b"])

    emb = jnp.concatenate([branch(myrmex_data, params["tactile"]),
                           branch(pose, params["pose"]),
                           branch(j_tau, params["jt"])], axis=1)
    hd = params["heads"]
    adv = jax.nn.relu(emb @ hd["wa1"] + hd["ba1"]) @ hd["wa2"] + hd["ba2"]
    val = jax.nn.relu(emb @ hd["wv1"] + hd["bv1"]) @ hd["wv2"] + hd["bv2"]
    return val + (adv - jnp.mean(adv))


# ---------------------------------- main -------------------------------------

if __name__ == "__main__":
    key = jax.random.PRNGKey(0)
    B = 2
    k1, k2, k3, k4, k5, kp = jax.random.split(key, 6)

    # NCHW inputs (fingertip config, n_timesteps = 10)
    myrmex_data = jax.random.normal(k1, (B, 2, N_TIMESTEPS, 4), jnp.float32)  # tactile
    pose = jax.random.normal(k2, (B, 1, N_TIMESTEPS, 4), jnp.float32)         # pose
    j_pos = jax.random.normal(k3, (B, 1, N_TIMESTEPS, 7), jnp.float32)        # unused
    j_tau = jax.random.normal(k4, (B, 1, N_TIMESTEPS, 7), jnp.float32)        # torques
    j_vel = jax.random.normal(k5, (B, 1, N_TIMESTEPS, 7), jnp.float32)        # unused

    torch_params = init_torch_params(kp, N_ACTIONS)
    kparams = prepare_kernel_params(torch_params, N_ACTIONS)

    fwd = jax.jit(dueling_placenet_forward,
                  static_argnames=("block_b", "n_actions"))
    q_values = fwd(kparams, myrmex_data, pose, j_pos, j_tau, j_vel)
    q_values = jax.block_until_ready(q_values)

    assert q_values.shape == (B, N_ACTIONS), q_values.shape
    assert q_values.dtype == jnp.float32

    # loose check vs. the f32 reference (kernel runs bf16 weights/activations)
    q_ref = _reference_forward(torch_params, myrmex_data, pose, j_tau, N_ACTIONS)
    assert float(jnp.max(jnp.abs(q_values - q_ref))) < 5e-2

    print("KERNEL_OK")
</pallas_src>

<mosaic_0001>
module attributes {stable_mosaic.version = 11 : i64} {
  func.func @_fused_dqn_kernel(%arg0: i32, %arg1: memref<2x190xbf16, #tpu.memory_space<vmem>>, %arg2: memref<190x1440xbf16, #tpu.memory_space<vmem>>, %arg3: memref<2x384x640xbf16, #tpu.memory_space<vmem>>, %arg4: memref<672x1120xbf16, #tpu.memory_space<vmem>>, %arg5: memref<2400x384xbf16, #tpu.memory_space<vmem>>, %arg6: memref<384x384xbf16, #tpu.memory_space<vmem>>, %arg7: memref<384x256xbf16, #tpu.memory_space<vmem>>, %arg8: memref<256x128xbf16, #tpu.memory_space<vmem>>, %arg9: memref<1x5120xf32, #tpu.memory_space<vmem>>, %arg10: memref<2x128xf32, #tpu.memory_space<vmem>>) attributes {dimension_semantics = [#tpu.dimension_semantics<parallel>], iteration_bounds = array<i64: 1>, scalar_prefetch = 0 : i64, scratch_operands = 0 : i64, tpu.core_type = #tpu.core_type<tc>, window_params = [{transform_indices = @transform_0, window_bounds = array<i64: 2, 190>}, {pipeline_mode = #tpu.pipeline_mode<synchronous>, transform_indices = @transform_1, window_bounds = array<i64: 190, 1440>}, {pipeline_mode = #tpu.pipeline_mode<synchronous>, transform_indices = @transform_2, window_bounds = array<i64: 2, 384, 640>}, {pipeline_mode = #tpu.pipeline_mode<synchronous>, transform_indices = @transform_3, window_bounds = array<i64: 672, 1120>}, {pipeline_mode = #tpu.pipeline_mode<synchronous>, transform_indices = @transform_4, window_bounds = array<i64: 2400, 384>}, {pipeline_mode = #tpu.pipeline_mode<synchronous>, transform_indices = @transform_5, window_bounds = array<i64: 384, 384>}, {pipeline_mode = #tpu.pipeline_mode<synchronous>, transform_indices = @transform_6, window_bounds = array<i64: 384, 256>}, {pipeline_mode = #tpu.pipeline_mode<synchronous>, transform_indices = @transform_7, window_bounds = array<i64: 256, 128>}, {pipeline_mode = #tpu.pipeline_mode<synchronous>, transform_indices = @transform_8, window_bounds = array<i64: 1, 5120>}, {transform_indices = @transform_9, window_bounds = array<i64: 2, 128>}]} {
    %c0 = arith.constant 0 : index
    %c0_0 = arith.constant 0 : index
    %0 = vector.load %arg1[%c0, %c0_0] : memref<2x190xbf16, #tpu.memory_space<vmem>>, vector<2x190xbf16>
    %c0_1 = arith.constant 0 : index
    %c0_2 = arith.constant 0 : index
    %1 = vector.load %arg2[%c0_1, %c0_2] : memref<190x1440xbf16, #tpu.memory_space<vmem>>, vector<190x1440xbf16>
    %cst = arith.constant dense<0.000000e+00> : vector<2x1440xf32>
    %2 = tpu.matmul %0, %1, %cst {dimension_numbers = #tpu.dot_dimension_numbers<[1], [0], [0], [1], [0, 0, 1, 1], [], []>} : vector<2x190xbf16>, vector<190x1440xbf16>, vector<2x1440xf32> -> vector<2x1440xf32>
    %c0_3 = arith.constant 0 : index
    %c0_4 = arith.constant 0 : index
    %3 = vector.load %arg9[%c0_3, %c0_4] : memref<1x5120xf32, #tpu.memory_space<vmem>>, vector<1x1440xf32>
    %4 = vector.broadcast %3 : vector<1x1440xf32> to vector<2x1440xf32>
    %5 = arith.addf %2, %4 : vector<2x1440xf32>
    %cst_5 = arith.constant 0.000000e+00 : f32
    %6 = vector.broadcast %cst_5 : f32 to vector<2x1440xf32>
    %7 = arith.maximumf %5, %6 : vector<2x1440xf32>
    %8 = arith.truncf %7 : vector<2x1440xf32> to vector<2x1440xbf16>
    %9 = vector.extract_strided_slice %8 {offsets = [0, 0], sizes = [2, 384], strides = [1, 1]} : vector<2x1440xbf16> to vector<2x384xbf16>
    %c0_6 = arith.constant 0 : index
    %c0_7 = arith.constant 0 : index
    %c0_8 = arith.constant 0 : index
    %10 = vector.load %arg3[%c0_6, %c0_7, %c0_8] : memref<2x384x640xbf16, #tpu.memory_space<vmem>>, vector<1x384x640xbf16>
    %11 = vector.shape_cast %10 : vector<1x384x640xbf16> to vector<384x640xbf16>
    %cst_9 = arith.constant dense<0.000000e+00> : vector<2x640xf32>
    %12 = tpu.matmul %9, %11, %cst_9 {dimension_numbers = #tpu.dot_dimension_numbers<[1], [0], [0], [1], [0, 0, 1, 1], [], []>} : vector<2x384xbf16>, vector<384x640xbf16>, vector<2x640xf32> -> vector<2x640xf32>
    %c0_10 = arith.constant 0 : index
    %c1536 = arith.constant 1536 : index
    %13 = vector.load %arg9[%c0_10, %c1536] : memref<1x5120xf32, #tpu.memory_space<vmem>>, vector<1x640xf32>
    %14 = vector.broadcast %13 : vector<1x640xf32> to vector<2x640xf32>
    %15 = arith.addf %12, %14 : vector<2x640xf32>
    %16 = vector.extract_strided_slice %8 {offsets = [0, 384], sizes = [2, 384], strides = [1, 1]} : vector<2x1440xbf16> to vector<2x384xbf16>
    %c1 = arith.constant 1 : index
    %c0_11 = arith.constant 0 : index
    %c0_12 = arith.constant 0 : index
    %17 = vector.load %arg3[%c1, %c0_11, %c0_12] : memref<2x384x640xbf16, #tpu.memory_space<vmem>>, vector<1x384x640xbf16>
    %18 = vector.shape_cast %17 : vector<1x384x640xbf16> to vector<384x640xbf16>
    %cst_13 = arith.constant dense<0.000000e+00> : vector<2x640xf32>
    %19 = tpu.matmul %16, %18, %cst_13 {dimension_numbers = #tpu.dot_dimension_numbers<[1], [0], [0], [1], [0, 0, 1, 1], [], []>} : vector<2x384xbf16>, vector<384x640xbf16>, vector<2x640xf32> -> vector<2x640xf32>
    %c0_14 = arith.constant 0 : index
    %c2176 = arith.constant 2176 : index
    %20 = vector.load %arg9[%c0_14, %c2176] : memref<1x5120xf32, #tpu.memory_space<vmem>>, vector<1x640xf32>
    %21 = vector.broadcast %20 : vector<1x640xf32> to vector<2x640xf32>
    %22 = arith.addf %19, %21 : vector<2x640xf32>
    %23 = vector.extract_strided_slice %8 {offsets = [0, 768], sizes = [2, 672], strides = [1, 1]} : vector<2x1440xbf16> to vector<2x672xbf16>
    %c0_15 = arith.constant 0 : index
    %c0_16 = arith.constant 0 : index
    %24 = vector.load %arg4[%c0_15, %c0_16] : memref<672x1120xbf16, #tpu.memory_space<vmem>>, vector<672x1120xbf16>
    %cst_17 = arith.constant dense<0.000000e+00> : vector<2x1120xf32>
    %25 = tpu.matmul %23, %24, %cst_17 {dimension_numbers = #tpu.dot_dimension_numbers<[1], [0], [0], [1], [0, 0, 1, 1], [], []>} : vector<2x672xbf16>, vector<672x1120xbf16>, vector<2x1120xf32> -> vector<2x1120xf32>
    %c0_18 = arith.constant 0 : index
    %c2816 = arith.constant 2816 : index
    %26 = vector.load %arg9[%c0_18, %c2816] : memref<1x5120xf32, #tpu.memory_space<vmem>>, vector<1x1120xf32>
    %27 = vector.broadcast %26 : vector<1x1120xf32> to vector<2x1120xf32>
    %28 = arith.addf %25, %27 : vector<2x1120xf32>
    %cst_19 = arith.constant 0.000000e+00 : f32
    %29 = vector.broadcast %cst_19 : f32 to vector<2x640xf32>
    %30 = arith.maximumf %15, %29 : vector<2x640xf32>
    %31 = arith.truncf %30 : vector<2x640xf32> to vector<2x640xbf16>
    %cst_20 = arith.constant 0.000000e+00 : f32
    %32 = vector.broadcast %cst_20 : f32 to vector<2x640xf32>
    %33 = arith.maximumf %22, %32 : vector<2x640xf32>
    %34 = arith.truncf %33 : vector<2x640xf32> to vector<2x640xbf16>
    %cst_21 = arith.constant 0.000000e+00 : f32
    %35 = vector.broadcast %cst_21 : f32 to vector<2x1120xf32>
    %36 = arith.maximumf %28, %35 : vector<2x1120xf32>
    %37 = arith.truncf %36 : vector<2x1120xf32> to vector<2x1120xbf16>
    %38 = tpu.concatenate %31, %34, %37 in 1 : vector<2x640xbf16>, vector<2x640xbf16>, vector<2x1120xbf16> -> vector<2x2400xbf16>
    %c0_22 = arith.constant 0 : index
    %c0_23 = arith.constant 0 : index
    %39 = vector.load %arg5[%c0_22, %c0_23] : memref<2400x384xbf16, #tpu.memory_space<vmem>>, vector<2400x384xbf16>
    %cst_24 = arith.constant dense<0.000000e+00> : vector<2x384xf32>
    %40 = tpu.matmul %38, %39, %cst_24 {dimension_numbers = #tpu.dot_dimension_numbers<[1], [0], [0], [1], [0, 0, 1, 1], [], []>} : vector<2x2400xbf16>, vector<2400x384xbf16>, vector<2x384xf32> -> vector<2x384xf32>
    %c0_25 = arith.constant 0 : index
    %c3968 = arith.constant 3968 : index
    %41 = vector.load %arg9[%c0_25, %c3968] : memref<1x5120xf32, #tpu.memory_space<vmem>>, vector<1x384xf32>
    %42 = vector.broadcast %41 : vector<1x384xf32> to vector<2x384xf32>
    %43 = arith.addf %40, %42 : vector<2x384xf32>
    %cst_26 = arith.constant 0.000000e+00 : f32
    %44 = vector.broadcast %cst_26 : f32 to vector<2x384xf32>
    %45 = arith.maximumf %43, %44 : vector<2x384xf32>
    %46 = arith.truncf %45 : vector<2x384xf32> to vector<2x384xbf16>
    %c0_27 = arith.constant 0 : index
    %c0_28 = arith.constant 0 : index
    %47 = vector.load %arg6[%c0_27, %c0_28] : memref<384x384xbf16, #tpu.memory_space<vmem>>, vector<384x384xbf16>
    %cst_29 = arith.constant dense<0.000000e+00> : vector<2x384xf32>
    %48 = tpu.matmul %46, %47, %cst_29 {dimension_numbers = #tpu.dot_dimension_numbers<[1], [0], [0], [1], [0, 0, 1, 1], [], []>} : vector<2x384xbf16>, vector<384x384xbf16>, vector<2x384xf32> -> vector<2x384xf32>
    %c0_30 = arith.constant 0 : index
    %c4352 = arith.constant 4352 : index
    %49 = vector.load %arg9[%c0_30, %c4352] : memref<1x5120xf32, #tpu.memory_space<vmem>>, vector<1x384xf32>
    %50 = vector.broadcast %49 : vector<1x384xf32> to vector<2x384xf32>
    %51 = arith.addf %48, %50 : vector<2x384xf32>
    %cst_31 = arith.constant 0.000000e+00 : f32
    %52 = vector.broadcast %cst_31 : f32 to vector<2x384xf32>
    %53 = arith.maximumf %51, %52 : vector<2x384xf32>
    %54 = arith.truncf %53 : vector<2x384xf32> to vector<2x384xbf16>
    %c0_32 = arith.constant 0 : index
    %c0_33 = arith.constant 0 : index
    %55 = vector.load %arg7[%c0_32, %c0_33] : memref<384x256xbf16, #tpu.memory_space<vmem>>, vector<384x256xbf16>
    %cst_34 = arith.constant dense<0.000000e+00> : vector<2x256xf32>
    %56 = tpu.matmul %54, %55, %cst_34 {dimension_numbers = #tpu.dot_dimension_numbers<[1], [0], [0], [1], [0, 0, 1, 1], [], []>} : vector<2x384xbf16>, vector<384x256xbf16>, vector<2x256xf32> -> vector<2x256xf32>
    %c0_35 = arith.constant 0 : index
    %c4736 = arith.constant 4736 : index
    %57 = vector.load %arg9[%c0_35, %c4736] : memref<1x5120xf32, #tpu.memory_space<vmem>>, vector<1x256xf32>
    %58 = vector.broadcast %57 : vector<1x256xf32> to vector<2x256xf32>
    %59 = arith.addf %56, %58 : vector<2x256xf32>
    %cst_36 = arith.constant 0.000000e+00 : f32
    %60 = vector.broadcast %cst_36 : f32 to vector<2x256xf32>
    %61 = arith.maximumf %59, %60 : vector<2x256xf32>
    %62 = arith.truncf %61 : vector<2x256xf32> to vector<2x256xbf16>
    %c0_37 = arith.constant 0 : index
    %c0_38 = arith.constant 0 : index
    %63 = vector.load %arg8[%c0_37, %c0_38] : memref<256x128xbf16, #tpu.memory_space<vmem>>, vector<256x128xbf16>
    %cst_39 = arith.constant dense<0.000000e+00> : vector<2x128xf32>
    %64 = tpu.matmul %62, %63, %cst_39 {dimension_numbers = #tpu.dot_dimension_numbers<[1], [0], [0], [1], [0, 0, 1, 1], [], []>} : vector<2x256xbf16>, vector<256x128xbf16>, vector<2x128xf32> -> vector<2x128xf32>
    %c0_40 = arith.constant 0 : index
    %c4992 = arith.constant 4992 : index
    %65 = vector.load %arg9[%c0_40, %c4992] : memref<1x5120xf32, #tpu.memory_space<vmem>>, vector<1x128xf32>
    %66 = vector.broadcast %65 : vector<1x128xf32> to vector<2x128xf32>
    %67 = arith.addf %64, %66 : vector<2x128xf32>
    %c0_41 = arith.constant 0 : index
    %c0_42 = arith.constant 0 : index
    %68 = vector.load %arg10[%c0_41, %c0_42] : memref<2x128xf32, #tpu.memory_space<vmem>>, vector<2x128xf32>
    tpu.vector_store %arg10[%c0_41, %c0_42], %67 {strides = array<i32>} : memref<2x128xf32, #tpu.memory_space<vmem>>, vector<2x128xf32>,
    return
  }
  func.func @transform_0(%arg0: i32) -> (i32, i32) {
    %c0_i32 = arith.constant 0 : i32
    %c0_i32_0 = arith.constant 0 : i32
    return %arg0, %c0_i32 : i32, i32
  }
  func.func @transform_1(%arg0: i32) -> (i32, i32) {
    %c0_i32 = arith.constant 0 : i32
    %c0_i32_0 = arith.constant 0 : i32
    %c0_i32_1 = arith.constant 0 : i32
    return %c0_i32, %c0_i32_0 : i32, i32
  }
  func.func @transform_2(%arg0: i32) -> (i32, i32, i32) {
    %c0_i32 = arith.constant 0 : i32
    %c0_i32_0 = arith.constant 0 : i32
    %c0_i32_1 = arith.constant 0 : i32
    %c0_i32_2 = arith.constant 0 : i32
    return %c0_i32, %c0_i32_0, %c0_i32_1 : i32, i32, i32
  }
  func.func @transform_3(%arg0: i32) -> (i32, i32) {
    %c0_i32 = arith.constant 0 : i32
    %c0_i32_0 = arith.constant 0 : i32
    %c0_i32_1 = arith.constant 0 : i32
    return %c0_i32, %c0_i32_0 : i32, i32
  }
  func.func @transform_4(%arg0: i32) -> (i32, i32) {
    %c0_i32 = arith.constant 0 : i32
    %c0_i32_0 = arith.constant 0 : i32
    %c0_i32_1 = arith.constant 0 : i32
    return %c0_i32, %c0_i32_0 : i32, i32
  }
  func.func @transform_5(%arg0: i32) -> (i32, i32) {
    %c0_i32 = arith.constant 0 : i32
    %c0_i32_0 = arith.constant 0 : i32
    %c0_i32_1 = arith.constant 0 : i32
    return %c0_i32, %c0_i32_0 : i32, i32
  }
  func.func @transform_6(%arg0: i32) -> (i32, i32) {
    %c0_i32 = arith.constant 0 : i32
    %c0_i32_0 = arith.constant 0 : i32
    %c0_i32_1 = arith.constant 0 : i32
    return %c0_i32, %c0_i32_0 : i32, i32
  }
  func.func @transform_7(%arg0: i32) -> (i32, i32) {
    %c0_i32 = arith.constant 0 : i32
    %c0_i32_0 = arith.constant 0 : i32
    %c0_i32_1 = arith.constant 0 : i32
    return %c0_i32, %c0_i32_0 : i32, i32
  }
  func.func @transform_8(%arg0: i32) -> (i32, i32) {
    %c0_i32 = arith.constant 0 : i32
    %c0_i32_0 = arith.constant 0 : i32
    %c0_i32_1 = arith.constant 0 : i32
    return %c0_i32, %c0_i32_0 : i32, i32
  }
  func.func @transform_9(%arg0: i32) -> (i32, i32) {
    %c0_i32 = arith.constant 0 : i32
    %c0_i32_0 = arith.constant 0 : i32
    return %arg0, %c0_i32 : i32, i32
  }
}

</mosaic_0001>

<llo_original>
// kernel: dueling_placenet_forward.1
$region0: #{dueling_placenet_forward.1}
  #allocation0 [shape = 'u32[]', space=smem, size = 0x4, offset = 0x4, fixed_abs, tag = 'smem constant byte address 0x4 - core index']
  #allocation1 [shape = 'u32[144,128]{1,0:T(1,128)}', space=vmem, size = 0x12000, scoped, tag = 'internal scratch']
  %s0 = inlined_call_operand.vmem [shape: bf16[2,190], index: 0, kind: input, shape index: {}]
  %s1 = inlined_call_operand.hbm [shape: bf16[190,1440], index: 1, kind: input, shape index: {}]
  %s2 = inlined_call_operand.hbm [shape: bf16[2,384,640], index: 2, kind: input, shape index: {}]
  %s3 = inlined_call_operand.hbm [shape: bf16[672,1120], index: 3, kind: input, shape index: {}]
  %s4 = inlined_call_operand.hbm [shape: bf16[2400,384], index: 4, kind: input, shape index: {}]
  %s5 = inlined_call_operand.hbm [shape: bf16[384,384], index: 5, kind: input, shape index: {}]
  %s6 = inlined_call_operand.hbm [shape: bf16[384,256], index: 6, kind: input, shape index: {}]
  %s7 = inlined_call_operand.hbm [shape: bf16[256,128], index: 7, kind: input, shape index: {}]
  %s8 = inlined_call_operand.hbm [shape: f32[1,5120], index: 8, kind: input, shape index: {}]
  %s9 = inlined_call_operand.vmem [shape: f32[2,128], index: 9, kind: output, shape index: {}]
  %s10 = sld [smem:[#allocation0]]
  $region78: #{dueling_placenet_forward.1} parent=0
    _
  %s12 = ssub.s32 1, %s10
  %s13 = scalar_select 0, %s12, %s10
  $region1: #{dueling_placenet_forward.1} parent=0
    #allocation2 [shape = 'u8[589824]{0}', space=vmem, size = 0x90000, scoped, tag = 'input window, operand 1, single buffered']
    #allocation3 [shape = 's32[1]{0}', space=sflag, size = 0x4, scoped, tag = 'scoped memory for dueling_placenet_forward.1']
    #allocation4 [shape = 'u8[983040]{0}', space=vmem, size = 0xf0000, scoped, tag = 'input window, operand 2, single buffered']
    #allocation5 [shape = 's32[1]{0}', space=sflag, size = 0x4, scoped, tag = 'scoped memory for dueling_placenet_forward.1']
    #allocation6 [shape = 'u8[1548288]{0}', space=vmem, size = 0x17a000, scoped, tag = 'input window, operand 3, single buffered']
    #allocation7 [shape = 'u8[1843200]{0}', space=vmem, size = 0x1c2000, scoped, tag = 'input window, operand 4, single buffered']
    #allocation8 [shape = 's32[1]{0}', space=sflag, size = 0x4, scoped, tag = 'scoped memory for dueling_placenet_forward.1']
    #allocation9 [shape = 'u8[294912]{0}', space=vmem, size = 0x48000, scoped, tag = 'input window, operand 5, single buffered']
    #allocation10 [shape = 'u8[196608]{0}', space=vmem, size = 0x30000, scoped, tag = 'input window, operand 6, single buffered']
    #allocation11 [shape = 's32[1]{0}', space=sflag, size = 0x4, scoped, tag = 'scoped memory for dueling_placenet_forward.1']
    #allocation12 [shape = 'u8[65536]{0}', space=vmem, size = 0x10000, scoped, tag = 'input window, operand 7, single buffered']
    #allocation13 [shape = 'u8[20480]{0}', space=vmem, size = 0x5000, scoped, tag = 'input window, operand 8, single buffered']
    #allocation14 [shape = 's32[1]{0}', space=sflag, size = 0x4, scoped, tag = 'scoped memory for dueling_placenet_forward.1']
    %14 = vsyncpa [#allocation3], 0
    %15 = vsyncpa [#allocation5], 0
    %16 = vsyncpa [#allocation8], 0
    %17 = vsyncpa [#allocation11], 0
    %18 = vsyncpa [#allocation14], 0
    // Predicated region
    $region2: #{dueling_placenet_forward.1} parent=1 // pred_check
      _
    $region3: #{dueling_placenet_forward.1} parent=1 // pred_check_branch
      %20 = sbr.rel (0) target = $region5
    $region4: #{dueling_placenet_forward.1} parent=1 // pred_region
      _
    $region5: #{dueling_placenet_forward.1} parent=1 // pred_fallthru
      _
    // Predicated region
    $region6: #{dueling_placenet_forward.1} parent=1 // pred_check
      _
    $region7: #{dueling_placenet_forward.1} parent=1 // pred_check_branch
      %22 = sbr.rel (0) target = $region9
    $region8: #{dueling_placenet_forward.1} parent=1 // pred_region
      %s24 = ssub.s32 18432, 18432
      %25 = vsyncadd [#allocation3], %s24
      %s26 = sshll.u32 [#allocation2], 4
      %s27 = int_to_ptr.vmem [resolvable:$true] %s26
      %32 = dma.hbm_to_vmem [thread:$0]  %s1, 18432, %s27, [#allocation3], 768, 768, 48
    $region9: #{dueling_placenet_forward.1} parent=1 // pred_fallthru
      _
    // Predicated region
    $region10: #{dueling_placenet_forward.1} parent=1 // pred_check
      _
    $region11: #{dueling_placenet_forward.1} parent=1 // pred_check_branch
      %34 = sbr.rel (0) target = $region13
    $region12: #{dueling_placenet_forward.1} parent=1 // pred_region
      %s36 = ssub.s32 30720, 30720
      %37 = vsyncadd [#allocation5], %s36
      %s38 = sshll.u32 [#allocation4], 4
      %s39 = int_to_ptr.vmem [resolvable:$true] %s38
      %44 = dma.hbm_to_vmem [thread:$0]  %s2, 30720, %s39, [#allocation5], 320, 320, 20
    $region13: #{dueling_placenet_forward.1} parent=1 // pred_fallthru
      _
    // Predicated region
    $region14: #{dueling_placenet_forward.1} parent=1 // pred_check
      _
    $region15: #{dueling_placenet_forward.1} parent=1 // pred_check_branch
      %46 = sbr.rel (0) target = $region17
    $region16: #{dueling_placenet_forward.1} parent=1 // pred_region
      %s48 = ssub.s32 48384, 48384
      %49 = vsyncadd [#allocation5], %s48
      %s50 = sshll.u32 [#allocation6], 4
      %s51 = int_to_ptr.vmem [resolvable:$true] %s50
      %56 = dma.hbm_to_vmem [thread:$0]  %s3, 48384, %s51, [#allocation5], 576, 576, 36
    $region17: #{dueling_placenet_forward.1} parent=1 // pred_fallthru
      _
    // Predicated region
    $region18: #{dueling_placenet_forward.1} parent=1 // pred_check
      _
    $region19: #{dueling_placenet_forward.1} parent=1 // pred_check_branch
      %58 = sbr.rel (0) target = $region21
    $region20: #{dueling_placenet_forward.1} parent=1 // pred_region
      %s60 = ssub.s32 57600, 57600
      %61 = vsyncadd [#allocation8], %s60
      %s62 = sshll.u32 [#allocation7], 4
      %s63 = int_to_ptr.vmem [resolvable:$true] %s62
      %68 = dma.hbm_to_vmem [thread:$0]  %s4, 57600, %s63, [#allocation8], 192, 192, 12
    $region21: #{dueling_placenet_forward.1} parent=1 // pred_fallthru
      _
    // Predicated region
    $region22: #{dueling_placenet_forward.1} parent=1 // pred_check
      _
    $region23: #{dueling_placenet_forward.1} parent=1 // pred_check_branch
      %70 = sbr.rel (0) target = $region25
    $region24: #{dueling_placenet_forward.1} parent=1 // pred_region
      %s72 = ssub.s32 9216, 9216
      %73 = vsyncadd [#allocation8], %s72
      %s74 = sshll.u32 [#allocation9], 4
      %s75 = int_to_ptr.vmem [resolvable:$true] %s74
      %80 = dma.hbm_to_vmem [thread:$0]  %s5, 9216, %s75, [#allocation8], 192, 192, 12
    $region25: #{dueling_placenet_forward.1} parent=1 // pred_fallthru
      _
    // Predicated region
    $region26: #{dueling_placenet_forward.1} parent=1 // pred_check
      _
    $region27: #{dueling_placenet_forward.1} parent=1 // pred_check_branch
      %82 = sbr.rel (0) target = $region29
    $region28: #{dueling_placenet_forward.1} parent=1 // pred_region
      %s84 = ssub.s32 6144, 6144
      %85 = vsyncadd [#allocation11], %s84
      %s86 = sshll.u32 [#allocation10], 4
      %s87 = int_to_ptr.vmem [resolvable:$true] %s86
      %92 = dma.hbm_to_vmem [thread:$0]  %s6, 6144, %s87, [#allocation11], 128, 128, 8
    $region29: #{dueling_placenet_forward.1} parent=1 // pred_fallthru
      _
    // Predicated region
    $region30: #{dueling_placenet_forward.1} parent=1 // pred_check
      _
    $region31: #{dueling_placenet_forward.1} parent=1 // pred_check_branch
      %94 = sbr.rel (0) target = $region33
    $region32: #{dueling_placenet_forward.1} parent=1 // pred_region
      %s96 = ssub.s32 2048, 2048
      %97 = vsyncadd [#allocation11], %s96
      %s98 = sshll.u32 [#allocation12], 4
      %s99 = int_to_ptr.vmem [resolvable:$true] %s98
      %104 = dma.hbm_to_vmem [thread:$0]  %s7, 2048, %s99, [#allocation11], 64, 64, 4
    $region33: #{dueling_placenet_forward.1} parent=1 // pred_fallthru
      _
    // Predicated region
    $region34: #{dueling_placenet_forward.1} parent=1 // pred_check
      _
    $region35: #{dueling_placenet_forward.1} parent=1 // pred_check_branch
      %106 = sbr.rel (0) target = $region37
    $region36: #{dueling_placenet_forward.1} parent=1 // pred_region
      %s108 = ssub.s32 640, 640
      %109 = vsyncadd [#allocation14], %s108
      %s111 = sshll.u32 [#allocation13], 4
      %s112 = int_to_ptr.vmem [resolvable:$true] %s111
      %114 = dma.hbm_to_vmem [thread:$0]  %s8, 640, %s112, [#allocation14]
    $region37: #{dueling_placenet_forward.1} parent=1 // pred_fallthru
      _
    // Predicated region
    $region38: #{dueling_placenet_forward.1} parent=1 // pred_check
      _
    $region39: #{dueling_placenet_forward.1} parent=1 // pred_check_branch
      %116 = sbr.rel (0) target = $region41
    $region40: #{dueling_placenet_forward.1} parent=1 // pred_region
      %117 = dma.done [#allocation3], 18432
    $region41: #{dueling_placenet_forward.1} parent=1 // pred_fallthru
      _
    // Predicated region
    $region42: #{dueling_placenet_forward.1} parent=1 // pred_check
      _
    $region43: #{dueling_placenet_forward.1} parent=1 // pred_check_branch
      %119 = sbr.rel (0) target = $region45
    $region44: #{dueling_placenet_forward.1} parent=1 // pred_region
      %120 = dma.done [#allocation5], 30720
    $region45: #{dueling_placenet_forward.1} parent=1 // pred_fallthru
      _
    // Predicated region
    $region46: #{dueling_placenet_forward.1} parent=1 // pred_check
      _
    $region47: #{dueling_placenet_forward.1} parent=1 // pred_check_branch
      %122 = sbr.rel (0) target = $region49
    $region48: #{dueling_placenet_forward.1} parent=1 // pred_region
      %123 = dma.done [#allocation5], 48384
    $region49: #{dueling_placenet_forward.1} parent=1 // pred_fallthru
      _
    // Predicated region
    $region50: #{dueling_placenet_forward.1} parent=1 // pred_check
      _
    $region51: #{dueling_placenet_forward.1} parent=1 // pred_check_branch
      %125 = sbr.rel (0) target = $region53
    $region52: #{dueling_placenet_forward.1} parent=1 // pred_region
      %126 = dma.done [#allocation8], 57600
    $region53: #{dueling_placenet_forward.1} parent=1 // pred_fallthru
      _
    // Predicated region
    $region54: #{dueling_placenet_forward.1} parent=1 // pred_check
      _
    $region55: #{dueling_placenet_forward.1} parent=1 // pred_check_branch
      %128 = sbr.rel (0) target = $region57
    $region56: #{dueling_placenet_forward.1} parent=1 // pred_region
      %129 = dma.done [#allocation8], 9216
    $region57: #{dueling_placenet_forward.1} parent=1 // pred_fallthru
      _
    // Predicated region
    $region58: #{dueling_placenet_forward.1} parent=1 // pred_check
      _
    $region59: #{dueling_placenet_forward.1} parent=1 // pred_check_branch
      %131 = sbr.rel (0) target = $region61
    $region60: #{dueling_placenet_forward.1} parent=1 // pred_region
      %132 = dma.done [#allocation11], 6144
    $region61: #{dueling_placenet_forward.1} parent=1 // pred_fallthru
      _
    // Predicated region
    $region62: #{dueling_placenet_forward.1} parent=1 // pred_check
      _
    $region63: #{dueling_placenet_forward.1} parent=1 // pred_check_branch
      %134 = sbr.rel (0) target = $region65
    $region64: #{dueling_placenet_forward.1} parent=1 // pred_region
      %135 = dma.done [#allocation11], 2048
    $region65: #{dueling_placenet_forward.1} parent=1 // pred_fallthru
      _
    // Predicated region
    $region66: #{dueling_placenet_forward.1} parent=1 // pred_check
      _
    $region67: #{dueling_placenet_forward.1} parent=1 // pred_check_branch
      %137 = sbr.rel (0) target = $region69
    $region68: #{dueling_placenet_forward.1} parent=1 // pred_region
      %138 = dma.done [#allocation14], 640
    $region69: #{dueling_placenet_forward.1} parent=1 // pred_fallthru
      _
    %v140 = vld [vmem:[%s0] sm:$0x3]
    %v141 = vld [vmem:[#allocation2] sm:$0xff]
    %v142 = vld [vmem:[#allocation2 + $0x8] sm:$0xff]
    %v143 = vld [vmem:[#allocation2 + $0x10] sm:$0xff]
    %v144 = vld [vmem:[#allocation2 + $0x18] sm:$0xff]
    %v145 = vld [vmem:[#allocation2 + $0x20] sm:$0xff]
    %v146 = vld [vmem:[#allocation2 + $0x28] sm:$0xff]
    %v147 = vld [vmem:[#allocation2 + $0x30] sm:$0xff]
    %v148 = vld [vmem:[#allocation2 + $0x38] sm:$0xff]
    %v149 = vld [vmem:[#allocation2 + $0x40] sm:$0xff]
    %v150 = vld [vmem:[#allocation2 + $0x48] sm:$0xff]
    %v151 = vld [vmem:[#allocation2 + $0x50] sm:$0xff]
    %v152 = vld [vmem:[#allocation2 + $0x58] sm:$0xff]
    %v153 = vld [vmem:[#allocation2 + $0x60] sm:$0xff]
    %v154 = vld [vmem:[#allocation2 + $0x68] sm:$0xff]
    %v155 = vld [vmem:[#allocation2 + $0x70] sm:$0xff]
    %v156 = vld [vmem:[#allocation2 + $0x78] sm:$0xff]
    %v157 = vld [vmem:[#allocation2 + $0x80] sm:$0xff]
    %v158 = vld [vmem:[#allocation2 + $0x88] sm:$0xff]
    %v159 = vld [vmem:[#allocation2 + $0x90] sm:$0xff]
    %v160 = vld [vmem:[#allocation2 + $0x98] sm:$0xff]
    %v161 = vld [vmem:[#allocation2 + $0xa0] sm:$0xff]
    %v162 = vld [vmem:[#allocation2 + $0xa8] sm:$0xff]
    %v163 = vld [vmem:[#allocation2 + $0xb0] sm:$0xff]
    %v164 = vld [vmem:[#allocation2 + $0xb8] sm:$0xff]
    %v165 = vld [vmem:[#allocation2 + $0xc0] sm:$0xff]
    %v166 = vld [vmem:[#allocation2 + $0xc8] sm:$0xff]
    %v167 = vld [vmem:[#allocation2 + $0xd0] sm:$0xff]
    %v168 = vld [vmem:[#allocation2 + $0xd8] sm:$0xff]
    %v169 = vld [vmem:[#allocation2 + $0xe0] sm:$0xff]
    %v170 = vld [vmem:[#allocation2 + $0xe8] sm:$0xff]
    %v171 = vld [vmem:[#allocation2 + $0xf0] sm:$0xff]
    %v172 = vld [vmem:[#allocation2 + $0xf8] sm:$0xff]
    %v173 = vld [vmem:[#allocation2 + $0x100] sm:$0xff]
    %v174 = vld [vmem:[#allocation2 + $0x108] sm:$0xff]
    %v175 = vld [vmem:[#allocation2 + $0x110] sm:$0xff]
    %v176 = vld [vmem:[#allocation2 + $0x118] sm:$0xff]
    %v177 = vld [vmem:[#allocation2 + $0x120] sm:$0xff]
    %v178 = vld [vmem:[#allocation2 + $0x128] sm:$0xff]
    %v179 = vld [vmem:[#allocation2 + $0x130] sm:$0xff]
    %v180 = vld [vmem:[#allocation2 + $0x138] sm:$0xff]
    %v181 = vld [vmem:[#allocation2 + $0x140] sm:$0xff]
    %v182 = vld [vmem:[#allocation2 + $0x148] sm:$0xff]
    %v183 = vld [vmem:[#allocation2 + $0x150] sm:$0xff]
    %v184 = vld [vmem:[#allocation2 + $0x158] sm:$0xff]
    %v185 = vld [vmem:[#allocation2 + $0x160] sm:$0xff]
    %v186 = vld [vmem:[#allocation2 + $0x168] sm:$0xff]
    %v187 = vld [vmem:[#allocation2 + $0x170] sm:$0xff]
    %v188 = vld [vmem:[#allocation2 + $0x178] sm:$0xff]
    %v189 = vld [vmem:[#allocation2 + $0x180] sm:$0xff]
    %v190 = vld [vmem:[#allocation2 + $0x188] sm:$0xff]
    %v191 = vld [vmem:[#allocation2 + $0x190] sm:$0xff]
    %v192 = vld [vmem:[#allocation2 + $0x198] sm:$0xff]
    %v193 = vld [vmem:[#allocation2 + $0x1a0] sm:$0xff]
    %v194 = vld [vmem:[#allocation2 + $0x1a8] sm:$0xff]
    %v195 = vld [vmem:[#allocation2 + $0x1b0] sm:$0xff]
    %v196 = vld [vmem:[#allocation2 + $0x1b8] sm:$0xff]
    %v197 = vld [vmem:[#allocation2 + $0x1c0] sm:$0xff]
    %v198 = vld [vmem:[#allocation2 + $0x1c8] sm:$0xff]
    %v199 = vld [vmem:[#allocation2 + $0x1d0] sm:$0xff]
    %v200 = vld [vmem:[#allocation2 + $0x1d8] sm:$0xff]
    %v201 = vld [vmem:[#allocation2 + $0x1e0] sm:$0xff]
    %v202 = vld [vmem:[#allocation2 + $0x1e8] sm:$0xff]
    %v203 = vld [vmem:[#allocation2 + $0x1f0] sm:$0xff]
    %v204 = vld [vmem:[#allocation2 + $0x1f8] sm:$0xff]
    %v205 = vld [vmem:[#allocation2 + $0x200] sm:$0xff]
    %v206 = vld [vmem:[#allocation2 + $0x208] sm:$0xff]
    %v207 = vld [vmem:[#allocation2 + $0x210] sm:$0xff]
    %v208 = vld [vmem:[#allocation2 + $0x218] sm:$0xff]
    %v209 = vld [vmem:[#allocation2 + $0x220] sm:$0xff]
    %v210 = vld [vmem:[#allocation2 + $0x228] sm:$0xff]
    %v211 = vld [vmem:[#allocation2 + $0x230] sm:$0xff]
    %v212 = vld [vmem:[#allocation2 + $0x238] sm:$0xff]
    %v213 = vld [vmem:[#allocation2 + $0x240] sm:$0xff]
    %v214 = vld [vmem:[#allocation2 + $0x248] sm:$0xff]
    %v215 = vld [vmem:[#allocation2 + $0x250] sm:$0xff]
    %v216 = vld [vmem:[#allocation2 + $0x258] sm:$0xff]
    %v217 = vld [vmem:[#allocation2 + $0x260] sm:$0xff]
    %v218 = vld [vmem:[#allocation2 + $0x268] sm:$0xff]
    %v219 = vld [vmem:[#allocation2 + $0x270] sm:$0xff]
    %v220 = vld [vmem:[#allocation2 + $0x278] sm:$0xff]
    %v221 = vld [vmem:[#allocation2 + $0x280] sm:$0xff]
    %v222 = vld [vmem:[#allocation2 + $0x288] sm:$0xff]
    %v223 = vld [vmem:[#allocation2 + $0x290] sm:$0xff]
    %v224 = vld [vmem:[#allocation2 + $0x298] sm:$0xff]
    %v225 = vld [vmem:[#allocation2 + $0x2a0] sm:$0xff]
    %v226 = vld [vmem:[#allocation2 + $0x2a8] sm:$0xff]
    %v227 = vld [vmem:[#allocation2 + $0x2b0] sm:$0xff]
    %v228 = vld [vmem:[#allocation2 + $0x2b8] sm:$0xff]
    %v229 = vld [vmem:[#allocation2 + $0x2c0] sm:$0xff]
    %v230 = vld [vmem:[#allocation2 + $0x2c8] sm:$0xff]
    %v231 = vld [vmem:[#allocation2 + $0x2d0] sm:$0xff]
    %v232 = vld [vmem:[#allocation2 + $0x2d8] sm:$0xff]
    %v233 = vld [vmem:[#allocation2 + $0x2e0] sm:$0xff]
    %v234 = vld [vmem:[#allocation2 + $0x2e8] sm:$0xff]
    %v235 = vld [vmem:[#allocation2 + $0x2f0] sm:$0xff]
    %v236 = vld [vmem:[#allocation2 + $0x2f8] sm:$0xff]
    %v237 = vld [vmem:[#allocation2 + $0x300] sm:$0xff]
    %v238 = vld [vmem:[#allocation2 + $0x308] sm:$0xff]
    %v239 = vld [vmem:[#allocation2 + $0x310] sm:$0xff]
    %v240 = vld [vmem:[#allocation2 + $0x318] sm:$0xff]
    %v241 = vld [vmem:[#allocation2 + $0x320] sm:$0xff]
    %v242 = vld [vmem:[#allocation2 + $0x328] sm:$0xff]
    %v243 = vld [vmem:[#allocation2 + $0x330] sm:$0xff]
    %v244 = vld [vmem:[#allocation2 + $0x338] sm:$0xff]
    %v245 = vld [vmem:[#allocation2 + $0x340] sm:$0xff]
    %v246 = vld [vmem:[#allocation2 + $0x348] sm:$0xff]
    %v247 = vld [vmem:[#allocation2 + $0x350] sm:$0xff]
    %v248 = vld [vmem:[#allocation2 + $0x358] sm:$0xff]
    %v249 = vld [vmem:[#allocation2 + $0x360] sm:$0xff]
    %v250 = vld [vmem:[#allocation2 + $0x368] sm:$0xff]
    %v251 = vld [vmem:[#allocation2 + $0x370] sm:$0xff]
    %v252 = vld [vmem:[#allocation2 + $0x378] sm:$0xff]
    %v253 = vld [vmem:[#allocation2 + $0x380] sm:$0xff]
    %v254 = vld [vmem:[#allocation2 + $0x388] sm:$0xff]
    %v255 = vld [vmem:[#allocation2 + $0x390] sm:$0xff]
    %v256 = vld [vmem:[#allocation2 + $0x398] sm:$0xff]
    %v257 = vld [vmem:[#allocation2 + $0x3a0] sm:$0xff]
    %v258 = vld [vmem:[#allocation2 + $0x3a8] sm:$0xff]
    %v259 = vld [vmem:[#allocation2 + $0x3b0] sm:$0xff]
    %v260 = vld [vmem:[#allocation2 + $0x3b8] sm:$0xff]
    %v261 = vld [vmem:[#allocation2 + $0x3c0] sm:$0xff]
    %v262 = vld [vmem:[#allocation2 + $0x3c8] sm:$0xff]
    %v263 = vld [vmem:[#allocation2 + $0x3d0] sm:$0xff]
    %v264 = vld [vmem:[#allocation2 + $0x3d8] sm:$0xff]
    %v265 = vld [vmem:[#allocation2 + $0x3e0] sm:$0xff]
    %v266 = vld [vmem:[#allocation2 + $0x3e8] sm:$0xff]
    %v267 = vld [vmem:[#allocation2 + $0x3f0] sm:$0xff]
    %v268 = vld [vmem:[#allocation2 + $0x3f8] sm:$0xff]
    %v269 = vld [vmem:[#allocation2 + $0x400] sm:$0xff]
    %v270 = vld [vmem:[#allocation2 + $0x408] sm:$0xff]
    %v271 = vld [vmem:[#allocation2 + $0x410] sm:$0xff]
    %v272 = vld [vmem:[#allocation2 + $0x418] sm:$0xff]
    %v273 = vld [vmem:[#allocation2 + $0x420] sm:$0xff]
    %v274 = vld [vmem:[#allocation2 + $0x428] sm:$0xff]
    %v275 = vld [vmem:[#allocation2 + $0x430] sm:$0xff]
    %v276 = vld [vmem:[#allocation2 + $0x438] sm:$0xff]
    %v277 = vld [vmem:[#allocation2 + $0x440] sm:$0xff]
    %v278 = vld [vmem:[#allocation2 + $0x448] sm:$0xff]
    %v279 = vld [vmem:[#allocation2 + $0x450] sm:$0x77]
    %v280 = vld [vmem:[#allocation2 + $0x458] sm:$0x77]
    %v281 = vld [vmem:[#allocation2 + $0x460] sm:$0x77]
    %v282 = vld [vmem:[#allocation2 + $0x468] sm:$0x77]
    %v283 = vld [vmem:[#allocation2 + $0x470] sm:$0x77]
    %v284 = vld [vmem:[#allocation2 + $0x478] sm:$0x77]
    %v285 = vld [vmem:[#allocation13] sm:$0xff]
    %v286 = vld [vmem:[#allocation13 + $0x8] sm:$0xf]
    %v289 = vlaneseq
    %v290 = vshrl.u32 %v289, 7
    %v291 = vsub.s32 0, %v290
    %v292 = vrot.slane %v285, %v291
    %v293 = vlaneseq
    %v294 = vshrl.u32 %v293, 7
    %v295 = vsub.s32 1, %v294
    %v296 = vrot.slane %v285, %v295
    %v297 = vlaneseq
    %v298 = vshrl.u32 %v297, 7
    %v299 = vsub.s32 2, %v298
    %v300 = vrot.slane %v285, %v299
    %v301 = vlaneseq
    %v302 = vshrl.u32 %v301, 7
    %v303 = vsub.s32 3, %v302
    %v304 = vrot.slane %v285, %v303
    %v305 = vlaneseq
    %v306 = vshrl.u32 %v305, 7
    %v307 = vsub.s32 4, %v306
    %v308 = vrot.slane %v285, %v307
    %v309 = vlaneseq
    %v310 = vshrl.u32 %v309, 7
    %v311 = vsub.s32 5, %v310
    %v312 = vrot.slane %v285, %v311
    %v313 = vlaneseq
    %v314 = vshrl.u32 %v313, 7
    %v315 = vsub.s32 6, %v314
    %v316 = vrot.slane %v285, %v315
    %v317 = vlaneseq
    %v318 = vshrl.u32 %v317, 7
    %v319 = vsub.s32 7, %v318
    %v320 = vrot.slane %v285, %v319
    %v321 = vlaneseq
    %v322 = vshrl.u32 %v321, 7
    %v323 = vsub.s32 0, %v322
    %v324 = vrot.slane %v286, %v323
    %v325 = vlaneseq
    %v326 = vshrl.u32 %v325, 7
    %v327 = vsub.s32 1, %v326
    %v328 = vrot.slane %v286, %v327
    %v329 = vlaneseq
    %v330 = vshrl.u32 %v329, 7
    %v331 = vsub.s32 2, %v330
    %v332 = vrot.slane %v286, %v331
    %v333 = vlaneseq
    %v334 = vshrl.u32 %v333, 7
    %v335 = vsub.s32 3, %v334
    %v336 = vrot.slane %v286, %v335
    %v351 = vunpack.c.l.s4 1966171168
    %v352 = vunpack.c.0.s8 %v351
    %v353 = vlaneseq
    %v354 = vshrl.u32 %v353, 7
    %v355 = vsub.s32 %v352, %v354
    %v356 = vrot.slane %v140, %v355
    %v357 = vcombine.high %v356, %v356
    %v359 = vunpack.c.l.s4 1966171168
    %v360 = vunpack.c.0.s8 %v359
    %v361 = vlaneseq
    %v362 = vshrl.u32 %v361, 7
    %v363 = vsub.s32 %v360, %v362
    %v364 = vrot.slane %v356, %v363
    %v366 = vunpack.c.l.s4 1966171168
    %v367 = vunpack.c.0.s8 %v366
    %v368 = vlaneseq
    %v369 = vshrl.u32 %v368, 7
    %v370 = vsub.s32 %v367, %v369
    %v371 = vrot.slane %v357, %v370
    %v517 = vunpack.c.l.b16 %v141
    %v518 = vunpack.c.h.b16 %v141
    %v519 = vunpack.c.l.b16 %v142
    %v520 = vunpack.c.h.b16 %v142
    %v521 = vunpack.c.l.b16 %v143
    %v522 = vunpack.c.h.b16 %v143
    %v523 = vunpack.c.l.b16 %v144
    %v524 = vunpack.c.h.b16 %v144
    %v525 = vunpack.c.l.b16 %v145
    %v526 = vunpack.c.h.b16 %v145
    %v527 = vunpack.c.l.b16 %v146
    %v528 = vunpack.c.h.b16 %v146
    %v529 = vunpack.c.l.b16 %v147
    %v530 = vunpack.c.h.b16 %v147
    %v531 = vunpack.c.l.b16 %v148
    %v532 = vunpack.c.h.b16 %v148
    %v533 = vunpack.c.l.b16 %v149
    %v534 = vunpack.c.h.b16 %v149
    %v535 = vunpack.c.l.b16 %v150
    %v536 = vunpack.c.h.b16 %v150
    %v537 = vunpack.c.l.b16 %v151
    %v538 = vunpack.c.h.b16 %v151
    %v539 = vunpack.c.l.b16 %v152
    %v540 = vunpack.c.h.b16 %v152
    %v541 = vunpack.c.l.b16 %v153
    %v542 = vunpack.c.h.b16 %v153
    %v543 = vunpack.c.l.b16 %v154
    %v544 = vunpack.c.h.b16 %v154
    %v545 = vunpack.c.l.b16 %v155
    %v546 = vunpack.c.h.b16 %v155
    %v547 = vunpack.c.l.b16 %v156
    %v548 = vunpack.c.h.b16 %v156
    %v549 = vunpack.c.l.b16 %v157
    %v550 = vunpack.c.h.b16 %v157
    %v551 = vunpack.c.l.b16 %v158
    %v552 = vunpack.c.h.b16 %v158
    %v553 = vunpack.c.l.b16 %v159
    %v554 = vunpack.c.h.b16 %v159
    %v555 = vunpack.c.l.b16 %v160
    %v556 = vunpack.c.h.b16 %v160
    %v557 = vunpack.c.l.b16 %v161
    %v558 = vunpack.c.h.b16 %v161
    %v559 = vunpack.c.l.b16 %v162
    %v560 = vunpack.c.h.b16 %v162
    %v561 = vunpack.c.l.b16 %v163
    %v562 = vunpack.c.h.b16 %v163
    %v563 = vunpack.c.l.b16 %v164
    %v564 = vunpack.c.h.b16 %v164
    %v565 = vunpack.c.l.b16 %v165
    %v566 = vunpack.c.h.b16 %v165
    %v567 = vunpack.c.l.b16 %v166
    %v568 = vunpack.c.h.b16 %v166
    %v569 = vunpack.c.l.b16 %v167
    %v570 = vunpack.c.h.b16 %v167
    %v571 = vunpack.c.l.b16 %v168
    %v572 = vunpack.c.h.b16 %v168
    %v573 = vunpack.c.l.b16 %v169
    %v574 = vunpack.c.h.b16 %v169
    %v575 = vunpack.c.l.b16 %v170
    %v576 = vunpack.c.h.b16 %v170
    %v577 = vunpack.c.l.b16 %v171
    %v578 = vunpack.c.h.b16 %v171
    %v579 = vunpack.c.l.b16 %v172
    %v580 = vunpack.c.h.b16 %v172
    %v581 = vunpack.c.l.b16 %v173
    %v582 = vunpack.c.h.b16 %v173
    %v583 = vunpack.c.l.b16 %v174
    %v584 = vunpack.c.h.b16 %v174
    %v585 = vunpack.c.l.b16 %v175
    %v586 = vunpack.c.h.b16 %v175
    %v587 = vunpack.c.l.b16 %v176
    %v588 = vunpack.c.h.b16 %v176
    %v589 = vunpack.c.l.b16 %v177
    %v590 = vunpack.c.h.b16 %v177
    %v591 = vunpack.c.l.b16 %v178
    %v592 = vunpack.c.h.b16 %v178
    %v593 = vunpack.c.l.b16 %v179
    %v594 = vunpack.c.h.b16 %v179
    %v595 = vunpack.c.l.b16 %v180
    %v596 = vunpack.c.h.b16 %v180
    %v597 = vunpack.c.l.b16 %v181
    %v598 = vunpack.c.h.b16 %v181
    %v599 = vunpack.c.l.b16 %v182
    %v600 = vunpack.c.h.b16 %v182
    %v601 = vunpack.c.l.b16 %v183
    %v602 = vunpack.c.h.b16 %v183
    %v603 = vunpack.c.l.b16 %v184
    %v604 = vunpack.c.h.b16 %v184
    %v605 = vunpack.c.l.b16 %v185
    %v606 = vunpack.c.h.b16 %v185
    %v607 = vunpack.c.l.b16 %v186
    %v608 = vunpack.c.h.b16 %v186
    %v609 = vunpack.c.l.b16 %v187
    %v610 = vunpack.c.h.b16 %v187
    %v611 = vunpack.c.l.b16 %v188
    %v612 = vunpack.c.h.b16 %v188
    %v613 = vunpack.c.l.b16 %v189
    %v614 = vunpack.c.h.b16 %v189
    %v615 = vunpack.c.l.b16 %v190
    %v616 = vunpack.c.h.b16 %v190
    %v617 = vunpack.c.l.b16 %v191
    %v618 = vunpack.c.h.b16 %v191
    %v619 = vunpack.c.l.b16 %v192
    %v620 = vunpack.c.h.b16 %v192
    %v621 = vunpack.c.l.b16 %v193
    %v622 = vunpack.c.h.b16 %v193
    %v623 = vunpack.c.l.b16 %v194
    %v624 = vunpack.c.h.b16 %v194
    %v625 = vunpack.c.l.b16 %v195
    %v626 = vunpack.c.h.b16 %v195
    %v627 = vunpack.c.l.b16 %v196
    %v628 = vunpack.c.h.b16 %v196
    %v629 = vunpack.c.l.b16 %v197
    %v630 = vunpack.c.h.b16 %v197
    %v631 = vunpack.c.l.b16 %v198
    %v632 = vunpack.c.h.b16 %v198
    %v633 = vunpack.c.l.b16 %v199
    %v634 = vunpack.c.h.b16 %v199
    %v635 = vunpack.c.l.b16 %v200
    %v636 = vunpack.c.h.b16 %v200
    %v637 = vunpack.c.l.b16 %v201
    %v638 = vunpack.c.h.b16 %v201
    %v639 = vunpack.c.l.b16 %v202
    %v640 = vunpack.c.h.b16 %v202
    %v641 = vunpack.c.l.b16 %v203
    %v642 = vunpack.c.h.b16 %v203
    %v643 = vunpack.c.l.b16 %v204
    %v644 = vunpack.c.h.b16 %v204
    %v645 = vunpack.c.l.b16 %v205
    %v646 = vunpack.c.h.b16 %v205
    %v647 = vunpack.c.l.b16 %v206
    %v648 = vunpack.c.h.b16 %v206
    %v649 = vunpack.c.l.b16 %v207
    %v650 = vunpack.c.h.b16 %v207
    %v651 = vunpack.c.l.b16 %v208
    %v652 = vunpack.c.h.b16 %v208
    %v653 = vunpack.c.l.b16 %v209
    %v654 = vunpack.c.h.b16 %v209
    %v655 = vunpack.c.l.b16 %v210
    %v656 = vunpack.c.h.b16 %v210
    %v657 = vunpack.c.l.b16 %v211
    %v658 = vunpack.c.h.b16 %v211
    %v659 = vunpack.c.l.b16 %v212
    %v660 = vunpack.c.h.b16 %v212
    %v661 = vunpack.c.l.b16 %v213
    %v662 = vunpack.c.h.b16 %v213
    %v663 = vunpack.c.l.b16 %v214
    %v664 = vunpack.c.h.b16 %v214
    %v665 = vunpack.c.l.b16 %v215
    %v666 = vunpack.c.h.b16 %v215
    %v667 = vunpack.c.l.b16 %v216
    %v668 = vunpack.c.h.b16 %v216
    %v669 = vunpack.c.l.b16 %v217
    %v670 = vunpack.c.h.b16 %v217
    %v671 = vunpack.c.l.b16 %v218
    %v672 = vunpack.c.h.b16 %v218
    %v673 = vunpack.c.l.b16 %v219
    %v674 = vunpack.c.h.b16 %v219
    %v675 = vunpack.c.l.b16 %v220
    %v676 = vunpack.c.h.b16 %v220
    %v677 = vunpack.c.l.b16 %v221
    %v678 = vunpack.c.h.b16 %v221
    %v679 = vunpack.c.l.b16 %v222
    %v680 = vunpack.c.h.b16 %v222
    %v681 = vunpack.c.l.b16 %v223
    %v682 = vunpack.c.h.b16 %v223
    %v683 = vunpack.c.l.b16 %v224
    %v684 = vunpack.c.h.b16 %v224
    %v685 = vunpack.c.l.b16 %v225
    %v686 = vunpack.c.h.b16 %v225
    %v687 = vunpack.c.l.b16 %v226
    %v688 = vunpack.c.h.b16 %v226
    %v689 = vunpack.c.l.b16 %v227
    %v690 = vunpack.c.h.b16 %v227
    %v691 = vunpack.c.l.b16 %v228
    %v692 = vunpack.c.h.b16 %v228
    %v693 = vunpack.c.l.b16 %v229
    %v694 = vunpack.c.h.b16 %v229
    %v695 = vunpack.c.l.b16 %v230
    %v696 = vunpack.c.h.b16 %v230
    %v697 = vunpack.c.l.b16 %v231
    %v698 = vunpack.c.h.b16 %v231
    %v699 = vunpack.c.l.b16 %v232
    %v700 = vunpack.c.h.b16 %v232
    %v701 = vunpack.c.l.b16 %v233
    %v702 = vunpack.c.h.b16 %v233
    %v703 = vunpack.c.l.b16 %v234
    %v704 = vunpack.c.h.b16 %v234
    %v705 = vunpack.c.l.b16 %v235
    %v706 = vunpack.c.h.b16 %v235
    %v707 = vunpack.c.l.b16 %v236
    %v708 = vunpack.c.h.b16 %v236
    %v709 = vunpack.c.l.b16 %v237
    %v710 = vunpack.c.h.b16 %v237
    %v711 = vunpack.c.l.b16 %v238
    %v712 = vunpack.c.h.b16 %v238
    %v713 = vunpack.c.l.b16 %v239
    %v714 = vunpack.c.h.b16 %v239
    %v715 = vunpack.c.l.b16 %v240
    %v716 = vunpack.c.h.b16 %v240
    %v717 = vunpack.c.l.b16 %v241
    %v718 = vunpack.c.h.b16 %v241
    %v719 = vunpack.c.l.b16 %v242
    %v720 = vunpack.c.h.b16 %v242
    %v721 = vunpack.c.l.b16 %v243
    %v722 = vunpack.c.h.b16 %v243
    %v723 = vunpack.c.l.b16 %v244
    %v724 = vunpack.c.h.b16 %v244
    %v725 = vunpack.c.l.b16 %v245
    %v726 = vunpack.c.h.b16 %v245
    %v727 = vunpack.c.l.b16 %v246
    %v728 = vunpack.c.h.b16 %v246
    %v729 = vunpack.c.l.b16 %v247
    %v730 = vunpack.c.h.b16 %v247
    %v731 = vunpack.c.l.b16 %v248
    %v732 = vunpack.c.h.b16 %v248
    %v733 = vunpack.c.l.b16 %v249
    %v734 = vunpack.c.h.b16 %v249
    %v735 = vunpack.c.l.b16 %v250
    %v736 = vunpack.c.h.b16 %v250
    %v737 = vunpack.c.l.b16 %v251
    %v738 = vunpack.c.h.b16 %v251
    %v739 = vunpack.c.l.b16 %v252
    %v740 = vunpack.c.h.b16 %v252
    %v741 = vunpack.c.l.b16 %v253
    %v742 = vunpack.c.h.b16 %v253
    %v743 = vunpack.c.l.b16 %v254
    %v744 = vunpack.c.h.b16 %v254
    %v745 = vunpack.c.l.b16 %v255
    %v746 = vunpack.c.h.b16 %v255
    %v747 = vunpack.c.l.b16 %v256
    %v748 = vunpack.c.h.b16 %v256
    %v749 = vunpack.c.l.b16 %v257
    %v750 = vunpack.c.h.b16 %v257
    %v751 = vunpack.c.l.b16 %v258
    %v752 = vunpack.c.h.b16 %v258
    %v753 = vunpack.c.l.b16 %v259
    %v754 = vunpack.c.h.b16 %v259
    %v755 = vunpack.c.l.b16 %v260
    %v756 = vunpack.c.h.b16 %v260
    %v757 = vunpack.c.l.b16 %v261
    %v758 = vunpack.c.h.b16 %v261
    %v759 = vunpack.c.l.b16 %v262
    %v760 = vunpack.c.h.b16 %v262
    %v761 = vunpack.c.l.b16 %v263
    %v762 = vunpack.c.h.b16 %v263
    %v763 = vunpack.c.l.b16 %v264
    %v764 = vunpack.c.h.b16 %v264
    %v765 = vunpack.c.l.b16 %v265
    %v766 = vunpack.c.h.b16 %v265
    %v767 = vunpack.c.l.b16 %v266
    %v768 = vunpack.c.h.b16 %v266
    %v769 = vunpack.c.l.b16 %v267
    %v770 = vunpack.c.h.b16 %v267
    %v771 = vunpack.c.l.b16 %v268
    %v772 = vunpack.c.h.b16 %v268
    %v773 = vunpack.c.l.b16 %v269
    %v774 = vunpack.c.h.b16 %v269
    %v775 = vunpack.c.l.b16 %v270
    %v776 = vunpack.c.h.b16 %v270
    %v777 = vunpack.c.l.b16 %v271
    %v778 = vunpack.c.h.b16 %v271
    %v779 = vunpack.c.l.b16 %v272
    %v780 = vunpack.c.h.b16 %v272
    %v781 = vunpack.c.l.b16 %v273
    %v782 = vunpack.c.h.b16 %v273
    %v783 = vunpack.c.l.b16 %v274
    %v784 = vunpack.c.h.b16 %v274
    %v785 = vunpack.c.l.b16 %v275
    %v786 = vunpack.c.h.b16 %v275
    %v787 = vunpack.c.l.b16 %v276
    %v788 = vunpack.c.h.b16 %v276
    %v789 = vunpack.c.l.b16 %v277
    %v790 = vunpack.c.h.b16 %v277
    %v791 = vunpack.c.l.b16 %v278
    %v792 = vunpack.c.h.b16 %v278
    %v793 = vunpack.c.l.b16 %v279
    %v794 = vunpack.c.h.b16 %v279
    %v795 = vunpack.c.l.b16 %v280
    %v796 = vunpack.c.h.b16 %v280
    %v797 = vunpack.c.l.b16 %v281
    %v798 = vunpack.c.h.b16 %v281
    %v799 = vunpack.c.l.b16 %v282
    %v800 = vunpack.c.h.b16 %v282
    %v801 = vunpack.c.l.b16 %v283
    %v802 = vunpack.c.h.b16 %v283
    %v803 = vunpack.c.l.b16 %v284
    %v804 = vunpack.c.h.b16 %v284
    %v805 = vpack.c.b16 %v529, %v517
    %v806 = vpack.c.b16 %v530, %v518
    %v807 = vpack.c.b16 %v531, %v519
    %v808 = vpack.c.b16 %v532, %v520
    %v809 = vpack.c.b16 %v533, %v521
    %v810 = vpack.c.b16 %v534, %v522
    %v811 = vpack.c.b16 %v535, %v523
    %v812 = vpack.c.b16 %v536, %v524
    %v813 = vpack.c.b16 %v537, %v525
    %v814 = vpack.c.b16 %v538, %v526
    %v815 = vpack.c.b16 %v539, %v527
    %v816 = vpack.c.b16 %v540, %v528
    %v817 = vpack.c.b16 %v553, %v541
    %v818 = vpack.c.b16 %v554, %v542
    %v819 = vpack.c.b16 %v555, %v543
    %v820 = vpack.c.b16 %v556, %v544
    %v821 = vpack.c.b16 %v557, %v545
    %v822 = vpack.c.b16 %v558, %v546
    %v823 = vpack.c.b16 %v559, %v547
    %v824 = vpack.c.b16 %v560, %v548
    %v825 = vpack.c.b16 %v561, %v549
    %v826 = vpack.c.b16 %v562, %v550
    %v827 = vpack.c.b16 %v563, %v551
    %v828 = vpack.c.b16 %v564, %v552
    %v829 = vpack.c.b16 %v577, %v565
    %v830 = vpack.c.b16 %v578, %v566
    %v831 = vpack.c.b16 %v579, %v567
    %v832 = vpack.c.b16 %v580, %v568
    %v833 = vpack.c.b16 %v581, %v569
    %v834 = vpack.c.b16 %v582, %v570
    %v835 = vpack.c.b16 %v583, %v571
    %v836 = vpack.c.b16 %v584, %v572
    %v837 = vpack.c.b16 %v585, %v573
    %v838 = vpack.c.b16 %v586, %v574
    %v839 = vpack.c.b16 %v587, %v575
    %v840 = vpack.c.b16 %v588, %v576
    %v841 = vpack.c.b16 %v601, %v589
    %v842 = vpack.c.b16 %v602, %v590
    %v843 = vpack.c.b16 %v603, %v591
    %v844 = vpack.c.b16 %v604, %v592
    %v845 = vpack.c.b16 %v605, %v593
    %v846 = vpack.c.b16 %v606, %v594
    %v847 = vpack.c.b16 %v607, %v595
    %v848 = vpack.c.b16 %v608, %v596
    %v849 = vpack.c.b16 %v609, %v597
    %v850 = vpack.c.b16 %v610, %v598
    %v851 = vpack.c.b16 %v611, %v599
    %v852 = vpack.c.b16 %v612, %v600
    %v853 = vpack.c.b16 %v625, %v613
    %v854 = vpack.c.b16 %v626, %v614
    %v855 = vpack.c.b16 %v627, %v615
    %v856 = vpack.c.b16 %v628, %v616
    %v857 = vpack.c.b16 %v629, %v617
    %v858 = vpack.c.b16 %v630, %v618
    %v859 = vpack.c.b16 %v631, %v619
    %v860 = vpack.c.b16 %v632, %v620
    %v861 = vpack.c.b16 %v633, %v621
    %v862 = vpack.c.b16 %v634, %v622
    %v863 = vpack.c.b16 %v635, %v623
    %v864 = vpack.c.b16 %v636, %v624
    %v865 = vpack.c.b16 %v649, %v637
    %v866 = vpack.c.b16 %v650, %v638
    %v867 = vpack.c.b16 %v651, %v639
    %v868 = vpack.c.b16 %v652, %v640
    %v869 = vpack.c.b16 %v653, %v641
    %v870 = vpack.c.b16 %v654, %v642
    %v871 = vpack.c.b16 %v655, %v643
    %v872 = vpack.c.b16 %v656, %v644
    %v873 = vpack.c.b16 %v657, %v645
    %v874 = vpack.c.b16 %v658, %v646
    %v875 = vpack.c.b16 %v659, %v647
    %v876 = vpack.c.b16 %v660, %v648
    %v877 = vpack.c.b16 %v673, %v661
    %v878 = vpack.c.b16 %v674, %v662
    %v879 = vpack.c.b16 %v675, %v663
    %v880 = vpack.c.b16 %v676, %v664
    %v881 = vpack.c.b16 %v677, %v665
    %v882 = vpack.c.b16 %v678, %v666
    %v883 = vpack.c.b16 %v679, %v667
    %v884 = vpack.c.b16 %v680, %v668
    %v885 = vpack.c.b16 %v681, %v669
    %v886 = vpack.c.b16 %v682, %v670
    %v887 = vpack.c.b16 %v683, %v671
    %v888 = vpack.c.b16 %v684, %v672
    %v889 = vpack.c.b16 %v697, %v685
    %v890 = vpack.c.b16 %v698, %v686
    %v891 = vpack.c.b16 %v699, %v687
    %v892 = vpack.c.b16 %v700, %v688
    %v893 = vpack.c.b16 %v701, %v689
    %v894 = vpack.c.b16 %v702, %v690
    %v895 = vpack.c.b16 %v703, %v691
    %v896 = vpack.c.b16 %v704, %v692
    %v897 = vpack.c.b16 %v705, %v693
    %v898 = vpack.c.b16 %v706, %v694
    %v899 = vpack.c.b16 %v707, %v695
    %v900 = vpack.c.b16 %v708, %v696
    %v901 = vpack.c.b16 %v721, %v709
    %v902 = vpack.c.b16 %v722, %v710
    %v903 = vpack.c.b16 %v723, %v711
    %v904 = vpack.c.b16 %v724, %v712
    %v905 = vpack.c.b16 %v725, %v713
    %v906 = vpack.c.b16 %v726, %v714
    %v907 = vpack.c.b16 %v727, %v715
    %v908 = vpack.c.b16 %v728, %v716
    %v909 = vpack.c.b16 %v729, %v717
    %v910 = vpack.c.b16 %v730, %v718
    %v911 = vpack.c.b16 %v731, %v719
    %v912 = vpack.c.b16 %v732, %v720
    %v913 = vpack.c.b16 %v745, %v733
    %v914 = vpack.c.b16 %v746, %v734
    %v915 = vpack.c.b16 %v747, %v735
    %v916 = vpack.c.b16 %v748, %v736
    %v917 = vpack.c.b16 %v749, %v737
    %v918 = vpack.c.b16 %v750, %v738
    %v919 = vpack.c.b16 %v751, %v739
    %v920 = vpack.c.b16 %v752, %v740
    %v921 = vpack.c.b16 %v753, %v741
    %v922 = vpack.c.b16 %v754, %v742
    %v923 = vpack.c.b16 %v755, %v743
    %v924 = vpack.c.b16 %v756, %v744
    %v925 = vpack.c.b16 %v769, %v757
    %v926 = vpack.c.b16 %v770, %v758
    %v927 = vpack.c.b16 %v771, %v759
    %v928 = vpack.c.b16 %v772, %v760
    %v929 = vpack.c.b16 %v773, %v761
    %v930 = vpack.c.b16 %v774, %v762
    %v931 = vpack.c.b16 %v775, %v763
    %v932 = vpack.c.b16 %v776, %v764
    %v933 = vpack.c.b16 %v777, %v765
    %v934 = vpack.c.b16 %v778, %v766
    %v935 = vpack.c.b16 %v779, %v767
    %v936 = vpack.c.b16 %v780, %v768
    %v937 = vpack.c.b16 %v793, %v781
    %v938 = vpack.c.b16 %v794, %v782
    %v939 = vpack.c.b16 %v795, %v783
    %v940 = vpack.c.b16 %v796, %v784
    %v941 = vpack.c.b16 %v797, %v785
    %v942 = vpack.c.b16 %v798, %v786
    %v943 = vpack.c.b16 %v799, %v787
    %v944 = vpack.c.b16 %v800, %v788
    %v945 = vpack.c.b16 %v801, %v789
    %v946 = vpack.c.b16 %v802, %v790
    %v947 = vpack.c.b16 %v803, %v791
    %v948 = vpack.c.b16 %v804, %v792
    %vm1081 = vcmask 506880
    %v1083 = vsel %vm1081, %v371, 0
    %vm1085 = vcmask 1046528
    %v1087 = vsel %vm1085, %v937, 0
    %v1090 = vsel %vm1085, %v938, 0
    %v1093 = vsel %vm1085, %v939, 0
    %v1096 = vsel %vm1085, %v940, 0
    %v1099 = vsel %vm1085, %v941, 0
    %v1102 = vsel %vm1085, %v942, 0
    %v1105 = vsel %vm1085, %v943, 0
    %v1108 = vsel %vm1085, %v944, 0
    %v1111 = vsel %vm1085, %v945, 0
    %v1114 = vsel %vm1085, %v946, 0
    %v1117 = vsel %vm1085, %v947, 0
    %v1120 = vsel %vm1085, %v948, 0
    %1122 = vmatprep.subr.bf16.mxu0 %v806
    %1123 = vmatpush1.bf16.msra.mxu0 %v805
    %1124 = vmatprep.subr.bf16.mxu0 %v818
    %1125 = vmatpush1.bf16.msra.mxu0 %v817
    %1126 = vmatprep.subr.bf16.mxu0 %v830
    %1127 = vmatpush1.bf16.msra.mxu0 %v829
    %1128 = vmatprep.subr.bf16.mxu0 %v842
    %1129 = vmatpush1.bf16.msra.mxu0 %v841
    %1130 = vmatprep.subr.bf16.mxu0 %v854
    %1131 = vmatpush1.bf16.msra.mxu0 %v853
    %1132 = vmatprep.subr.bf16.mxu0 %v866
    %1133 = vmatpush1.bf16.msra.mxu0 %v865
    %1134 = vmatprep.subr.bf16.mxu0 %v878
    %1135 = vmatpush1.bf16.msra.mxu0 %v877
    %1136 = vmatprep.subr.bf16.mxu0 %v890
    %1137 = vmatpush1.bf16.msra.mxu0 %v889
    %1138 = vmatprep.subr.bf16.mxu0 %v902
    %1139 = vmatpush1.bf16.msra.mxu0 %v901
    %1140 = vmatprep.subr.bf16.mxu0 %v914
    %1141 = vmatpush1.bf16.msra.mxu0 %v913
    %1142 = vmatprep.subr.bf16.mxu0 %v926
    %1143 = vmatpush1.bf16.msra.mxu0 %v925
    %1144 = vmatprep.subr.bf16.mxu0 %v1090
    %1145 = vmatpush1.bf16.msra.mxu0 %v1087
    %1146 = vmatprep.subr.bf16.mxu0 0
    %1147 = vmatpush1.bf16.msra.mxu0 0
    %1148 = vmatprep.subr.bf16.mxu0 0
    %1149 = vmatpush1.bf16.msra.mxu0 0
    %1150 = vmatprep.subr.bf16.mxu0 0
    %1151 = vmatpush1.bf16.msra.mxu0 0
    %1152 = vmatprep.subr.bf16.mxu0 0
    %1153 = vmatpush1.bf16.msra.mxu0 0
    %1154 = vmatprep.mubr.bf16.mxu0 %v1083
    %1155 = vmatmul.mubr.bf16.gmra.mrb[0].mxu0 %v364
    %v1156 = vpop.f32.mrb[0].mxu0
    %v1157 = vadd.f32 %v292, %v1156
    %v1158 = vpop.f32.mrb[0].mxu0
    %v1159 = vadd.f32 %v296, %v1158
    %v1160 = vpop.f32.mrb[0].mxu0
    %v1161 = vpop.f32.mrb[0].mxu0
    %1162 = vdwg.mxu0
    %1163 = vmatprep.subr.bf16.mxu0 %v808
    %1164 = vmatpush1.bf16.msra.mxu0 %v807
    %1165 = vmatprep.subr.bf16.mxu0 %v820
    %1166 = vmatpush1.bf16.msra.mxu0 %v819
    %1167 = vmatprep.subr.bf16.mxu0 %v832
    %1168 = vmatpush1.bf16.msra.mxu0 %v831
    %1169 = vmatprep.subr.bf16.mxu0 %v844
    %1170 = vmatpush1.bf16.msra.mxu0 %v843
    %1171 = vmatprep.subr.bf16.mxu0 %v856
    %1172 = vmatpush1.bf16.msra.mxu0 %v855
    %1173 = vmatprep.subr.bf16.mxu0 %v868
    %1174 = vmatpush1.bf16.msra.mxu0 %v867
    %1175 = vmatprep.subr.bf16.mxu0 %v880
    %1176 = vmatpush1.bf16.msra.mxu0 %v879
    %1177 = vmatprep.subr.bf16.mxu0 %v892
    %1178 = vmatpush1.bf16.msra.mxu0 %v891
    %1179 = vmatprep.subr.bf16.mxu0 %v904
    %1180 = vmatpush1.bf16.msra.mxu0 %v903
    %1181 = vmatprep.subr.bf16.mxu0 %v916
    %1182 = vmatpush1.bf16.msra.mxu0 %v915
    %1183 = vmatprep.subr.bf16.mxu0 %v928
    %1184 = vmatpush1.bf16.msra.mxu0 %v927
    %1185 = vmatprep.subr.bf16.mxu0 %v1096
    %1186 = vmatpush1.bf16.msra.mxu0 %v1093
    %1187 = vmatprep.subr.bf16.mxu0 0
    %1188 = vmatpush1.bf16.msra.mxu0 0
    %1189 = vmatprep.subr.bf16.mxu0 0
    %1190 = vmatpush1.bf16.msra.mxu0 0
    %1191 = vmatprep.subr.bf16.mxu0 0
    %1192 = vmatpush1.bf16.msra.mxu0 0
    %1193 = vmatprep.subr.bf16.mxu0 0
    %1194 = vmatpush1.bf16.msra.mxu0 0
    %1195 = vmatprep.mubr.bf16.mxu0 %v1083
    %1196 = vmatmul.mubr.bf16.gmra.mrb[0].mxu0 %v364
    %v1197 = vpop.f32.mrb[0].mxu0
    %v1198 = vadd.f32 %v300, %v1197
    %v1199 = vpop.f32.mrb[0].mxu0
    %v1200 = vadd.f32 %v304, %v1199
    %v1201 = vpop.f32.mrb[0].mxu0
    %v1202 = vpop.f32.mrb[0].mxu0
    %1203 = vdwg.mxu0
    %1204 = vmatprep.subr.bf16.mxu0 %v810
    %1205 = vmatpush1.bf16.msra.mxu0 %v809
    %1206 = vmatprep.subr.bf16.mxu0 %v822
    %1207 = vmatpush1.bf16.msra.mxu0 %v821
    %1208 = vmatprep.subr.bf16.mxu0 %v834
    %1209 = vmatpush1.bf16.msra.mxu0 %v833
    %1210 = vmatprep.subr.bf16.mxu0 %v846
    %1211 = vmatpush1.bf16.msra.mxu0 %v845
    %1212 = vmatprep.subr.bf16.mxu0 %v858
    %1213 = vmatpush1.bf16.msra.mxu0 %v857
    %1214 = vmatprep.subr.bf16.mxu0 %v870
    %1215 = vmatpush1.bf16.msra.mxu0 %v869
    %1216 = vmatprep.subr.bf16.mxu0 %v882
    %1217 = vmatpush1.bf16.msra.mxu0 %v881
    %1218 = vmatprep.subr.bf16.mxu0 %v894
    %1219 = vmatpush1.bf16.msra.mxu0 %v893
    %1220 = vmatprep.subr.bf16.mxu0 %v906
    %1221 = vmatpush1.bf16.msra.mxu0 %v905
    %1222 = vmatprep.subr.bf16.mxu0 %v918
    %1223 = vmatpush1.bf16.msra.mxu0 %v917
    %1224 = vmatprep.subr.bf16.mxu0 %v930
    %1225 = vmatpush1.bf16.msra.mxu0 %v929
    %1226 = vmatprep.subr.bf16.mxu0 %v1102
    %1227 = vmatpush1.bf16.msra.mxu0 %v1099
    %1228 = vmatprep.subr.bf16.mxu0 0
    %1229 = vmatpush1.bf16.msra.mxu0 0
    %1230 = vmatprep.subr.bf16.mxu0 0
    %1231 = vmatpush1.bf16.msra.mxu0 0
    %1232 = vmatprep.subr.bf16.mxu0 0
    %1233 = vmatpush1.bf16.msra.mxu0 0
    %1234 = vmatprep.subr.bf16.mxu0 0
    %1235 = vmatpush1.bf16.msra.mxu0 0
    %1236 = vmatprep.mubr.bf16.mxu0 %v1083
    %1237 = vmatmul.mubr.bf16.gmra.mrb[0].mxu0 %v364
    %v1238 = vpop.f32.mrb[0].mxu0
    %v1239 = vadd.f32 %v308, %v1238
    %v1240 = vpop.f32.mrb[0].mxu0
    %v1241 = vadd.f32 %v312, %v1240
    %v1242 = vpop.f32.mrb[0].mxu0
    %v1243 = vpop.f32.mrb[0].mxu0
    %1244 = vdwg.mxu0
    %1245 = vmatprep.subr.bf16.mxu0 %v812
    %1246 = vmatpush1.bf16.msra.mxu0 %v811
    %1247 = vmatprep.subr.bf16.mxu0 %v824
    %1248 = vmatpush1.bf16.msra.mxu0 %v823
    %1249 = vmatprep.subr.bf16.mxu0 %v836
    %1250 = vmatpush1.bf16.msra.mxu0 %v835
    %1251 = vmatprep.subr.bf16.mxu0 %v848
    %1252 = vmatpush1.bf16.msra.mxu0 %v847
    %1253 = vmatprep.subr.bf16.mxu0 %v860
    %1254 = vmatpush1.bf16.msra.mxu0 %v859
    %1255 = vmatprep.subr.bf16.mxu0 %v872
    %1256 = vmatpush1.bf16.msra.mxu0 %v871
    %1257 = vmatprep.subr.bf16.mxu0 %v884
    %1258 = vmatpush1.bf16.msra.mxu0 %v883
    %1259 = vmatprep.subr.bf16.mxu0 %v896
    %1260 = vmatpush1.bf16.msra.mxu0 %v895
    %1261 = vmatprep.subr.bf16.mxu0 %v908
    %1262 = vmatpush1.bf16.msra.mxu0 %v907
    %1263 = vmatprep.subr.bf16.mxu0 %v920
    %1264 = vmatpush1.bf16.msra.mxu0 %v919
    %1265 = vmatprep.subr.bf16.mxu0 %v932
    %1266 = vmatpush1.bf16.msra.mxu0 %v931
    %1267 = vmatprep.subr.bf16.mxu0 %v1108
    %1268 = vmatpush1.bf16.msra.mxu0 %v1105
    %1269 = vmatprep.subr.bf16.mxu0 0
    %1270 = vmatpush1.bf16.msra.mxu0 0
    %1271 = vmatprep.subr.bf16.mxu0 0
    %1272 = vmatpush1.bf16.msra.mxu0 0
    %1273 = vmatprep.subr.bf16.mxu0 0
    %1274 = vmatpush1.bf16.msra.mxu0 0
    %1275 = vmatprep.subr.bf16.mxu0 0
    %1276 = vmatpush1.bf16.msra.mxu0 0
    %1277 = vmatprep.mubr.bf16.mxu0 %v1083
    %1278 = vmatmul.mubr.bf16.gmra.mrb[0].mxu0 %v364
    %v1279 = vpop.f32.mrb[0].mxu0
    %v1280 = vadd.f32 %v316, %v1279
    %v1281 = vpop.f32.mrb[0].mxu0
    %v1282 = vadd.f32 %v320, %v1281
    %v1283 = vpop.f32.mrb[0].mxu0
    %v1284 = vpop.f32.mrb[0].mxu0
    %1285 = vdwg.mxu0
    %1286 = vmatprep.subr.bf16.mxu0 %v814
    %1287 = vmatpush1.bf16.msra.mxu0 %v813
    %1288 = vmatprep.subr.bf16.mxu0 %v826
    %1289 = vmatpush1.bf16.msra.mxu0 %v825
    %1290 = vmatprep.subr.bf16.mxu0 %v838
    %1291 = vmatpush1.bf16.msra.mxu0 %v837
    %1292 = vmatprep.subr.bf16.mxu0 %v850
    %1293 = vmatpush1.bf16.msra.mxu0 %v849
    %1294 = vmatprep.subr.bf16.mxu0 %v862
    %1295 = vmatpush1.bf16.msra.mxu0 %v861
    %1296 = vmatprep.subr.bf16.mxu0 %v874
    %1297 = vmatpush1.bf16.msra.mxu0 %v873
    %1298 = vmatprep.subr.bf16.mxu0 %v886
    %1299 = vmatpush1.bf16.msra.mxu0 %v885
    %1300 = vmatprep.subr.bf16.mxu0 %v898
    %1301 = vmatpush1.bf16.msra.mxu0 %v897
    %1302 = vmatprep.subr.bf16.mxu0 %v910
    %1303 = vmatpush1.bf16.msra.mxu0 %v909
    %1304 = vmatprep.subr.bf16.mxu0 %v922
    %1305 = vmatpush1.bf16.msra.mxu0 %v921
    %1306 = vmatprep.subr.bf16.mxu0 %v934
    %1307 = vmatpush1.bf16.msra.mxu0 %v933
    %1308 = vmatprep.subr.bf16.mxu0 %v1114
    %1309 = vmatpush1.bf16.msra.mxu0 %v1111
    %1310 = vmatprep.subr.bf16.mxu0 0
    %1311 = vmatpush1.bf16.msra.mxu0 0
    %1312 = vmatprep.subr.bf16.mxu0 0
    %1313 = vmatpush1.bf16.msra.mxu0 0
    %1314 = vmatprep.subr.bf16.mxu0 0
    %1315 = vmatpush1.bf16.msra.mxu0 0
    %1316 = vmatprep.subr.bf16.mxu0 0
    %1317 = vmatpush1.bf16.msra.mxu0 0
    %1318 = vmatprep.mubr.bf16.mxu0 %v1083
    %1319 = vmatmul.mubr.bf16.gmra.mrb[0].mxu0 %v364
    %v1320 = vpop.f32.mrb[0].mxu0
    %v1321 = vadd.f32 %v324, %v1320
    %v1322 = vpop.f32.mrb[0].mxu0
    %v1323 = vadd.f32 %v328, %v1322
    %v1324 = vpop.f32.mrb[0].mxu0
    %v1325 = vpop.f32.mrb[0].mxu0
    %1326 = vdwg.mxu0
    %1327 = vmatprep.subr.bf16.mxu0 %v816
    %1328 = vmatpush1.bf16.msra.mxu0 %v815
    %1329 = vmatprep.subr.bf16.mxu0 %v828
    %1330 = vmatpush1.bf16.msra.mxu0 %v827
    %1331 = vmatprep.subr.bf16.mxu0 %v840
    %1332 = vmatpush1.bf16.msra.mxu0 %v839
    %1333 = vmatprep.subr.bf16.mxu0 %v852
    %1334 = vmatpush1.bf16.msra.mxu0 %v851
    %1335 = vmatprep.subr.bf16.mxu0 %v864
    %1336 = vmatpush1.bf16.msra.mxu0 %v863
    %1337 = vmatprep.subr.bf16.mxu0 %v876
    %1338 = vmatpush1.bf16.msra.mxu0 %v875
    %1339 = vmatprep.subr.bf16.mxu0 %v888
    %1340 = vmatpush1.bf16.msra.mxu0 %v887
    %1341 = vmatprep.subr.bf16.mxu0 %v900
    %1342 = vmatpush1.bf16.msra.mxu0 %v899
    %1343 = vmatprep.subr.bf16.mxu0 %v912
    %1344 = vmatpush1.bf16.msra.mxu0 %v911
    %1345 = vmatprep.subr.bf16.mxu0 %v924
    %1346 = vmatpush1.bf16.msra.mxu0 %v923
    %1347 = vmatprep.subr.bf16.mxu0 %v936
    %1348 = vmatpush1.bf16.msra.mxu0 %v935
    %1349 = vmatprep.subr.bf16.mxu0 %v1120
    %1350 = vmatpush1.bf16.msra.mxu0 %v1117
    %1351 = vmatprep.subr.bf16.mxu0 0
    %1352 = vmatpush1.bf16.msra.mxu0 0
    %1353 = vmatprep.subr.bf16.mxu0 0
    %1354 = vmatpush1.bf16.msra.mxu0 0
    %1355 = vmatprep.subr.bf16.mxu0 0
    %1356 = vmatpush1.bf16.msra.mxu0 0
    %1357 = vmatprep.subr.bf16.mxu0 0
    %1358 = vmatpush1.bf16.msra.mxu0 0
    %1359 = vmatprep.mubr.bf16.mxu0 %v1083
    %1360 = vmatmul.mubr.bf16.gmra.mrb[0].mxu0 %v364
    %v1361 = vpop.f32.mrb[0].mxu0
    %v1362 = vadd.f32 %v332, %v1361
    %v1363 = vpop.f32.mrb[0].mxu0
    %v1364 = vadd.f32 %v336, %v1363
    %v1365 = vpop.f32.mrb[0].mxu0
    %v1366 = vpop.f32.mrb[0].mxu0
    %1367 = vdwg.mxu0
    %v1368 = vmax.f32 %v1157, 0.0
    %v1369 = vmax.f32 %v1159, 0.0
    %v1370 = vmax.f32 %v1198, 0.0
    %v1371 = vmax.f32 %v1200, 0.0
    %v1372 = vmax.f32 %v1239, 0.0
    %v1373 = vmax.f32 %v1241, 0.0
    %v1374 = vmax.f32 %v1280, 0.0
    %v1375 = vmax.f32 %v1282, 0.0
    %v1376 = vmax.f32 %v1321, 0.0
    %v1377 = vmax.f32 %v1323, 0.0
    %v1378 = vmax.f32 %v1362, 0.0
    %v1379 = vmax.f32 %v1364, 0.0
    %v1380 = vpack.c.bf16 %v1368, %v1368
    %v1381 = vpack.c.bf16 %v1369, %v1369
    %v1382 = vpack.c.bf16 %v1370, %v1370
    %v1383 = vpack.c.bf16 %v1371, %v1371
    %v1384 = vpack.c.bf16 %v1372, %v1372
    %v1385 = vpack.c.bf16 %v1373, %v1373
    %v1386 = vpack.c.bf16 %v1374, %v1374
    %v1387 = vpack.c.bf16 %v1375, %v1375
    %v1388 = vpack.c.bf16 %v1376, %v1376
    %v1389 = vpack.c.bf16 %v1377, %v1377
    %v1390 = vpack.c.bf16 %v1378, %v1378
    %v1391 = vpack.c.bf16 %v1379, %v1379
    %v1392 = vld [vmem:[#allocation4] sm:$0xff]
    %v1393 = vld [vmem:[#allocation4 + $0x8] sm:$0xff]
    %v1394 = vld [vmem:[#allocation4 + $0x10] sm:$0xf]
    %v1395 = vld [vmem:[#allocation4 + $0x14] sm:$0xff]
    %v1396 = vld [vmem:[#allocation4 + $0x1c] sm:$0xff]
    %v1397 = vld [vmem:[#allocation4 + $0x24] sm:$0xf]
    %v1398 = vld [vmem:[#allocation4 + $0x28] sm:$0xff]
    %v1399 = vld [vmem:[#allocation4 + $0x30] sm:$0xff]
    %v1400 = vld [vmem:[#allocation4 + $0x38] sm:$0xf]
    %v1401 = vld [vmem:[#allocation4 + $0x3c] sm:$0xff]
    %v1402 = vld [vmem:[#allocation4 + $0x44] sm:$0xff]
    %v1403 = vld [vmem:[#allocation4 + $0x4c] sm:$0xf]
    %v1404 = vld [vmem:[#allocation4 + $0x50] sm:$0xff]
    %v1405 = vld [vmem:[#allocation4 + $0x58] sm:$0xff]
    %v1406 = vld [vmem:[#allocation4 + $0x60] sm:$0xf]
    %v1407 = vld [vmem:[#allocation4 + $0x64] sm:$0xff]
    %v1408 = vld [vmem:[#allocation4 + $0x6c] sm:$0xff]
    %v1409 = vld [vmem:[#allocation4 + $0x74] sm:$0xf]
    %v1410 = vld [vmem:[#allocation4 + $0x78] sm:$0xff]
    %v1411 = vld [vmem:[#allocation4 + $0x80] sm:$0xff]
    %v1412 = vld [vmem:[#allocation4 + $0x88] sm:$0xf]
    %v1413 = vld [vmem:[#allocation4 + $0x8c] sm:$0xff]
    %v1414 = vld [vmem:[#allocation4 + $0x94] sm:$0xff]
    %v1415 = vld [vmem:[#allocation4 + $0x9c] sm:$0xf]
    %v1416 = vld [vmem:[#allocation4 + $0xa0] sm:$0xff]
    %v1417 = vld [vmem:[#allocation4 + $0xa8] sm:$0xff]
    %v1418 = vld [vmem:[#allocation4 + $0xb0] sm:$0xf]
    %v1419 = vld [vmem:[#allocation4 + $0xb4] sm:$0xff]
    %v1420 = vld [vmem:[#allocation4 + $0xbc] sm:$0xff]
    %v1421 = vld [vmem:[#allocation4 + $0xc4] sm:$0xf]
    %v1422 = vld [vmem:[#allocation4 + $0xc8] sm:$0xff]
    %v1423 = vld [vmem:[#allocation4 + $0xd0] sm:$0xff]
    %v1424 = vld [vmem:[#allocation4 + $0xd8] sm:$0xf]
    %v1425 = vld [vmem:[#allocation4 + $0xdc] sm:$0xff]
    %v1426 = vld [vmem:[#allocation4 + $0xe4] sm:$0xff]
    %v1427 = vld [vmem:[#allocation4 + $0xec] sm:$0xf]
    %v1428 = vld [vmem:[#allocation4 + $0xf0] sm:$0xff]
    %v1429 = vld [vmem:[#allocation4 + $0xf8] sm:$0xff]
    %v1430 = vld [vmem:[#allocation4 + $0x100] sm:$0xf]
    %v1431 = vld [vmem:[#allocation4 + $0x104] sm:$0xff]
    %v1432 = vld [vmem:[#allocation4 + $0x10c] sm:$0xff]
    %v1433 = vld [vmem:[#allocation4 + $0x114] sm:$0xf]
    %v1434 = vld [vmem:[#allocation4 + $0x118] sm:$0xff]
    %v1435 = vld [vmem:[#allocation4 + $0x120] sm:$0xff]
    %v1436 = vld [vmem:[#allocation4 + $0x128] sm:$0xf]
    %v1437 = vld [vmem:[#allocation4 + $0x12c] sm:$0xff]
    %v1438 = vld [vmem:[#allocation4 + $0x134] sm:$0xff]
    %v1439 = vld [vmem:[#allocation4 + $0x13c] sm:$0xf]
    %v1440 = vld [vmem:[#allocation4 + $0x140] sm:$0xff]
    %v1441 = vld [vmem:[#allocation4 + $0x148] sm:$0xff]
    %v1442 = vld [vmem:[#allocation4 + $0x150] sm:$0xf]
    %v1443 = vld [vmem:[#allocation4 + $0x154] sm:$0xff]
    %v1444 = vld [vmem:[#allocation4 + $0x15c] sm:$0xff]
    %v1445 = vld [vmem:[#allocation4 + $0x164] sm:$0xf]
    %v1446 = vld [vmem:[#allocation4 + $0x168] sm:$0xff]
    %v1447 = vld [vmem:[#allocation4 + $0x170] sm:$0xff]
    %v1448 = vld [vmem:[#allocation4 + $0x178] sm:$0xf]
    %v1449 = vld [vmem:[#allocation4 + $0x17c] sm:$0xff]
    %v1450 = vld [vmem:[#allocation4 + $0x184] sm:$0xff]
    %v1451 = vld [vmem:[#allocation4 + $0x18c] sm:$0xf]
    %v1452 = vld [vmem:[#allocation4 + $0x190] sm:$0xff]
    %v1453 = vld [vmem:[#allocation4 + $0x198] sm:$0xff]
    %v1454 = vld [vmem:[#allocation4 + $0x1a0] sm:$0xf]
    %v1455 = vld [vmem:[#allocation4 + $0x1a4] sm:$0xff]
    %v1456 = vld [vmem:[#allocation4 + $0x1ac] sm:$0xff]
    %v1457 = vld [vmem:[#allocation4 + $0x1b4] sm:$0xf]
    %v1458 = vld [vmem:[#allocation4 + $0x1b8] sm:$0xff]
    %v1459 = vld [vmem:[#allocation4 + $0x1c0] sm:$0xff]
    %v1460 = vld [vmem:[#allocation4 + $0x1c8] sm:$0xf]
    %v1461 = vld [vmem:[#allocation4 + $0x1cc] sm:$0xff]
    %v1462 = vld [vmem:[#allocation4 + $0x1d4] sm:$0xff]
    %v1463 = vld [vmem:[#allocation4 + $0x1dc] sm:$0xf]
    %v1464 = vld [vmem:[#allocation4 + $0x1e0] sm:$0xff]
    %v1465 = vld [vmem:[#allocation4 + $0x1e8] sm:$0xff]
    %v1466 = vld [vmem:[#allocation4 + $0x1f0] sm:$0xf]
    %v1467 = vld [vmem:[#allocation4 + $0x1f4] sm:$0xff]
    %v1468 = vld [vmem:[#allocation4 + $0x1fc] sm:$0xff]
    %v1469 = vld [vmem:[#allocation4 + $0x204] sm:$0xf]
    %v1470 = vld [vmem:[#allocation4 + $0x208] sm:$0xff]
    %v1471 = vld [vmem:[#allocation4 + $0x210] sm:$0xff]
    %v1472 = vld [vmem:[#allocation4 + $0x218] sm:$0xf]
    %v1473 = vld [vmem:[#allocation4 + $0x21c] sm:$0xff]
    %v1474 = vld [vmem:[#allocation4 + $0x224] sm:$0xff]
    %v1475 = vld [vmem:[#allocation4 + $0x22c] sm:$0xf]
    %v1476 = vld [vmem:[#allocation4 + $0x230] sm:$0xff]
    %v1477 = vld [vmem:[#allocation4 + $0x238] sm:$0xff]
    %v1478 = vld [vmem:[#allocation4 + $0x240] sm:$0xf]
    %v1479 = vld [vmem:[#allocation4 + $0x244] sm:$0xff]
    %v1480 = vld [vmem:[#allocation4 + $0x24c] sm:$0xff]
    %v1481 = vld [vmem:[#allocation4 + $0x254] sm:$0xf]
    %v1482 = vld [vmem:[#allocation4 + $0x258] sm:$0xff]
    %v1483 = vld [vmem:[#allocation4 + $0x260] sm:$0xff]
    %v1484 = vld [vmem:[#allocation4 + $0x268] sm:$0xf]
    %v1485 = vld [vmem:[#allocation4 + $0x26c] sm:$0xff]
    %v1486 = vld [vmem:[#allocation4 + $0x274] sm:$0xff]
    %v1487 = vld [vmem:[#allocation4 + $0x27c] sm:$0xf]
    %v1488 = vld [vmem:[#allocation4 + $0x280] sm:$0xff]
    %v1489 = vld [vmem:[#allocation4 + $0x288] sm:$0xff]
    %v1490 = vld [vmem:[#allocation4 + $0x290] sm:$0xf]
    %v1491 = vld [vmem:[#allocation4 + $0x294] sm:$0xff]
    %v1492 = vld [vmem:[#allocation4 + $0x29c] sm:$0xff]
    %v1493 = vld [vmem:[#allocation4 + $0x2a4] sm:$0xf]
    %v1494 = vld [vmem:[#allocation4 + $0x2a8] sm:$0xff]
    %v1495 = vld [vmem:[#allocation4 + $0x2b0] sm:$0xff]
    %v1496 = vld [vmem:[#allocation4 + $0x2b8] sm:$0xf]
    %v1497 = vld [vmem:[#allocation4 + $0x2bc] sm:$0xff]
    %v1498 = vld [vmem:[#allocation4 + $0x2c4] sm:$0xff]
    %v1499 = vld [vmem:[#allocation4 + $0x2cc] sm:$0xf]
    %v1500 = vld [vmem:[#allocation4 + $0x2d0] sm:$0xff]
    %v1501 = vld [vmem:[#allocation4 + $0x2d8] sm:$0xff]
    %v1502 = vld [vmem:[#allocation4 + $0x2e0] sm:$0xf]
    %v1503 = vld [vmem:[#allocation4 + $0x2e4] sm:$0xff]
    %v1504 = vld [vmem:[#allocation4 + $0x2ec] sm:$0xff]
    %v1505 = vld [vmem:[#allocation4 + $0x2f4] sm:$0xf]
    %v1506 = vld [vmem:[#allocation4 + $0x2f8] sm:$0xff]
    %v1507 = vld [vmem:[#allocation4 + $0x300] sm:$0xff]
    %v1508 = vld [vmem:[#allocation4 + $0x308] sm:$0xf]
    %v1509 = vld [vmem:[#allocation4 + $0x30c] sm:$0xff]
    %v1510 = vld [vmem:[#allocation4 + $0x314] sm:$0xff]
    %v1511 = vld [vmem:[#allocation4 + $0x31c] sm:$0xf]
    %v1512 = vld [vmem:[#allocation4 + $0x320] sm:$0xff]
    %v1513 = vld [vmem:[#allocation4 + $0x328] sm:$0xff]
    %v1514 = vld [vmem:[#allocation4 + $0x330] sm:$0xf]
    %v1515 = vld [vmem:[#allocation4 + $0x334] sm:$0xff]
    %v1516 = vld [vmem:[#allocation4 + $0x33c] sm:$0xff]
    %v1517 = vld [vmem:[#allocation4 + $0x344] sm:$0xf]
    %v1518 = vld [vmem:[#allocation4 + $0x348] sm:$0xff]
    %v1519 = vld [vmem:[#allocation4 + $0x350] sm:$0xff]
    %v1520 = vld [vmem:[#allocation4 + $0x358] sm:$0xf]
    %v1521 = vld [vmem:[#allocation4 + $0x35c] sm:$0xff]
    %v1522 = vld [vmem:[#allocation4 + $0x364] sm:$0xff]
    %v1523 = vld [vmem:[#allocation4 + $0x36c] sm:$0xf]
    %v1524 = vld [vmem:[#allocation4 + $0x370] sm:$0xff]
    %v1525 = vld [vmem:[#allocation4 + $0x378] sm:$0xff]
    %v1526 = vld [vmem:[#allocation4 + $0x380] sm:$0xf]
    %v1527 = vld [vmem:[#allocation4 + $0x384] sm:$0xff]
    %v1528 = vld [vmem:[#allocation4 + $0x38c] sm:$0xff]
    %v1529 = vld [vmem:[#allocation4 + $0x394] sm:$0xf]
    %v1530 = vld [vmem:[#allocation4 + $0x398] sm:$0xff]
    %v1531 = vld [vmem:[#allocation4 + $0x3a0] sm:$0xff]
    %v1532 = vld [vmem:[#allocation4 + $0x3a8] sm:$0xf]
    %v1533 = vld [vmem:[#allocation4 + $0x3ac] sm:$0xff]
    %v1534 = vld [vmem:[#allocation4 + $0x3b4] sm:$0xff]
    %v1535 = vld [vmem:[#allocation4 + $0x3bc] sm:$0xf]
    %v1536 = vld [vmem:[#allocation13 + $0xc] sm:$0x1f]
    %v1538 = vlaneseq
    %v1539 = vshrl.u32 %v1538, 7
    %v1540 = vsub.s32 0, %v1539
    %v1541 = vrot.slane %v1536, %v1540
    %v1542 = vlaneseq
    %v1543 = vshrl.u32 %v1542, 7
    %v1544 = vsub.s32 1, %v1543
    %v1545 = vrot.slane %v1536, %v1544
    %v1546 = vlaneseq
    %v1547 = vshrl.u32 %v1546, 7
    %v1548 = vsub.s32 2, %v1547
    %v1549 = vrot.slane %v1536, %v1548
    %v1550 = vlaneseq
    %v1551 = vshrl.u32 %v1550, 7
    %v1552 = vsub.s32 3, %v1551
    %v1553 = vrot.slane %v1536, %v1552
    %v1554 = vlaneseq
    %v1555 = vshrl.u32 %v1554, 7
    %v1556 = vsub.s32 4, %v1555
    %v1557 = vrot.slane %v1536, %v1556
    %v1707 = vunpack.c.l.b16 %v1392
    %v1708 = vunpack.c.h.b16 %v1392
    %v1709 = vunpack.c.l.b16 %v1393
    %v1710 = vunpack.c.h.b16 %v1393
    %v1711 = vunpack.c.l.b16 %v1394
    %v1712 = vunpack.c.l.b16 %v1395
    %v1713 = vunpack.c.h.b16 %v1395
    %v1714 = vunpack.c.l.b16 %v1396
    %v1715 = vunpack.c.h.b16 %v1396
    %v1716 = vunpack.c.l.b16 %v1397
    %v1717 = vunpack.c.l.b16 %v1398
    %v1718 = vunpack.c.h.b16 %v1398
    %v1719 = vunpack.c.l.b16 %v1399
    %v1720 = vunpack.c.h.b16 %v1399
    %v1721 = vunpack.c.l.b16 %v1400
    %v1722 = vunpack.c.l.b16 %v1401
    %v1723 = vunpack.c.h.b16 %v1401
    %v1724 = vunpack.c.l.b16 %v1402
    %v1725 = vunpack.c.h.b16 %v1402
    %v1726 = vunpack.c.l.b16 %v1403
    %v1727 = vunpack.c.l.b16 %v1404
    %v1728 = vunpack.c.h.b16 %v1404
    %v1729 = vunpack.c.l.b16 %v1405
    %v1730 = vunpack.c.h.b16 %v1405
    %v1731 = vunpack.c.l.b16 %v1406
    %v1732 = vunpack.c.l.b16 %v1407
    %v1733 = vunpack.c.h.b16 %v1407
    %v1734 = vunpack.c.l.b16 %v1408
    %v1735 = vunpack.c.h.b16 %v1408
    %v1736 = vunpack.c.l.b16 %v1409
    %v1737 = vunpack.c.l.b16 %v1410
    %v1738 = vunpack.c.h.b16 %v1410
    %v1739 = vunpack.c.l.b16 %v1411
    %v1740 = vunpack.c.h.b16 %v1411
    %v1741 = vunpack.c.l.b16 %v1412
    %v1742 = vunpack.c.l.b16 %v1413
    %v1743 = vunpack.c.h.b16 %v1413
    %v1744 = vunpack.c.l.b16 %v1414
    %v1745 = vunpack.c.h.b16 %v1414
    %v1746 = vunpack.c.l.b16 %v1415
    %v1747 = vunpack.c.l.b16 %v1416
    %v1748 = vunpack.c.h.b16 %v1416
    %v1749 = vunpack.c.l.b16 %v1417
    %v1750 = vunpack.c.h.b16 %v1417
    %v1751 = vunpack.c.l.b16 %v1418
    %v1752 = vunpack.c.l.b16 %v1419
    %v1753 = vunpack.c.h.b16 %v1419
    %v1754 = vunpack.c.l.b16 %v1420
    %v1755 = vunpack.c.h.b16 %v1420
    %v1756 = vunpack.c.l.b16 %v1421
    %v1757 = vunpack.c.l.b16 %v1422
    %v1758 = vunpack.c.h.b16 %v1422
    %v1759 = vunpack.c.l.b16 %v1423
    %v1760 = vunpack.c.h.b16 %v1423
    %v1761 = vunpack.c.l.b16 %v1424
    %v1762 = vunpack.c.l.b16 %v1425
    %v1763 = vunpack.c.h.b16 %v1425
    %v1764 = vunpack.c.l.b16 %v1426
    %v1765 = vunpack.c.h.b16 %v1426
    %v1766 = vunpack.c.l.b16 %v1427
    %v1767 = vunpack.c.l.b16 %v1428
    %v1768 = vunpack.c.h.b16 %v1428
    %v1769 = vunpack.c.l.b16 %v1429
    %v1770 = vunpack.c.h.b16 %v1429
    %v1771 = vunpack.c.l.b16 %v1430
    %v1772 = vunpack.c.l.b16 %v1431
    %v1773 = vunpack.c.h.b16 %v1431
    %v1774 = vunpack.c.l.b16 %v1432
    %v1775 = vunpack.c.h.b16 %v1432
    %v1776 = vunpack.c.l.b16 %v1433
    %v1777 = vunpack.c.l.b16 %v1434
    %v1778 = vunpack.c.h.b16 %v1434
    %v1779 = vunpack.c.l.b16 %v1435
    %v1780 = vunpack.c.h.b16 %v1435
    %v1781 = vunpack.c.l.b16 %v1436
    %v1782 = vunpack.c.l.b16 %v1437
    %v1783 = vunpack.c.h.b16 %v1437
    %v1784 = vunpack.c.l.b16 %v1438
    %v1785 = vunpack.c.h.b16 %v1438
    %v1786 = vunpack.c.l.b16 %v1439
    %v1787 = vunpack.c.l.b16 %v1440
    %v1788 = vunpack.c.h.b16 %v1440
    %v1789 = vunpack.c.l.b16 %v1441
    %v1790 = vunpack.c.h.b16 %v1441
    %v1791 = vunpack.c.l.b16 %v1442
    %v1792 = vunpack.c.l.b16 %v1443
    %v1793 = vunpack.c.h.b16 %v1443
    %v1794 = vunpack.c.l.b16 %v1444
    %v1795 = vunpack.c.h.b16 %v1444
    %v1796 = vunpack.c.l.b16 %v1445
    %v1797 = vunpack.c.l.b16 %v1446
    %v1798 = vunpack.c.h.b16 %v1446
    %v1799 = vunpack.c.l.b16 %v1447
    %v1800 = vunpack.c.h.b16 %v1447
    %v1801 = vunpack.c.l.b16 %v1448
    %v1802 = vunpack.c.l.b16 %v1449
    %v1803 = vunpack.c.h.b16 %v1449
    %v1804 = vunpack.c.l.b16 %v1450
    %v1805 = vunpack.c.h.b16 %v1450
    %v1806 = vunpack.c.l.b16 %v1451
    %v1807 = vunpack.c.l.b16 %v1452
    %v1808 = vunpack.c.h.b16 %v1452
    %v1809 = vunpack.c.l.b16 %v1453
    %v1810 = vunpack.c.h.b16 %v1453
    %v1811 = vunpack.c.l.b16 %v1454
    %v1812 = vunpack.c.l.b16 %v1455
    %v1813 = vunpack.c.h.b16 %v1455
    %v1814 = vunpack.c.l.b16 %v1456
    %v1815 = vunpack.c.h.b16 %v1456
    %v1816 = vunpack.c.l.b16 %v1457
    %v1817 = vunpack.c.l.b16 %v1458
    %v1818 = vunpack.c.h.b16 %v1458
    %v1819 = vunpack.c.l.b16 %v1459
    %v1820 = vunpack.c.h.b16 %v1459
    %v1821 = vunpack.c.l.b16 %v1460
    %v1822 = vunpack.c.l.b16 %v1461
    %v1823 = vunpack.c.h.b16 %v1461
    %v1824 = vunpack.c.l.b16 %v1462
    %v1825 = vunpack.c.h.b16 %v1462
    %v1826 = vunpack.c.l.b16 %v1463
    %v1827 = vunpack.c.l.b16 %v1464
    %v1828 = vunpack.c.h.b16 %v1464
    %v1829 = vunpack.c.l.b16 %v1465
    %v1830 = vunpack.c.h.b16 %v1465
    %v1831 = vunpack.c.l.b16 %v1466
    %v1832 = vunpack.c.l.b16 %v1467
    %v1833 = vunpack.c.h.b16 %v1467
    %v1834 = vunpack.c.l.b16 %v1468
    %v1835 = vunpack.c.h.b16 %v1468
    %v1836 = vunpack.c.l.b16 %v1469
    %v1837 = vunpack.c.l.b16 %v1470
    %v1838 = vunpack.c.h.b16 %v1470
    %v1839 = vunpack.c.l.b16 %v1471
    %v1840 = vunpack.c.h.b16 %v1471
    %v1841 = vunpack.c.l.b16 %v1472
    %v1842 = vunpack.c.l.b16 %v1473
    %v1843 = vunpack.c.h.b16 %v1473
    %v1844 = vunpack.c.l.b16 %v1474
    %v1845 = vunpack.c.h.b16 %v1474
    %v1846 = vunpack.c.l.b16 %v1475
    %v1847 = vunpack.c.l.b16 %v1476
    %v1848 = vunpack.c.h.b16 %v1476
    %v1849 = vunpack.c.l.b16 %v1477
    %v1850 = vunpack.c.h.b16 %v1477
    %v1851 = vunpack.c.l.b16 %v1478
    %v1852 = vunpack.c.l.b16 %v1479
    %v1853 = vunpack.c.h.b16 %v1479
    %v1854 = vunpack.c.l.b16 %v1480
    %v1855 = vunpack.c.h.b16 %v1480
    %v1856 = vunpack.c.l.b16 %v1481
    %v1857 = vunpack.c.l.b16 %v1482
    %v1858 = vunpack.c.h.b16 %v1482
    %v1859 = vunpack.c.l.b16 %v1483
    %v1860 = vunpack.c.h.b16 %v1483
    %v1861 = vunpack.c.l.b16 %v1484
    %v1862 = vunpack.c.l.b16 %v1485
    %v1863 = vunpack.c.h.b16 %v1485
    %v1864 = vunpack.c.l.b16 %v1486
    %v1865 = vunpack.c.h.b16 %v1486
    %v1866 = vunpack.c.l.b16 %v1487
    %v1867 = vunpack.c.l.b16 %v1488
    %v1868 = vunpack.c.h.b16 %v1488
    %v1869 = vunpack.c.l.b16 %v1489
    %v1870 = vunpack.c.h.b16 %v1489
    %v1871 = vunpack.c.l.b16 %v1490
    %v1872 = vunpack.c.l.b16 %v1491
    %v1873 = vunpack.c.h.b16 %v1491
    %v1874 = vunpack.c.l.b16 %v1492
    %v1875 = vunpack.c.h.b16 %v1492
    %v1876 = vunpack.c.l.b16 %v1493
    %v1877 = vunpack.c.l.b16 %v1494
    %v1878 = vunpack.c.h.b16 %v1494
    %v1879 = vunpack.c.l.b16 %v1495
    %v1880 = vunpack.c.h.b16 %v1495
    %v1881 = vunpack.c.l.b16 %v1496
    %v1882 = vunpack.c.l.b16 %v1497
    %v1883 = vunpack.c.h.b16 %v1497
    %v1884 = vunpack.c.l.b16 %v1498
    %v1885 = vunpack.c.h.b16 %v1498
    %v1886 = vunpack.c.l.b16 %v1499
    %v1887 = vunpack.c.l.b16 %v1500
    %v1888 = vunpack.c.h.b16 %v1500
    %v1889 = vunpack.c.l.b16 %v1501
    %v1890 = vunpack.c.h.b16 %v1501
    %v1891 = vunpack.c.l.b16 %v1502
    %v1892 = vunpack.c.l.b16 %v1503
    %v1893 = vunpack.c.h.b16 %v1503
    %v1894 = vunpack.c.l.b16 %v1504
    %v1895 = vunpack.c.h.b16 %v1504
    %v1896 = vunpack.c.l.b16 %v1505
    %v1897 = vunpack.c.l.b16 %v1506
    %v1898 = vunpack.c.h.b16 %v1506
    %v1899 = vunpack.c.l.b16 %v1507
    %v1900 = vunpack.c.h.b16 %v1507
    %v1901 = vunpack.c.l.b16 %v1508
    %v1902 = vunpack.c.l.b16 %v1509
    %v1903 = vunpack.c.h.b16 %v1509
    %v1904 = vunpack.c.l.b16 %v1510
    %v1905 = vunpack.c.h.b16 %v1510
    %v1906 = vunpack.c.l.b16 %v1511
    %v1907 = vunpack.c.l.b16 %v1512
    %v1908 = vunpack.c.h.b16 %v1512
    %v1909 = vunpack.c.l.b16 %v1513
    %v1910 = vunpack.c.h.b16 %v1513
    %v1911 = vunpack.c.l.b16 %v1514
    %v1912 = vunpack.c.l.b16 %v1515
    %v1913 = vunpack.c.h.b16 %v1515
    %v1914 = vunpack.c.l.b16 %v1516
    %v1915 = vunpack.c.h.b16 %v1516
    %v1916 = vunpack.c.l.b16 %v1517
    %v1917 = vunpack.c.l.b16 %v1518
    %v1918 = vunpack.c.h.b16 %v1518
    %v1919 = vunpack.c.l.b16 %v1519
    %v1920 = vunpack.c.h.b16 %v1519
    %v1921 = vunpack.c.l.b16 %v1520
    %v1922 = vunpack.c.l.b16 %v1521
    %v1923 = vunpack.c.h.b16 %v1521
    %v1924 = vunpack.c.l.b16 %v1522
    %v1925 = vunpack.c.h.b16 %v1522
    %v1926 = vunpack.c.l.b16 %v1523
    %v1927 = vunpack.c.l.b16 %v1524
    %v1928 = vunpack.c.h.b16 %v1524
    %v1929 = vunpack.c.l.b16 %v1525
    %v1930 = vunpack.c.h.b16 %v1525
    %v1931 = vunpack.c.l.b16 %v1526
    %v1932 = vunpack.c.l.b16 %v1527
    %v1933 = vunpack.c.h.b16 %v1527
    %v1934 = vunpack.c.l.b16 %v1528
    %v1935 = vunpack.c.h.b16 %v1528
    %v1936 = vunpack.c.l.b16 %v1529
    %v1937 = vunpack.c.l.b16 %v1530
    %v1938 = vunpack.c.h.b16 %v1530
    %v1939 = vunpack.c.l.b16 %v1531
    %v1940 = vunpack.c.h.b16 %v1531
    %v1941 = vunpack.c.l.b16 %v1532
    %v1942 = vunpack.c.l.b16 %v1533
    %v1943 = vunpack.c.h.b16 %v1533
    %v1944 = vunpack.c.l.b16 %v1534
    %v1945 = vunpack.c.h.b16 %v1534
    %v1946 = vunpack.c.l.b16 %v1535
    %v1947 = vpack.c.b16 %v1712, %v1707
    %v1948 = vpack.c.b16 %v1713, %v1708
    %v1949 = vpack.c.b16 %v1714, %v1709
    %v1950 = vpack.c.b16 %v1715, %v1710
    %v1951 = vpack.c.b16 %v1716, %v1711
    %v1952 = vpack.c.b16 %v1722, %v1717
    %v1953 = vpack.c.b16 %v1723, %v1718
    %v1954 = vpack.c.b16 %v1724, %v1719
    %v1955 = vpack.c.b16 %v1725, %v1720
    %v1956 = vpack.c.b16 %v1726, %v1721
    %v1957 = vpack.c.b16 %v1732, %v1727
    %v1958 = vpack.c.b16 %v1733, %v1728
    %v1959 = vpack.c.b16 %v1734, %v1729
    %v1960 = vpack.c.b16 %v1735, %v1730
    %v1961 = vpack.c.b16 %v1736, %v1731
    %v1962 = vpack.c.b16 %v1742, %v1737
    %v1963 = vpack.c.b16 %v1743, %v1738
    %v1964 = vpack.c.b16 %v1744, %v1739
    %v1965 = vpack.c.b16 %v1745, %v1740
    %v1966 = vpack.c.b16 %v1746, %v1741
    %v1967 = vpack.c.b16 %v1752, %v1747
    %v1968 = vpack.c.b16 %v1753, %v1748
    %v1969 = vpack.c.b16 %v1754, %v1749
    %v1970 = vpack.c.b16 %v1755, %v1750
    %v1971 = vpack.c.b16 %v1756, %v1751
    %v1972 = vpack.c.b16 %v1762, %v1757
    %v1973 = vpack.c.b16 %v1763, %v1758
    %v1974 = vpack.c.b16 %v1764, %v1759
    %v1975 = vpack.c.b16 %v1765, %v1760
    %v1976 = vpack.c.b16 %v1766, %v1761
    %v1977 = vpack.c.b16 %v1772, %v1767
    %v1978 = vpack.c.b16 %v1773, %v1768
    %v1979 = vpack.c.b16 %v1774, %v1769
    %v1980 = vpack.c.b16 %v1775, %v1770
    %v1981 = vpack.c.b16 %v1776, %v1771
    %v1982 = vpack.c.b16 %v1782, %v1777
    %v1983 = vpack.c.b16 %v1783, %v1778
    %v1984 = vpack.c.b16 %v1784, %v1779
    %v1985 = vpack.c.b16 %v1785, %v1780
    %v1986 = vpack.c.b16 %v1786, %v1781
    %v1987 = vpack.c.b16 %v1792, %v1787
    %v1988 = vpack.c.b16 %v1793, %v1788
    %v1989 = vpack.c.b16 %v1794, %v1789
    %v1990 = vpack.c.b16 %v1795, %v1790
    %v1991 = vpack.c.b16 %v1796, %v1791
    %v1992 = vpack.c.b16 %v1802, %v1797
    %v1993 = vpack.c.b16 %v1803, %v1798
    %v1994 = vpack.c.b16 %v1804, %v1799
    %v1995 = vpack.c.b16 %v1805, %v1800
    %v1996 = vpack.c.b16 %v1806, %v1801
    %v1997 = vpack.c.b16 %v1812, %v1807
    %v1998 = vpack.c.b16 %v1813, %v1808
    %v1999 = vpack.c.b16 %v1814, %v1809
    %v2000 = vpack.c.b16 %v1815, %v1810
    %v2001 = vpack.c.b16 %v1816, %v1811
    %v2002 = vpack.c.b16 %v1822, %v1817
    %v2003 = vpack.c.b16 %v1823, %v1818
    %v2004 = vpack.c.b16 %v1824, %v1819
    %v2005 = vpack.c.b16 %v1825, %v1820
    %v2006 = vpack.c.b16 %v1826, %v1821
    %v2007 = vpack.c.b16 %v1832, %v1827
    %v2008 = vpack.c.b16 %v1833, %v1828
    %v2009 = vpack.c.b16 %v1834, %v1829
    %v2010 = vpack.c.b16 %v1835, %v1830
    %v2011 = vpack.c.b16 %v1836, %v1831
    %v2012 = vpack.c.b16 %v1842, %v1837
    %v2013 = vpack.c.b16 %v1843, %v1838
    %v2014 = vpack.c.b16 %v1844, %v1839
    %v2015 = vpack.c.b16 %v1845, %v1840
    %v2016 = vpack.c.b16 %v1846, %v1841
    %v2017 = vpack.c.b16 %v1852, %v1847
    %v2018 = vpack.c.b16 %v1853, %v1848
    %v2019 = vpack.c.b16 %v1854, %v1849
    %v2020 = vpack.c.b16 %v1855, %v1850
    %v2021 = vpack.c.b16 %v1856, %v1851
    %v2022 = vpack.c.b16 %v1862, %v1857
    %v2023 = vpack.c.b16 %v1863, %v1858
    %v2024 = vpack.c.b16 %v1864, %v1859
    %v2025 = vpack.c.b16 %v1865, %v1860
    %v2026 = vpack.c.b16 %v1866, %v1861
    %v2027 = vpack.c.b16 %v1872, %v1867
    %v2028 = vpack.c.b16 %v1873, %v1868
    %v2029 = vpack.c.b16 %v1874, %v1869
    %v2030 = vpack.c.b16 %v1875, %v1870
    %v2031 = vpack.c.b16 %v1876, %v1871
    %v2032 = vpack.c.b16 %v1882, %v1877
    %v2033 = vpack.c.b16 %v1883, %v1878
    %v2034 = vpack.c.b16 %v1884, %v1879
    %v2035 = vpack.c.b16 %v1885, %v1880
    %v2036 = vpack.c.b16 %v1886, %v1881
    %v2037 = vpack.c.b16 %v1892, %v1887
    %v2038 = vpack.c.b16 %v1893, %v1888
    %v2039 = vpack.c.b16 %v1894, %v1889
    %v2040 = vpack.c.b16 %v1895, %v1890
    %v2041 = vpack.c.b16 %v1896, %v1891
    %v2042 = vpack.c.b16 %v1902, %v1897
    %v2043 = vpack.c.b16 %v1903, %v1898
    %v2044 = vpack.c.b16 %v1904, %v1899
    %v2045 = vpack.c.b16 %v1905, %v1900
    %v2046 = vpack.c.b16 %v1906, %v1901
    %v2047 = vpack.c.b16 %v1912, %v1907
    %v2048 = vpack.c.b16 %v1913, %v1908
    %v2049 = vpack.c.b16 %v1914, %v1909
    %v2050 = vpack.c.b16 %v1915, %v1910
    %v2051 = vpack.c.b16 %v1916, %v1911
    %v2052 = vpack.c.b16 %v1922, %v1917
    %v2053 = vpack.c.b16 %v1923, %v1918
    %v2054 = vpack.c.b16 %v1924, %v1919
    %v2055 = vpack.c.b16 %v1925, %v1920
    %v2056 = vpack.c.b16 %v1926, %v1921
    %v2057 = vpack.c.b16 %v1932, %v1927
    %v2058 = vpack.c.b16 %v1933, %v1928
    %v2059 = vpack.c.b16 %v1934, %v1929
    %v2060 = vpack.c.b16 %v1935, %v1930
    %v2061 = vpack.c.b16 %v1936, %v1931
    %v2062 = vpack.c.b16 %v1942, %v1937
    %v2063 = vpack.c.b16 %v1943, %v1938
    %v2064 = vpack.c.b16 %v1944, %v1939
    %v2065 = vpack.c.b16 %v1945, %v1940
    %v2066 = vpack.c.b16 %v1946, %v1941
    %2187 = vmatprep.subr.bf16.mxu0 %v1948
    %2188 = vmatpush1.bf16.msra.mxu0 %v1947
    %2189 = vmatprep.subr.bf16.mxu0 %v1953
    %2190 = vmatpush1.bf16.msra.mxu0 %v1952
    %2191 = vmatprep.subr.bf16.mxu0 %v1958
    %2192 = vmatpush1.bf16.msra.mxu0 %v1957
    %2193 = vmatprep.subr.bf16.mxu0 %v1963
    %2194 = vmatpush1.bf16.msra.mxu0 %v1962
    %2195 = vmatprep.subr.bf16.mxu0 %v1968
    %2196 = vmatpush1.bf16.msra.mxu0 %v1967
    %2197 = vmatprep.subr.bf16.mxu0 %v1973
    %2198 = vmatpush1.bf16.msra.mxu0 %v1972
    %2199 = vmatprep.subr.bf16.mxu0 %v1978
    %2200 = vmatpush1.bf16.msra.mxu0 %v1977
    %2201 = vmatprep.subr.bf16.mxu0 %v1983
    %2202 = vmatpush1.bf16.msra.mxu0 %v1982
    %2203 = vmatprep.subr.bf16.mxu0 %v1988
    %2204 = vmatpush1.bf16.msra.mxu0 %v1987
    %2205 = vmatprep.subr.bf16.mxu0 %v1993
    %2206 = vmatpush1.bf16.msra.mxu0 %v1992
    %2207 = vmatprep.subr.bf16.mxu0 %v1998
    %2208 = vmatpush1.bf16.msra.mxu0 %v1997
    %2209 = vmatprep.subr.bf16.mxu0 %v2003
    %2210 = vmatpush1.bf16.msra.mxu0 %v2002
    %2211 = vmatprep.subr.bf16.mxu0 %v2008
    %2212 = vmatpush1.bf16.msra.mxu0 %v2007
    %2213 = vmatprep.subr.bf16.mxu0 %v2013
    %2214 = vmatpush1.bf16.msra.mxu0 %v2012
    %2215 = vmatprep.subr.bf16.mxu0 %v2018
    %2216 = vmatpush1.bf16.msra.mxu0 %v2017
    %2217 = vmatprep.subr.bf16.mxu0 %v2023
    %2218 = vmatpush1.bf16.msra.mxu0 %v2022
    %2219 = vmatprep.mubr.bf16.mxu0 %v1381
    %2220 = vmatmul.mubr.bf16.gmra.mrb[0].mxu0 %v1380
    %v2221 = vpop.f32.mrb[0].mxu0
    %v2222 = vadd.f32 %v1541, %v2221
    %v2223 = vpop.f32.mrb[0].mxu0
    %v2224 = vadd.f32 %v1545, %v2223
    %v2225 = vpop.f32.mrb[0].mxu0
    %v2226 = vpop.f32.mrb[0].mxu0
    %2227 = vdwg.mxu0
    %2228 = vmatprep.subr.bf16.mxu0 %v2028
    %2229 = vmatpush1.bf16.msra.mxu0 %v2027
    %2230 = vmatprep.subr.bf16.mxu0 %v2033
    %2231 = vmatpush1.bf16.msra.mxu0 %v2032
    %2232 = vmatprep.subr.bf16.mxu0 %v2038
    %2233 = vmatpush1.bf16.msra.mxu0 %v2037
    %2234 = vmatprep.subr.bf16.mxu0 %v2043
    %2235 = vmatpush1.bf16.msra.mxu0 %v2042
    %2236 = vmatprep.subr.bf16.mxu0 %v2048
    %2237 = vmatpush1.bf16.msra.mxu0 %v2047
    %2238 = vmatprep.subr.bf16.mxu0 %v2053
    %2239 = vmatpush1.bf16.msra.mxu0 %v2052
    %2240 = vmatprep.subr.bf16.mxu0 %v2058
    %2241 = vmatpush1.bf16.msra.mxu0 %v2057
    %2242 = vmatprep.subr.bf16.mxu0 %v2063
    %2243 = vmatpush1.bf16.msra.mxu0 %v2062
    %2244 = vmatprep.subr.bf16.mxu0 0
    %2245 = vmatpush1.bf16.msra.mxu0 0
    %2246 = vmatprep.subr.bf16.mxu0 0
    %2247 = vmatpush1.bf16.msra.mxu0 0
    %2248 = vmatprep.subr.bf16.mxu0 0
    %2249 = vmatpush1.bf16.msra.mxu0 0
    %2250 = vmatprep.subr.bf16.mxu0 0
    %2251 = vmatpush1.bf16.msra.mxu0 0
    %2252 = vmatprep.subr.bf16.mxu0 0
    %2253 = vmatpush1.bf16.msra.mxu0 0
    %2254 = vmatprep.subr.bf16.mxu0 0
    %2255 = vmatpush1.bf16.msra.mxu0 0
    %2256 = vmatprep.subr.bf16.mxu0 0
    %2257 = vmatpush1.bf16.msra.mxu0 0
    %2258 = vmatprep.subr.bf16.mxu0 0
    %2259 = vmatpush1.bf16.msra.mxu0 0
    %2260 = vmatprep.mubr.bf16.mxu0 0
    %2261 = vmatmul.mubr.bf16.gmra.mrb[0].mxu0 %v1382
    %v2262 = vpop.f32.mrb[0].mxu0
    %v2263 = vadd.f32 %v2222, %v2262
    %v2264 = vpop.f32.mrb[0].mxu0
    %v2265 = vadd.f32 %v2224, %v2264
    %v2266 = vpop.f32.mrb[0].mxu0
    %v2267 = vpop.f32.mrb[0].mxu0
    %2268 = vdwg.mxu0
    %2269 = vmatprep.subr.bf16.mxu0 %v1950
    %2270 = vmatpush1.bf16.msra.mxu0 %v1949
    %2271 = vmatprep.subr.bf16.mxu0 %v1955
    %2272 = vmatpush1.bf16.msra.mxu0 %v1954
    %2273 = vmatprep.subr.bf16.mxu0 %v1960
    %2274 = vmatpush1.bf16.msra.mxu0 %v1959
    %2275 = vmatprep.subr.bf16.mxu0 %v1965
    %2276 = vmatpush1.bf16.msra.mxu0 %v1964
    %2277 = vmatprep.subr.bf16.mxu0 %v1970
    %2278 = vmatpush1.bf16.msra.mxu0 %v1969
    %2279 = vmatprep.subr.bf16.mxu0 %v1975
    %2280 = vmatpush1.bf16.msra.mxu0 %v1974
    %2281 = vmatprep.subr.bf16.mxu0 %v1980
    %2282 = vmatpush1.bf16.msra.mxu0 %v1979
    %2283 = vmatprep.subr.bf16.mxu0 %v1985
    %2284 = vmatpush1.bf16.msra.mxu0 %v1984
    %2285 = vmatprep.subr.bf16.mxu0 %v1990
    %2286 = vmatpush1.bf16.msra.mxu0 %v1989
    %2287 = vmatprep.subr.bf16.mxu0 %v1995
    %2288 = vmatpush1.bf16.msra.mxu0 %v1994
    %2289 = vmatprep.subr.bf16.mxu0 %v2000
    %2290 = vmatpush1.bf16.msra.mxu0 %v1999
    %2291 = vmatprep.subr.bf16.mxu0 %v2005
    %2292 = vmatpush1.bf16.msra.mxu0 %v2004
    %2293 = vmatprep.subr.bf16.mxu0 %v2010
    %2294 = vmatpush1.bf16.msra.mxu0 %v2009
    %2295 = vmatprep.subr.bf16.mxu0 %v2015
    %2296 = vmatpush1.bf16.msra.mxu0 %v2014
    %2297 = vmatprep.subr.bf16.mxu0 %v2020
    %2298 = vmatpush1.bf16.msra.mxu0 %v2019
    %2299 = vmatprep.subr.bf16.mxu0 %v2025
    %2300 = vmatpush1.bf16.msra.mxu0 %v2024
    %2301 = vmatprep.mubr.bf16.mxu0 %v1381
    %2302 = vmatmul.mubr.bf16.gmra.mrb[0].mxu0 %v1380
    %v2303 = vpop.f32.mrb[0].mxu0
    %v2304 = vadd.f32 %v1549, %v2303
    %v2305 = vpop.f32.mrb[0].mxu0
    %v2306 = vadd.f32 %v1553, %v2305
    %v2307 = vpop.f32.mrb[0].mxu0
    %v2308 = vpop.f32.mrb[0].mxu0
    %2309 = vdwg.mxu0
    %2310 = vmatprep.subr.bf16.mxu0 %v2030
    %2311 = vmatpush1.bf16.msra.mxu0 %v2029
    %2312 = vmatprep.subr.bf16.mxu0 %v2035
    %2313 = vmatpush1.bf16.msra.mxu0 %v2034
    %2314 = vmatprep.subr.bf16.mxu0 %v2040
    %2315 = vmatpush1.bf16.msra.mxu0 %v2039
    %2316 = vmatprep.subr.bf16.mxu0 %v2045
    %2317 = vmatpush1.bf16.msra.mxu0 %v2044
    %2318 = vmatprep.subr.bf16.mxu0 %v2050
    %2319 = vmatpush1.bf16.msra.mxu0 %v2049
    %2320 = vmatprep.subr.bf16.mxu0 %v2055
    %2321 = vmatpush1.bf16.msra.mxu0 %v2054
    %2322 = vmatprep.subr.bf16.mxu0 %v2060
    %2323 = vmatpush1.bf16.msra.mxu0 %v2059
    %2324 = vmatprep.subr.bf16.mxu0 %v2065
    %2325 = vmatpush1.bf16.msra.mxu0 %v2064
    %2326 = vmatprep.subr.bf16.mxu0 0
    %2327 = vmatpush1.bf16.msra.mxu0 0
    %2328 = vmatprep.subr.bf16.mxu0 0
    %2329 = vmatpush1.bf16.msra.mxu0 0
    %2330 = vmatprep.subr.bf16.mxu0 0
    %2331 = vmatpush1.bf16.msra.mxu0 0
    %2332 = vmatprep.subr.bf16.mxu0 0
    %2333 = vmatpush1.bf16.msra.mxu0 0
    %2334 = vmatprep.subr.bf16.mxu0 0
    %2335 = vmatpush1.bf16.msra.mxu0 0
    %2336 = vmatprep.subr.bf16.mxu0 0
    %2337 = vmatpush1.bf16.msra.mxu0 0
    %2338 = vmatprep.subr.bf16.mxu0 0
    %2339 = vmatpush1.bf16.msra.mxu0 0
    %2340 = vmatprep.subr.bf16.mxu0 0
    %2341 = vmatpush1.bf16.msra.mxu0 0
    %2342 = vmatprep.mubr.bf16.mxu0 0
    %2343 = vmatmul.mubr.bf16.gmra.mrb[0].mxu0 %v1382
    %v2344 = vpop.f32.mrb[0].mxu0
    %v2345 = vadd.f32 %v2304, %v2344
    %v2346 = vpop.f32.mrb[0].mxu0
    %v2347 = vadd.f32 %v2306, %v2346
    %v2348 = vpop.f32.mrb[0].mxu0
    %v2349 = vpop.f32.mrb[0].mxu0
    %2350 = vdwg.mxu0
    %2351 = vmatprep.subr.bf16.mxu0 0
    %2352 = vmatpush1.bf16.msra.mxu0 %v1951
    %2353 = vmatprep.subr.bf16.mxu0 0
    %2354 = vmatpush1.bf16.msra.mxu0 %v1956
    %2355 = vmatprep.subr.bf16.mxu0 0
    %2356 = vmatpush1.bf16.msra.mxu0 %v1961
    %2357 = vmatprep.subr.bf16.mxu0 0
    %2358 = vmatpush1.bf16.msra.mxu0 %v1966
    %2359 = vmatprep.subr.bf16.mxu0 0
    %2360 = vmatpush1.bf16.msra.mxu0 %v1971
    %2361 = vmatprep.subr.bf16.mxu0 0
    %2362 = vmatpush1.bf16.msra.mxu0 %v1976
    %2363 = vmatprep.subr.bf16.mxu0 0
    %2364 = vmatpush1.bf16.msra.mxu0 %v1981
    %2365 = vmatprep.subr.bf16.mxu0 0
    %2366 = vmatpush1.bf16.msra.mxu0 %v1986
    %2367 = vmatprep.subr.bf16.mxu0 0
    %2368 = vmatpush1.bf16.msra.mxu0 %v1991
    %2369 = vmatprep.subr.bf16.mxu0 0
    %2370 = vmatpush1.bf16.msra.mxu0 %v1996
    %2371 = vmatprep.subr.bf16.mxu0 0
    %2372 = vmatpush1.bf16.msra.mxu0 %v2001
    %2373 = vmatprep.subr.bf16.mxu0 0
    %2374 = vmatpush1.bf16.msra.mxu0 %v2006
    %2375 = vmatprep.subr.bf16.mxu0 0
    %2376 = vmatpush1.bf16.msra.mxu0 %v2011
    %2377 = vmatprep.subr.bf16.mxu0 0
    %2378 = vmatpush1.bf16.msra.mxu0 %v2016
    %2379 = vmatprep.subr.bf16.mxu0 0
    %2380 = vmatpush1.bf16.msra.mxu0 %v2021
    %2381 = vmatprep.subr.bf16.mxu0 0
    %2382 = vmatpush1.bf16.msra.mxu0 %v2026
    %2383 = vmatprep.mubr.bf16.mxu0 %v1381
    %2384 = vmatmul.mubr.bf16.gmra.mrb[0].mxu0 %v1380
    %v2385 = vpop.f32.mrb[0].mxu0
    %v2386 = vadd.f32 %v1557, %v2385
    %v2387 = vpop.f32.mrb[0].mxu0
    %v2388 = vpop.f32.mrb[0].mxu0
    %v2389 = vpop.f32.mrb[0].mxu0
    %2390 = vdwg.mxu0
    %2391 = vmatprep.subr.bf16.mxu0 0
    %2392 = vmatpush1.bf16.msra.mxu0 %v2031
    %2393 = vmatprep.subr.bf16.mxu0 0
    %2394 = vmatpush1.bf16.msra.mxu0 %v2036
    %2395 = vmatprep.subr.bf16.mxu0 0
    %2396 = vmatpush1.bf16.msra.mxu0 %v2041
    %2397 = vmatprep.subr.bf16.mxu0 0
    %2398 = vmatpush1.bf16.msra.mxu0 %v2046
    %2399 = vmatprep.subr.bf16.mxu0 0
    %2400 = vmatpush1.bf16.msra.mxu0 %v2051
    %2401 = vmatprep.subr.bf16.mxu0 0
    %2402 = vmatpush1.bf16.msra.mxu0 %v2056
    %2403 = vmatprep.subr.bf16.mxu0 0
    %2404 = vmatpush1.bf16.msra.mxu0 %v2061
    %2405 = vmatprep.subr.bf16.mxu0 0
    %2406 = vmatpush1.bf16.msra.mxu0 %v2066
    %2407 = vmatprep.subr.bf16.mxu0 0
    %2408 = vmatpush1.bf16.msra.mxu0 0
    %2409 = vmatprep.subr.bf16.mxu0 0
    %2410 = vmatpush1.bf16.msra.mxu0 0
    %2411 = vmatprep.subr.bf16.mxu0 0
    %2412 = vmatpush1.bf16.msra.mxu0 0
    %2413 = vmatprep.subr.bf16.mxu0 0
    %2414 = vmatpush1.bf16.msra.mxu0 0
    %2415 = vmatprep.subr.bf16.mxu0 0
    %2416 = vmatpush1.bf16.msra.mxu0 0
    %2417 = vmatprep.subr.bf16.mxu0 0
    %2418 = vmatpush1.bf16.msra.mxu0 0
    %2419 = vmatprep.subr.bf16.mxu0 0
    %2420 = vmatpush1.bf16.msra.mxu0 0
    %2421 = vmatprep.subr.bf16.mxu0 0
    %2422 = vmatpush1.bf16.msra.mxu0 0
    %2423 = vmatprep.mubr.bf16.mxu0 0
    %2424 = vmatmul.mubr.bf16.gmra.mrb[0].mxu0 %v1382
    %v2425 = vpop.f32.mrb[0].mxu0
    %v2426 = vadd.f32 %v2386, %v2425
    %v2427 = vpop.f32.mrb[0].mxu0
    %v2428 = vpop.f32.mrb[0].mxu0
    %v2429 = vpop.f32.mrb[0].mxu0
    %2430 = vdwg.mxu0
    %s2431 = scalar_lea.vmem [#allocation4], 960
    %v2432 = vld [vmem:[%s2431] sm:$0xff]
    %v2433 = vld [vmem:[%s2431 + $0x8] sm:$0xff]
    %v2434 = vld [vmem:[%s2431 + $0x10] sm:$0xf]
    %v2435 = vld [vmem:[%s2431 + $0x14] sm:$0xff]
    %v2436 = vld [vmem:[%s2431 + $0x1c] sm:$0xff]
    %v2437 = vld [vmem:[%s2431 + $0x24] sm:$0xf]
    %v2438 = vld [vmem:[%s2431 + $0x28] sm:$0xff]
    %v2439 = vld [vmem:[%s2431 + $0x30] sm:$0xff]
    %v2440 = vld [vmem:[%s2431 + $0x38] sm:$0xf]
    %v2441 = vld [vmem:[%s2431 + $0x3c] sm:$0xff]
    %v2442 = vld [vmem:[%s2431 + $0x44] sm:$0xff]
    %v2443 = vld [vmem:[%s2431 + $0x4c] sm:$0xf]
    %v2444 = vld [vmem:[%s2431 + $0x50] sm:$0xff]
    %v2445 = vld [vmem:[%s2431 + $0x58] sm:$0xff]
    %v2446 = vld [vmem:[%s2431 + $0x60] sm:$0xf]
    %v2447 = vld [vmem:[%s2431 + $0x64] sm:$0xff]
    %v2448 = vld [vmem:[%s2431 + $0x6c] sm:$0xff]
    %v2449 = vld [vmem:[%s2431 + $0x74] sm:$0xf]
    %v2450 = vld [vmem:[%s2431 + $0x78] sm:$0xff]
    %v2451 = vld [vmem:[%s2431 + $0x80] sm:$0xff]
    %v2452 = vld [vmem:[%s2431 + $0x88] sm:$0xf]
    %v2453 = vld [vmem:[%s2431 + $0x8c] sm:$0xff]
    %v2454 = vld [vmem:[%s2431 + $0x94] sm:$0xff]
    %v2455 = vld [vmem:[%s2431 + $0x9c] sm:$0xf]
    %v2456 = vld [vmem:[%s2431 + $0xa0] sm:$0xff]
    %v2457 = vld [vmem:[%s2431 + $0xa8] sm:$0xff]
    %v2458 = vld [vmem:[%s2431 + $0xb0] sm:$0xf]
    %v2459 = vld [vmem:[%s2431 + $0xb4] sm:$0xff]
    %v2460 = vld [vmem:[%s2431 + $0xbc] sm:$0xff]
    %v2461 = vld [vmem:[%s2431 + $0xc4] sm:$0xf]
    %v2462 = vld [vmem:[%s2431 + $0xc8] sm:$0xff]
    %v2463 = vld [vmem:[%s2431 + $0xd0] sm:$0xff]
    %v2464 = vld [vmem:[%s2431 + $0xd8] sm:$0xf]
    %v2465 = vld [vmem:[%s2431 + $0xdc] sm:$0xff]
    %v2466 = vld [vmem:[%s2431 + $0xe4] sm:$0xff]
    %v2467 = vld [vmem:[%s2431 + $0xec] sm:$0xf]
    %v2468 = vld [vmem:[%s2431 + $0xf0] sm:$0xff]
    %v2469 = vld [vmem:[%s2431 + $0xf8] sm:$0xff]
    %v2470 = vld [vmem:[%s2431 + $0x100] sm:$0xf]
    %v2471 = vld [vmem:[%s2431 + $0x104] sm:$0xff]
    %v2472 = vld [vmem:[%s2431 + $0x10c] sm:$0xff]
    %v2473 = vld [vmem:[%s2431 + $0x114] sm:$0xf]
    %v2474 = vld [vmem:[%s2431 + $0x118] sm:$0xff]
    %v2475 = vld [vmem:[%s2431 + $0x120] sm:$0xff]
    %v2476 = vld [vmem:[%s2431 + $0x128] sm:$0xf]
    %v2477 = vld [vmem:[%s2431 + $0x12c] sm:$0xff]
    %v2478 = vld [vmem:[%s2431 + $0x134] sm:$0xff]
    %v2479 = vld [vmem:[%s2431 + $0x13c] sm:$0xf]
    %v2480 = vld [vmem:[%s2431 + $0x140] sm:$0xff]
    %v2481 = vld [vmem:[%s2431 + $0x148] sm:$0xff]
    %v2482 = vld [vmem:[%s2431 + $0x150] sm:$0xf]
    %v2483 = vld [vmem:[%s2431 + $0x154] sm:$0xff]
    %v2484 = vld [vmem:[%s2431 + $0x15c] sm:$0xff]
    %v2485 = vld [vmem:[%s2431 + $0x164] sm:$0xf]
    %v2486 = vld [vmem:[%s2431 + $0x168] sm:$0xff]
    %v2487 = vld [vmem:[%s2431 + $0x170] sm:$0xff]
    %v2488 = vld [vmem:[%s2431 + $0x178] sm:$0xf]
    %v2489 = vld [vmem:[%s2431 + $0x17c] sm:$0xff]
    %v2490 = vld [vmem:[%s2431 + $0x184] sm:$0xff]
    %v2491 = vld [vmem:[%s2431 + $0x18c] sm:$0xf]
    %v2492 = vld [vmem:[%s2431 + $0x190] sm:$0xff]
    %v2493 = vld [vmem:[%s2431 + $0x198] sm:$0xff]
    %v2494 = vld [vmem:[%s2431 + $0x1a0] sm:$0xf]
    %v2495 = vld [vmem:[%s2431 + $0x1a4] sm:$0xff]
    %v2496 = vld [vmem:[%s2431 + $0x1ac] sm:$0xff]
    %v2497 = vld [vmem:[%s2431 + $0x1b4] sm:$0xf]
    %v2498 = vld [vmem:[%s2431 + $0x1b8] sm:$0xff]
    %v2499 = vld [vmem:[%s2431 + $0x1c0] sm:$0xff]
    %v2500 = vld [vmem:[%s2431 + $0x1c8] sm:$0xf]
    %v2501 = vld [vmem:[%s2431 + $0x1cc] sm:$0xff]
    %v2502 = vld [vmem:[%s2431 + $0x1d4] sm:$0xff]
    %v2503 = vld [vmem:[%s2431 + $0x1dc] sm:$0xf]
    %v2504 = vld [vmem:[%s2431 + $0x1e0] sm:$0xff]
    %v2505 = vld [vmem:[%s2431 + $0x1e8] sm:$0xff]
    %v2506 = vld [vmem:[%s2431 + $0x1f0] sm:$0xf]
    %v2507 = vld [vmem:[%s2431 + $0x1f4] sm:$0xff]
    %v2508 = vld [vmem:[%s2431 + $0x1fc] sm:$0xff]
    %v2509 = vld [vmem:[%s2431 + $0x204] sm:$0xf]
    %v2510 = vld [vmem:[%s2431 + $0x208] sm:$0xff]
    %v2511 = vld [vmem:[%s2431 + $0x210] sm:$0xff]
    %v2512 = vld [vmem:[%s2431 + $0x218] sm:$0xf]
    %v2513 = vld [vmem:[%s2431 + $0x21c] sm:$0xff]
    %v2514 = vld [vmem:[%s2431 + $0x224] sm:$0xff]
    %v2515 = vld [vmem:[%s2431 + $0x22c] sm:$0xf]
    %v2516 = vld [vmem:[%s2431 + $0x230] sm:$0xff]
    %v2517 = vld [vmem:[%s2431 + $0x238] sm:$0xff]
    %v2518 = vld [vmem:[%s2431 + $0x240] sm:$0xf]
    %v2519 = vld [vmem:[%s2431 + $0x244] sm:$0xff]
    %v2520 = vld [vmem:[%s2431 + $0x24c] sm:$0xff]
    %v2521 = vld [vmem:[%s2431 + $0x254] sm:$0xf]
    %v2522 = vld [vmem:[%s2431 + $0x258] sm:$0xff]
    %v2523 = vld [vmem:[%s2431 + $0x260] sm:$0xff]
    %v2524 = vld [vmem:[%s2431 + $0x268] sm:$0xf]
    %v2525 = vld [vmem:[%s2431 + $0x26c] sm:$0xff]
    %v2526 = vld [vmem:[%s2431 + $0x274] sm:$0xff]
    %v2527 = vld [vmem:[%s2431 + $0x27c] sm:$0xf]
    %v2528 = vld [vmem:[%s2431 + $0x280] sm:$0xff]
    %v2529 = vld [vmem:[%s2431 + $0x288] sm:$0xff]
    %v2530 = vld [vmem:[%s2431 + $0x290] sm:$0xf]
    %v2531 = vld [vmem:[%s2431 + $0x294] sm:$0xff]
    %v2532 = vld [vmem:[%s2431 + $0x29c] sm:$0xff]
    %v2533 = vld [vmem:[%s2431 + $0x2a4] sm:$0xf]
    %v2534 = vld [vmem:[%s2431 + $0x2a8] sm:$0xff]
    %v2535 = vld [vmem:[%s2431 + $0x2b0] sm:$0xff]
    %v2536 = vld [vmem:[%s2431 + $0x2b8] sm:$0xf]
    %v2537 = vld [vmem:[%s2431 + $0x2bc] sm:$0xff]
    %v2538 = vld [vmem:[%s2431 + $0x2c4] sm:$0xff]
    %v2539 = vld [vmem:[%s2431 + $0x2cc] sm:$0xf]
    %v2540 = vld [vmem:[%s2431 + $0x2d0] sm:$0xff]
    %v2541 = vld [vmem:[%s2431 + $0x2d8] sm:$0xff]
    %v2542 = vld [vmem:[%s2431 + $0x2e0] sm:$0xf]
    %v2543 = vld [vmem:[%s2431 + $0x2e4] sm:$0xff]
    %v2544 = vld [vmem:[%s2431 + $0x2ec] sm:$0xff]
    %v2545 = vld [vmem:[%s2431 + $0x2f4] sm:$0xf]
    %v2546 = vld [vmem:[%s2431 + $0x2f8] sm:$0xff]
    %v2547 = vld [vmem:[%s2431 + $0x300] sm:$0xff]
    %v2548 = vld [vmem:[%s2431 + $0x308] sm:$0xf]
    %v2549 = vld [vmem:[%s2431 + $0x30c] sm:$0xff]
    %v2550 = vld [vmem:[%s2431 + $0x314] sm:$0xff]
    %v2551 = vld [vmem:[%s2431 + $0x31c] sm:$0xf]
    %v2552 = vld [vmem:[%s2431 + $0x320] sm:$0xff]
    %v2553 = vld [vmem:[%s2431 + $0x328] sm:$0xff]
    %v2554 = vld [vmem:[%s2431 + $0x330] sm:$0xf]
    %v2555 = vld [vmem:[%s2431 + $0x334] sm:$0xff]
    %v2556 = vld [vmem:[%s2431 + $0x33c] sm:$0xff]
    %v2557 = vld [vmem:[%s2431 + $0x344] sm:$0xf]
    %v2558 = vld [vmem:[%s2431 + $0x348] sm:$0xff]
    %v2559 = vld [vmem:[%s2431 + $0x350] sm:$0xff]
    %v2560 = vld [vmem:[%s2431 + $0x358] sm:$0xf]
    %v2561 = vld [vmem:[%s2431 + $0x35c] sm:$0xff]
    %v2562 = vld [vmem:[%s2431 + $0x364] sm:$0xff]
    %v2563 = vld [vmem:[%s2431 + $0x36c] sm:$0xf]
    %v2564 = vld [vmem:[%s2431 + $0x370] sm:$0xff]
    %v2565 = vld [vmem:[%s2431 + $0x378] sm:$0xff]
    %v2566 = vld [vmem:[%s2431 + $0x380] sm:$0xf]
    %v2567 = vld [vmem:[%s2431 + $0x384] sm:$0xff]
    %v2568 = vld [vmem:[%s2431 + $0x38c] sm:$0xff]
    %v2569 = vld [vmem:[%s2431 + $0x394] sm:$0xf]
    %v2570 = vld [vmem:[%s2431 + $0x398] sm:$0xff]
    %v2571 = vld [vmem:[%s2431 + $0x3a0] sm:$0xff]
    %v2572 = vld [vmem:[%s2431 + $0x3a8] sm:$0xf]
    %v2573 = vld [vmem:[%s2431 + $0x3ac] sm:$0xff]
    %v2574 = vld [vmem:[%s2431 + $0x3b4] sm:$0xff]
    %v2575 = vld [vmem:[%s2431 + $0x3bc] sm:$0xf]
    %v2576 = vld [vmem:[#allocation13 + $0x11] sm:$0x1f]
    %v2578 = vlaneseq
    %v2579 = vshrl.u32 %v2578, 7
    %v2580 = vsub.s32 0, %v2579
    %v2581 = vrot.slane %v2576, %v2580
    %v2582 = vlaneseq
    %v2583 = vshrl.u32 %v2582, 7
    %v2584 = vsub.s32 1, %v2583
    %v2585 = vrot.slane %v2576, %v2584
    %v2586 = vlaneseq
    %v2587 = vshrl.u32 %v2586, 7
    %v2588 = vsub.s32 2, %v2587
    %v2589 = vrot.slane %v2576, %v2588
    %v2590 = vlaneseq
    %v2591 = vshrl.u32 %v2590, 7
    %v2592 = vsub.s32 3, %v2591
    %v2593 = vrot.slane %v2576, %v2592
    %v2594 = vlaneseq
    %v2595 = vshrl.u32 %v2594, 7
    %v2596 = vsub.s32 4, %v2595
    %v2597 = vrot.slane %v2576, %v2596
    %v2747 = vunpack.c.l.b16 %v2432
    %v2748 = vunpack.c.h.b16 %v2432
    %v2749 = vunpack.c.l.b16 %v2433
    %v2750 = vunpack.c.h.b16 %v2433
    %v2751 = vunpack.c.l.b16 %v2434
    %v2752 = vunpack.c.l.b16 %v2435
    %v2753 = vunpack.c.h.b16 %v2435
    %v2754 = vunpack.c.l.b16 %v2436
    %v2755 = vunpack.c.h.b16 %v2436
    %v2756 = vunpack.c.l.b16 %v2437
    %v2757 = vunpack.c.l.b16 %v2438
    %v2758 = vunpack.c.h.b16 %v2438
    %v2759 = vunpack.c.l.b16 %v2439
    %v2760 = vunpack.c.h.b16 %v2439
    %v2761 = vunpack.c.l.b16 %v2440
    %v2762 = vunpack.c.l.b16 %v2441
    %v2763 = vunpack.c.h.b16 %v2441
    %v2764 = vunpack.c.l.b16 %v2442
    %v2765 = vunpack.c.h.b16 %v2442
    %v2766 = vunpack.c.l.b16 %v2443
    %v2767 = vunpack.c.l.b16 %v2444
    %v2768 = vunpack.c.h.b16 %v2444
    %v2769 = vunpack.c.l.b16 %v2445
    %v2770 = vunpack.c.h.b16 %v2445
    %v2771 = vunpack.c.l.b16 %v2446
    %v2772 = vunpack.c.l.b16 %v2447
    %v2773 = vunpack.c.h.b16 %v2447
    %v2774 = vunpack.c.l.b16 %v2448
    %v2775 = vunpack.c.h.b16 %v2448
    %v2776 = vunpack.c.l.b16 %v2449
    %v2777 = vunpack.c.l.b16 %v2450
    %v2778 = vunpack.c.h.b16 %v2450
    %v2779 = vunpack.c.l.b16 %v2451
    %v2780 = vunpack.c.h.b16 %v2451
    %v2781 = vunpack.c.l.b16 %v2452
    %v2782 = vunpack.c.l.b16 %v2453
    %v2783 = vunpack.c.h.b16 %v2453
    %v2784 = vunpack.c.l.b16 %v2454
    %v2785 = vunpack.c.h.b16 %v2454
    %v2786 = vunpack.c.l.b16 %v2455
    %v2787 = vunpack.c.l.b16 %v2456
    %v2788 = vunpack.c.h.b16 %v2456
    %v2789 = vunpack.c.l.b16 %v2457
    %v2790 = vunpack.c.h.b16 %v2457
    %v2791 = vunpack.c.l.b16 %v2458
    %v2792 = vunpack.c.l.b16 %v2459
    %v2793 = vunpack.c.h.b16 %v2459
    %v2794 = vunpack.c.l.b16 %v2460
    %v2795 = vunpack.c.h.b16 %v2460
    %v2796 = vunpack.c.l.b16 %v2461
    %v2797 = vunpack.c.l.b16 %v2462
    %v2798 = vunpack.c.h.b16 %v2462
    %v2799 = vunpack.c.l.b16 %v2463
    %v2800 = vunpack.c.h.b16 %v2463
    %v2801 = vunpack.c.l.b16 %v2464
    %v2802 = vunpack.c.l.b16 %v2465
    %v2803 = vunpack.c.h.b16 %v2465
    %v2804 = vunpack.c.l.b16 %v2466
    %v2805 = vunpack.c.h.b16 %v2466
    %v2806 = vunpack.c.l.b16 %v2467
    %v2807 = vunpack.c.l.b16 %v2468
    %v2808 = vunpack.c.h.b16 %v2468
    %v2809 = vunpack.c.l.b16 %v2469
    %v2810 = vunpack.c.h.b16 %v2469
    %v2811 = vunpack.c.l.b16 %v2470
    %v2812 = vunpack.c.l.b16 %v2471
    %v2813 = vunpack.c.h.b16 %v2471
    %v2814 = vunpack.c.l.b16 %v2472
    %v2815 = vunpack.c.h.b16 %v2472
    %v2816 = vunpack.c.l.b16 %v2473
    %v2817 = vunpack.c.l.b16 %v2474
    %v2818 = vunpack.c.h.b16 %v2474
    %v2819 = vunpack.c.l.b16 %v2475
    %v2820 = vunpack.c.h.b16 %v2475
    %v2821 = vunpack.c.l.b16 %v2476
    %v2822 = vunpack.c.l.b16 %v2477
    %v2823 = vunpack.c.h.b16 %v2477
    %v2824 = vunpack.c.l.b16 %v2478
    %v2825 = vunpack.c.h.b16 %v2478
    %v2826 = vunpack.c.l.b16 %v2479
    %v2827 = vunpack.c.l.b16 %v2480
    %v2828 = vunpack.c.h.b16 %v2480
    %v2829 = vunpack.c.l.b16 %v2481
    %v2830 = vunpack.c.h.b16 %v2481
    %v2831 = vunpack.c.l.b16 %v2482
    %v2832 = vunpack.c.l.b16 %v2483
    %v2833 = vunpack.c.h.b16 %v2483
    %v2834 = vunpack.c.l.b16 %v2484
    %v2835 = vunpack.c.h.b16 %v2484
    %v2836 = vunpack.c.l.b16 %v2485
    %v2837 = vunpack.c.l.b16 %v2486
    %v2838 = vunpack.c.h.b16 %v2486
    %v2839 = vunpack.c.l.b16 %v2487
    %v2840 = vunpack.c.h.b16 %v2487
    %v2841 = vunpack.c.l.b16 %v2488
    %v2842 = vunpack.c.l.b16 %v2489
    %v2843 = vunpack.c.h.b16 %v2489
    %v2844 = vunpack.c.l.b16 %v2490
    %v2845 = vunpack.c.h.b16 %v2490
    %v2846 = vunpack.c.l.b16 %v2491
    %v2847 = vunpack.c.l.b16 %v2492
    %v2848 = vunpack.c.h.b16 %v2492
    %v2849 = vunpack.c.l.b16 %v2493
    %v2850 = vunpack.c.h.b16 %v2493
    %v2851 = vunpack.c.l.b16 %v2494
    %v2852 = vunpack.c.l.b16 %v2495
    %v2853 = vunpack.c.h.b16 %v2495
    %v2854 = vunpack.c.l.b16 %v2496
    %v2855 = vunpack.c.h.b16 %v2496
    %v2856 = vunpack.c.l.b16 %v2497
    %v2857 = vunpack.c.l.b16 %v2498
    %v2858 = vunpack.c.h.b16 %v2498
    %v2859 = vunpack.c.l.b16 %v2499
    %v2860 = vunpack.c.h.b16 %v2499
    %v2861 = vunpack.c.l.b16 %v2500
    %v2862 = vunpack.c.l.b16 %v2501
    %v2863 = vunpack.c.h.b16 %v2501
    %v2864 = vunpack.c.l.b16 %v2502
    %v2865 = vunpack.c.h.b16 %v2502
    %v2866 = vunpack.c.l.b16 %v2503
    %v2867 = vunpack.c.l.b16 %v2504
    %v2868 = vunpack.c.h.b16 %v2504
    %v2869 = vunpack.c.l.b16 %v2505
    %v2870 = vunpack.c.h.b16 %v2505
    %v2871 = vunpack.c.l.b16 %v2506
    %v2872 = vunpack.c.l.b16 %v2507
    %v2873 = vunpack.c.h.b16 %v2507
    %v2874 = vunpack.c.l.b16 %v2508
    %v2875 = vunpack.c.h.b16 %v2508
    %v2876 = vunpack.c.l.b16 %v2509
    %v2877 = vunpack.c.l.b16 %v2510
    %v2878 = vunpack.c.h.b16 %v2510
    %v2879 = vunpack.c.l.b16 %v2511
    %v2880 = vunpack.c.h.b16 %v2511
    %v2881 = vunpack.c.l.b16 %v2512
    %v2882 = vunpack.c.l.b16 %v2513
    %v2883 = vunpack.c.h.b16 %v2513
    %v2884 = vunpack.c.l.b16 %v2514
    %v2885 = vunpack.c.h.b16 %v2514
    %v2886 = vunpack.c.l.b16 %v2515
    %v2887 = vunpack.c.l.b16 %v2516
    %v2888 = vunpack.c.h.b16 %v2516
    %v2889 = vunpack.c.l.b16 %v2517
    %v2890 = vunpack.c.h.b16 %v2517
    %v2891 = vunpack.c.l.b16 %v2518
    %v2892 = vunpack.c.l.b16 %v2519
    %v2893 = vunpack.c.h.b16 %v2519
    %v2894 = vunpack.c.l.b16 %v2520
    %v2895 = vunpack.c.h.b16 %v2520
    %v2896 = vunpack.c.l.b16 %v2521
    %v2897 = vunpack.c.l.b16 %v2522
    %v2898 = vunpack.c.h.b16 %v2522
    %v2899 = vunpack.c.l.b16 %v2523
    %v2900 = vunpack.c.h.b16 %v2523
    %v2901 = vunpack.c.l.b16 %v2524
    %v2902 = vunpack.c.l.b16 %v2525
    %v2903 = vunpack.c.h.b16 %v2525
    %v2904 = vunpack.c.l.b16 %v2526
    %v2905 = vunpack.c.h.b16 %v2526
    %v2906 = vunpack.c.l.b16 %v2527
    %v2907 = vunpack.c.l.b16 %v2528
    %v2908 = vunpack.c.h.b16 %v2528
    %v2909 = vunpack.c.l.b16 %v2529
    %v2910 = vunpack.c.h.b16 %v2529
    %v2911 = vunpack.c.l.b16 %v2530
    %v2912 = vunpack.c.l.b16 %v2531
    %v2913 = vunpack.c.h.b16 %v2531
    %v2914 = vunpack.c.l.b16 %v2532
    %v2915 = vunpack.c.h.b16 %v2532
    %v2916 = vunpack.c.l.b16 %v2533
    %v2917 = vunpack.c.l.b16 %v2534
    %v2918 = vunpack.c.h.b16 %v2534
    %v2919 = vunpack.c.l.b16 %v2535
    %v2920 = vunpack.c.h.b16 %v2535
    %v2921 = vunpack.c.l.b16 %v2536
    %v2922 = vunpack.c.l.b16 %v2537
    %v2923 = vunpack.c.h.b16 %v2537
    %v2924 = vunpack.c.l.b16 %v2538
    %v2925 = vunpack.c.h.b16 %v2538
    %v2926 = vunpack.c.l.b16 %v2539
    %v2927 = vunpack.c.l.b16 %v2540
    %v2928 = vunpack.c.h.b16 %v2540
    %v2929 = vunpack.c.l.b16 %v2541
    %v2930 = vunpack.c.h.b16 %v2541
    %v2931 = vunpack.c.l.b16 %v2542
    %v2932 = vunpack.c.l.b16 %v2543
    %v2933 = vunpack.c.h.b16 %v2543
    %v2934 = vunpack.c.l.b16 %v2544
    %v2935 = vunpack.c.h.b16 %v2544
    %v2936 = vunpack.c.l.b16 %v2545
    %v2937 = vunpack.c.l.b16 %v2546
    %v2938 = vunpack.c.h.b16 %v2546
    %v2939 = vunpack.c.l.b16 %v2547
    %v2940 = vunpack.c.h.b16 %v2547
    %v2941 = vunpack.c.l.b16 %v2548
    %v2942 = vunpack.c.l.b16 %v2549
    %v2943 = vunpack.c.h.b16 %v2549
    %v2944 = vunpack.c.l.b16 %v2550
    %v2945 = vunpack.c.h.b16 %v2550
    %v2946 = vunpack.c.l.b16 %v2551
    %v2947 = vunpack.c.l.b16 %v2552
    %v2948 = vunpack.c.h.b16 %v2552
    %v2949 = vunpack.c.l.b16 %v2553
    %v2950 = vunpack.c.h.b16 %v2553
    %v2951 = vunpack.c.l.b16 %v2554
    %v2952 = vunpack.c.l.b16 %v2555
    %v2953 = vunpack.c.h.b16 %v2555
    %v2954 = vunpack.c.l.b16 %v2556
    %v2955 = vunpack.c.h.b16 %v2556
    %v2956 = vunpack.c.l.b16 %v2557
    %v2957 = vunpack.c.l.b16 %v2558
    %v2958 = vunpack.c.h.b16 %v2558
    %v2959 = vunpack.c.l.b16 %v2559
    %v2960 = vunpack.c.h.b16 %v2559
    %v2961 = vunpack.c.l.b16 %v2560
    %v2962 = vunpack.c.l.b16 %v2561
    %v2963 = vunpack.c.h.b16 %v2561
    %v2964 = vunpack.c.l.b16 %v2562
    %v2965 = vunpack.c.h.b16 %v2562
    %v2966 = vunpack.c.l.b16 %v2563
    %v2967 = vunpack.c.l.b16 %v2564
    %v2968 = vunpack.c.h.b16 %v2564
    %v2969 = vunpack.c.l.b16 %v2565
    %v2970 = vunpack.c.h.b16 %v2565
    %v2971 = vunpack.c.l.b16 %v2566
    %v2972 = vunpack.c.l.b16 %v2567
    %v2973 = vunpack.c.h.b16 %v2567
    %v2974 = vunpack.c.l.b16 %v2568
    %v2975 = vunpack.c.h.b16 %v2568
    %v2976 = vunpack.c.l.b16 %v2569
    %v2977 = vunpack.c.l.b16 %v2570
    %v2978 = vunpack.c.h.b16 %v2570
    %v2979 = vunpack.c.l.b16 %v2571
    %v2980 = vunpack.c.h.b16 %v2571
    %v2981 = vunpack.c.l.b16 %v2572
    %v2982 = vunpack.c.l.b16 %v2573
    %v2983 = vunpack.c.h.b16 %v2573
    %v2984 = vunpack.c.l.b16 %v2574
    %v2985 = vunpack.c.h.b16 %v2574
    %v2986 = vunpack.c.l.b16 %v2575
    %v2987 = vpack.c.b16 %v2752, %v2747
    %v2988 = vpack.c.b16 %v2753, %v2748
    %v2989 = vpack.c.b16 %v2754, %v2749
    %v2990 = vpack.c.b16 %v2755, %v2750
    %v2991 = vpack.c.b16 %v2756, %v2751
    %v2992 = vpack.c.b16 %v2762, %v2757
    %v2993 = vpack.c.b16 %v2763, %v2758
    %v2994 = vpack.c.b16 %v2764, %v2759
    %v2995 = vpack.c.b16 %v2765, %v2760
    %v2996 = vpack.c.b16 %v2766, %v2761
    %v2997 = vpack.c.b16 %v2772, %v2767
    %v2998 = vpack.c.b16 %v2773, %v2768
    %v2999 = vpack.c.b16 %v2774, %v2769
    %v3000 = vpack.c.b16 %v2775, %v2770
    %v3001 = vpack.c.b16 %v2776, %v2771
    %v3002 = vpack.c.b16 %v2782, %v2777
    %v3003 = vpack.c.b16 %v2783, %v2778
    %v3004 = vpack.c.b16 %v2784, %v2779
    %v3005 = vpack.c.b16 %v2785, %v2780
    %v3006 = vpack.c.b16 %v2786, %v2781
    %v3007 = vpack.c.b16 %v2792, %v2787
    %v3008 = vpack.c.b16 %v2793, %v2788
    %v3009 = vpack.c.b16 %v2794, %v2789
    %v3010 = vpack.c.b16 %v2795, %v2790
    %v3011 = vpack.c.b16 %v2796, %v2791
    %v3012 = vpack.c.b16 %v2802, %v2797
    %v3013 = vpack.c.b16 %v2803, %v2798
    %v3014 = vpack.c.b16 %v2804, %v2799
    %v3015 = vpack.c.b16 %v2805, %v2800
    %v3016 = vpack.c.b16 %v2806, %v2801
    %v3017 = vpack.c.b16 %v2812, %v2807
    %v3018 = vpack.c.b16 %v2813, %v2808
    %v3019 = vpack.c.b16 %v2814, %v2809
    %v3020 = vpack.c.b16 %v2815, %v2810
    %v3021 = vpack.c.b16 %v2816, %v2811
    %v3022 = vpack.c.b16 %v2822, %v2817
    %v3023 = vpack.c.b16 %v2823, %v2818
    %v3024 = vpack.c.b16 %v2824, %v2819
    %v3025 = vpack.c.b16 %v2825, %v2820
    %v3026 = vpack.c.b16 %v2826, %v2821
    %v3027 = vpack.c.b16 %v2832, %v2827
    %v3028 = vpack.c.b16 %v2833, %v2828
    %v3029 = vpack.c.b16 %v2834, %v2829
    %v3030 = vpack.c.b16 %v2835, %v2830
    %v3031 = vpack.c.b16 %v2836, %v2831
    %v3032 = vpack.c.b16 %v2842, %v2837
    %v3033 = vpack.c.b16 %v2843, %v2838
    %v3034 = vpack.c.b16 %v2844, %v2839
    %v3035 = vpack.c.b16 %v2845, %v2840
    %v3036 = vpack.c.b16 %v2846, %v2841
    %v3037 = vpack.c.b16 %v2852, %v2847
    %v3038 = vpack.c.b16 %v2853, %v2848
    %v3039 = vpack.c.b16 %v2854, %v2849
    %v3040 = vpack.c.b16 %v2855, %v2850
    %v3041 = vpack.c.b16 %v2856, %v2851
    %v3042 = vpack.c.b16 %v2862, %v2857
    %v3043 = vpack.c.b16 %v2863, %v2858
    %v3044 = vpack.c.b16 %v2864, %v2859
    %v3045 = vpack.c.b16 %v2865, %v2860
    %v3046 = vpack.c.b16 %v2866, %v2861
    %v3047 = vpack.c.b16 %v2872, %v2867
    %v3048 = vpack.c.b16 %v2873, %v2868
    %v3049 = vpack.c.b16 %v2874, %v2869
    %v3050 = vpack.c.b16 %v2875, %v2870
    %v3051 = vpack.c.b16 %v2876, %v2871
    %v3052 = vpack.c.b16 %v2882, %v2877
    %v3053 = vpack.c.b16 %v2883, %v2878
    %v3054 = vpack.c.b16 %v2884, %v2879
    %v3055 = vpack.c.b16 %v2885, %v2880
    %v3056 = vpack.c.b16 %v2886, %v2881
    %v3057 = vpack.c.b16 %v2892, %v2887
    %v3058 = vpack.c.b16 %v2893, %v2888
    %v3059 = vpack.c.b16 %v2894, %v2889
    %v3060 = vpack.c.b16 %v2895, %v2890
    %v3061 = vpack.c.b16 %v2896, %v2891
    %v3062 = vpack.c.b16 %v2902, %v2897
    %v3063 = vpack.c.b16 %v2903, %v2898
    %v3064 = vpack.c.b16 %v2904, %v2899
    %v3065 = vpack.c.b16 %v2905, %v2900
    %v3066 = vpack.c.b16 %v2906, %v2901
    %v3067 = vpack.c.b16 %v2912, %v2907
    %v3068 = vpack.c.b16 %v2913, %v2908
    %v3069 = vpack.c.b16 %v2914, %v2909
    %v3070 = vpack.c.b16 %v2915, %v2910
    %v3071 = vpack.c.b16 %v2916, %v2911
    %v3072 = vpack.c.b16 %v2922, %v2917
    %v3073 = vpack.c.b16 %v2923, %v2918
    %v3074 = vpack.c.b16 %v2924, %v2919
    %v3075 = vpack.c.b16 %v2925, %v2920
    %v3076 = vpack.c.b16 %v2926, %v2921
    %v3077 = vpack.c.b16 %v2932, %v2927
    %v3078 = vpack.c.b16 %v2933, %v2928
    %v3079 = vpack.c.b16 %v2934, %v2929
    %v3080 = vpack.c.b16 %v2935, %v2930
    %v3081 = vpack.c.b16 %v2936, %v2931
    %v3082 = vpack.c.b16 %v2942, %v2937
    %v3083 = vpack.c.b16 %v2943, %v2938
    %v3084 = vpack.c.b16 %v2944, %v2939
    %v3085 = vpack.c.b16 %v2945, %v2940
    %v3086 = vpack.c.b16 %v2946, %v2941
    %v3087 = vpack.c.b16 %v2952, %v2947
    %v3088 = vpack.c.b16 %v2953, %v2948
    %v3089 = vpack.c.b16 %v2954, %v2949
    %v3090 = vpack.c.b16 %v2955, %v2950
    %v3091 = vpack.c.b16 %v2956, %v2951
    %v3092 = vpack.c.b16 %v2962, %v2957
    %v3093 = vpack.c.b16 %v2963, %v2958
    %v3094 = vpack.c.b16 %v2964, %v2959
    %v3095 = vpack.c.b16 %v2965, %v2960
    %v3096 = vpack.c.b16 %v2966, %v2961
    %v3097 = vpack.c.b16 %v2972, %v2967
    %v3098 = vpack.c.b16 %v2973, %v2968
    %v3099 = vpack.c.b16 %v2974, %v2969
    %v3100 = vpack.c.b16 %v2975, %v2970
    %v3101 = vpack.c.b16 %v2976, %v2971
    %v3102 = vpack.c.b16 %v2982, %v2977
    %v3103 = vpack.c.b16 %v2983, %v2978
    %v3104 = vpack.c.b16 %v2984, %v2979
    %v3105 = vpack.c.b16 %v2985, %v2980
    %v3106 = vpack.c.b16 %v2986, %v2981
    %3227 = vmatprep.subr.bf16.mxu0 %v2988
    %3228 = vmatpush1.bf16.msra.mxu0 %v2987
    %3229 = vmatprep.subr.bf16.mxu0 %v2993
    %3230 = vmatpush1.bf16.msra.mxu0 %v2992
    %3231 = vmatprep.subr.bf16.mxu0 %v2998
    %3232 = vmatpush1.bf16.msra.mxu0 %v2997
    %3233 = vmatprep.subr.bf16.mxu0 %v3003
    %3234 = vmatpush1.bf16.msra.mxu0 %v3002
    %3235 = vmatprep.subr.bf16.mxu0 %v3008
    %3236 = vmatpush1.bf16.msra.mxu0 %v3007
    %3237 = vmatprep.subr.bf16.mxu0 %v3013
    %3238 = vmatpush1.bf16.msra.mxu0 %v3012
    %3239 = vmatprep.subr.bf16.mxu0 %v3018
    %3240 = vmatpush1.bf16.msra.mxu0 %v3017
    %3241 = vmatprep.subr.bf16.mxu0 %v3023
    %3242 = vmatpush1.bf16.msra.mxu0 %v3022
    %3243 = vmatprep.subr.bf16.mxu0 %v3028
    %3244 = vmatpush1.bf16.msra.mxu0 %v3027
    %3245 = vmatprep.subr.bf16.mxu0 %v3033
    %3246 = vmatpush1.bf16.msra.mxu0 %v3032
    %3247 = vmatprep.subr.bf16.mxu0 %v3038
    %3248 = vmatpush1.bf16.msra.mxu0 %v3037
    %3249 = vmatprep.subr.bf16.mxu0 %v3043
    %3250 = vmatpush1.bf16.msra.mxu0 %v3042
    %3251 = vmatprep.subr.bf16.mxu0 %v3048
    %3252 = vmatpush1.bf16.msra.mxu0 %v3047
    %3253 = vmatprep.subr.bf16.mxu0 %v3053
    %3254 = vmatpush1.bf16.msra.mxu0 %v3052
    %3255 = vmatprep.subr.bf16.mxu0 %v3058
    %3256 = vmatpush1.bf16.msra.mxu0 %v3057
    %3257 = vmatprep.subr.bf16.mxu0 %v3063
    %3258 = vmatpush1.bf16.msra.mxu0 %v3062
    %3259 = vmatprep.mubr.bf16.mxu0 %v1384
    %3260 = vmatmul.mubr.bf16.gmra.mrb[0].mxu0 %v1383
    %v3261 = vpop.f32.mrb[0].mxu0
    %v3262 = vadd.f32 %v2581, %v3261
    %v3263 = vpop.f32.mrb[0].mxu0
    %v3264 = vadd.f32 %v2585, %v3263
    %v3265 = vpop.f32.mrb[0].mxu0
    %v3266 = vpop.f32.mrb[0].mxu0
    %3267 = vdwg.mxu0
    %3268 = vmatprep.subr.bf16.mxu0 %v3068
    %3269 = vmatpush1.bf16.msra.mxu0 %v3067
    %3270 = vmatprep.subr.bf16.mxu0 %v3073
    %3271 = vmatpush1.bf16.msra.mxu0 %v3072
    %3272 = vmatprep.subr.bf16.mxu0 %v3078
    %3273 = vmatpush1.bf16.msra.mxu0 %v3077
    %3274 = vmatprep.subr.bf16.mxu0 %v3083
    %3275 = vmatpush1.bf16.msra.mxu0 %v3082
    %3276 = vmatprep.subr.bf16.mxu0 %v3088
    %3277 = vmatpush1.bf16.msra.mxu0 %v3087
    %3278 = vmatprep.subr.bf16.mxu0 %v3093
    %3279 = vmatpush1.bf16.msra.mxu0 %v3092
    %3280 = vmatprep.subr.bf16.mxu0 %v3098
    %3281 = vmatpush1.bf16.msra.mxu0 %v3097
    %3282 = vmatprep.subr.bf16.mxu0 %v3103
    %3283 = vmatpush1.bf16.msra.mxu0 %v3102
    %3284 = vmatprep.subr.bf16.mxu0 0
    %3285 = vmatpush1.bf16.msra.mxu0 0
    %3286 = vmatprep.subr.bf16.mxu0 0
    %3287 = vmatpush1.bf16.msra.mxu0 0
    %3288 = vmatprep.subr.bf16.mxu0 0
    %3289 = vmatpush1.bf16.msra.mxu0 0
    %3290 = vmatprep.subr.bf16.mxu0 0
    %3291 = vmatpush1.bf16.msra.mxu0 0
    %3292 = vmatprep.subr.bf16.mxu0 0
    %3293 = vmatpush1.bf16.msra.mxu0 0
    %3294 = vmatprep.subr.bf16.mxu0 0
    %3295 = vmatpush1.bf16.msra.mxu0 0
    %3296 = vmatprep.subr.bf16.mxu0 0
    %3297 = vmatpush1.bf16.msra.mxu0 0
    %3298 = vmatprep.subr.bf16.mxu0 0
    %3299 = vmatpush1.bf16.msra.mxu0 0
    %3300 = vmatprep.mubr.bf16.mxu0 0
    %3301 = vmatmul.mubr.bf16.gmra.mrb[0].mxu0 %v1385
    %v3302 = vpop.f32.mrb[0].mxu0
    %v3303 = vadd.f32 %v3262, %v3302
    %v3304 = vpop.f32.mrb[0].mxu0
    %v3305 = vadd.f32 %v3264, %v3304
    %v3306 = vpop.f32.mrb[0].mxu0
    %v3307 = vpop.f32.mrb[0].mxu0
    %3308 = vdwg.mxu0
    %3309 = vmatprep.subr.bf16.mxu0 %v2990
    %3310 = vmatpush1.bf16.msra.mxu0 %v2989
    %3311 = vmatprep.subr.bf16.mxu0 %v2995
    %3312 = vmatpush1.bf16.msra.mxu0 %v2994
    %3313 = vmatprep.subr.bf16.mxu0 %v3000
    %3314 = vmatpush1.bf16.msra.mxu0 %v2999
    %3315 = vmatprep.subr.bf16.mxu0 %v3005
    %3316 = vmatpush1.bf16.msra.mxu0 %v3004
    %3317 = vmatprep.subr.bf16.mxu0 %v3010
    %3318 = vmatpush1.bf16.msra.mxu0 %v3009
    %3319 = vmatprep.subr.bf16.mxu0 %v3015
    %3320 = vmatpush1.bf16.msra.mxu0 %v3014
    %3321 = vmatprep.subr.bf16.mxu0 %v3020
    %3322 = vmatpush1.bf16.msra.mxu0 %v3019
    %3323 = vmatprep.subr.bf16.mxu0 %v3025
    %3324 = vmatpush1.bf16.msra.mxu0 %v3024
    %3325 = vmatprep.subr.bf16.mxu0 %v3030
    %3326 = vmatpush1.bf16.msra.mxu0 %v3029
    %3327 = vmatprep.subr.bf16.mxu0 %v3035
    %3328 = vmatpush1.bf16.msra.mxu0 %v3034
    %3329 = vmatprep.subr.bf16.mxu0 %v3040
    %3330 = vmatpush1.bf16.msra.mxu0 %v3039
    %3331 = vmatprep.subr.bf16.mxu0 %v3045
    %3332 = vmatpush1.bf16.msra.mxu0 %v3044
    %3333 = vmatprep.subr.bf16.mxu0 %v3050
    %3334 = vmatpush1.bf16.msra.mxu0 %v3049
    %3335 = vmatprep.subr.bf16.mxu0 %v3055
    %3336 = vmatpush1.bf16.msra.mxu0 %v3054
    %3337 = vmatprep.subr.bf16.mxu0 %v3060
    %3338 = vmatpush1.bf16.msra.mxu0 %v3059
    %3339 = vmatprep.subr.bf16.mxu0 %v3065
    %3340 = vmatpush1.bf16.msra.mxu0 %v3064
    %3341 = vmatprep.mubr.bf16.mxu0 %v1384
    %3342 = vmatmul.mubr.bf16.gmra.mrb[0].mxu0 %v1383
    %v3343 = vpop.f32.mrb[0].mxu0
    %v3344 = vadd.f32 %v2589, %v3343
    %v3345 = vpop.f32.mrb[0].mxu0
    %v3346 = vadd.f32 %v2593, %v3345
    %v3347 = vpop.f32.mrb[0].mxu0
    %v3348 = vpop.f32.mrb[0].mxu0
    %3349 = vdwg.mxu0
    %3350 = vmatprep.subr.bf16.mxu0 %v3070
    %3351 = vmatpush1.bf16.msra.mxu0 %v3069
    %3352 = vmatprep.subr.bf16.mxu0 %v3075
    %3353 = vmatpush1.bf16.msra.mxu0 %v3074
    %3354 = vmatprep.subr.bf16.mxu0 %v3080
    %3355 = vmatpush1.bf16.msra.mxu0 %v3079
    %3356 = vmatprep.subr.bf16.mxu0 %v3085
    %3357 = vmatpush1.bf16.msra.mxu0 %v3084
    %3358 = vmatprep.subr.bf16.mxu0 %v3090
    %3359 = vmatpush1.bf16.msra.mxu0 %v3089
    %3360 = vmatprep.subr.bf16.mxu0 %v3095
    %3361 = vmatpush1.bf16.msra.mxu0 %v3094
    %3362 = vmatprep.subr.bf16.mxu0 %v3100
    %3363 = vmatpush1.bf16.msra.mxu0 %v3099
    %3364 = vmatprep.subr.bf16.mxu0 %v3105
    %3365 = vmatpush1.bf16.msra.mxu0 %v3104
    %3366 = vmatprep.subr.bf16.mxu0 0
    %3367 = vmatpush1.bf16.msra.mxu0 0
    %3368 = vmatprep.subr.bf16.mxu0 0
    %3369 = vmatpush1.bf16.msra.mxu0 0
    %3370 = vmatprep.subr.bf16.mxu0 0
    %3371 = vmatpush1.bf16.msra.mxu0 0
    %3372 = vmatprep.subr.bf16.mxu0 0
    %3373 = vmatpush1.bf16.msra.mxu0 0
    %3374 = vmatprep.subr.bf16.mxu0 0
    %3375 = vmatpush1.bf16.msra.mxu0 0
    %3376 = vmatprep.subr.bf16.mxu0 0
    %3377 = vmatpush1.bf16.msra.mxu0 0
    %3378 = vmatprep.subr.bf16.mxu0 0
    %3379 = vmatpush1.bf16.msra.mxu0 0
    %3380 = vmatprep.subr.bf16.mxu0 0
    %3381 = vmatpush1.bf16.msra.mxu0 0
    %3382 = vmatprep.mubr.bf16.mxu0 0
    %3383 = vmatmul.mubr.bf16.gmra.mrb[0].mxu0 %v1385
    %v3384 = vpop.f32.mrb[0].mxu0
    %v3385 = vadd.f32 %v3344, %v3384
    %v3386 = vpop.f32.mrb[0].mxu0
    %v3387 = vadd.f32 %v3346, %v3386
    %v3388 = vpop.f32.mrb[0].mxu0
    %v3389 = vpop.f32.mrb[0].mxu0
    %3390 = vdwg.mxu0
    %3391 = vmatprep.subr.bf16.mxu0 0
    %3392 = vmatpush1.bf16.msra.mxu0 %v2991
    %3393 = vmatprep.subr.bf16.mxu0 0
    %3394 = vmatpush1.bf16.msra.mxu0 %v2996
    %3395 = vmatprep.subr.bf16.mxu0 0
    %3396 = vmatpush1.bf16.msra.mxu0 %v3001
    %3397 = vmatprep.subr.bf16.mxu0 0
    %3398 = vmatpush1.bf16.msra.mxu0 %v3006
    %3399 = vmatprep.subr.bf16.mxu0 0
    %3400 = vmatpush1.bf16.msra.mxu0 %v3011
    %3401 = vmatprep.subr.bf16.mxu0 0
    %3402 = vmatpush1.bf16.msra.mxu0 %v3016
    %3403 = vmatprep.subr.bf16.mxu0 0
    %3404 = vmatpush1.bf16.msra.mxu0 %v3021
    %3405 = vmatprep.subr.bf16.mxu0 0
    %3406 = vmatpush1.bf16.msra.mxu0 %v3026
    %3407 = vmatprep.subr.bf16.mxu0 0
    %3408 = vmatpush1.bf16.msra.mxu0 %v3031
    %3409 = vmatprep.subr.bf16.mxu0 0
    %3410 = vmatpush1.bf16.msra.mxu0 %v3036
    %3411 = vmatprep.subr.bf16.mxu0 0
    %3412 = vmatpush1.bf16.msra.mxu0 %v3041
    %3413 = vmatprep.subr.bf16.mxu0 0
    %3414 = vmatpush1.bf16.msra.mxu0 %v3046
    %3415 = vmatprep.subr.bf16.mxu0 0
    %3416 = vmatpush1.bf16.msra.mxu0 %v3051
    %3417 = vmatprep.subr.bf16.mxu0 0
    %3418 = vmatpush1.bf16.msra.mxu0 %v3056
    %3419 = vmatprep.subr.bf16.mxu0 0
    %3420 = vmatpush1.bf16.msra.mxu0 %v3061
    %3421 = vmatprep.subr.bf16.mxu0 0
    %3422 = vmatpush1.bf16.msra.mxu0 %v3066
    %3423 = vmatprep.mubr.bf16.mxu0 %v1384
    %3424 = vmatmul.mubr.bf16.gmra.mrb[0].mxu0 %v1383
    %v3425 = vpop.f32.mrb[0].mxu0
    %v3426 = vadd.f32 %v2597, %v3425
    %v3427 = vpop.f32.mrb[0].mxu0
    %v3428 = vpop.f32.mrb[0].mxu0
    %v3429 = vpop.f32.mrb[0].mxu0
    %3430 = vdwg.mxu0
    %3431 = vmatprep.subr.bf16.mxu0 0
    %3432 = vmatpush1.bf16.msra.mxu0 %v3071
    %3433 = vmatprep.subr.bf16.mxu0 0
    %3434 = vmatpush1.bf16.msra.mxu0 %v3076
    %3435 = vmatprep.subr.bf16.mxu0 0
    %3436 = vmatpush1.bf16.msra.mxu0 %v3081
    %3437 = vmatprep.subr.bf16.mxu0 0
    %3438 = vmatpush1.bf16.msra.mxu0 %v3086
    %3439 = vmatprep.subr.bf16.mxu0 0
    %3440 = vmatpush1.bf16.msra.mxu0 %v3091
    %3441 = vmatprep.subr.bf16.mxu0 0
    %3442 = vmatpush1.bf16.msra.mxu0 %v3096
    %3443 = vmatprep.subr.bf16.mxu0 0
    %3444 = vmatpush1.bf16.msra.mxu0 %v3101
    %3445 = vmatprep.subr.bf16.mxu0 0
    %3446 = vmatpush1.bf16.msra.mxu0 %v3106
    %3447 = vmatprep.subr.bf16.mxu0 0
    %3448 = vmatpush1.bf16.msra.mxu0 0
    %3449 = vmatprep.subr.bf16.mxu0 0
    %3450 = vmatpush1.bf16.msra.mxu0 0
    %3451 = vmatprep.subr.bf16.mxu0 0
    %3452 = vmatpush1.bf16.msra.mxu0 0
    %3453 = vmatprep.subr.bf16.mxu0 0
    %3454 = vmatpush1.bf16.msra.mxu0 0
    %3455 = vmatprep.subr.bf16.mxu0 0
    %3456 = vmatpush1.bf16.msra.mxu0 0
    %3457 = vmatprep.subr.bf16.mxu0 0
    %3458 = vmatpush1.bf16.msra.mxu0 0
    %3459 = vmatprep.subr.bf16.mxu0 0
    %3460 = vmatpush1.bf16.msra.mxu0 0
    %3461 = vmatprep.subr.bf16.mxu0 0
    %3462 = vmatpush1.bf16.msra.mxu0 0
    %3463 = vmatprep.mubr.bf16.mxu0 0
    %3464 = vmatmul.mubr.bf16.gmra.mrb[0].mxu0 %v1385
    %v3465 = vpop.f32.mrb[0].mxu0
    %v3466 = vadd.f32 %v3426, %v3465
    %v3467 = vpop.f32.mrb[0].mxu0
    %v3468 = vpop.f32.mrb[0].mxu0
    %v3469 = vpop.f32.mrb[0].mxu0
    %3470 = vdwg.mxu0
    %v3471 = vld [vmem:[#allocation6] sm:$0xff]
    %v3472 = vld [vmem:[#allocation6 + $0x8] sm:$0xff]
    %v3473 = vld [vmem:[#allocation6 + $0x10] sm:$0xff]
    %v3474 = vld [vmem:[#allocation6 + $0x18] sm:$0xff]
    %v3475 = vld [vmem:[#allocation6 + $0x20] sm:$0xf]
    %v3476 = vld [vmem:[#allocation6 + $0x24] sm:$0xff]
    %v3477 = vld [vmem:[#allocation6 + $0x2c] sm:$0xff]
    %v3478 = vld [vmem:[#allocation6 + $0x34] sm:$0xff]
    %v3479 = vld [vmem:[#allocation6 + $0x3c] sm:$0xff]
    %v3480 = vld [vmem:[#allocation6 + $0x44] sm:$0xf]
    %v3481 = vld [vmem:[#allocation6 + $0x48] sm:$0xff]
    %v3482 = vld [vmem:[#allocation6 + $0x50] sm:$0xff]
    %v3483 = vld [vmem:[#allocation6 + $0x58] sm:$0xff]
    %v3484 = vld [vmem:[#allocation6 + $0x60] sm:$0xff]
    %v3485 = vld [vmem:[#allocation6 + $0x68] sm:$0xf]
    %v3486 = vld [vmem:[#allocation6 + $0x6c] sm:$0xff]
    %v3487 = vld [vmem:[#allocation6 + $0x74] sm:$0xff]
    %v3488 = vld [vmem:[#allocation6 + $0x7c] sm:$0xff]
    %v3489 = vld [vmem:[#allocation6 + $0x84] sm:$0xff]
    %v3490 = vld [vmem:[#allocation6 + $0x8c] sm:$0xf]
    %v3491 = vld [vmem:[#allocation6 + $0x90] sm:$0xff]
    %v3492 = vld [vmem:[#allocation6 + $0x98] sm:$0xff]
    %v3493 = vld [vmem:[#allocation6 + $0xa0] sm:$0xff]
    %v3494 = vld [vmem:[#allocation6 + $0xa8] sm:$0xff]
    %v3495 = vld [vmem:[#allocation6 + $0xb0] sm:$0xf]
    %v3496 = vld [vmem:[#allocation6 + $0xb4] sm:$0xff]
    %v3497 = vld [vmem:[#allocation6 + $0xbc] sm:$0xff]
    %v3498 = vld [vmem:[#allocation6 + $0xc4] sm:$0xff]
    %v3499 = vld [vmem:[#allocation6 + $0xcc] sm:$0xff]
    %v3500 = vld [vmem:[#allocation6 + $0xd4] sm:$0xf]
    %v3501 = vld [vmem:[#allocation6 + $0xd8] sm:$0xff]
    %v3502 = vld [vmem:[#allocation6 + $0xe0] sm:$0xff]
    %v3503 = vld [vmem:[#allocation6 + $0xe8] sm:$0xff]
    %v3504 = vld [vmem:[#allocation6 + $0xf0] sm:$0xff]
    %v3505 = vld [vmem:[#allocation6 + $0xf8] sm:$0xf]
    %v3506 = vld [vmem:[#allocation6 + $0xfc] sm:$0xff]
    %v3507 = vld [vmem:[#allocation6 + $0x104] sm:$0xff]
    %v3508 = vld [vmem:[#allocation6 + $0x10c] sm:$0xff]
    %v3509 = vld [vmem:[#allocation6 + $0x114] sm:$0xff]
    %v3510 = vld [vmem:[#allocation6 + $0x11c] sm:$0xf]
    %v3511 = vld [vmem:[#allocation6 + $0x120] sm:$0xff]
    %v3512 = vld [vmem:[#allocation6 + $0x128] sm:$0xff]
    %v3513 = vld [vmem:[#allocation6 + $0x130] sm:$0xff]
    %v3514 = vld [vmem:[#allocation6 + $0x138] sm:$0xff]
    %v3515 = vld [vmem:[#allocation6 + $0x140] sm:$0xf]
    %v3516 = vld [vmem:[#allocation6 + $0x144] sm:$0xff]
    %v3517 = vld [vmem:[#allocation6 + $0x14c] sm:$0xff]
    %v3518 = vld [vmem:[#allocation6 + $0x154] sm:$0xff]
    %v3519 = vld [vmem:[#allocation6 + $0x15c] sm:$0xff]
    %v3520 = vld [vmem:[#allocation6 + $0x164] sm:$0xf]
    %v3521 = vld [vmem:[#allocation6 + $0x168] sm:$0xff]
    %v3522 = vld [vmem:[#allocation6 + $0x170] sm:$0xff]
    %v3523 = vld [vmem:[#allocation6 + $0x178] sm:$0xff]
    %v3524 = vld [vmem:[#allocation6 + $0x180] sm:$0xff]
    %v3525 = vld [vmem:[#allocation6 + $0x188] sm:$0xf]
    %v3526 = vld [vmem:[#allocation6 + $0x18c] sm:$0xff]
    %v3527 = vld [vmem:[#allocation6 + $0x194] sm:$0xff]
    %v3528 = vld [vmem:[#allocation6 + $0x19c] sm:$0xff]
    %v3529 = vld [vmem:[#allocation6 + $0x1a4] sm:$0xff]
    %v3530 = vld [vmem:[#allocation6 + $0x1ac] sm:$0xf]
    %v3531 = vld [vmem:[#allocation6 + $0x1b0] sm:$0xff]
    %v3532 = vld [vmem:[#allocation6 + $0x1b8] sm:$0xff]
    %v3533 = vld [vmem:[#allocation6 + $0x1c0] sm:$0xff]
    %v3534 = vld [vmem:[#allocation6 + $0x1c8] sm:$0xff]
    %v3535 = vld [vmem:[#allocation6 + $0x1d0] sm:$0xf]
    %v3536 = vld [vmem:[#allocation6 + $0x1d4] sm:$0xff]
    %v3537 = vld [vmem:[#allocation6 + $0x1dc] sm:$0xff]
    %v3538 = vld [vmem:[#allocation6 + $0x1e4] sm:$0xff]
    %v3539 = vld [vmem:[#allocation6 + $0x1ec] sm:$0xff]
    %v3540 = vld [vmem:[#allocation6 + $0x1f4] sm:$0xf]
    %v3541 = vld [vmem:[#allocation6 + $0x1f8] sm:$0xff]
    %v3542 = vld [vmem:[#allocation6 + $0x200] sm:$0xff]
    %v3543 = vld [vmem:[#allocation6 + $0x208] sm:$0xff]
    %v3544 = vld [vmem:[#allocation6 + $0x210] sm:$0xff]
    %v3545 = vld [vmem:[#allocation6 + $0x218] sm:$0xf]
    %v3546 = vld [vmem:[#allocation6 + $0x21c] sm:$0xff]
    %v3547 = vld [vmem:[#allocation6 + $0x224] sm:$0xff]
    %v3548 = vld [vmem:[#allocation6 + $0x22c] sm:$0xff]
    %v3549 = vld [vmem:[#allocation6 + $0x234] sm:$0xff]
    %v3550 = vld [vmem:[#allocation6 + $0x23c] sm:$0xf]
    %v3551 = vld [vmem:[#allocation6 + $0x240] sm:$0xff]
    %v3552 = vld [vmem:[#allocation6 + $0x248] sm:$0xff]
    %v3553 = vld [vmem:[#allocation6 + $0x250] sm:$0xff]
    %v3554 = vld [vmem:[#allocation6 + $0x258] sm:$0xff]
    %v3555 = vld [vmem:[#allocation6 + $0x260] sm:$0xf]
    %v3556 = vld [vmem:[#allocation6 + $0x264] sm:$0xff]
    %v3557 = vld [vmem:[#allocation6 + $0x26c] sm:$0xff]
    %v3558 = vld [vmem:[#allocation6 + $0x274] sm:$0xff]
    %v3559 = vld [vmem:[#allocation6 + $0x27c] sm:$0xff]
    %v3560 = vld [vmem:[#allocation6 + $0x284] sm:$0xf]
    %v3561 = vld [vmem:[#allocation6 + $0x288] sm:$0xff]
    %v3562 = vld [vmem:[#allocation6 + $0x290] sm:$0xff]
    %v3563 = vld [vmem:[#allocation6 + $0x298] sm:$0xff]
    %v3564 = vld [vmem:[#allocation6 + $0x2a0] sm:$0xff]
    %v3565 = vld [vmem:[#allocation6 + $0x2a8] sm:$0xf]
    %v3566 = vld [vmem:[#allocation6 + $0x2ac] sm:$0xff]
    %v3567 = vld [vmem:[#allocation6 + $0x2b4] sm:$0xff]
    %v3568 = vld [vmem:[#allocation6 + $0x2bc] sm:$0xff]
    %v3569 = vld [vmem:[#allocation6 + $0x2c4] sm:$0xff]
    %v3570 = vld [vmem:[#allocation6 + $0x2cc] sm:$0xf]
    %v3571 = vld [vmem:[#allocation6 + $0x2d0] sm:$0xff]
    %v3572 = vld [vmem:[#allocation6 + $0x2d8] sm:$0xff]
    %v3573 = vld [vmem:[#allocation6 + $0x2e0] sm:$0xff]
    %v3574 = vld [vmem:[#allocation6 + $0x2e8] sm:$0xff]
    %v3575 = vld [vmem:[#allocation6 + $0x2f0] sm:$0xf]
    %v3576 = vld [vmem:[#allocation6 + $0x2f4] sm:$0xff]
    %v3577 = vld [vmem:[#allocation6 + $0x2fc] sm:$0xff]
    %v3578 = vld [vmem:[#allocation6 + $0x304] sm:$0xff]
    %v3579 = vld [vmem:[#allocation6 + $0x30c] sm:$0xff]
    %v3580 = vld [vmem:[#allocation6 + $0x314] sm:$0xf]
    %v3581 = vld [vmem:[#allocation6 + $0x318] sm:$0xff]
    %v3582 = vld [vmem:[#allocation6 + $0x320] sm:$0xff]
    %v3583 = vld [vmem:[#allocation6 + $0x328] sm:$0xff]
    %v3584 = vld [vmem:[#allocation6 + $0x330] sm:$0xff]
    %v3585 = vld [vmem:[#allocation6 + $0x338] sm:$0xf]
    %v3586 = vld [vmem:[#allocation6 + $0x33c] sm:$0xff]
    %v3587 = vld [vmem:[#allocation6 + $0x344] sm:$0xff]
    %v3588 = vld [vmem:[#allocation6 + $0x34c] sm:$0xff]
    %v3589 = vld [vmem:[#allocation6 + $0x354] sm:$0xff]
    %v3590 = vld [vmem:[#allocation6 + $0x35c] sm:$0xf]
    %v3591 = vld [vmem:[#allocation6 + $0x360] sm:$0xff]
    %v3592 = vld [vmem:[#allocation6 + $0x368] sm:$0xff]
    %v3593 = vld [vmem:[#allocation6 + $0x370] sm:$0xff]
    %v3594 = vld [vmem:[#allocation6 + $0x378] sm:$0xff]
    %v3595 = vld [vmem:[#allocation6 + $0x380] sm:$0xf]
    %v3596 = vld [vmem:[#allocation6 + $0x384] sm:$0xff]
    %v3597 = vld [vmem:[#allocation6 + $0x38c] sm:$0xff]
    %v3598 = vld [vmem:[#allocation6 + $0x394] sm:$0xff]
    %v3599 = vld [vmem:[#allocation6 + $0x39c] sm:$0xff]
    %v3600 = vld [vmem:[#allocation6 + $0x3a4] sm:$0xf]
    %v3601 = vld [vmem:[#allocation6 + $0x3a8] sm:$0xff]
    %v3602 = vld [vmem:[#allocation6 + $0x3b0] sm:$0xff]
    %v3603 = vld [vmem:[#allocation6 + $0x3b8] sm:$0xff]
    %v3604 = vld [vmem:[#allocation6 + $0x3c0] sm:$0xff]
    %v3605 = vld [vmem:[#allocation6 + $0x3c8] sm:$0xf]
    %v3606 = vld [vmem:[#allocation6 + $0x3cc] sm:$0xff]
    %v3607 = vld [vmem:[#allocation6 + $0x3d4] sm:$0xff]
    %v3608 = vld [vmem:[#allocation6 + $0x3dc] sm:$0xff]
    %v3609 = vld [vmem:[#allocation6 + $0x3e4] sm:$0xff]
    %v3610 = vld [vmem:[#allocation6 + $0x3ec] sm:$0xf]
    %v3611 = vld [vmem:[#allocation6 + $0x3f0] sm:$0xff]
    %v3612 = vld [vmem:[#allocation6 + $0x3f8] sm:$0xff]
    %v3613 = vld [vmem:[#allocation6 + $0x400] sm:$0xff]
    %v3614 = vld [vmem:[#allocation6 + $0x408] sm:$0xff]
    %v3615 = vld [vmem:[#allocation6 + $0x410] sm:$0xf]
    %v3616 = vld [vmem:[#allocation6 + $0x414] sm:$0xff]
    %v3617 = vld [vmem:[#allocation6 + $0x41c] sm:$0xff]
    %v3618 = vld [vmem:[#allocation6 + $0x424] sm:$0xff]
    %v3619 = vld [vmem:[#allocation6 + $0x42c] sm:$0xff]
    %v3620 = vld [vmem:[#allocation6 + $0x434] sm:$0xf]
    %v3621 = vld [vmem:[#allocation6 + $0x438] sm:$0xff]
    %v3622 = vld [vmem:[#allocation6 + $0x440] sm:$0xff]
    %v3623 = vld [vmem:[#allocation6 + $0x448] sm:$0xff]
    %v3624 = vld [vmem:[#allocation6 + $0x450] sm:$0xff]
    %v3625 = vld [vmem:[#allocation6 + $0x458] sm:$0xf]
    %v3626 = vld [vmem:[#allocation6 + $0x45c] sm:$0xff]
    %v3627 = vld [vmem:[#allocation6 + $0x464] sm:$0xff]
    %v3628 = vld [vmem:[#allocation6 + $0x46c] sm:$0xff]
    %v3629 = vld [vmem:[#allocation6 + $0x474] sm:$0xff]
    %v3630 = vld [vmem:[#allocation6 + $0x47c] sm:$0xf]
    %v3631 = vld [vmem:[#allocation6 + $0x480] sm:$0xff]
    %v3632 = vld [vmem:[#allocation6 + $0x488] sm:$0xff]
    %v3633 = vld [vmem:[#allocation6 + $0x490] sm:$0xff]
    %v3634 = vld [vmem:[#allocation6 + $0x498] sm:$0xff]
    %v3635 = vld [vmem:[#allocation6 + $0x4a0] sm:$0xf]
    %v3636 = vld [vmem:[#allocation6 + $0x4a4] sm:$0xff]
    %v3637 = vld [vmem:[#allocation6 + $0x4ac] sm:$0xff]
    %v3638 = vld [vmem:[#allocation6 + $0x4b4] sm:$0xff]
    %v3639 = vld [vmem:[#allocation6 + $0x4bc] sm:$0xff]
    %v3640 = vld [vmem:[#allocation6 + $0x4c4] sm:$0xf]
    %v3641 = vld [vmem:[#allocation6 + $0x4c8] sm:$0xff]
    %v3642 = vld [vmem:[#allocation6 + $0x4d0] sm:$0xff]
    %v3643 = vld [vmem:[#allocation6 + $0x4d8] sm:$0xff]
    %v3644 = vld [vmem:[#allocation6 + $0x4e0] sm:$0xff]
    %v3645 = vld [vmem:[#allocation6 + $0x4e8] sm:$0xf]
    %v3646 = vld [vmem:[#allocation6 + $0x4ec] sm:$0xff]
    %v3647 = vld [vmem:[#allocation6 + $0x4f4] sm:$0xff]
    %v3648 = vld [vmem:[#allocation6 + $0x4fc] sm:$0xff]
    %v3649 = vld [vmem:[#allocation6 + $0x504] sm:$0xff]
    %v3650 = vld [vmem:[#allocation6 + $0x50c] sm:$0xf]
    %v3651 = vld [vmem:[#allocation6 + $0x510] sm:$0xff]
    %v3652 = vld [vmem:[#allocation6 + $0x518] sm:$0xff]
    %v3653 = vld [vmem:[#allocation6 + $0x520] sm:$0xff]
    %v3654 = vld [vmem:[#allocation6 + $0x528] sm:$0xff]
    %v3655 = vld [vmem:[#allocation6 + $0x530] sm:$0xf]
    %v3656 = vld [vmem:[#allocation6 + $0x534] sm:$0xff]
    %v3657 = vld [vmem:[#allocation6 + $0x53c] sm:$0xff]
    %v3658 = vld [vmem:[#allocation6 + $0x544] sm:$0xff]
    %v3659 = vld [vmem:[#allocation6 + $0x54c] sm:$0xff]
    %v3660 = vld [vmem:[#allocation6 + $0x554] sm:$0xf]
    %v3661 = vld [vmem:[#allocation6 + $0x558] sm:$0xff]
    %v3662 = vld [vmem:[#allocation6 + $0x560] sm:$0xff]
    %v3663 = vld [vmem:[#allocation6 + $0x568] sm:$0xff]
    %v3664 = vld [vmem:[#allocation6 + $0x570] sm:$0xff]
    %v3665 = vld [vmem:[#allocation6 + $0x578] sm:$0xf]
    %v3666 = vld [vmem:[#allocation6 + $0x57c] sm:$0xff]
    %v3667 = vld [vmem:[#allocation6 + $0x584] sm:$0xff]
    %v3668 = vld [vmem:[#allocation6 + $0x58c] sm:$0xff]
    %v3669 = vld [vmem:[#allocation6 + $0x594] sm:$0xff]
    %v3670 = vld [vmem:[#allocation6 + $0x59c] sm:$0xf]
    %v3671 = vld [vmem:[#allocation6 + $0x5a0] sm:$0xff]
    %v3672 = vld [vmem:[#allocation6 + $0x5a8] sm:$0xff]
    %v3673 = vld [vmem:[#allocation6 + $0x5b0] sm:$0xff]
    %v3674 = vld [vmem:[#allocation6 + $0x5b8] sm:$0xff]
    %v3675 = vld [vmem:[#allocation6 + $0x5c0] sm:$0xf]
    %v3676 = vld [vmem:[#allocation6 + $0x5c4] sm:$0xff]
    %v3677 = vld [vmem:[#allocation6 + $0x5cc] sm:$0xff]
    %v3678 = vld [vmem:[#allocation6 + $0x5d4] sm:$0xff]
    %v3679 = vld [vmem:[#allocation6 + $0x5dc] sm:$0xff]
    %v3680 = vld [vmem:[#allocation6 + $0x5e4] sm:$0xf]
    %v3681 = vld [vmem:[#allocation6 + $0x5e8] sm:$0xff]
    %v3682 = vld [vmem:[#allocation6 + $0x5f0] sm:$0xff]
    %v3683 = vld [vmem:[#allocation6 + $0x5f8] sm:$0xff]
    %v3684 = vld [vmem:[#allocation6 + $0x600] sm:$0xff]
    %v3685 = vld [vmem:[#allocation6 + $0x608] sm:$0xf]
    %v3686 = vld [vmem:[#allocation6 + $0x60c] sm:$0xff]
    %v3687 = vld [vmem:[#allocation6 + $0x614] sm:$0xff]
    %v3688 = vld [vmem:[#allocation6 + $0x61c] sm:$0xff]
    %v3689 = vld [vmem:[#allocation6 + $0x624] sm:$0xff]
    %v3690 = vld [vmem:[#allocation6 + $0x62c] sm:$0xf]
    %v3691 = vld [vmem:[#allocation6 + $0x630] sm:$0xff]
    %v3692 = vld [vmem:[#allocation6 + $0x638] sm:$0xff]
    %v3693 = vld [vmem:[#allocation6 + $0x640] sm:$0xff]
    %v3694 = vld [vmem:[#allocation6 + $0x648] sm:$0xff]
    %v3695 = vld [vmem:[#allocation6 + $0x650] sm:$0xf]
    %v3696 = vld [vmem:[#allocation6 + $0x654] sm:$0xff]
    %v3697 = vld [vmem:[#allocation6 + $0x65c] sm:$0xff]
    %v3698 = vld [vmem:[#allocation6 + $0x664] sm:$0xff]
    %v3699 = vld [vmem:[#allocation6 + $0x66c] sm:$0xff]
    %v3700 = vld [vmem:[#allocation6 + $0x674] sm:$0xf]
    %v3701 = vld [vmem:[#allocation6 + $0x678] sm:$0xff]
    %v3702 = vld [vmem:[#allocation6 + $0x680] sm:$0xff]
    %v3703 = vld [vmem:[#allocation6 + $0x688] sm:$0xff]
    %v3704 = vld [vmem:[#allocation6 + $0x690] sm:$0xff]
    %v3705 = vld [vmem:[#allocation6 + $0x698] sm:$0xf]
    %v3706 = vld [vmem:[#allocation6 + $0x69c] sm:$0xff]
    %v3707 = vld [vmem:[#allocation6 + $0x6a4] sm:$0xff]
    %v3708 = vld [vmem:[#allocation6 + $0x6ac] sm:$0xff]
    %v3709 = vld [vmem:[#allocation6 + $0x6b4] sm:$0xff]
    %v3710 = vld [vmem:[#allocation6 + $0x6bc] sm:$0xf]
    %v3711 = vld [vmem:[#allocation6 + $0x6c0] sm:$0xff]
    %v3712 = vld [vmem:[#allocation6 + $0x6c8] sm:$0xff]
    %v3713 = vld [vmem:[#allocation6 + $0x6d0] sm:$0xff]
    %v3714 = vld [vmem:[#allocation6 + $0x6d8] sm:$0xff]
    %v3715 = vld [vmem:[#allocation6 + $0x6e0] sm:$0xf]
    %v3716 = vld [vmem:[#allocation6 + $0x6e4] sm:$0xff]
    %v3717 = vld [vmem:[#allocation6 + $0x6ec] sm:$0xff]
    %v3718 = vld [vmem:[#allocation6 + $0x6f4] sm:$0xff]
    %v3719 = vld [vmem:[#allocation6 + $0x6fc] sm:$0xff]
    %v3720 = vld [vmem:[#allocation6 + $0x704] sm:$0xf]
    %v3721 = vld [vmem:[#allocation6 + $0x708] sm:$0xff]
    %v3722 = vld [vmem:[#allocation6 + $0x710] sm:$0xff]
    %v3723 = vld [vmem:[#allocation6 + $0x718] sm:$0xff]
    %v3724 = vld [vmem:[#allocation6 + $0x720] sm:$0xff]
    %v3725 = vld [vmem:[#allocation6 + $0x728] sm:$0xf]
    %v3726 = vld [vmem:[#allocation6 + $0x72c] sm:$0xff]
    %v3727 = vld [vmem:[#allocation6 + $0x734] sm:$0xff]
    %v3728 = vld [vmem:[#allocation6 + $0x73c] sm:$0xff]
    %v3729 = vld [vmem:[#allocation6 + $0x744] sm:$0xff]
    %v3730 = vld [vmem:[#allocation6 + $0x74c] sm:$0xf]
    %v3731 = vld [vmem:[#allocation6 + $0x750] sm:$0xff]
    %v3732 = vld [vmem:[#allocation6 + $0x758] sm:$0xff]
    %v3733 = vld [vmem:[#allocation6 + $0x760] sm:$0xff]
    %v3734 = vld [vmem:[#allocation6 + $0x768] sm:$0xff]
    %v3735 = vld [vmem:[#allocation6 + $0x770] sm:$0xf]
    %v3736 = vld [vmem:[#allocation6 + $0x774] sm:$0xff]
    %v3737 = vld [vmem:[#allocation6 + $0x77c] sm:$0xff]
    %v3738 = vld [vmem:[#allocation6 + $0x784] sm:$0xff]
    %v3739 = vld [vmem:[#allocation6 + $0x78c] sm:$0xff]
    %v3740 = vld [vmem:[#allocation6 + $0x794] sm:$0xf]
    %v3741 = vld [vmem:[#allocation6 + $0x798] sm:$0xff]
    %v3742 = vld [vmem:[#allocation6 + $0x7a0] sm:$0xff]
    %v3743 = vld [vmem:[#allocation6 + $0x7a8] sm:$0xff]
    %v3744 = vld [vmem:[#allocation6 + $0x7b0] sm:$0xff]
    %v3745 = vld [vmem:[#allocation6 + $0x7b8] sm:$0xf]
    %v3746 = vld [vmem:[#allocation6 + $0x7bc] sm:$0xff]
    %v3747 = vld [vmem:[#allocation6 + $0x7c4] sm:$0xff]
    %v3748 = vld [vmem:[#allocation6 + $0x7cc] sm:$0xff]
    %v3749 = vld [vmem:[#allocation6 + $0x7d4] sm:$0xff]
    %v3750 = vld [vmem:[#allocation6 + $0x7dc] sm:$0xf]
    %v3751 = vld [vmem:[#allocation6 + $0x7e0] sm:$0xff]
    %v3752 = vld [vmem:[#allocation6 + $0x7e8] sm:$0xff]
    %v3753 = vld [vmem:[#allocation6 + $0x7f0] sm:$0xff]
    %v3754 = vld [vmem:[#allocation6 + $0x7f8] sm:$0xff]
    %v3755 = vld [vmem:[#allocation6 + $0x800] sm:$0xf]
    %v3756 = vld [vmem:[#allocation6 + $0x804] sm:$0xff]
    %v3757 = vld [vmem:[#allocation6 + $0x80c] sm:$0xff]
    %v3758 = vld [vmem:[#allocation6 + $0x814] sm:$0xff]
    %v3759 = vld [vmem:[#allocation6 + $0x81c] sm:$0xff]
    %v3760 = vld [vmem:[#allocation6 + $0x824] sm:$0xf]
    %v3761 = vld [vmem:[#allocation6 + $0x828] sm:$0xff]
    %v3762 = vld [vmem:[#allocation6 + $0x830] sm:$0xff]
    %v3763 = vld [vmem:[#allocation6 + $0x838] sm:$0xff]
    %v3764 = vld [vmem:[#allocation6 + $0x840] sm:$0xff]
    %v3765 = vld [vmem:[#allocation6 + $0x848] sm:$0xf]
    %v3766 = vld [vmem:[#allocation6 + $0x84c] sm:$0xff]
    %v3767 = vld [vmem:[#allocation6 + $0x854] sm:$0xff]
    %v3768 = vld [vmem:[#allocation6 + $0x85c] sm:$0xff]
    %v3769 = vld [vmem:[#allocation6 + $0x864] sm:$0xff]
    %v3770 = vld [vmem:[#allocation6 + $0x86c] sm:$0xf]
    %v3771 = vld [vmem:[#allocation6 + $0x870] sm:$0xff]
    %v3772 = vld [vmem:[#allocation6 + $0x878] sm:$0xff]
    %v3773 = vld [vmem:[#allocation6 + $0x880] sm:$0xff]
    %v3774 = vld [vmem:[#allocation6 + $0x888] sm:$0xff]
    %v3775 = vld [vmem:[#allocation6 + $0x890] sm:$0xf]
    %v3776 = vld [vmem:[#allocation6 + $0x894] sm:$0xff]
    %v3777 = vld [vmem:[#allocation6 + $0x89c] sm:$0xff]
    %v3778 = vld [vmem:[#allocation6 + $0x8a4] sm:$0xff]
    %v3779 = vld [vmem:[#allocation6 + $0x8ac] sm:$0xff]
    %v3780 = vld [vmem:[#allocation6 + $0x8b4] sm:$0xf]
    %v3781 = vld [vmem:[#allocation6 + $0x8b8] sm:$0xff]
    %v3782 = vld [vmem:[#allocation6 + $0x8c0] sm:$0xff]
    %v3783 = vld [vmem:[#allocation6 + $0x8c8] sm:$0xff]
    %v3784 = vld [vmem:[#allocation6 + $0x8d0] sm:$0xff]
    %v3785 = vld [vmem:[#allocation6 + $0x8d8] sm:$0xf]
    %v3786 = vld [vmem:[#allocation6 + $0x8dc] sm:$0xff]
    %v3787 = vld [vmem:[#allocation6 + $0x8e4] sm:$0xff]
    %v3788 = vld [vmem:[#allocation6 + $0x8ec] sm:$0xff]
    %v3789 = vld [vmem:[#allocation6 + $0x8f4] sm:$0xff]
    %v3790 = vld [vmem:[#allocation6 + $0x8fc] sm:$0xf]
    %v3791 = vld [vmem:[#allocation6 + $0x900] sm:$0xff]
    %v3792 = vld [vmem:[#allocation6 + $0x908] sm:$0xff]
    %v3793 = vld [vmem:[#allocation6 + $0x910] sm:$0xff]
    %v3794 = vld [vmem:[#allocation6 + $0x918] sm:$0xff]
    %v3795 = vld [vmem:[#allocation6 + $0x920] sm:$0xf]
    %v3796 = vld [vmem:[#allocation6 + $0x924] sm:$0xff]
    %v3797 = vld [vmem:[#allocation6 + $0x92c] sm:$0xff]
    %v3798 = vld [vmem:[#allocation6 + $0x934] sm:$0xff]
    %v3799 = vld [vmem:[#allocation6 + $0x93c] sm:$0xff]
    %v3800 = vld [vmem:[#allocation6 + $0x944] sm:$0xf]
    %v3801 = vld [vmem:[#allocation6 + $0x948] sm:$0xff]
    %v3802 = vld [vmem:[#allocation6 + $0x950] sm:$0xff]
    %v3803 = vld [vmem:[#allocation6 + $0x958] sm:$0xff]
    %v3804 = vld [vmem:[#allocation6 + $0x960] sm:$0xff]
    %v3805 = vld [vmem:[#allocation6 + $0x968] sm:$0xf]
    %v3806 = vld [vmem:[#allocation6 + $0x96c] sm:$0xff]
    %v3807 = vld [vmem:[#allocation6 + $0x974] sm:$0xff]
    %v3808 = vld [vmem:[#allocation6 + $0x97c] sm:$0xff]
    %v3809 = vld [vmem:[#allocation6 + $0x984] sm:$0xff]
    %v3810 = vld [vmem:[#allocation6 + $0x98c] sm:$0xf]
    %v3811 = vld [vmem:[#allocation6 + $0x990] sm:$0xff]
    %v3812 = vld [vmem:[#allocation6 + $0x998] sm:$0xff]
    %v3813 = vld [vmem:[#allocation6 + $0x9a0] sm:$0xff]
    %v3814 = vld [vmem:[#allocation6 + $0x9a8] sm:$0xff]
    %v3815 = vld [vmem:[#allocation6 + $0x9b0] sm:$0xf]
    %v3816 = vld [vmem:[#allocation6 + $0x9b4] sm:$0xff]
    %v3817 = vld [vmem:[#allocation6 + $0x9bc] sm:$0xff]
    %v3818 = vld [vmem:[#allocation6 + $0x9c4] sm:$0xff]
    %v3819 = vld [vmem:[#allocation6 + $0x9cc] sm:$0xff]
    %v3820 = vld [vmem:[#allocation6 + $0x9d4] sm:$0xf]
    %v3821 = vld [vmem:[#allocation6 + $0x9d8] sm:$0xff]
    %v3822 = vld [vmem:[#allocation6 + $0x9e0] sm:$0xff]
    %v3823 = vld [vmem:[#allocation6 + $0x9e8] sm:$0xff]
    %v3824 = vld [vmem:[#allocation6 + $0x9f0] sm:$0xff]
    %v3825 = vld [vmem:[#allocation6 + $0x9f8] sm:$0xf]
    %v3826 = vld [vmem:[#allocation6 + $0x9fc] sm:$0xff]
    %v3827 = vld [vmem:[#allocation6 + $0xa04] sm:$0xff]
    %v3828 = vld [vmem:[#allocation6 + $0xa0c] sm:$0xff]
    %v3829 = vld [vmem:[#allocation6 + $0xa14] sm:$0xff]
    %v3830 = vld [vmem:[#allocation6 + $0xa1c] sm:$0xf]
    %v3831 = vld [vmem:[#allocation6 + $0xa20] sm:$0xff]
    %v3832 = vld [vmem:[#allocation6 + $0xa28] sm:$0xff]
    %v3833 = vld [vmem:[#allocation6 + $0xa30] sm:$0xff]
    %v3834 = vld [vmem:[#allocation6 + $0xa38] sm:$0xff]
    %v3835 = vld [vmem:[#allocation6 + $0xa40] sm:$0xf]
    %v3836 = vld [vmem:[#allocation6 + $0xa44] sm:$0xff]
    %v3837 = vld [vmem:[#allocation6 + $0xa4c] sm:$0xff]
    %v3838 = vld [vmem:[#allocation6 + $0xa54] sm:$0xff]
    %v3839 = vld [vmem:[#allocation6 + $0xa5c] sm:$0xff]
    %v3840 = vld [vmem:[#allocation6 + $0xa64] sm:$0xf]
    %v3841 = vld [vmem:[#allocation6 + $0xa68] sm:$0xff]
    %v3842 = vld [vmem:[#allocation6 + $0xa70] sm:$0xff]
    %v3843 = vld [vmem:[#allocation6 + $0xa78] sm:$0xff]
    %v3844 = vld [vmem:[#allocation6 + $0xa80] sm:$0xff]
    %v3845 = vld [vmem:[#allocation6 + $0xa88] sm:$0xf]
    %v3846 = vld [vmem:[#allocation6 + $0xa8c] sm:$0xff]
    %v3847 = vld [vmem:[#allocation6 + $0xa94] sm:$0xff]
    %v3848 = vld [vmem:[#allocation6 + $0xa9c] sm:$0xff]
    %v3849 = vld [vmem:[#allocation6 + $0xaa4] sm:$0xff]
    %v3850 = vld [vmem:[#allocation6 + $0xaac] sm:$0xf]
    %v3851 = vld [vmem:[#allocation6 + $0xab0] sm:$0xff]
    %v3852 = vld [vmem:[#allocation6 + $0xab8] sm:$0xff]
    %v3853 = vld [vmem:[#allocation6 + $0xac0] sm:$0xff]
    %v3854 = vld [vmem:[#allocation6 + $0xac8] sm:$0xff]
    %v3855 = vld [vmem:[#allocation6 + $0xad0] sm:$0xf]
    %v3856 = vld [vmem:[#allocation6 + $0xad4] sm:$0xff]
    %v3857 = vld [vmem:[#allocation6 + $0xadc] sm:$0xff]
    %v3858 = vld [vmem:[#allocation6 + $0xae4] sm:$0xff]
    %v3859 = vld [vmem:[#allocation6 + $0xaec] sm:$0xff]
    %v3860 = vld [vmem:[#allocation6 + $0xaf4] sm:$0xf]
    %v3861 = vld [vmem:[#allocation6 + $0xaf8] sm:$0xff]
    %v3862 = vld [vmem:[#allocation6 + $0xb00] sm:$0xff]
    %v3863 = vld [vmem:[#allocation6 + $0xb08] sm:$0xff]
    %v3864 = vld [vmem:[#allocation6 + $0xb10] sm:$0xff]
    %v3865 = vld [vmem:[#allocation6 + $0xb18] sm:$0xf]
    %v3866 = vld [vmem:[#allocation6 + $0xb1c] sm:$0xff]
    %v3867 = vld [vmem:[#allocation6 + $0xb24] sm:$0xff]
    %v3868 = vld [vmem:[#allocation6 + $0xb2c] sm:$0xff]
    %v3869 = vld [vmem:[#allocation6 + $0xb34] sm:$0xff]
    %v3870 = vld [vmem:[#allocation6 + $0xb3c] sm:$0xf]
    %v3871 = vld [vmem:[#allocation6 + $0xb40] sm:$0xff]
    %v3872 = vld [vmem:[#allocation6 + $0xb48] sm:$0xff]
    %v3873 = vld [vmem:[#allocation6 + $0xb50] sm:$0xff]
    %v3874 = vld [vmem:[#allocation6 + $0xb58] sm:$0xff]
    %v3875 = vld [vmem:[#allocation6 + $0xb60] sm:$0xf]
    %v3876 = vld [vmem:[#allocation6 + $0xb64] sm:$0xff]
    %v3877 = vld [vmem:[#allocation6 + $0xb6c] sm:$0xff]
    %v3878 = vld [vmem:[#allocation6 + $0xb74] sm:$0xff]
    %v3879 = vld [vmem:[#allocation6 + $0xb7c] sm:$0xff]
    %v3880 = vld [vmem:[#allocation6 + $0xb84] sm:$0xf]
    %v3881 = vld [vmem:[#allocation6 + $0xb88] sm:$0xff]
    %v3882 = vld [vmem:[#allocation6 + $0xb90] sm:$0xff]
    %v3883 = vld [vmem:[#allocation6 + $0xb98] sm:$0xff]
    %v3884 = vld [vmem:[#allocation6 + $0xba0] sm:$0xff]
    %v3885 = vld [vmem:[#allocation6 + $0xba8] sm:$0xf]
    %v3886 = vld [vmem:[#allocation6 + $0xbac] sm:$0xff]
    %v3887 = vld [vmem:[#allocation6 + $0xbb4] sm:$0xff]
    %v3888 = vld [vmem:[#allocation6 + $0xbbc] sm:$0xff]
    %v3889 = vld [vmem:[#allocation6 + $0xbc4] sm:$0xff]
    %v3890 = vld [vmem:[#allocation6 + $0xbcc] sm:$0xf]
    %v3891 = vld [vmem:[#allocation13 + $0x16] sm:$0xff]
    %v3892 = vld [vmem:[#allocation13 + $0x1e] sm:$0x1]
    %v3895 = vlaneseq
    %v3896 = vshrl.u32 %v3895, 7
    %v3897 = vsub.s32 0, %v3896
    %v3898 = vrot.slane %v3891, %v3897
    %v3899 = vlaneseq
    %v3900 = vshrl.u32 %v3899, 7
    %v3901 = vsub.s32 1, %v3900
    %v3902 = vrot.slane %v3891, %v3901
    %v3903 = vlaneseq
    %v3904 = vshrl.u32 %v3903, 7
    %v3905 = vsub.s32 2, %v3904
    %v3906 = vrot.slane %v3891, %v3905
    %v3907 = vlaneseq
    %v3908 = vshrl.u32 %v3907, 7
    %v3909 = vsub.s32 3, %v3908
    %v3910 = vrot.slane %v3891, %v3909
    %v3911 = vlaneseq
    %v3912 = vshrl.u32 %v3911, 7
    %v3913 = vsub.s32 4, %v3912
    %v3914 = vrot.slane %v3891, %v3913
    %v3915 = vlaneseq
    %v3916 = vshrl.u32 %v3915, 7
    %v3917 = vsub.s32 5, %v3916
    %v3918 = vrot.slane %v3891, %v3917
    %v3919 = vlaneseq
    %v3920 = vshrl.u32 %v3919, 7
    %v3921 = vsub.s32 6, %v3920
    %v3922 = vrot.slane %v3891, %v3921
    %v3923 = vlaneseq
    %v3924 = vshrl.u32 %v3923, 7
    %v3925 = vsub.s32 7, %v3924
    %v3926 = vrot.slane %v3891, %v3925
    %v3927 = vlaneseq
    %v3928 = vshrl.u32 %v3927, 7
    %v3929 = vsub.s32 0, %v3928
    %v3930 = vrot.slane %v3892, %v3929
    %v4360 = vunpack.c.l.b16 %v3471
    %v4361 = vunpack.c.h.b16 %v3471
    %v4362 = vunpack.c.l.b16 %v3472
    %v4363 = vunpack.c.h.b16 %v3472
    %v4364 = vunpack.c.l.b16 %v3473
    %v4365 = vunpack.c.h.b16 %v3473
    %v4366 = vunpack.c.l.b16 %v3474
    %v4367 = vunpack.c.h.b16 %v3474
    %v4368 = vunpack.c.l.b16 %v3475
    %v4369 = vunpack.c.l.b16 %v3476
    %v4370 = vunpack.c.h.b16 %v3476
    %v4371 = vunpack.c.l.b16 %v3477
    %v4372 = vunpack.c.h.b16 %v3477
    %v4373 = vunpack.c.l.b16 %v3478
    %v4374 = vunpack.c.h.b16 %v3478
    %v4375 = vunpack.c.l.b16 %v3479
    %v4376 = vunpack.c.h.b16 %v3479
    %v4377 = vunpack.c.l.b16 %v3480
    %v4378 = vunpack.c.l.b16 %v3481
    %v4379 = vunpack.c.h.b16 %v3481
    %v4380 = vunpack.c.l.b16 %v3482
    %v4381 = vunpack.c.h.b16 %v3482
    %v4382 = vunpack.c.l.b16 %v3483
    %v4383 = vunpack.c.h.b16 %v3483
    %v4384 = vunpack.c.l.b16 %v3484
    %v4385 = vunpack.c.h.b16 %v3484
    %v4386 = vunpack.c.l.b16 %v3485
    %v4387 = vunpack.c.l.b16 %v3486
    %v4388 = vunpack.c.h.b16 %v3486
    %v4389 = vunpack.c.l.b16 %v3487
    %v4390 = vunpack.c.h.b16 %v3487
    %v4391 = vunpack.c.l.b16 %v3488
    %v4392 = vunpack.c.h.b16 %v3488
    %v4393 = vunpack.c.l.b16 %v3489
    %v4394 = vunpack.c.h.b16 %v3489
    %v4395 = vunpack.c.l.b16 %v3490
    %v4396 = vunpack.c.l.b16 %v3491
    %v4397 = vunpack.c.h.b16 %v3491
    %v4398 = vunpack.c.l.b16 %v3492
    %v4399 = vunpack.c.h.b16 %v3492
    %v4400 = vunpack.c.l.b16 %v3493
    %v4401 = vunpack.c.h.b16 %v3493
    %v4402 = vunpack.c.l.b16 %v3494
    %v4403 = vunpack.c.h.b16 %v3494
    %v4404 = vunpack.c.l.b16 %v3495
    %v4405 = vunpack.c.l.b16 %v3496
    %v4406 = vunpack.c.h.b16 %v3496
    %v4407 = vunpack.c.l.b16 %v3497
    %v4408 = vunpack.c.h.b16 %v3497
    %v4409 = vunpack.c.l.b16 %v3498
    %v4410 = vunpack.c.h.b16 %v3498
    %v4411 = vunpack.c.l.b16 %v3499
    %v4412 = vunpack.c.h.b16 %v3499
    %v4413 = vunpack.c.l.b16 %v3500
    %v4414 = vunpack.c.l.b16 %v3501
    %v4415 = vunpack.c.h.b16 %v3501
    %v4416 = vunpack.c.l.b16 %v3502
    %v4417 = vunpack.c.h.b16 %v3502
    %v4418 = vunpack.c.l.b16 %v3503
    %v4419 = vunpack.c.h.b16 %v3503
    %v4420 = vunpack.c.l.b16 %v3504
    %v4421 = vunpack.c.h.b16 %v3504
    %v4422 = vunpack.c.l.b16 %v3505
    %v4423 = vunpack.c.l.b16 %v3506
    %v4424 = vunpack.c.h.b16 %v3506
    %v4425 = vunpack.c.l.b16 %v3507
    %v4426 = vunpack.c.h.b16 %v3507
    %v4427 = vunpack.c.l.b16 %v3508
    %v4428 = vunpack.c.h.b16 %v3508
    %v4429 = vunpack.c.l.b16 %v3509
    %v4430 = vunpack.c.h.b16 %v3509
    %v4431 = vunpack.c.l.b16 %v3510
    %v4432 = vunpack.c.l.b16 %v3511
    %v4433 = vunpack.c.h.b16 %v3511
    %v4434 = vunpack.c.l.b16 %v3512
    %v4435 = vunpack.c.h.b16 %v3512
    %v4436 = vunpack.c.l.b16 %v3513
    %v4437 = vunpack.c.h.b16 %v3513
    %v4438 = vunpack.c.l.b16 %v3514
    %v4439 = vunpack.c.h.b16 %v3514
    %v4440 = vunpack.c.l.b16 %v3515
    %v4441 = vunpack.c.l.b16 %v3516
    %v4442 = vunpack.c.h.b16 %v3516
    %v4443 = vunpack.c.l.b16 %v3517
    %v4444 = vunpack.c.h.b16 %v3517
    %v4445 = vunpack.c.l.b16 %v3518
    %v4446 = vunpack.c.h.b16 %v3518
    %v4447 = vunpack.c.l.b16 %v3519
    %v4448 = vunpack.c.h.b16 %v3519
    %v4449 = vunpack.c.l.b16 %v3520
    %v4450 = vunpack.c.l.b16 %v3521
    %v4451 = vunpack.c.h.b16 %v3521
    %v4452 = vunpack.c.l.b16 %v3522
    %v4453 = vunpack.c.h.b16 %v3522
    %v4454 = vunpack.c.l.b16 %v3523
    %v4455 = vunpack.c.h.b16 %v3523
    %v4456 = vunpack.c.l.b16 %v3524
    %v4457 = vunpack.c.h.b16 %v3524
    %v4458 = vunpack.c.l.b16 %v3525
    %v4459 = vunpack.c.l.b16 %v3526
    %v4460 = vunpack.c.h.b16 %v3526
    %v4461 = vunpack.c.l.b16 %v3527
    %v4462 = vunpack.c.h.b16 %v3527
    %v4463 = vunpack.c.l.b16 %v3528
    %v4464 = vunpack.c.h.b16 %v3528
    %v4465 = vunpack.c.l.b16 %v3529
    %v4466 = vunpack.c.h.b16 %v3529
    %v4467 = vunpack.c.l.b16 %v3530
    %v4468 = vunpack.c.l.b16 %v3531
    %v4469 = vunpack.c.h.b16 %v3531
    %v4470 = vunpack.c.l.b16 %v3532
    %v4471 = vunpack.c.h.b16 %v3532
    %v4472 = vunpack.c.l.b16 %v3533
    %v4473 = vunpack.c.h.b16 %v3533
    %v4474 = vunpack.c.l.b16 %v3534
    %v4475 = vunpack.c.h.b16 %v3534
    %v4476 = vunpack.c.l.b16 %v3535
    %v4477 = vunpack.c.l.b16 %v3536
    %v4478 = vunpack.c.h.b16 %v3536
    %v4479 = vunpack.c.l.b16 %v3537
    %v4480 = vunpack.c.h.b16 %v3537
    %v4481 = vunpack.c.l.b16 %v3538
    %v4482 = vunpack.c.h.b16 %v3538
    %v4483 = vunpack.c.l.b16 %v3539
    %v4484 = vunpack.c.h.b16 %v3539
    %v4485 = vunpack.c.l.b16 %v3540
    %v4486 = vunpack.c.l.b16 %v3541
    %v4487 = vunpack.c.h.b16 %v3541
    %v4488 = vunpack.c.l.b16 %v3542
    %v4489 = vunpack.c.h.b16 %v3542
    %v4490 = vunpack.c.l.b16 %v3543
    %v4491 = vunpack.c.h.b16 %v3543
    %v4492 = vunpack.c.l.b16 %v3544
    %v4493 = vunpack.c.h.b16 %v3544
    %v4494 = vunpack.c.l.b16 %v3545
    %v4495 = vunpack.c.l.b16 %v3546
    %v4496 = vunpack.c.h.b16 %v3546
    %v4497 = vunpack.c.l.b16 %v3547
    %v4498 = vunpack.c.h.b16 %v3547
    %v4499 = vunpack.c.l.b16 %v3548
    %v4500 = vunpack.c.h.b16 %v3548
    %v4501 = vunpack.c.l.b16 %v3549
    %v4502 = vunpack.c.h.b16 %v3549
    %v4503 = vunpack.c.l.b16 %v3550
    %v4504 = vunpack.c.l.b16 %v3551
    %v4505 = vunpack.c.h.b16 %v3551
    %v4506 = vunpack.c.l.b16 %v3552
    %v4507 = vunpack.c.h.b16 %v3552
    %v4508 = vunpack.c.l.b16 %v3553
    %v4509 = vunpack.c.h.b16 %v3553
    %v4510 = vunpack.c.l.b16 %v3554
    %v4511 = vunpack.c.h.b16 %v3554
    %v4512 = vunpack.c.l.b16 %v3555
    %v4513 = vunpack.c.l.b16 %v3556
    %v4514 = vunpack.c.h.b16 %v3556
    %v4515 = vunpack.c.l.b16 %v3557
    %v4516 = vunpack.c.h.b16 %v3557
    %v4517 = vunpack.c.l.b16 %v3558
    %v4518 = vunpack.c.h.b16 %v3558
    %v4519 = vunpack.c.l.b16 %v3559
    %v4520 = vunpack.c.h.b16 %v3559
    %v4521 = vunpack.c.l.b16 %v3560
    %v4522 = vunpack.c.l.b16 %v3561
    %v4523 = vunpack.c.h.b16 %v3561
    %v4524 = vunpack.c.l.b16 %v3562
    %v4525 = vunpack.c.h.b16 %v3562
    %v4526 = vunpack.c.l.b16 %v3563
    %v4527 = vunpack.c.h.b16 %v3563
    %v4528 = vunpack.c.l.b16 %v3564
    %v4529 = vunpack.c.h.b16 %v3564
    %v4530 = vunpack.c.l.b16 %v3565
    %v4531 = vunpack.c.l.b16 %v3566
    %v4532 = vunpack.c.h.b16 %v3566
    %v4533 = vunpack.c.l.b16 %v3567
    %v4534 = vunpack.c.h.b16 %v3567
    %v4535 = vunpack.c.l.b16 %v3568
    %v4536 = vunpack.c.h.b16 %v3568
    %v4537 = vunpack.c.l.b16 %v3569
    %v4538 = vunpack.c.h.b16 %v3569
    %v4539 = vunpack.c.l.b16 %v3570
    %v4540 = vunpack.c.l.b16 %v3571
    %v4541 = vunpack.c.h.b16 %v3571
    %v4542 = vunpack.c.l.b16 %v3572
    %v4543 = vunpack.c.h.b16 %v3572
    %v4544 = vunpack.c.l.b16 %v3573
    %v4545 = vunpack.c.h.b16 %v3573
    %v4546 = vunpack.c.l.b16 %v3574
    %v4547 = vunpack.c.h.b16 %v3574
    %v4548 = vunpack.c.l.b16 %v3575
    %v4549 = vunpack.c.l.b16 %v3576
    %v4550 = vunpack.c.h.b16 %v3576
    %v4551 = vunpack.c.l.b16 %v3577
    %v4552 = vunpack.c.h.b16 %v3577
    %v4553 = vunpack.c.l.b16 %v3578
    %v4554 = vunpack.c.h.b16 %v3578
    %v4555 = vunpack.c.l.b16 %v3579
    %v4556 = vunpack.c.h.b16 %v3579
    %v4557 = vunpack.c.l.b16 %v3580
    %v4558 = vunpack.c.l.b16 %v3581
    %v4559 = vunpack.c.h.b16 %v3581
    %v4560 = vunpack.c.l.b16 %v3582
    %v4561 = vunpack.c.h.b16 %v3582
    %v4562 = vunpack.c.l.b16 %v3583
    %v4563 = vunpack.c.h.b16 %v3583
    %v4564 = vunpack.c.l.b16 %v3584
    %v4565 = vunpack.c.h.b16 %v3584
    %v4566 = vunpack.c.l.b16 %v3585
    %v4567 = vunpack.c.l.b16 %v3586
    %v4568 = vunpack.c.h.b16 %v3586
    %v4569 = vunpack.c.l.b16 %v3587
    %v4570 = vunpack.c.h.b16 %v3587
    %v4571 = vunpack.c.l.b16 %v3588
    %v4572 = vunpack.c.h.b16 %v3588
    %v4573 = vunpack.c.l.b16 %v3589
    %v4574 = vunpack.c.h.b16 %v3589
    %v4575 = vunpack.c.l.b16 %v3590
    %v4576 = vunpack.c.l.b16 %v3591
    %v4577 = vunpack.c.h.b16 %v3591
    %v4578 = vunpack.c.l.b16 %v3592
    %v4579 = vunpack.c.h.b16 %v3592
    %v4580 = vunpack.c.l.b16 %v3593
    %v4581 = vunpack.c.h.b16 %v3593
    %v4582 = vunpack.c.l.b16 %v3594
    %v4583 = vunpack.c.h.b16 %v3594
    %v4584 = vunpack.c.l.b16 %v3595
    %v4585 = vunpack.c.l.b16 %v3596
    %v4586 = vunpack.c.h.b16 %v3596
    %v4587 = vunpack.c.l.b16 %v3597
    %v4588 = vunpack.c.h.b16 %v3597
    %v4589 = vunpack.c.l.b16 %v3598
    %v4590 = vunpack.c.h.b16 %v3598
    %v4591 = vunpack.c.l.b16 %v3599
    %v4592 = vunpack.c.h.b16 %v3599
    %v4593 = vunpack.c.l.b16 %v3600
    %v4594 = vunpack.c.l.b16 %v3601
    %v4595 = vunpack.c.h.b16 %v3601
    %v4596 = vunpack.c.l.b16 %v3602
    %v4597 = vunpack.c.h.b16 %v3602
    %v4598 = vunpack.c.l.b16 %v3603
    %v4599 = vunpack.c.h.b16 %v3603
    %v4600 = vunpack.c.l.b16 %v3604
    %v4601 = vunpack.c.h.b16 %v3604
    %v4602 = vunpack.c.l.b16 %v3605
    %v4603 = vunpack.c.l.b16 %v3606
    %v4604 = vunpack.c.h.b16 %v3606
    %v4605 = vunpack.c.l.b16 %v3607
    %v4606 = vunpack.c.h.b16 %v3607
    %v4607 = vunpack.c.l.b16 %v3608
    %v4608 = vunpack.c.h.b16 %v3608
    %v4609 = vunpack.c.l.b16 %v3609
    %v4610 = vunpack.c.h.b16 %v3609
    %v4611 = vunpack.c.l.b16 %v3610
    %v4612 = vunpack.c.l.b16 %v3611
    %v4613 = vunpack.c.h.b16 %v3611
    %v4614 = vunpack.c.l.b16 %v3612
    %v4615 = vunpack.c.h.b16 %v3612
    %v4616 = vunpack.c.l.b16 %v3613
    %v4617 = vunpack.c.h.b16 %v3613
    %v4618 = vunpack.c.l.b16 %v3614
    %v4619 = vunpack.c.h.b16 %v3614
    %v4620 = vunpack.c.l.b16 %v3615
    %v4621 = vunpack.c.l.b16 %v3616
    %v4622 = vunpack.c.h.b16 %v3616
    %v4623 = vunpack.c.l.b16 %v3617
    %v4624 = vunpack.c.h.b16 %v3617
    %v4625 = vunpack.c.l.b16 %v3618
    %v4626 = vunpack.c.h.b16 %v3618
    %v4627 = vunpack.c.l.b16 %v3619
    %v4628 = vunpack.c.h.b16 %v3619
    %v4629 = vunpack.c.l.b16 %v3620
    %v4630 = vunpack.c.l.b16 %v3621
    %v4631 = vunpack.c.h.b16 %v3621
    %v4632 = vunpack.c.l.b16 %v3622
    %v4633 = vunpack.c.h.b16 %v3622
    %v4634 = vunpack.c.l.b16 %v3623
    %v4635 = vunpack.c.h.b16 %v3623
    %v4636 = vunpack.c.l.b16 %v3624
    %v4637 = vunpack.c.h.b16 %v3624
    %v4638 = vunpack.c.l.b16 %v3625
    %v4639 = vunpack.c.l.b16 %v3626
    %v4640 = vunpack.c.h.b16 %v3626
    %v4641 = vunpack.c.l.b16 %v3627
    %v4642 = vunpack.c.h.b16 %v3627
    %v4643 = vunpack.c.l.b16 %v3628
    %v4644 = vunpack.c.h.b16 %v3628
    %v4645 = vunpack.c.l.b16 %v3629
    %v4646 = vunpack.c.h.b16 %v3629
    %v4647 = vunpack.c.l.b16 %v3630
    %v4648 = vunpack.c.l.b16 %v3631
    %v4649 = vunpack.c.h.b16 %v3631
    %v4650 = vunpack.c.l.b16 %v3632
    %v4651 = vunpack.c.h.b16 %v3632
    %v4652 = vunpack.c.l.b16 %v3633
    %v4653 = vunpack.c.h.b16 %v3633
    %v4654 = vunpack.c.l.b16 %v3634
    %v4655 = vunpack.c.h.b16 %v3634
    %v4656 = vunpack.c.l.b16 %v3635
    %v4657 = vunpack.c.l.b16 %v3636
    %v4658 = vunpack.c.h.b16 %v3636
    %v4659 = vunpack.c.l.b16 %v3637
    %v4660 = vunpack.c.h.b16 %v3637
    %v4661 = vunpack.c.l.b16 %v3638
    %v4662 = vunpack.c.h.b16 %v3638
    %v4663 = vunpack.c.l.b16 %v3639
    %v4664 = vunpack.c.h.b16 %v3639
    %v4665 = vunpack.c.l.b16 %v3640
    %v4666 = vunpack.c.l.b16 %v3641
    %v4667 = vunpack.c.h.b16 %v3641
    %v4668 = vunpack.c.l.b16 %v3642
    %v4669 = vunpack.c.h.b16 %v3642
    %v4670 = vunpack.c.l.b16 %v3643
    %v4671 = vunpack.c.h.b16 %v3643
    %v4672 = vunpack.c.l.b16 %v3644
    %v4673 = vunpack.c.h.b16 %v3644
    %v4674 = vunpack.c.l.b16 %v3645
    %v4675 = vunpack.c.l.b16 %v3646
    %v4676 = vunpack.c.h.b16 %v3646
    %v4677 = vunpack.c.l.b16 %v3647
    %v4678 = vunpack.c.h.b16 %v3647
    %v4679 = vunpack.c.l.b16 %v3648
    %v4680 = vunpack.c.h.b16 %v3648
    %v4681 = vunpack.c.l.b16 %v3649
    %v4682 = vunpack.c.h.b16 %v3649
    %v4683 = vunpack.c.l.b16 %v3650
    %v4684 = vunpack.c.l.b16 %v3651
    %v4685 = vunpack.c.h.b16 %v3651
    %v4686 = vunpack.c.l.b16 %v3652
    %v4687 = vunpack.c.h.b16 %v3652
    %v4688 = vunpack.c.l.b16 %v3653
    %v4689 = vunpack.c.h.b16 %v3653
    %v4690 = vunpack.c.l.b16 %v3654
    %v4691 = vunpack.c.h.b16 %v3654
    %v4692 = vunpack.c.l.b16 %v3655
    %v4693 = vunpack.c.l.b16 %v3656
    %v4694 = vunpack.c.h.b16 %v3656
    %v4695 = vunpack.c.l.b16 %v3657
    %v4696 = vunpack.c.h.b16 %v3657
    %v4697 = vunpack.c.l.b16 %v3658
    %v4698 = vunpack.c.h.b16 %v3658
    %v4699 = vunpack.c.l.b16 %v3659
    %v4700 = vunpack.c.h.b16 %v3659
    %v4701 = vunpack.c.l.b16 %v3660
    %v4702 = vunpack.c.l.b16 %v3661
    %v4703 = vunpack.c.h.b16 %v3661
    %v4704 = vunpack.c.l.b16 %v3662
    %v4705 = vunpack.c.h.b16 %v3662
    %v4706 = vunpack.c.l.b16 %v3663
    %v4707 = vunpack.c.h.b16 %v3663
    %v4708 = vunpack.c.l.b16 %v3664
    %v4709 = vunpack.c.h.b16 %v3664
    %v4710 = vunpack.c.l.b16 %v3665
    %v4711 = vunpack.c.l.b16 %v3666
    %v4712 = vunpack.c.h.b16 %v3666
    %v4713 = vunpack.c.l.b16 %v3667
    %v4714 = vunpack.c.h.b16 %v3667
    %v4715 = vunpack.c.l.b16 %v3668
    %v4716 = vunpack.c.h.b16 %v3668
    %v4717 = vunpack.c.l.b16 %v3669
    %v4718 = vunpack.c.h.b16 %v3669
    %v4719 = vunpack.c.l.b16 %v3670
    %v4720 = vunpack.c.l.b16 %v3671
    %v4721 = vunpack.c.h.b16 %v3671
    %v4722 = vunpack.c.l.b16 %v3672
    %v4723 = vunpack.c.h.b16 %v3672
    %v4724 = vunpack.c.l.b16 %v3673
    %v4725 = vunpack.c.h.b16 %v3673
    %v4726 = vunpack.c.l.b16 %v3674
    %v4727 = vunpack.c.h.b16 %v3674
    %v4728 = vunpack.c.l.b16 %v3675
    %v4729 = vunpack.c.l.b16 %v3676
    %v4730 = vunpack.c.h.b16 %v3676
    %v4731 = vunpack.c.l.b16 %v3677
    %v4732 = vunpack.c.h.b16 %v3677
    %v4733 = vunpack.c.l.b16 %v3678
    %v4734 = vunpack.c.h.b16 %v3678
    %v4735 = vunpack.c.l.b16 %v3679
    %v4736 = vunpack.c.h.b16 %v3679
    %v4737 = vunpack.c.l.b16 %v3680
    %v4738 = vunpack.c.l.b16 %v3681
    %v4739 = vunpack.c.h.b16 %v3681
    %v4740 = vunpack.c.l.b16 %v3682
    %v4741 = vunpack.c.h.b16 %v3682
    %v4742 = vunpack.c.l.b16 %v3683
    %v4743 = vunpack.c.h.b16 %v3683
    %v4744 = vunpack.c.l.b16 %v3684
    %v4745 = vunpack.c.h.b16 %v3684
    %v4746 = vunpack.c.l.b16 %v3685
    %v4747 = vunpack.c.l.b16 %v3686
    %v4748 = vunpack.c.h.b16 %v3686
    %v4749 = vunpack.c.l.b16 %v3687
    %v4750 = vunpack.c.h.b16 %v3687
    %v4751 = vunpack.c.l.b16 %v3688
    %v4752 = vunpack.c.h.b16 %v3688
    %v4753 = vunpack.c.l.b16 %v3689
    %v4754 = vunpack.c.h.b16 %v3689
    %v4755 = vunpack.c.l.b16 %v3690
    %v4756 = vunpack.c.l.b16 %v3691
    %v4757 = vunpack.c.h.b16 %v3691
    %v4758 = vunpack.c.l.b16 %v3692
    %v4759 = vunpack.c.h.b16 %v3692
    %v4760 = vunpack.c.l.b16 %v3693
    %v4761 = vunpack.c.h.b16 %v3693
    %v4762 = vunpack.c.l.b16 %v3694
    %v4763 = vunpack.c.h.b16 %v3694
    %v4764 = vunpack.c.l.b16 %v3695
    %v4765 = vunpack.c.l.b16 %v3696
    %v4766 = vunpack.c.h.b16 %v3696
    %v4767 = vunpack.c.l.b16 %v3697
    %v4768 = vunpack.c.h.b16 %v3697
    %v4769 = vunpack.c.l.b16 %v3698
    %v4770 = vunpack.c.h.b16 %v3698
    %v4771 = vunpack.c.l.b16 %v3699
    %v4772 = vunpack.c.h.b16 %v3699
    %v4773 = vunpack.c.l.b16 %v3700
    %v4774 = vunpack.c.l.b16 %v3701
    %v4775 = vunpack.c.h.b16 %v3701
    %v4776 = vunpack.c.l.b16 %v3702
    %v4777 = vunpack.c.h.b16 %v3702
    %v4778 = vunpack.c.l.b16 %v3703
    %v4779 = vunpack.c.h.b16 %v3703
    %v4780 = vunpack.c.l.b16 %v3704
    %v4781 = vunpack.c.h.b16 %v3704
    %v4782 = vunpack.c.l.b16 %v3705
    %v4783 = vunpack.c.l.b16 %v3706
    %v4784 = vunpack.c.h.b16 %v3706
    %v4785 = vunpack.c.l.b16 %v3707
    %v4786 = vunpack.c.h.b16 %v3707
    %v4787 = vunpack.c.l.b16 %v3708
    %v4788 = vunpack.c.h.b16 %v3708
    %v4789 = vunpack.c.l.b16 %v3709
    %v4790 = vunpack.c.h.b16 %v3709
    %v4791 = vunpack.c.l.b16 %v3710
    %v4792 = vunpack.c.l.b16 %v3711
    %v4793 = vunpack.c.h.b16 %v3711
    %v4794 = vunpack.c.l.b16 %v3712
    %v4795 = vunpack.c.h.b16 %v3712
    %v4796 = vunpack.c.l.b16 %v3713
    %v4797 = vunpack.c.h.b16 %v3713
    %v4798 = vunpack.c.l.b16 %v3714
    %v4799 = vunpack.c.h.b16 %v3714
    %v4800 = vunpack.c.l.b16 %v3715
    %v4801 = vunpack.c.l.b16 %v3716
    %v4802 = vunpack.c.h.b16 %v3716
    %v4803 = vunpack.c.l.b16 %v3717
    %v4804 = vunpack.c.h.b16 %v3717
    %v4805 = vunpack.c.l.b16 %v3718
    %v4806 = vunpack.c.h.b16 %v3718
    %v4807 = vunpack.c.l.b16 %v3719
    %v4808 = vunpack.c.h.b16 %v3719
    %v4809 = vunpack.c.l.b16 %v3720
    %v4810 = vunpack.c.l.b16 %v3721
    %v4811 = vunpack.c.h.b16 %v3721
    %v4812 = vunpack.c.l.b16 %v3722
    %v4813 = vunpack.c.h.b16 %v3722
    %v4814 = vunpack.c.l.b16 %v3723
    %v4815 = vunpack.c.h.b16 %v3723
    %v4816 = vunpack.c.l.b16 %v3724
    %v4817 = vunpack.c.h.b16 %v3724
    %v4818 = vunpack.c.l.b16 %v3725
    %v4819 = vunpack.c.l.b16 %v3726
    %v4820 = vunpack.c.h.b16 %v3726
    %v4821 = vunpack.c.l.b16 %v3727
    %v4822 = vunpack.c.h.b16 %v3727
    %v4823 = vunpack.c.l.b16 %v3728
    %v4824 = vunpack.c.h.b16 %v3728
    %v4825 = vunpack.c.l.b16 %v3729
    %v4826 = vunpack.c.h.b16 %v3729
    %v4827 = vunpack.c.l.b16 %v3730
    %v4828 = vunpack.c.l.b16 %v3731
    %v4829 = vunpack.c.h.b16 %v3731
    %v4830 = vunpack.c.l.b16 %v3732
    %v4831 = vunpack.c.h.b16 %v3732
    %v4832 = vunpack.c.l.b16 %v3733
    %v4833 = vunpack.c.h.b16 %v3733
    %v4834 = vunpack.c.l.b16 %v3734
    %v4835 = vunpack.c.h.b16 %v3734
    %v4836 = vunpack.c.l.b16 %v3735
    %v4837 = vunpack.c.l.b16 %v3736
    %v4838 = vunpack.c.h.b16 %v3736
    %v4839 = vunpack.c.l.b16 %v3737
    %v4840 = vunpack.c.h.b16 %v3737
    %v4841 = vunpack.c.l.b16 %v3738
    %v4842 = vunpack.c.h.b16 %v3738
    %v4843 = vunpack.c.l.b16 %v3739
    %v4844 = vunpack.c.h.b16 %v3739
    %v4845 = vunpack.c.l.b16 %v3740
    %v4846 = vunpack.c.l.b16 %v3741
    %v4847 = vunpack.c.h.b16 %v3741
    %v4848 = vunpack.c.l.b16 %v3742
    %v4849 = vunpack.c.h.b16 %v3742
    %v4850 = vunpack.c.l.b16 %v3743
    %v4851 = vunpack.c.h.b16 %v3743
    %v4852 = vunpack.c.l.b16 %v3744
    %v4853 = vunpack.c.h.b16 %v3744
    %v4854 = vunpack.c.l.b16 %v3745
    %v4855 = vunpack.c.l.b16 %v3746
    %v4856 = vunpack.c.h.b16 %v3746
    %v4857 = vunpack.c.l.b16 %v3747
    %v4858 = vunpack.c.h.b16 %v3747
    %v4859 = vunpack.c.l.b16 %v3748
    %v4860 = vunpack.c.h.b16 %v3748
    %v4861 = vunpack.c.l.b16 %v3749
    %v4862 = vunpack.c.h.b16 %v3749
    %v4863 = vunpack.c.l.b16 %v3750
    %v4864 = vunpack.c.l.b16 %v3751
    %v4865 = vunpack.c.h.b16 %v3751
    %v4866 = vunpack.c.l.b16 %v3752
    %v4867 = vunpack.c.h.b16 %v3752
    %v4868 = vunpack.c.l.b16 %v3753
    %v4869 = vunpack.c.h.b16 %v3753
    %v4870 = vunpack.c.l.b16 %v3754
    %v4871 = vunpack.c.h.b16 %v3754
    %v4872 = vunpack.c.l.b16 %v3755
    %v4873 = vunpack.c.l.b16 %v3756
    %v4874 = vunpack.c.h.b16 %v3756
    %v4875 = vunpack.c.l.b16 %v3757
    %v4876 = vunpack.c.h.b16 %v3757
    %v4877 = vunpack.c.l.b16 %v3758
    %v4878 = vunpack.c.h.b16 %v3758
    %v4879 = vunpack.c.l.b16 %v3759
    %v4880 = vunpack.c.h.b16 %v3759
    %v4881 = vunpack.c.l.b16 %v3760
    %v4882 = vunpack.c.l.b16 %v3761
    %v4883 = vunpack.c.h.b16 %v3761
    %v4884 = vunpack.c.l.b16 %v3762
    %v4885 = vunpack.c.h.b16 %v3762
    %v4886 = vunpack.c.l.b16 %v3763
    %v4887 = vunpack.c.h.b16 %v3763
    %v4888 = vunpack.c.l.b16 %v3764
    %v4889 = vunpack.c.h.b16 %v3764
    %v4890 = vunpack.c.l.b16 %v3765
    %v4891 = vunpack.c.l.b16 %v3766
    %v4892 = vunpack.c.h.b16 %v3766
    %v4893 = vunpack.c.l.b16 %v3767
    %v4894 = vunpack.c.h.b16 %v3767
    %v4895 = vunpack.c.l.b16 %v3768
    %v4896 = vunpack.c.h.b16 %v3768
    %v4897 = vunpack.c.l.b16 %v3769
    %v4898 = vunpack.c.h.b16 %v3769
    %v4899 = vunpack.c.l.b16 %v3770
    %v4900 = vunpack.c.l.b16 %v3771
    %v4901 = vunpack.c.h.b16 %v3771
    %v4902 = vunpack.c.l.b16 %v3772
    %v4903 = vunpack.c.h.b16 %v3772
    %v4904 = vunpack.c.l.b16 %v3773
    %v4905 = vunpack.c.h.b16 %v3773
    %v4906 = vunpack.c.l.b16 %v3774
    %v4907 = vunpack.c.h.b16 %v3774
    %v4908 = vunpack.c.l.b16 %v3775
    %v4909 = vunpack.c.l.b16 %v3776
    %v4910 = vunpack.c.h.b16 %v3776
    %v4911 = vunpack.c.l.b16 %v3777
    %v4912 = vunpack.c.h.b16 %v3777
    %v4913 = vunpack.c.l.b16 %v3778
    %v4914 = vunpack.c.h.b16 %v3778
    %v4915 = vunpack.c.l.b16 %v3779
    %v4916 = vunpack.c.h.b16 %v3779
    %v4917 = vunpack.c.l.b16 %v3780
    %v4918 = vunpack.c.l.b16 %v3781
    %v4919 = vunpack.c.h.b16 %v3781
    %v4920 = vunpack.c.l.b16 %v3782
    %v4921 = vunpack.c.h.b16 %v3782
    %v4922 = vunpack.c.l.b16 %v3783
    %v4923 = vunpack.c.h.b16 %v3783
    %v4924 = vunpack.c.l.b16 %v3784
    %v4925 = vunpack.c.h.b16 %v3784
    %v4926 = vunpack.c.l.b16 %v3785
    %v4927 = vunpack.c.l.b16 %v3786
    %v4928 = vunpack.c.h.b16 %v3786
    %v4929 = vunpack.c.l.b16 %v3787
    %v4930 = vunpack.c.h.b16 %v3787
    %v4931 = vunpack.c.l.b16 %v3788
    %v4932 = vunpack.c.h.b16 %v3788
    %v4933 = vunpack.c.l.b16 %v3789
    %v4934 = vunpack.c.h.b16 %v3789
    %v4935 = vunpack.c.l.b16 %v3790
    %v4936 = vunpack.c.l.b16 %v3791
    %v4937 = vunpack.c.h.b16 %v3791
    %v4938 = vunpack.c.l.b16 %v3792
    %v4939 = vunpack.c.h.b16 %v3792
    %v4940 = vunpack.c.l.b16 %v3793
    %v4941 = vunpack.c.h.b16 %v3793
    %v4942 = vunpack.c.l.b16 %v3794
    %v4943 = vunpack.c.h.b16 %v3794
    %v4944 = vunpack.c.l.b16 %v3795
    %v4945 = vunpack.c.l.b16 %v3796
    %v4946 = vunpack.c.h.b16 %v3796
    %v4947 = vunpack.c.l.b16 %v3797
    %v4948 = vunpack.c.h.b16 %v3797
    %v4949 = vunpack.c.l.b16 %v3798
    %v4950 = vunpack.c.h.b16 %v3798
    %v4951 = vunpack.c.l.b16 %v3799
    %v4952 = vunpack.c.h.b16 %v3799
    %v4953 = vunpack.c.l.b16 %v3800
    %v4954 = vunpack.c.l.b16 %v3801
    %v4955 = vunpack.c.h.b16 %v3801
    %v4956 = vunpack.c.l.b16 %v3802
    %v4957 = vunpack.c.h.b16 %v3802
    %v4958 = vunpack.c.l.b16 %v3803
    %v4959 = vunpack.c.h.b16 %v3803
    %v4960 = vunpack.c.l.b16 %v3804
    %v4961 = vunpack.c.h.b16 %v3804
    %v4962 = vunpack.c.l.b16 %v3805
    %v4963 = vunpack.c.l.b16 %v3806
    %v4964 = vunpack.c.h.b16 %v3806
    %v4965 = vunpack.c.l.b16 %v3807
    %v4966 = vunpack.c.h.b16 %v3807
    %v4967 = vunpack.c.l.b16 %v3808
    %v4968 = vunpack.c.h.b16 %v3808
    %v4969 = vunpack.c.l.b16 %v3809
    %v4970 = vunpack.c.h.b16 %v3809
    %v4971 = vunpack.c.l.b16 %v3810
    %v4972 = vunpack.c.l.b16 %v3811
    %v4973 = vunpack.c.h.b16 %v3811
    %v4974 = vunpack.c.l.b16 %v3812
    %v4975 = vunpack.c.h.b16 %v3812
    %v4976 = vunpack.c.l.b16 %v3813
    %v4977 = vunpack.c.h.b16 %v3813
    %v4978 = vunpack.c.l.b16 %v3814
    %v4979 = vunpack.c.h.b16 %v3814
    %v4980 = vunpack.c.l.b16 %v3815
    %v4981 = vunpack.c.l.b16 %v3816
    %v4982 = vunpack.c.h.b16 %v3816
    %v4983 = vunpack.c.l.b16 %v3817
    %v4984 = vunpack.c.h.b16 %v3817
    %v4985 = vunpack.c.l.b16 %v3818
    %v4986 = vunpack.c.h.b16 %v3818
    %v4987 = vunpack.c.l.b16 %v3819
    %v4988 = vunpack.c.h.b16 %v3819
    %v4989 = vunpack.c.l.b16 %v3820
    %v4990 = vunpack.c.l.b16 %v3821
    %v4991 = vunpack.c.h.b16 %v3821
    %v4992 = vunpack.c.l.b16 %v3822
    %v4993 = vunpack.c.h.b16 %v3822
    %v4994 = vunpack.c.l.b16 %v3823
    %v4995 = vunpack.c.h.b16 %v3823
    %v4996 = vunpack.c.l.b16 %v3824
    %v4997 = vunpack.c.h.b16 %v3824
    %v4998 = vunpack.c.l.b16 %v3825
    %v4999 = vunpack.c.l.b16 %v3826
    %v5000 = vunpack.c.h.b16 %v3826
    %v5001 = vunpack.c.l.b16 %v3827
    %v5002 = vunpack.c.h.b16 %v3827
    %v5003 = vunpack.c.l.b16 %v3828
    %v5004 = vunpack.c.h.b16 %v3828
    %v5005 = vunpack.c.l.b16 %v3829
    %v5006 = vunpack.c.h.b16 %v3829
    %v5007 = vunpack.c.l.b16 %v3830
    %v5008 = vunpack.c.l.b16 %v3831
    %v5009 = vunpack.c.h.b16 %v3831
    %v5010 = vunpack.c.l.b16 %v3832
    %v5011 = vunpack.c.h.b16 %v3832
    %v5012 = vunpack.c.l.b16 %v3833
    %v5013 = vunpack.c.h.b16 %v3833
    %v5014 = vunpack.c.l.b16 %v3834
    %v5015 = vunpack.c.h.b16 %v3834
    %v5016 = vunpack.c.l.b16 %v3835
    %v5017 = vunpack.c.l.b16 %v3836
    %v5018 = vunpack.c.h.b16 %v3836
    %v5019 = vunpack.c.l.b16 %v3837
    %v5020 = vunpack.c.h.b16 %v3837
    %v5021 = vunpack.c.l.b16 %v3838
    %v5022 = vunpack.c.h.b16 %v3838
    %v5023 = vunpack.c.l.b16 %v3839
    %v5024 = vunpack.c.h.b16 %v3839
    %v5025 = vunpack.c.l.b16 %v3840
    %v5026 = vunpack.c.l.b16 %v3841
    %v5027 = vunpack.c.h.b16 %v3841
    %v5028 = vunpack.c.l.b16 %v3842
    %v5029 = vunpack.c.h.b16 %v3842
    %v5030 = vunpack.c.l.b16 %v3843
    %v5031 = vunpack.c.h.b16 %v3843
    %v5032 = vunpack.c.l.b16 %v3844
    %v5033 = vunpack.c.h.b16 %v3844
    %v5034 = vunpack.c.l.b16 %v3845
    %v5035 = vunpack.c.l.b16 %v3846
    %v5036 = vunpack.c.h.b16 %v3846
    %v5037 = vunpack.c.l.b16 %v3847
    %v5038 = vunpack.c.h.b16 %v3847
    %v5039 = vunpack.c.l.b16 %v3848
    %v5040 = vunpack.c.h.b16 %v3848
    %v5041 = vunpack.c.l.b16 %v3849
    %v5042 = vunpack.c.h.b16 %v3849
    %v5043 = vunpack.c.l.b16 %v3850
    %v5044 = vunpack.c.l.b16 %v3851
    %v5045 = vunpack.c.h.b16 %v3851
    %v5046 = vunpack.c.l.b16 %v3852
    %v5047 = vunpack.c.h.b16 %v3852
    %v5048 = vunpack.c.l.b16 %v3853
    %v5049 = vunpack.c.h.b16 %v3853
    %v5050 = vunpack.c.l.b16 %v3854
    %v5051 = vunpack.c.h.b16 %v3854
    %v5052 = vunpack.c.l.b16 %v3855
    %v5053 = vunpack.c.l.b16 %v3856
    %v5054 = vunpack.c.h.b16 %v3856
    %v5055 = vunpack.c.l.b16 %v3857
    %v5056 = vunpack.c.h.b16 %v3857
    %v5057 = vunpack.c.l.b16 %v3858
    %v5058 = vunpack.c.h.b16 %v3858
    %v5059 = vunpack.c.l.b16 %v3859
    %v5060 = vunpack.c.h.b16 %v3859
    %v5061 = vunpack.c.l.b16 %v3860
    %v5062 = vunpack.c.l.b16 %v3861
    %v5063 = vunpack.c.h.b16 %v3861
    %v5064 = vunpack.c.l.b16 %v3862
    %v5065 = vunpack.c.h.b16 %v3862
    %v5066 = vunpack.c.l.b16 %v3863
    %v5067 = vunpack.c.h.b16 %v3863
    %v5068 = vunpack.c.l.b16 %v3864
    %v5069 = vunpack.c.h.b16 %v3864
    %v5070 = vunpack.c.l.b16 %v3865
    %v5071 = vunpack.c.l.b16 %v3866
    %v5072 = vunpack.c.h.b16 %v3866
    %v5073 = vunpack.c.l.b16 %v3867
    %v5074 = vunpack.c.h.b16 %v3867
    %v5075 = vunpack.c.l.b16 %v3868
    %v5076 = vunpack.c.h.b16 %v3868
    %v5077 = vunpack.c.l.b16 %v3869
    %v5078 = vunpack.c.h.b16 %v3869
    %v5079 = vunpack.c.l.b16 %v3870
    %v5080 = vunpack.c.l.b16 %v3871
    %v5081 = vunpack.c.h.b16 %v3871
    %v5082 = vunpack.c.l.b16 %v3872
    %v5083 = vunpack.c.h.b16 %v3872
    %v5084 = vunpack.c.l.b16 %v3873
    %v5085 = vunpack.c.h.b16 %v3873
    %v5086 = vunpack.c.l.b16 %v3874
    %v5087 = vunpack.c.h.b16 %v3874
    %v5088 = vunpack.c.l.b16 %v3875
    %v5089 = vunpack.c.l.b16 %v3876
    %v5090 = vunpack.c.h.b16 %v3876
    %v5091 = vunpack.c.l.b16 %v3877
    %v5092 = vunpack.c.h.b16 %v3877
    %v5093 = vunpack.c.l.b16 %v3878
    %v5094 = vunpack.c.h.b16 %v3878
    %v5095 = vunpack.c.l.b16 %v3879
    %v5096 = vunpack.c.h.b16 %v3879
    %v5097 = vunpack.c.l.b16 %v3880
    %v5098 = vunpack.c.l.b16 %v3881
    %v5099 = vunpack.c.h.b16 %v3881
    %v5100 = vunpack.c.l.b16 %v3882
    %v5101 = vunpack.c.h.b16 %v3882
    %v5102 = vunpack.c.l.b16 %v3883
    %v5103 = vunpack.c.h.b16 %v3883
    %v5104 = vunpack.c.l.b16 %v3884
    %v5105 = vunpack.c.h.b16 %v3884
    %v5106 = vunpack.c.l.b16 %v3885
    %v5107 = vunpack.c.l.b16 %v3886
    %v5108 = vunpack.c.h.b16 %v3886
    %v5109 = vunpack.c.l.b16 %v3887
    %v5110 = vunpack.c.h.b16 %v3887
    %v5111 = vunpack.c.l.b16 %v3888
    %v5112 = vunpack.c.h.b16 %v3888
    %v5113 = vunpack.c.l.b16 %v3889
    %v5114 = vunpack.c.h.b16 %v3889
    %v5115 = vunpack.c.l.b16 %v3890
    %v5116 = vpack.c.b16 %v4369, %v4360
    %v5117 = vpack.c.b16 %v4370, %v4361
    %v5118 = vpack.c.b16 %v4371, %v4362
    %v5119 = vpack.c.b16 %v4372, %v4363
    %v5120 = vpack.c.b16 %v4373, %v4364
    %v5121 = vpack.c.b16 %v4374, %v4365
    %v5122 = vpack.c.b16 %v4375, %v4366
    %v5123 = vpack.c.b16 %v4376, %v4367
    %v5124 = vpack.c.b16 %v4377, %v4368
    %v5125 = vpack.c.b16 %v4387, %v4378
    %v5126 = vpack.c.b16 %v4388, %v4379
    %v5127 = vpack.c.b16 %v4389, %v4380
    %v5128 = vpack.c.b16 %v4390, %v4381
    %v5129 = vpack.c.b16 %v4391, %v4382
    %v5130 = vpack.c.b16 %v4392, %v4383
    %v5131 = vpack.c.b16 %v4393, %v4384
    %v5132 = vpack.c.b16 %v4394, %v4385
    %v5133 = vpack.c.b16 %v4395, %v4386
    %v5134 = vpack.c.b16 %v4405, %v4396
    %v5135 = vpack.c.b16 %v4406, %v4397
    %v5136 = vpack.c.b16 %v4407, %v4398
    %v5137 = vpack.c.b16 %v4408, %v4399
    %v5138 = vpack.c.b16 %v4409, %v4400
    %v5139 = vpack.c.b16 %v4410, %v4401
    %v5140 = vpack.c.b16 %v4411, %v4402
    %v5141 = vpack.c.b16 %v4412, %v4403
    %v5142 = vpack.c.b16 %v4413, %v4404
    %v5143 = vpack.c.b16 %v4423, %v4414
    %v5144 = vpack.c.b16 %v4424, %v4415
    %v5145 = vpack.c.b16 %v4425, %v4416
    %v5146 = vpack.c.b16 %v4426, %v4417
    %v5147 = vpack.c.b16 %v4427, %v4418
    %v5148 = vpack.c.b16 %v4428, %v4419
    %v5149 = vpack.c.b16 %v4429, %v4420
    %v5150 = vpack.c.b16 %v4430, %v4421
    %v5151 = vpack.c.b16 %v4431, %v4422
    %v5152 = vpack.c.b16 %v4441, %v4432
    %v5153 = vpack.c.b16 %v4442, %v4433
    %v5154 = vpack.c.b16 %v4443, %v4434
    %v5155 = vpack.c.b16 %v4444, %v4435
    %v5156 = vpack.c.b16 %v4445, %v4436
    %v5157 = vpack.c.b16 %v4446, %v4437
    %v5158 = vpack.c.b16 %v4447, %v4438
    %v5159 = vpack.c.b16 %v4448, %v4439
    %v5160 = vpack.c.b16 %v4449, %v4440
    %v5161 = vpack.c.b16 %v4459, %v4450
    %v5162 = vpack.c.b16 %v4460, %v4451
    %v5163 = vpack.c.b16 %v4461, %v4452
    %v5164 = vpack.c.b16 %v4462, %v4453
    %v5165 = vpack.c.b16 %v4463, %v4454
    %v5166 = vpack.c.b16 %v4464, %v4455
    %v5167 = vpack.c.b16 %v4465, %v4456
    %v5168 = vpack.c.b16 %v4466, %v4457
    %v5169 = vpack.c.b16 %v4467, %v4458
    %v5170 = vpack.c.b16 %v4477, %v4468
    %v5171 = vpack.c.b16 %v4478, %v4469
    %v5172 = vpack.c.b16 %v4479, %v4470
    %v5173 = vpack.c.b16 %v4480, %v4471
    %v5174 = vpack.c.b16 %v4481, %v4472
    %v5175 = vpack.c.b16 %v4482, %v4473
    %v5176 = vpack.c.b16 %v4483, %v4474
    %v5177 = vpack.c.b16 %v4484, %v4475
    %v5178 = vpack.c.b16 %v4485, %v4476
    %v5179 = vpack.c.b16 %v4495, %v4486
    %v5180 = vpack.c.b16 %v4496, %v4487
    %v5181 = vpack.c.b16 %v4497, %v4488
    %v5182 = vpack.c.b16 %v4498, %v4489
    %v5183 = vpack.c.b16 %v4499, %v4490
    %v5184 = vpack.c.b16 %v4500, %v4491
    %v5185 = vpack.c.b16 %v4501, %v4492
    %v5186 = vpack.c.b16 %v4502, %v4493
    %v5187 = vpack.c.b16 %v4503, %v4494
    %v5188 = vpack.c.b16 %v4513, %v4504
    %v5189 = vpack.c.b16 %v4514, %v4505
    %v5190 = vpack.c.b16 %v4515, %v4506
    %v5191 = vpack.c.b16 %v4516, %v4507
    %v5192 = vpack.c.b16 %v4517, %v4508
    %v5193 = vpack.c.b16 %v4518, %v4509
    %v5194 = vpack.c.b16 %v4519, %v4510
    %v5195 = vpack.c.b16 %v4520, %v4511
    %v5196 = vpack.c.b16 %v4521, %v4512
    %v5197 = vpack.c.b16 %v4531, %v4522
    %v5198 = vpack.c.b16 %v4532, %v4523
    %v5199 = vpack.c.b16 %v4533, %v4524
    %v5200 = vpack.c.b16 %v4534, %v4525
    %v5201 = vpack.c.b16 %v4535, %v4526
    %v5202 = vpack.c.b16 %v4536, %v4527
    %v5203 = vpack.c.b16 %v4537, %v4528
    %v5204 = vpack.c.b16 %v4538, %v4529
    %v5205 = vpack.c.b16 %v4539, %v4530
    %v5206 = vpack.c.b16 %v4549, %v4540
    %v5207 = vpack.c.b16 %v4550, %v4541
    %v5208 = vpack.c.b16 %v4551, %v4542
    %v5209 = vpack.c.b16 %v4552, %v4543
    %v5210 = vpack.c.b16 %v4553, %v4544
    %v5211 = vpack.c.b16 %v4554, %v4545
    %v5212 = vpack.c.b16 %v4555, %v4546
    %v5213 = vpack.c.b16 %v4556, %v4547
    %v5214 = vpack.c.b16 %v4557, %v4548
    %v5215 = vpack.c.b16 %v4567, %v4558
    %v5216 = vpack.c.b16 %v4568, %v4559
    %v5217 = vpack.c.b16 %v4569, %v4560
    %v5218 = vpack.c.b16 %v4570, %v4561
    %v5219 = vpack.c.b16 %v4571, %v4562
    %v5220 = vpack.c.b16 %v4572, %v4563
    %v5221 = vpack.c.b16 %v4573, %v4564
    %v5222 = vpack.c.b16 %v4574, %v4565
    %v5223 = vpack.c.b16 %v4575, %v4566
    %v5224 = vpack.c.b16 %v4585, %v4576
    %v5225 = vpack.c.b16 %v4586, %v4577
    %v5226 = vpack.c.b16 %v4587, %v4578
    %v5227 = vpack.c.b16 %v4588, %v4579
    %v5228 = vpack.c.b16 %v4589, %v4580
    %v5229 = vpack.c.b16 %v4590, %v4581
    %v5230 = vpack.c.b16 %v4591, %v4582
    %v5231 = vpack.c.b16 %v4592, %v4583
    %v5232 = vpack.c.b16 %v4593, %v4584
    %v5233 = vpack.c.b16 %v4603, %v4594
    %v5234 = vpack.c.b16 %v4604, %v4595
    %v5235 = vpack.c.b16 %v4605, %v4596
    %v5236 = vpack.c.b16 %v4606, %v4597
    %v5237 = vpack.c.b16 %v4607, %v4598
    %v5238 = vpack.c.b16 %v4608, %v4599
    %v5239 = vpack.c.b16 %v4609, %v4600
    %v5240 = vpack.c.b16 %v4610, %v4601
    %v5241 = vpack.c.b16 %v4611, %v4602
    %v5242 = vpack.c.b16 %v4621, %v4612
    %v5243 = vpack.c.b16 %v4622, %v4613
    %v5244 = vpack.c.b16 %v4623, %v4614
    %v5245 = vpack.c.b16 %v4624, %v4615
    %v5246 = vpack.c.b16 %v4625, %v4616
    %v5247 = vpack.c.b16 %v4626, %v4617
    %v5248 = vpack.c.b16 %v4627, %v4618
    %v5249 = vpack.c.b16 %v4628, %v4619
    %v5250 = vpack.c.b16 %v4629, %v4620
    %v5251 = vpack.c.b16 %v4639, %v4630
    %v5252 = vpack.c.b16 %v4640, %v4631
    %v5253 = vpack.c.b16 %v4641, %v4632
    %v5254 = vpack.c.b16 %v4642, %v4633
    %v5255 = vpack.c.b16 %v4643, %v4634
    %v5256 = vpack.c.b16 %v4644, %v4635
    %v5257 = vpack.c.b16 %v4645, %v4636
    %v5258 = vpack.c.b16 %v4646, %v4637
    %v5259 = vpack.c.b16 %v4647, %v4638
    %v5260 = vpack.c.b16 %v4657, %v4648
    %v5261 = vpack.c.b16 %v4658, %v4649
    %v5262 = vpack.c.b16 %v4659, %v4650
    %v5263 = vpack.c.b16 %v4660, %v4651
    %v5264 = vpack.c.b16 %v4661, %v4652
    %v5265 = vpack.c.b16 %v4662, %v4653
    %v5266 = vpack.c.b16 %v4663, %v4654
    %v5267 = vpack.c.b16 %v4664, %v4655
    %v5268 = vpack.c.b16 %v4665, %v4656
    %v5269 = vpack.c.b16 %v4675, %v4666
    %v5270 = vpack.c.b16 %v4676, %v4667
    %v5271 = vpack.c.b16 %v4677, %v4668
    %v5272 = vpack.c.b16 %v4678, %v4669
    %v5273 = vpack.c.b16 %v4679, %v4670
    %v5274 = vpack.c.b16 %v4680, %v4671
    %v5275 = vpack.c.b16 %v4681, %v4672
    %v5276 = vpack.c.b16 %v4682, %v4673
    %v5277 = vpack.c.b16 %v4683, %v4674
    %v5278 = vpack.c.b16 %v4693, %v4684
    %v5279 = vpack.c.b16 %v4694, %v4685
    %v5280 = vpack.c.b16 %v4695, %v4686
    %v5281 = vpack.c.b16 %v4696, %v4687
    %v5282 = vpack.c.b16 %v4697, %v4688
    %v5283 = vpack.c.b16 %v4698, %v4689
    %v5284 = vpack.c.b16 %v4699, %v4690
    %v5285 = vpack.c.b16 %v4700, %v4691
    %v5286 = vpack.c.b16 %v4701, %v4692
    %v5287 = vpack.c.b16 %v4711, %v4702
    %v5288 = vpack.c.b16 %v4712, %v4703
    %v5289 = vpack.c.b16 %v4713, %v4704
    %v5290 = vpack.c.b16 %v4714, %v4705
    %v5291 = vpack.c.b16 %v4715, %v4706
    %v5292 = vpack.c.b16 %v4716, %v4707
    %v5293 = vpack.c.b16 %v4717, %v4708
    %v5294 = vpack.c.b16 %v4718, %v4709
    %v5295 = vpack.c.b16 %v4719, %v4710
    %v5296 = vpack.c.b16 %v4729, %v4720
    %v5297 = vpack.c.b16 %v4730, %v4721
    %v5298 = vpack.c.b16 %v4731, %v4722
    %v5299 = vpack.c.b16 %v4732, %v4723
    %v5300 = vpack.c.b16 %v4733, %v4724
    %v5301 = vpack.c.b16 %v4734, %v4725
    %v5302 = vpack.c.b16 %v4735, %v4726
    %v5303 = vpack.c.b16 %v4736, %v4727
    %v5304 = vpack.c.b16 %v4737, %v4728
    %v5305 = vpack.c.b16 %v4747, %v4738
    %v5306 = vpack.c.b16 %v4748, %v4739
    %v5307 = vpack.c.b16 %v4749, %v4740
    %v5308 = vpack.c.b16 %v4750, %v4741
    %v5309 = vpack.c.b16 %v4751, %v4742
    %v5310 = vpack.c.b16 %v4752, %v4743
    %v5311 = vpack.c.b16 %v4753, %v4744
    %v5312 = vpack.c.b16 %v4754, %v4745
    %v5313 = vpack.c.b16 %v4755, %v4746
    %v5314 = vpack.c.b16 %v4765, %v4756
    %v5315 = vpack.c.b16 %v4766, %v4757
    %v5316 = vpack.c.b16 %v4767, %v4758
    %v5317 = vpack.c.b16 %v4768, %v4759
    %v5318 = vpack.c.b16 %v4769, %v4760
    %v5319 = vpack.c.b16 %v4770, %v4761
    %v5320 = vpack.c.b16 %v4771, %v4762
    %v5321 = vpack.c.b16 %v4772, %v4763
    %v5322 = vpack.c.b16 %v4773, %v4764
    %v5323 = vpack.c.b16 %v4783, %v4774
    %v5324 = vpack.c.b16 %v4784, %v4775
    %v5325 = vpack.c.b16 %v4785, %v4776
    %v5326 = vpack.c.b16 %v4786, %v4777
    %v5327 = vpack.c.b16 %v4787, %v4778
    %v5328 = vpack.c.b16 %v4788, %v4779
    %v5329 = vpack.c.b16 %v4789, %v4780
    %v5330 = vpack.c.b16 %v4790, %v4781
    %v5331 = vpack.c.b16 %v4791, %v4782
    %v5332 = vpack.c.b16 %v4801, %v4792
    %v5333 = vpack.c.b16 %v4802, %v4793
    %v5334 = vpack.c.b16 %v4803, %v4794
    %v5335 = vpack.c.b16 %v4804, %v4795
    %v5336 = vpack.c.b16 %v4805, %v4796
    %v5337 = vpack.c.b16 %v4806, %v4797
    %v5338 = vpack.c.b16 %v4807, %v4798
    %v5339 = vpack.c.b16 %v4808, %v4799
    %v5340 = vpack.c.b16 %v4809, %v4800
    %v5341 = vpack.c.b16 %v4819, %v4810
    %v5342 = vpack.c.b16 %v4820, %v4811
    %v5343 = vpack.c.b16 %v4821, %v4812
    %v5344 = vpack.c.b16 %v4822, %v4813
    %v5345 = vpack.c.b16 %v4823, %v4814
    %v5346 = vpack.c.b16 %v4824, %v4815
    %v5347 = vpack.c.b16 %v4825, %v4816
    %v5348 = vpack.c.b16 %v4826, %v4817
    %v5349 = vpack.c.b16 %v4827, %v4818
    %v5350 = vpack.c.b16 %v4837, %v4828
    %v5351 = vpack.c.b16 %v4838, %v4829
    %v5352 = vpack.c.b16 %v4839, %v4830
    %v5353 = vpack.c.b16 %v4840, %v4831
    %v5354 = vpack.c.b16 %v4841, %v4832
    %v5355 = vpack.c.b16 %v4842, %v4833
    %v5356 = vpack.c.b16 %v4843, %v4834
    %v5357 = vpack.c.b16 %v4844, %v4835
    %v5358 = vpack.c.b16 %v4845, %v4836
    %v5359 = vpack.c.b16 %v4855, %v4846
    %v5360 = vpack.c.b16 %v4856, %v4847
    %v5361 = vpack.c.b16 %v4857, %v4848
    %v5362 = vpack.c.b16 %v4858, %v4849
    %v5363 = vpack.c.b16 %v4859, %v4850
    %v5364 = vpack.c.b16 %v4860, %v4851
    %v5365 = vpack.c.b16 %v4861, %v4852
    %v5366 = vpack.c.b16 %v4862, %v4853
    %v5367 = vpack.c.b16 %v4863, %v4854
    %v5368 = vpack.c.b16 %v4873, %v4864
    %v5369 = vpack.c.b16 %v4874, %v4865
    %v5370 = vpack.c.b16 %v4875, %v4866
    %v5371 = vpack.c.b16 %v4876, %v4867
    %v5372 = vpack.c.b16 %v4877, %v4868
    %v5373 = vpack.c.b16 %v4878, %v4869
    %v5374 = vpack.c.b16 %v4879, %v4870
    %v5375 = vpack.c.b16 %v4880, %v4871
    %v5376 = vpack.c.b16 %v4881, %v4872
    %v5377 = vpack.c.b16 %v4891, %v4882
    %v5378 = vpack.c.b16 %v4892, %v4883
    %v5379 = vpack.c.b16 %v4893, %v4884
    %v5380 = vpack.c.b16 %v4894, %v4885
    %v5381 = vpack.c.b16 %v4895, %v4886
    %v5382 = vpack.c.b16 %v4896, %v4887
    %v5383 = vpack.c.b16 %v4897, %v4888
    %v5384 = vpack.c.b16 %v4898, %v4889
    %v5385 = vpack.c.b16 %v4899, %v4890
    %v5386 = vpack.c.b16 %v4909, %v4900
    %v5387 = vpack.c.b16 %v4910, %v4901
    %v5388 = vpack.c.b16 %v4911, %v4902
    %v5389 = vpack.c.b16 %v4912, %v4903
    %v5390 = vpack.c.b16 %v4913, %v4904
    %v5391 = vpack.c.b16 %v4914, %v4905
    %v5392 = vpack.c.b16 %v4915, %v4906
    %v5393 = vpack.c.b16 %v4916, %v4907
    %v5394 = vpack.c.b16 %v4917, %v4908
    %v5395 = vpack.c.b16 %v4927, %v4918
    %v5396 = vpack.c.b16 %v4928, %v4919
    %v5397 = vpack.c.b16 %v4929, %v4920
    %v5398 = vpack.c.b16 %v4930, %v4921
    %v5399 = vpack.c.b16 %v4931, %v4922
    %v5400 = vpack.c.b16 %v4932, %v4923
    %v5401 = vpack.c.b16 %v4933, %v4924
    %v5402 = vpack.c.b16 %v4934, %v4925
    %v5403 = vpack.c.b16 %v4935, %v4926
    %v5404 = vpack.c.b16 %v4945, %v4936
    %v5405 = vpack.c.b16 %v4946, %v4937
    %v5406 = vpack.c.b16 %v4947, %v4938
    %v5407 = vpack.c.b16 %v4948, %v4939
    %v5408 = vpack.c.b16 %v4949, %v4940
    %v5409 = vpack.c.b16 %v4950, %v4941
    %v5410 = vpack.c.b16 %v4951, %v4942
    %v5411 = vpack.c.b16 %v4952, %v4943
    %v5412 = vpack.c.b16 %v4953, %v4944
    %v5413 = vpack.c.b16 %v4963, %v4954
    %v5414 = vpack.c.b16 %v4964, %v4955
    %v5415 = vpack.c.b16 %v4965, %v4956
    %v5416 = vpack.c.b16 %v4966, %v4957
    %v5417 = vpack.c.b16 %v4967, %v4958
    %v5418 = vpack.c.b16 %v4968, %v4959
    %v5419 = vpack.c.b16 %v4969, %v4960
    %v5420 = vpack.c.b16 %v4970, %v4961
    %v5421 = vpack.c.b16 %v4971, %v4962
    %v5422 = vpack.c.b16 %v4981, %v4972
    %v5423 = vpack.c.b16 %v4982, %v4973
    %v5424 = vpack.c.b16 %v4983, %v4974
    %v5425 = vpack.c.b16 %v4984, %v4975
    %v5426 = vpack.c.b16 %v4985, %v4976
    %v5427 = vpack.c.b16 %v4986, %v4977
    %v5428 = vpack.c.b16 %v4987, %v4978
    %v5429 = vpack.c.b16 %v4988, %v4979
    %v5430 = vpack.c.b16 %v4989, %v4980
    %v5431 = vpack.c.b16 %v4999, %v4990
    %v5432 = vpack.c.b16 %v5000, %v4991
    %v5433 = vpack.c.b16 %v5001, %v4992
    %v5434 = vpack.c.b16 %v5002, %v4993
    %v5435 = vpack.c.b16 %v5003, %v4994
    %v5436 = vpack.c.b16 %v5004, %v4995
    %v5437 = vpack.c.b16 %v5005, %v4996
    %v5438 = vpack.c.b16 %v5006, %v4997
    %v5439 = vpack.c.b16 %v5007, %v4998
    %v5440 = vpack.c.b16 %v5017, %v5008
    %v5441 = vpack.c.b16 %v5018, %v5009
    %v5442 = vpack.c.b16 %v5019, %v5010
    %v5443 = vpack.c.b16 %v5020, %v5011
    %v5444 = vpack.c.b16 %v5021, %v5012
    %v5445 = vpack.c.b16 %v5022, %v5013
    %v5446 = vpack.c.b16 %v5023, %v5014
    %v5447 = vpack.c.b16 %v5024, %v5015
    %v5448 = vpack.c.b16 %v5025, %v5016
    %v5449 = vpack.c.b16 %v5035, %v5026
    %v5450 = vpack.c.b16 %v5036, %v5027
    %v5451 = vpack.c.b16 %v5037, %v5028
    %v5452 = vpack.c.b16 %v5038, %v5029
    %v5453 = vpack.c.b16 %v5039, %v5030
    %v5454 = vpack.c.b16 %v5040, %v5031
    %v5455 = vpack.c.b16 %v5041, %v5032
    %v5456 = vpack.c.b16 %v5042, %v5033
    %v5457 = vpack.c.b16 %v5043, %v5034
    %v5458 = vpack.c.b16 %v5053, %v5044
    %v5459 = vpack.c.b16 %v5054, %v5045
    %v5460 = vpack.c.b16 %v5055, %v5046
    %v5461 = vpack.c.b16 %v5056, %v5047
    %v5462 = vpack.c.b16 %v5057, %v5048
    %v5463 = vpack.c.b16 %v5058, %v5049
    %v5464 = vpack.c.b16 %v5059, %v5050
    %v5465 = vpack.c.b16 %v5060, %v5051
    %v5466 = vpack.c.b16 %v5061, %v5052
    %v5467 = vpack.c.b16 %v5071, %v5062
    %v5468 = vpack.c.b16 %v5072, %v5063
    %v5469 = vpack.c.b16 %v5073, %v5064
    %v5470 = vpack.c.b16 %v5074, %v5065
    %v5471 = vpack.c.b16 %v5075, %v5066
    %v5472 = vpack.c.b16 %v5076, %v5067
    %v5473 = vpack.c.b16 %v5077, %v5068
    %v5474 = vpack.c.b16 %v5078, %v5069
    %v5475 = vpack.c.b16 %v5079, %v5070
    %v5476 = vpack.c.b16 %v5089, %v5080
    %v5477 = vpack.c.b16 %v5090, %v5081
    %v5478 = vpack.c.b16 %v5091, %v5082
    %v5479 = vpack.c.b16 %v5092, %v5083
    %v5480 = vpack.c.b16 %v5093, %v5084
    %v5481 = vpack.c.b16 %v5094, %v5085
    %v5482 = vpack.c.b16 %v5095, %v5086
    %v5483 = vpack.c.b16 %v5096, %v5087
    %v5484 = vpack.c.b16 %v5097, %v5088
    %v5485 = vpack.c.b16 %v5107, %v5098
    %v5486 = vpack.c.b16 %v5108, %v5099
    %v5487 = vpack.c.b16 %v5109, %v5100
    %v5488 = vpack.c.b16 %v5110, %v5101
    %v5489 = vpack.c.b16 %v5111, %v5102
    %v5490 = vpack.c.b16 %v5112, %v5103
    %v5491 = vpack.c.b16 %v5113, %v5104
    %v5492 = vpack.c.b16 %v5114, %v5105
    %v5493 = vpack.c.b16 %v5115, %v5106
    %vm5872 = vcmask 261120
    %v5874 = vsel %vm5872, %v1391, 0
    %5876 = vmatprep.subr.bf16.mxu0 %v5117
    %5877 = vmatpush1.bf16.msra.mxu0 %v5116
    %5878 = vmatprep.subr.bf16.mxu0 %v5126
    %5879 = vmatpush1.bf16.msra.mxu0 %v5125
    %5880 = vmatprep.subr.bf16.mxu0 %v5135
    %5881 = vmatpush1.bf16.msra.mxu0 %v5134
    %5882 = vmatprep.subr.bf16.mxu0 %v5144
    %5883 = vmatpush1.bf16.msra.mxu0 %v5143
    %5884 = vmatprep.subr.bf16.mxu0 %v5153
    %5885 = vmatpush1.bf16.msra.mxu0 %v5152
    %5886 = vmatprep.subr.bf16.mxu0 %v5162
    %5887 = vmatpush1.bf16.msra.mxu0 %v5161
    %5888 = vmatprep.subr.bf16.mxu0 %v5171
    %5889 = vmatpush1.bf16.msra.mxu0 %v5170
    %5890 = vmatprep.subr.bf16.mxu0 %v5180
    %5891 = vmatpush1.bf16.msra.mxu0 %v5179
    %5892 = vmatprep.subr.bf16.mxu0 %v5189
    %5893 = vmatpush1.bf16.msra.mxu0 %v5188
    %5894 = vmatprep.subr.bf16.mxu0 %v5198
    %5895 = vmatpush1.bf16.msra.mxu0 %v5197
    %5896 = vmatprep.subr.bf16.mxu0 %v5207
    %5897 = vmatpush1.bf16.msra.mxu0 %v5206
    %5898 = vmatprep.subr.bf16.mxu0 %v5216
    %5899 = vmatpush1.bf16.msra.mxu0 %v5215
    %5900 = vmatprep.subr.bf16.mxu0 %v5225
    %5901 = vmatpush1.bf16.msra.mxu0 %v5224
    %5902 = vmatprep.subr.bf16.mxu0 %v5234
    %5903 = vmatpush1.bf16.msra.mxu0 %v5233
    %5904 = vmatprep.subr.bf16.mxu0 %v5243
    %5905 = vmatpush1.bf16.msra.mxu0 %v5242
    %5906 = vmatprep.subr.bf16.mxu0 %v5252
    %5907 = vmatpush1.bf16.msra.mxu0 %v5251
    %5908 = vmatprep.mubr.bf16.mxu0 %v1387
    %5909 = vmatmul.mubr.bf16.gmra.mrb[0].mxu0 %v1386
    %v5910 = vpop.f32.mrb[0].mxu0
    %v5911 = vadd.f32 %v3898, %v5910
    %v5912 = vpop.f32.mrb[0].mxu0
    %v5913 = vadd.f32 %v3902, %v5912
    %v5914 = vpop.f32.mrb[0].mxu0
    %v5915 = vpop.f32.mrb[0].mxu0
    %5916 = vdwg.mxu0
    %5917 = vmatprep.subr.bf16.mxu0 %v5261
    %5918 = vmatpush1.bf16.msra.mxu0 %v5260
    %5919 = vmatprep.subr.bf16.mxu0 %v5270
    %5920 = vmatpush1.bf16.msra.mxu0 %v5269
    %5921 = vmatprep.subr.bf16.mxu0 %v5279
    %5922 = vmatpush1.bf16.msra.mxu0 %v5278
    %5923 = vmatprep.subr.bf16.mxu0 %v5288
    %5924 = vmatpush1.bf16.msra.mxu0 %v5287
    %5925 = vmatprep.subr.bf16.mxu0 %v5297
    %5926 = vmatpush1.bf16.msra.mxu0 %v5296
    %5927 = vmatprep.subr.bf16.mxu0 %v5306
    %5928 = vmatpush1.bf16.msra.mxu0 %v5305
    %5929 = vmatprep.subr.bf16.mxu0 %v5315
    %5930 = vmatpush1.bf16.msra.mxu0 %v5314
    %5931 = vmatprep.subr.bf16.mxu0 %v5324
    %5932 = vmatpush1.bf16.msra.mxu0 %v5323
    %5933 = vmatprep.subr.bf16.mxu0 %v5333
    %5934 = vmatpush1.bf16.msra.mxu0 %v5332
    %5935 = vmatprep.subr.bf16.mxu0 %v5342
    %5936 = vmatpush1.bf16.msra.mxu0 %v5341
    %5937 = vmatprep.subr.bf16.mxu0 %v5351
    %5938 = vmatpush1.bf16.msra.mxu0 %v5350
    %5939 = vmatprep.subr.bf16.mxu0 %v5360
    %5940 = vmatpush1.bf16.msra.mxu0 %v5359
    %5941 = vmatprep.subr.bf16.mxu0 %v5369
    %5942 = vmatpush1.bf16.msra.mxu0 %v5368
    %5943 = vmatprep.subr.bf16.mxu0 %v5378
    %5944 = vmatpush1.bf16.msra.mxu0 %v5377
    %5945 = vmatprep.subr.bf16.mxu0 %v5387
    %5946 = vmatpush1.bf16.msra.mxu0 %v5386
    %5947 = vmatprep.subr.bf16.mxu0 %v5396
    %5948 = vmatpush1.bf16.msra.mxu0 %v5395
    %5949 = vmatprep.mubr.bf16.mxu0 %v1389
    %5950 = vmatmul.mubr.bf16.gmra.mrb[0].mxu0 %v1388
    %v5951 = vpop.f32.mrb[0].mxu0
    %v5952 = vadd.f32 %v5911, %v5951
    %v5953 = vpop.f32.mrb[0].mxu0
    %v5954 = vadd.f32 %v5913, %v5953
    %v5955 = vpop.f32.mrb[0].mxu0
    %v5956 = vpop.f32.mrb[0].mxu0
    %5957 = vdwg.mxu0
    %5958 = vmatprep.subr.bf16.mxu0 %v5405
    %5959 = vmatpush1.bf16.msra.mxu0 %v5404
    %5960 = vmatprep.subr.bf16.mxu0 %v5414
    %5961 = vmatpush1.bf16.msra.mxu0 %v5413
    %5962 = vmatprep.subr.bf16.mxu0 %v5423
    %5963 = vmatpush1.bf16.msra.mxu0 %v5422
    %5964 = vmatprep.subr.bf16.mxu0 %v5432
    %5965 = vmatpush1.bf16.msra.mxu0 %v5431
    %5966 = vmatprep.subr.bf16.mxu0 %v5441
    %5967 = vmatpush1.bf16.msra.mxu0 %v5440
    %5968 = vmatprep.subr.bf16.mxu0 %v5450
    %5969 = vmatpush1.bf16.msra.mxu0 %v5449
    %5970 = vmatprep.subr.bf16.mxu0 %v5459
    %5971 = vmatpush1.bf16.msra.mxu0 %v5458
    %5972 = vmatprep.subr.bf16.mxu0 %v5468
    %5973 = vmatpush1.bf16.msra.mxu0 %v5467
    %5974 = vmatprep.subr.bf16.mxu0 %v5477
    %5975 = vmatpush1.bf16.msra.mxu0 %v5476
    %5976 = vmatprep.subr.bf16.mxu0 %v5486
    %5977 = vmatpush1.bf16.msra.mxu0 %v5485
    %5978 = vmatprep.subr.bf16.mxu0 0
    %5979 = vmatpush1.bf16.msra.mxu0 0
    %5980 = vmatprep.subr.bf16.mxu0 0
    %5981 = vmatpush1.bf16.msra.mxu0 0
    %5982 = vmatprep.subr.bf16.mxu0 0
    %5983 = vmatpush1.bf16.msra.mxu0 0
    %5984 = vmatprep.subr.bf16.mxu0 0
    %5985 = vmatpush1.bf16.msra.mxu0 0
    %5986 = vmatprep.subr.bf16.mxu0 0
    %5987 = vmatpush1.bf16.msra.mxu0 0
    %5988 = vmatprep.subr.bf16.mxu0 0
    %5989 = vmatpush1.bf16.msra.mxu0 0
    %5990 = vmatprep.mubr.bf16.mxu0 %v5874
    %5991 = vmatmul.mubr.bf16.gmra.mrb[0].mxu0 %v1390
    %v5992 = vpop.f32.mrb[0].mxu0
    %v5993 = vadd.f32 %v5952, %v5992
    %v5994 = vpop.f32.mrb[0].mxu0
    %v5995 = vadd.f32 %v5954, %v5994
    %v5996 = vpop.f32.mrb[0].mxu0
    %v5997 = vpop.f32.mrb[0].mxu0
    %5998 = vdwg.mxu0
    %5999 = vmatprep.subr.bf16.mxu0 %v5119
    %6000 = vmatpush1.bf16.msra.mxu0 %v5118
    %6001 = vmatprep.subr.bf16.mxu0 %v5128
    %6002 = vmatpush1.bf16.msra.mxu0 %v5127
    %6003 = vmatprep.subr.bf16.mxu0 %v5137
    %6004 = vmatpush1.bf16.msra.mxu0 %v5136
    %6005 = vmatprep.subr.bf16.mxu0 %v5146
    %6006 = vmatpush1.bf16.msra.mxu0 %v5145
    %6007 = vmatprep.subr.bf16.mxu0 %v5155
    %6008 = vmatpush1.bf16.msra.mxu0 %v5154
    %6009 = vmatprep.subr.bf16.mxu0 %v5164
    %6010 = vmatpush1.bf16.msra.mxu0 %v5163
    %6011 = vmatprep.subr.bf16.mxu0 %v5173
    %6012 = vmatpush1.bf16.msra.mxu0 %v5172
    %6013 = vmatprep.subr.bf16.mxu0 %v5182
    %6014 = vmatpush1.bf16.msra.mxu0 %v5181
    %6015 = vmatprep.subr.bf16.mxu0 %v5191
    %6016 = vmatpush1.bf16.msra.mxu0 %v5190
    %6017 = vmatprep.subr.bf16.mxu0 %v5200
    %6018 = vmatpush1.bf16.msra.mxu0 %v5199
    %6019 = vmatprep.subr.bf16.mxu0 %v5209
    %6020 = vmatpush1.bf16.msra.mxu0 %v5208
    %6021 = vmatprep.subr.bf16.mxu0 %v5218
    %6022 = vmatpush1.bf16.msra.mxu0 %v5217
    %6023 = vmatprep.subr.bf16.mxu0 %v5227
    %6024 = vmatpush1.bf16.msra.mxu0 %v5226
    %6025 = vmatprep.subr.bf16.mxu0 %v5236
    %6026 = vmatpush1.bf16.msra.mxu0 %v5235
    %6027 = vmatprep.subr.bf16.mxu0 %v5245
    %6028 = vmatpush1.bf16.msra.mxu0 %v5244
    %6029 = vmatprep.subr.bf16.mxu0 %v5254
    %6030 = vmatpush1.bf16.msra.mxu0 %v5253
    %6031 = vmatprep.mubr.bf16.mxu0 %v1387
    %6032 = vmatmul.mubr.bf16.gmra.mrb[0].mxu0 %v1386
    %v6033 = vpop.f32.mrb[0].mxu0
    %v6034 = vadd.f32 %v3906, %v6033
    %v6035 = vpop.f32.mrb[0].mxu0
    %v6036 = vadd.f32 %v3910, %v6035
    %v6037 = vpop.f32.mrb[0].mxu0
    %v6038 = vpop.f32.mrb[0].mxu0
    %6039 = vdwg.mxu0
    %6040 = vmatprep.subr.bf16.mxu0 %v5263
    %6041 = vmatpush1.bf16.msra.mxu0 %v5262
    %6042 = vmatprep.subr.bf16.mxu0 %v5272
    %6043 = vmatpush1.bf16.msra.mxu0 %v5271
    %6044 = vmatprep.subr.bf16.mxu0 %v5281
    %6045 = vmatpush1.bf16.msra.mxu0 %v5280
    %6046 = vmatprep.subr.bf16.mxu0 %v5290
    %6047 = vmatpush1.bf16.msra.mxu0 %v5289
    %6048 = vmatprep.subr.bf16.mxu0 %v5299
    %6049 = vmatpush1.bf16.msra.mxu0 %v5298
    %6050 = vmatprep.subr.bf16.mxu0 %v5308
    %6051 = vmatpush1.bf16.msra.mxu0 %v5307
    %6052 = vmatprep.subr.bf16.mxu0 %v5317
    %6053 = vmatpush1.bf16.msra.mxu0 %v5316
    %6054 = vmatprep.subr.bf16.mxu0 %v5326
    %6055 = vmatpush1.bf16.msra.mxu0 %v5325
    %6056 = vmatprep.subr.bf16.mxu0 %v5335
    %6057 = vmatpush1.bf16.msra.mxu0 %v5334
    %6058 = vmatprep.subr.bf16.mxu0 %v5344
    %6059 = vmatpush1.bf16.msra.mxu0 %v5343
    %6060 = vmatprep.subr.bf16.mxu0 %v5353
    %6061 = vmatpush1.bf16.msra.mxu0 %v5352
    %6062 = vmatprep.subr.bf16.mxu0 %v5362
    %6063 = vmatpush1.bf16.msra.mxu0 %v5361
    %6064 = vmatprep.subr.bf16.mxu0 %v5371
    %6065 = vmatpush1.bf16.msra.mxu0 %v5370
    %6066 = vmatprep.subr.bf16.mxu0 %v5380
    %6067 = vmatpush1.bf16.msra.mxu0 %v5379
    %6068 = vmatprep.subr.bf16.mxu0 %v5389
    %6069 = vmatpush1.bf16.msra.mxu0 %v5388
    %6070 = vmatprep.subr.bf16.mxu0 %v5398
    %6071 = vmatpush1.bf16.msra.mxu0 %v5397
    %6072 = vmatprep.mubr.bf16.mxu0 %v1389
    %6073 = vmatmul.mubr.bf16.gmra.mrb[0].mxu0 %v1388
    %v6074 = vpop.f32.mrb[0].mxu0
    %v6075 = vadd.f32 %v6034, %v6074
    %v6076 = vpop.f32.mrb[0].mxu0
    %v6077 = vadd.f32 %v6036, %v6076
    %v6078 = vpop.f32.mrb[0].mxu0
    %v6079 = vpop.f32.mrb[0].mxu0
    %6080 = vdwg.mxu0
    %6081 = vmatprep.subr.bf16.mxu0 %v5407
    %6082 = vmatpush1.bf16.msra.mxu0 %v5406
    %6083 = vmatprep.subr.bf16.mxu0 %v5416
    %6084 = vmatpush1.bf16.msra.mxu0 %v5415
    %6085 = vmatprep.subr.bf16.mxu0 %v5425
    %6086 = vmatpush1.bf16.msra.mxu0 %v5424
    %6087 = vmatprep.subr.bf16.mxu0 %v5434
    %6088 = vmatpush1.bf16.msra.mxu0 %v5433
    %6089 = vmatprep.subr.bf16.mxu0 %v5443
    %6090 = vmatpush1.bf16.msra.mxu0 %v5442
    %6091 = vmatprep.subr.bf16.mxu0 %v5452
    %6092 = vmatpush1.bf16.msra.mxu0 %v5451
    %6093 = vmatprep.subr.bf16.mxu0 %v5461
    %6094 = vmatpush1.bf16.msra.mxu0 %v5460
    %6095 = vmatprep.subr.bf16.mxu0 %v5470
    %6096 = vmatpush1.bf16.msra.mxu0 %v5469
    %6097 = vmatprep.subr.bf16.mxu0 %v5479
    %6098 = vmatpush1.bf16.msra.mxu0 %v5478
    %6099 = vmatprep.subr.bf16.mxu0 %v5488
    %6100 = vmatpush1.bf16.msra.mxu0 %v5487
    %6101 = vmatprep.subr.bf16.mxu0 0
    %6102 = vmatpush1.bf16.msra.mxu0 0
    %6103 = vmatprep.subr.bf16.mxu0 0
    %6104 = vmatpush1.bf16.msra.mxu0 0
    %6105 = vmatprep.subr.bf16.mxu0 0
    %6106 = vmatpush1.bf16.msra.mxu0 0
    %6107 = vmatprep.subr.bf16.mxu0 0
    %6108 = vmatpush1.bf16.msra.mxu0 0
    %6109 = vmatprep.subr.bf16.mxu0 0
    %6110 = vmatpush1.bf16.msra.mxu0 0
    %6111 = vmatprep.subr.bf16.mxu0 0
    %6112 = vmatpush1.bf16.msra.mxu0 0
    %6113 = vmatprep.mubr.bf16.mxu0 %v5874
    %6114 = vmatmul.mubr.bf16.gmra.mrb[0].mxu0 %v1390
    %v6115 = vpop.f32.mrb[0].mxu0
    %v6116 = vadd.f32 %v6075, %v6115
    %v6117 = vpop.f32.mrb[0].mxu0
    %v6118 = vadd.f32 %v6077, %v6117
    %v6119 = vpop.f32.mrb[0].mxu0
    %v6120 = vpop.f32.mrb[0].mxu0
    %6121 = vdwg.mxu0
    %6122 = vmatprep.subr.bf16.mxu0 %v5121
    %6123 = vmatpush1.bf16.msra.mxu0 %v5120
    %6124 = vmatprep.subr.bf16.mxu0 %v5130
    %6125 = vmatpush1.bf16.msra.mxu0 %v5129
    %6126 = vmatprep.subr.bf16.mxu0 %v5139
    %6127 = vmatpush1.bf16.msra.mxu0 %v5138
    %6128 = vmatprep.subr.bf16.mxu0 %v5148
    %6129 = vmatpush1.bf16.msra.mxu0 %v5147
    %6130 = vmatprep.subr.bf16.mxu0 %v5157
    %6131 = vmatpush1.bf16.msra.mxu0 %v5156
    %6132 = vmatprep.subr.bf16.mxu0 %v5166
    %6133 = vmatpush1.bf16.msra.mxu0 %v5165
    %6134 = vmatprep.subr.bf16.mxu0 %v5175
    %6135 = vmatpush1.bf16.msra.mxu0 %v5174
    %6136 = vmatprep.subr.bf16.mxu0 %v5184
    %6137 = vmatpush1.bf16.msra.mxu0 %v5183
    %6138 = vmatprep.subr.bf16.mxu0 %v5193
    %6139 = vmatpush1.bf16.msra.mxu0 %v5192
    %6140 = vmatprep.subr.bf16.mxu0 %v5202
    %6141 = vmatpush1.bf16.msra.mxu0 %v5201
    %6142 = vmatprep.subr.bf16.mxu0 %v5211
    %6143 = vmatpush1.bf16.msra.mxu0 %v5210
    %6144 = vmatprep.subr.bf16.mxu0 %v5220
    %6145 = vmatpush1.bf16.msra.mxu0 %v5219
    %6146 = vmatprep.subr.bf16.mxu0 %v5229
    %6147 = vmatpush1.bf16.msra.mxu0 %v5228
    %6148 = vmatprep.subr.bf16.mxu0 %v5238
    %6149 = vmatpush1.bf16.msra.mxu0 %v5237
    %6150 = vmatprep.subr.bf16.mxu0 %v5247
    %6151 = vmatpush1.bf16.msra.mxu0 %v5246
    %6152 = vmatprep.subr.bf16.mxu0 %v5256
    %6153 = vmatpush1.bf16.msra.mxu0 %v5255
    %6154 = vmatprep.mubr.bf16.mxu0 %v1387
    %6155 = vmatmul.mubr.bf16.gmra.mrb[0].mxu0 %v1386
    %v6156 = vpop.f32.mrb[0].mxu0
    %v6157 = vadd.f32 %v3914, %v6156
    %v6158 = vpop.f32.mrb[0].mxu0
    %v6159 = vadd.f32 %v3918, %v6158
    %v6160 = vpop.f32.mrb[0].mxu0
    %v6161 = vpop.f32.mrb[0].mxu0
    %6162 = vdwg.mxu0
    %6163 = vmatprep.subr.bf16.mxu0 %v5265
    %6164 = vmatpush1.bf16.msra.mxu0 %v5264
    %6165 = vmatprep.subr.bf16.mxu0 %v5274
    %6166 = vmatpush1.bf16.msra.mxu0 %v5273
    %6167 = vmatprep.subr.bf16.mxu0 %v5283
    %6168 = vmatpush1.bf16.msra.mxu0 %v5282
    %6169 = vmatprep.subr.bf16.mxu0 %v5292
    %6170 = vmatpush1.bf16.msra.mxu0 %v5291
    %6171 = vmatprep.subr.bf16.mxu0 %v5301
    %6172 = vmatpush1.bf16.msra.mxu0 %v5300
    %6173 = vmatprep.subr.bf16.mxu0 %v5310
    %6174 = vmatpush1.bf16.msra.mxu0 %v5309
    %6175 = vmatprep.subr.bf16.mxu0 %v5319
    %6176 = vmatpush1.bf16.msra.mxu0 %v5318
    %6177 = vmatprep.subr.bf16.mxu0 %v5328
    %6178 = vmatpush1.bf16.msra.mxu0 %v5327
    %6179 = vmatprep.subr.bf16.mxu0 %v5337
    %6180 = vmatpush1.bf16.msra.mxu0 %v5336
    %6181 = vmatprep.subr.bf16.mxu0 %v5346
    %6182 = vmatpush1.bf16.msra.mxu0 %v5345
    %6183 = vmatprep.subr.bf16.mxu0 %v5355
    %6184 = vmatpush1.bf16.msra.mxu0 %v5354
    %6185 = vmatprep.subr.bf16.mxu0 %v5364
    %6186 = vmatpush1.bf16.msra.mxu0 %v5363
    %6187 = vmatprep.subr.bf16.mxu0 %v5373
    %6188 = vmatpush1.bf16.msra.mxu0 %v5372
    %6189 = vmatprep.subr.bf16.mxu0 %v5382
    %6190 = vmatpush1.bf16.msra.mxu0 %v5381
    %6191 = vmatprep.subr.bf16.mxu0 %v5391
    %6192 = vmatpush1.bf16.msra.mxu0 %v5390
    %6193 = vmatprep.subr.bf16.mxu0 %v5400
    %6194 = vmatpush1.bf16.msra.mxu0 %v5399
    %6195 = vmatprep.mubr.bf16.mxu0 %v1389
    %6196 = vmatmul.mubr.bf16.gmra.mrb[0].mxu0 %v1388
    %v6197 = vpop.f32.mrb[0].mxu0
    %v6198 = vadd.f32 %v6157, %v6197
    %v6199 = vpop.f32.mrb[0].mxu0
    %v6200 = vadd.f32 %v6159, %v6199
    %v6201 = vpop.f32.mrb[0].mxu0
    %v6202 = vpop.f32.mrb[0].mxu0
    %6203 = vdwg.mxu0
    %6204 = vmatprep.subr.bf16.mxu0 %v5409
    %6205 = vmatpush1.bf16.msra.mxu0 %v5408
    %6206 = vmatprep.subr.bf16.mxu0 %v5418
    %6207 = vmatpush1.bf16.msra.mxu0 %v5417
    %6208 = vmatprep.subr.bf16.mxu0 %v5427
    %6209 = vmatpush1.bf16.msra.mxu0 %v5426
    %6210 = vmatprep.subr.bf16.mxu0 %v5436
    %6211 = vmatpush1.bf16.msra.mxu0 %v5435
    %6212 = vmatprep.subr.bf16.mxu0 %v5445
    %6213 = vmatpush1.bf16.msra.mxu0 %v5444
    %6214 = vmatprep.subr.bf16.mxu0 %v5454
    %6215 = vmatpush1.bf16.msra.mxu0 %v5453
    %6216 = vmatprep.subr.bf16.mxu0 %v5463
    %6217 = vmatpush1.bf16.msra.mxu0 %v5462
    %6218 = vmatprep.subr.bf16.mxu0 %v5472
    %6219 = vmatpush1.bf16.msra.mxu0 %v5471
    %6220 = vmatprep.subr.bf16.mxu0 %v5481
    %6221 = vmatpush1.bf16.msra.mxu0 %v5480
    %6222 = vmatprep.subr.bf16.mxu0 %v5490
    %6223 = vmatpush1.bf16.msra.mxu0 %v5489
    %6224 = vmatprep.subr.bf16.mxu0 0
    %6225 = vmatpush1.bf16.msra.mxu0 0
    %6226 = vmatprep.subr.bf16.mxu0 0
    %6227 = vmatpush1.bf16.msra.mxu0 0
    %6228 = vmatprep.subr.bf16.mxu0 0
    %6229 = vmatpush1.bf16.msra.mxu0 0
    %6230 = vmatprep.subr.bf16.mxu0 0
    %6231 = vmatpush1.bf16.msra.mxu0 0
    %6232 = vmatprep.subr.bf16.mxu0 0
    %6233 = vmatpush1.bf16.msra.mxu0 0
    %6234 = vmatprep.subr.bf16.mxu0 0
    %6235 = vmatpush1.bf16.msra.mxu0 0
    %6236 = vmatprep.mubr.bf16.mxu0 %v5874
    %6237 = vmatmul.mubr.bf16.gmra.mrb[0].mxu0 %v1390
    %v6238 = vpop.f32.mrb[0].mxu0
    %v6239 = vadd.f32 %v6198, %v6238
    %v6240 = vpop.f32.mrb[0].mxu0
    %v6241 = vadd.f32 %v6200, %v6240
    %v6242 = vpop.f32.mrb[0].mxu0
    %v6243 = vpop.f32.mrb[0].mxu0
    %6244 = vdwg.mxu0
    %6245 = vmatprep.subr.bf16.mxu0 %v5123
    %6246 = vmatpush1.bf16.msra.mxu0 %v5122
    %6247 = vmatprep.subr.bf16.mxu0 %v5132
    %6248 = vmatpush1.bf16.msra.mxu0 %v5131
    %6249 = vmatprep.subr.bf16.mxu0 %v5141
    %6250 = vmatpush1.bf16.msra.mxu0 %v5140
    %6251 = vmatprep.subr.bf16.mxu0 %v5150
    %6252 = vmatpush1.bf16.msra.mxu0 %v5149
    %6253 = vmatprep.subr.bf16.mxu0 %v5159
    %6254 = vmatpush1.bf16.msra.mxu0 %v5158
    %6255 = vmatprep.subr.bf16.mxu0 %v5168
    %6256 = vmatpush1.bf16.msra.mxu0 %v5167
    %6257 = vmatprep.subr.bf16.mxu0 %v5177
    %6258 = vmatpush1.bf16.msra.mxu0 %v5176
    %6259 = vmatprep.subr.bf16.mxu0 %v5186
    %6260 = vmatpush1.bf16.msra.mxu0 %v5185
    %6261 = vmatprep.subr.bf16.mxu0 %v5195
    %6262 = vmatpush1.bf16.msra.mxu0 %v5194
    %6263 = vmatprep.subr.bf16.mxu0 %v5204
    %6264 = vmatpush1.bf16.msra.mxu0 %v5203
    %6265 = vmatprep.subr.bf16.mxu0 %v5213
    %6266 = vmatpush1.bf16.msra.mxu0 %v5212
    %6267 = vmatprep.subr.bf16.mxu0 %v5222
    %6268 = vmatpush1.bf16.msra.mxu0 %v5221
    %6269 = vmatprep.subr.bf16.mxu0 %v5231
    %6270 = vmatpush1.bf16.msra.mxu0 %v5230
    %6271 = vmatprep.subr.bf16.mxu0 %v5240
    %6272 = vmatpush1.bf16.msra.mxu0 %v5239
    %6273 = vmatprep.subr.bf16.mxu0 %v5249
    %6274 = vmatpush1.bf16.msra.mxu0 %v5248
    %6275 = vmatprep.subr.bf16.mxu0 %v5258
    %6276 = vmatpush1.bf16.msra.mxu0 %v5257
    %6277 = vmatprep.mubr.bf16.mxu0 %v1387
    %6278 = vmatmul.mubr.bf16.gmra.mrb[0].mxu0 %v1386
    %v6279 = vpop.f32.mrb[0].mxu0
    %v6280 = vadd.f32 %v3922, %v6279
    %v6281 = vpop.f32.mrb[0].mxu0
    %v6282 = vadd.f32 %v3926, %v6281
    %v6283 = vpop.f32.mrb[0].mxu0
    %v6284 = vpop.f32.mrb[0].mxu0
    %6285 = vdwg.mxu0
    %6286 = vmatprep.subr.bf16.mxu0 %v5267
    %6287 = vmatpush1.bf16.msra.mxu0 %v5266
    %6288 = vmatprep.subr.bf16.mxu0 %v5276
    %6289 = vmatpush1.bf16.msra.mxu0 %v5275
    %6290 = vmatprep.subr.bf16.mxu0 %v5285
    %6291 = vmatpush1.bf16.msra.mxu0 %v5284
    %6292 = vmatprep.subr.bf16.mxu0 %v5294
    %6293 = vmatpush1.bf16.msra.mxu0 %v5293
    %6294 = vmatprep.subr.bf16.mxu0 %v5303
    %6295 = vmatpush1.bf16.msra.mxu0 %v5302
    %6296 = vmatprep.subr.bf16.mxu0 %v5312
    %6297 = vmatpush1.bf16.msra.mxu0 %v5311
    %6298 = vmatprep.subr.bf16.mxu0 %v5321
    %6299 = vmatpush1.bf16.msra.mxu0 %v5320
    %6300 = vmatprep.subr.bf16.mxu0 %v5330
    %6301 = vmatpush1.bf16.msra.mxu0 %v5329
    %6302 = vmatprep.subr.bf16.mxu0 %v5339
    %6303 = vmatpush1.bf16.msra.mxu0 %v5338
    %6304 = vmatprep.subr.bf16.mxu0 %v5348
    %6305 = vmatpush1.bf16.msra.mxu0 %v5347
    %6306 = vmatprep.subr.bf16.mxu0 %v5357
    %6307 = vmatpush1.bf16.msra.mxu0 %v5356
    %6308 = vmatprep.subr.bf16.mxu0 %v5366
    %6309 = vmatpush1.bf16.msra.mxu0 %v5365
    %6310 = vmatprep.subr.bf16.mxu0 %v5375
    %6311 = vmatpush1.bf16.msra.mxu0 %v5374
    %6312 = vmatprep.subr.bf16.mxu0 %v5384
    %6313 = vmatpush1.bf16.msra.mxu0 %v5383
    %6314 = vmatprep.subr.bf16.mxu0 %v5393
    %6315 = vmatpush1.bf16.msra.mxu0 %v5392
    %6316 = vmatprep.subr.bf16.mxu0 %v5402
    %6317 = vmatpush1.bf16.msra.mxu0 %v5401
    %6318 = vmatprep.mubr.bf16.mxu0 %v1389
    %6319 = vmatmul.mubr.bf16.gmra.mrb[0].mxu0 %v1388
    %v6320 = vpop.f32.mrb[0].mxu0
    %v6321 = vadd.f32 %v6280, %v6320
    %v6322 = vpop.f32.mrb[0].mxu0
    %v6323 = vadd.f32 %v6282, %v6322
    %v6324 = vpop.f32.mrb[0].mxu0
    %v6325 = vpop.f32.mrb[0].mxu0
    %6326 = vdwg.mxu0
    %6327 = vmatprep.subr.bf16.mxu0 %v5411
    %6328 = vmatpush1.bf16.msra.mxu0 %v5410
    %6329 = vmatprep.subr.bf16.mxu0 %v5420
    %6330 = vmatpush1.bf16.msra.mxu0 %v5419
    %6331 = vmatprep.subr.bf16.mxu0 %v5429
    %6332 = vmatpush1.bf16.msra.mxu0 %v5428
    %6333 = vmatprep.subr.bf16.mxu0 %v5438
    %6334 = vmatpush1.bf16.msra.mxu0 %v5437
    %6335 = vmatprep.subr.bf16.mxu0 %v5447
    %6336 = vmatpush1.bf16.msra.mxu0 %v5446
    %6337 = vmatprep.subr.bf16.mxu0 %v5456
    %6338 = vmatpush1.bf16.msra.mxu0 %v5455
    %6339 = vmatprep.subr.bf16.mxu0 %v5465
    %6340 = vmatpush1.bf16.msra.mxu0 %v5464
    %6341 = vmatprep.subr.bf16.mxu0 %v5474
    %6342 = vmatpush1.bf16.msra.mxu0 %v5473
    %6343 = vmatprep.subr.bf16.mxu0 %v5483
    %6344 = vmatpush1.bf16.msra.mxu0 %v5482
    %6345 = vmatprep.subr.bf16.mxu0 %v5492
    %6346 = vmatpush1.bf16.msra.mxu0 %v5491
    %6347 = vmatprep.subr.bf16.mxu0 0
    %6348 = vmatpush1.bf16.msra.mxu0 0
    %6349 = vmatprep.subr.bf16.mxu0 0
    %6350 = vmatpush1.bf16.msra.mxu0 0
    %6351 = vmatprep.subr.bf16.mxu0 0
    %6352 = vmatpush1.bf16.msra.mxu0 0
    %6353 = vmatprep.subr.bf16.mxu0 0
    %6354 = vmatpush1.bf16.msra.mxu0 0
    %6355 = vmatprep.subr.bf16.mxu0 0
    %6356 = vmatpush1.bf16.msra.mxu0 0
    %6357 = vmatprep.subr.bf16.mxu0 0
    %6358 = vmatpush1.bf16.msra.mxu0 0
    %6359 = vmatprep.mubr.bf16.mxu0 %v5874
    %6360 = vmatmul.mubr.bf16.gmra.mrb[0].mxu0 %v1390
    %v6361 = vpop.f32.mrb[0].mxu0
    %v6362 = vadd.f32 %v6321, %v6361
    %v6363 = vpop.f32.mrb[0].mxu0
    %v6364 = vadd.f32 %v6323, %v6363
    %v6365 = vpop.f32.mrb[0].mxu0
    %v6366 = vpop.f32.mrb[0].mxu0
    %6367 = vdwg.mxu0
    %6368 = vmatprep.subr.bf16.mxu0 0
    %6369 = vmatpush1.bf16.msra.mxu0 %v5124
    %6370 = vmatprep.subr.bf16.mxu0 0
    %6371 = vmatpush1.bf16.msra.mxu0 %v5133
    %6372 = vmatprep.subr.bf16.mxu0 0
    %6373 = vmatpush1.bf16.msra.mxu0 %v5142
    %6374 = vmatprep.subr.bf16.mxu0 0
    %6375 = vmatpush1.bf16.msra.mxu0 %v5151
    %6376 = vmatprep.subr.bf16.mxu0 0
    %6377 = vmatpush1.bf16.msra.mxu0 %v5160
    %6378 = vmatprep.subr.bf16.mxu0 0
    %6379 = vmatpush1.bf16.msra.mxu0 %v5169
    %6380 = vmatprep.subr.bf16.mxu0 0
    %6381 = vmatpush1.bf16.msra.mxu0 %v5178
    %6382 = vmatprep.subr.bf16.mxu0 0
    %6383 = vmatpush1.bf16.msra.mxu0 %v5187
    %6384 = vmatprep.subr.bf16.mxu0 0
    %6385 = vmatpush1.bf16.msra.mxu0 %v5196
    %6386 = vmatprep.subr.bf16.mxu0 0
    %6387 = vmatpush1.bf16.msra.mxu0 %v5205
    %6388 = vmatprep.subr.bf16.mxu0 0
    %6389 = vmatpush1.bf16.msra.mxu0 %v5214
    %6390 = vmatprep.subr.bf16.mxu0 0
    %6391 = vmatpush1.bf16.msra.mxu0 %v5223
    %6392 = vmatprep.subr.bf16.mxu0 0
    %6393 = vmatpush1.bf16.msra.mxu0 %v5232
    %6394 = vmatprep.subr.bf16.mxu0 0
    %6395 = vmatpush1.bf16.msra.mxu0 %v5241
    %6396 = vmatprep.subr.bf16.mxu0 0
    %6397 = vmatpush1.bf16.msra.mxu0 %v5250
    %6398 = vmatprep.subr.bf16.mxu0 0
    %6399 = vmatpush1.bf16.msra.mxu0 %v5259
    %6400 = vmatprep.mubr.bf16.mxu0 %v1387
    %6401 = vmatmul.mubr.bf16.gmra.mrb[0].mxu0 %v1386
    %v6402 = vpop.f32.mrb[0].mxu0
    %v6403 = vadd.f32 %v3930, %v6402
    %v6404 = vpop.f32.mrb[0].mxu0
    %v6405 = vpop.f32.mrb[0].mxu0
    %v6406 = vpop.f32.mrb[0].mxu0
    %6407 = vdwg.mxu0
    %6408 = vmatprep.subr.bf16.mxu0 0
    %6409 = vmatpush1.bf16.msra.mxu0 %v5268
    %6410 = vmatprep.subr.bf16.mxu0 0
    %6411 = vmatpush1.bf16.msra.mxu0 %v5277
    %6412 = vmatprep.subr.bf16.mxu0 0
    %6413 = vmatpush1.bf16.msra.mxu0 %v5286
    %6414 = vmatprep.subr.bf16.mxu0 0
    %6415 = vmatpush1.bf16.msra.mxu0 %v5295
    %6416 = vmatprep.subr.bf16.mxu0 0
    %6417 = vmatpush1.bf16.msra.mxu0 %v5304
    %6418 = vmatprep.subr.bf16.mxu0 0
    %6419 = vmatpush1.bf16.msra.mxu0 %v5313
    %6420 = vmatprep.subr.bf16.mxu0 0
    %6421 = vmatpush1.bf16.msra.mxu0 %v5322
    %6422 = vmatprep.subr.bf16.mxu0 0
    %6423 = vmatpush1.bf16.msra.mxu0 %v5331
    %6424 = vmatprep.subr.bf16.mxu0 0
    %6425 = vmatpush1.bf16.msra.mxu0 %v5340
    %6426 = vmatprep.subr.bf16.mxu0 0
    %6427 = vmatpush1.bf16.msra.mxu0 %v5349
    %6428 = vmatprep.subr.bf16.mxu0 0
    %6429 = vmatpush1.bf16.msra.mxu0 %v5358
    %6430 = vmatprep.subr.bf16.mxu0 0
    %6431 = vmatpush1.bf16.msra.mxu0 %v5367
    %6432 = vmatprep.subr.bf16.mxu0 0
    %6433 = vmatpush1.bf16.msra.mxu0 %v5376
    %6434 = vmatprep.subr.bf16.mxu0 0
    %6435 = vmatpush1.bf16.msra.mxu0 %v5385
    %6436 = vmatprep.subr.bf16.mxu0 0
    %6437 = vmatpush1.bf16.msra.mxu0 %v5394
    %6438 = vmatprep.subr.bf16.mxu0 0
    %6439 = vmatpush1.bf16.msra.mxu0 %v5403
    %6440 = vmatprep.mubr.bf16.mxu0 %v1389
    %6441 = vmatmul.mubr.bf16.gmra.mrb[0].mxu0 %v1388
    %v6442 = vpop.f32.mrb[0].mxu0
    %v6443 = vadd.f32 %v6403, %v6442
    %v6444 = vpop.f32.mrb[0].mxu0
    %v6445 = vpop.f32.mrb[0].mxu0
    %v6446 = vpop.f32.mrb[0].mxu0
    %6447 = vdwg.mxu0
    %6448 = vmatprep.subr.bf16.mxu0 0
    %6449 = vmatpush1.bf16.msra.mxu0 %v5412
    %6450 = vmatprep.subr.bf16.mxu0 0
    %6451 = vmatpush1.bf16.msra.mxu0 %v5421
    %6452 = vmatprep.subr.bf16.mxu0 0
    %6453 = vmatpush1.bf16.msra.mxu0 %v5430
    %6454 = vmatprep.subr.bf16.mxu0 0
    %6455 = vmatpush1.bf16.msra.mxu0 %v5439
    %6456 = vmatprep.subr.bf16.mxu0 0
    %6457 = vmatpush1.bf16.msra.mxu0 %v5448
    %6458 = vmatprep.subr.bf16.mxu0 0
    %6459 = vmatpush1.bf16.msra.mxu0 %v5457
    %6460 = vmatprep.subr.bf16.mxu0 0
    %6461 = vmatpush1.bf16.msra.mxu0 %v5466
    %6462 = vmatprep.subr.bf16.mxu0 0
    %6463 = vmatpush1.bf16.msra.mxu0 %v5475
    %6464 = vmatprep.subr.bf16.mxu0 0
    %6465 = vmatpush1.bf16.msra.mxu0 %v5484
    %6466 = vmatprep.subr.bf16.mxu0 0
    %6467 = vmatpush1.bf16.msra.mxu0 %v5493
    %6468 = vmatprep.subr.bf16.mxu0 0
    %6469 = vmatpush1.bf16.msra.mxu0 0
    %6470 = vmatprep.subr.bf16.mxu0 0
    %6471 = vmatpush1.bf16.msra.mxu0 0
    %6472 = vmatprep.subr.bf16.mxu0 0
    %6473 = vmatpush1.bf16.msra.mxu0 0
    %6474 = vmatprep.subr.bf16.mxu0 0
    %6475 = vmatpush1.bf16.msra.mxu0 0
    %6476 = vmatprep.subr.bf16.mxu0 0
    %6477 = vmatpush1.bf16.msra.mxu0 0
    %6478 = vmatprep.subr.bf16.mxu0 0
    %6479 = vmatpush1.bf16.msra.mxu0 0
    %6480 = vmatprep.mubr.bf16.mxu0 %v5874
    %6481 = vmatmul.mubr.bf16.gmra.mrb[0].mxu0 %v1390
    %v6482 = vpop.f32.mrb[0].mxu0
    %v6483 = vadd.f32 %v6443, %v6482
    %v6484 = vpop.f32.mrb[0].mxu0
    %v6485 = vpop.f32.mrb[0].mxu0
    %v6486 = vpop.f32.mrb[0].mxu0
    %6487 = vdwg.mxu0
    %v6488 = vmax.f32 %v2263, 0.0
    %v6489 = vmax.f32 %v2265, 0.0
    %v6490 = vmax.f32 %v2345, 0.0
    %v6491 = vmax.f32 %v2347, 0.0
    %v6492 = vmax.f32 %v2426, 0.0
    %v6493 = vpack.c.bf16 %v6488, %v6488
    %v6494 = vpack.c.bf16 %v6489, %v6489
    %v6495 = vpack.c.bf16 %v6490, %v6490
    %v6496 = vpack.c.bf16 %v6491, %v6491
    %v6497 = vpack.c.bf16 %v6492, %v6492
    %v6498 = vmax.f32 %v3303, 0.0
    %v6499 = vmax.f32 %v3305, 0.0
    %v6500 = vmax.f32 %v3385, 0.0
    %v6501 = vmax.f32 %v3387, 0.0
    %v6502 = vmax.f32 %v3466, 0.0
    %v6503 = vpack.c.bf16 %v6498, %v6498
    %v6504 = vpack.c.bf16 %v6499, %v6499
    %v6505 = vpack.c.bf16 %v6500, %v6500
    %v6506 = vpack.c.bf16 %v6501, %v6501
    %v6507 = vpack.c.bf16 %v6502, %v6502
    %v6508 = vmax.f32 %v5993, 0.0
    %v6509 = vmax.f32 %v5995, 0.0
    %v6510 = vmax.f32 %v6116, 0.0
    %v6511 = vmax.f32 %v6118, 0.0
    %v6512 = vmax.f32 %v6239, 0.0
    %v6513 = vmax.f32 %v6241, 0.0
    %v6514 = vmax.f32 %v6362, 0.0
    %v6515 = vmax.f32 %v6364, 0.0
    %v6516 = vmax.f32 %v6483, 0.0
    %v6517 = vpack.c.bf16 %v6508, %v6508
    %v6518 = vpack.c.bf16 %v6509, %v6509
    %v6519 = vpack.c.bf16 %v6510, %v6510
    %v6520 = vpack.c.bf16 %v6511, %v6511
    %v6521 = vpack.c.bf16 %v6512, %v6512
    %v6522 = vpack.c.bf16 %v6513, %v6513
    %v6523 = vpack.c.bf16 %v6514, %v6514
    %v6524 = vpack.c.bf16 %v6515, %v6515
    %v6525 = vpack.c.bf16 %v6516, %v6516
    %v6526 = vld [vmem:[#allocation7] sm:$0xff]
    %v6527 = vld [vmem:[#allocation7 + $0x8] sm:$0xf]
    %v6528 = vld [vmem:[#allocation7 + $0xc] sm:$0xff]
    %v6529 = vld [vmem:[#allocation7 + $0x14] sm:$0xf]
    %v6530 = vld [vmem:[#allocation7 + $0x18] sm:$0xff]
    %v6531 = vld [vmem:[#allocation7 + $0x20] sm:$0xf]
    %v6532 = vld [vmem:[#allocation7 + $0x24] sm:$0xff]
    %v6533 = vld [vmem:[#allocation7 + $0x2c] sm:$0xf]
    %v6534 = vld [vmem:[#allocation7 + $0x30] sm:$0xff]
    %v6535 = vld [vmem:[#allocation7 + $0x38] sm:$0xf]
    %v6536 = vld [vmem:[#allocation7 + $0x3c] sm:$0xff]
    %v6537 = vld [vmem:[#allocation7 + $0x44] sm:$0xf]
    %v6538 = vld [vmem:[#allocation7 + $0x48] sm:$0xff]
    %v6539 = vld [vmem:[#allocation7 + $0x50] sm:$0xf]
    %v6540 = vld [vmem:[#allocation7 + $0x54] sm:$0xff]
    %v6541 = vld [vmem:[#allocation7 + $0x5c] sm:$0xf]
    %v6542 = vld [vmem:[#allocation7 + $0x60] sm:$0xff]
    %v6543 = vld [vmem:[#allocation7 + $0x68] sm:$0xf]
    %v6544 = vld [vmem:[#allocation7 + $0x6c] sm:$0xff]
    %v6545 = vld [vmem:[#allocation7 + $0x74] sm:$0xf]
    %v6546 = vld [vmem:[#allocation7 + $0x78] sm:$0xff]
    %v6547 = vld [vmem:[#allocation7 + $0x80] sm:$0xf]
    %v6548 = vld [vmem:[#allocation7 + $0x84] sm:$0xff]
    %v6549 = vld [vmem:[#allocation7 + $0x8c] sm:$0xf]
    %v6550 = vld [vmem:[#allocation7 + $0x90] sm:$0xff]
    %v6551 = vld [vmem:[#allocation7 + $0x98] sm:$0xf]
    %v6552 = vld [vmem:[#allocation7 + $0x9c] sm:$0xff]
    %v6553 = vld [vmem:[#allocation7 + $0xa4] sm:$0xf]
    %v6554 = vld [vmem:[#allocation7 + $0xa8] sm:$0xff]
    %v6555 = vld [vmem:[#allocation7 + $0xb0] sm:$0xf]
    %v6556 = vld [vmem:[#allocation7 + $0xb4] sm:$0xff]
    %v6557 = vld [vmem:[#allocation7 + $0xbc] sm:$0xf]
    %v6558 = vld [vmem:[#allocation7 + $0xc0] sm:$0xff]
    %v6559 = vld [vmem:[#allocation7 + $0xc8] sm:$0xf]
    %v6560 = vld [vmem:[#allocation7 + $0xcc] sm:$0xff]
    %v6561 = vld [vmem:[#allocation7 + $0xd4] sm:$0xf]
    %v6562 = vld [vmem:[#allocation7 + $0xd8] sm:$0xff]
    %v6563 = vld [vmem:[#allocation7 + $0xe0] sm:$0xf]
    %v6564 = vld [vmem:[#allocation7 + $0xe4] sm:$0xff]
    %v6565 = vld [vmem:[#allocation7 + $0xec] sm:$0xf]
    %v6566 = vld [vmem:[#allocation7 + $0xf0] sm:$0xff]
    %v6567 = vld [vmem:[#allocation7 + $0xf8] sm:$0xf]
    %v6568 = vld [vmem:[#allocation7 + $0xfc] sm:$0xff]
    %v6569 = vld [vmem:[#allocation7 + $0x104] sm:$0xf]
    %v6570 = vld [vmem:[#allocation7 + $0x108] sm:$0xff]
    %v6571 = vld [vmem:[#allocation7 + $0x110] sm:$0xf]
    %v6572 = vld [vmem:[#allocation7 + $0x114] sm:$0xff]
    %v6573 = vld [vmem:[#allocation7 + $0x11c] sm:$0xf]
    %v6574 = vld [vmem:[#allocation7 + $0x120] sm:$0xff]
    %v6575 = vld [vmem:[#allocation7 + $0x128] sm:$0xf]
    %v6576 = vld [vmem:[#allocation7 + $0x12c] sm:$0xff]
    %v6577 = vld [vmem:[#allocation7 + $0x134] sm:$0xf]
    %v6578 = vld [vmem:[#allocation7 + $0x138] sm:$0xff]
    %v6579 = vld [vmem:[#allocation7 + $0x140] sm:$0xf]
    %v6580 = vld [vmem:[#allocation7 + $0x144] sm:$0xff]
    %v6581 = vld [vmem:[#allocation7 + $0x14c] sm:$0xf]
    %v6582 = vld [vmem:[#allocation7 + $0x150] sm:$0xff]
    %v6583 = vld [vmem:[#allocation7 + $0x158] sm:$0xf]
    %v6584 = vld [vmem:[#allocation7 + $0x15c] sm:$0xff]
    %v6585 = vld [vmem:[#allocation7 + $0x164] sm:$0xf]
    %v6586 = vld [vmem:[#allocation7 + $0x168] sm:$0xff]
    %v6587 = vld [vmem:[#allocation7 + $0x170] sm:$0xf]
    %v6588 = vld [vmem:[#allocation7 + $0x174] sm:$0xff]
    %v6589 = vld [vmem:[#allocation7 + $0x17c] sm:$0xf]
    %v6590 = vld [vmem:[#allocation7 + $0x180] sm:$0xff]
    %v6591 = vld [vmem:[#allocation7 + $0x188] sm:$0xf]
    %v6592 = vld [vmem:[#allocation7 + $0x18c] sm:$0xff]
    %v6593 = vld [vmem:[#allocation7 + $0x194] sm:$0xf]
    %v6594 = vld [vmem:[#allocation7 + $0x198] sm:$0xff]
    %v6595 = vld [vmem:[#allocation7 + $0x1a0] sm:$0xf]
    %v6596 = vld [vmem:[#allocation7 + $0x1a4] sm:$0xff]
    %v6597 = vld [vmem:[#allocation7 + $0x1ac] sm:$0xf]
    %v6598 = vld [vmem:[#allocation7 + $0x1b0] sm:$0xff]
    %v6599 = vld [vmem:[#allocation7 + $0x1b8] sm:$0xf]
    %v6600 = vld [vmem:[#allocation7 + $0x1bc] sm:$0xff]
    %v6601 = vld [vmem:[#allocation7 + $0x1c4] sm:$0xf]
    %v6602 = vld [vmem:[#allocation7 + $0x1c8] sm:$0xff]
    %v6603 = vld [vmem:[#allocation7 + $0x1d0] sm:$0xf]
    %v6604 = vld [vmem:[#allocation7 + $0x1d4] sm:$0xff]
    %v6605 = vld [vmem:[#allocation7 + $0x1dc] sm:$0xf]
    %v6606 = vld [vmem:[#allocation7 + $0x1e0] sm:$0xff]
    %v6607 = vld [vmem:[#allocation7 + $0x1e8] sm:$0xf]
    %v6608 = vld [vmem:[#allocation7 + $0x1ec] sm:$0xff]
    %v6609 = vld [vmem:[#allocation7 + $0x1f4] sm:$0xf]
    %v6610 = vld [vmem:[#allocation7 + $0x1f8] sm:$0xff]
    %v6611 = vld [vmem:[#allocation7 + $0x200] sm:$0xf]
    %v6612 = vld [vmem:[#allocation7 + $0x204] sm:$0xff]
    %v6613 = vld [vmem:[#allocation7 + $0x20c] sm:$0xf]
    %v6614 = vld [vmem:[#allocation7 + $0x210] sm:$0xff]
    %v6615 = vld [vmem:[#allocation7 + $0x218] sm:$0xf]
    %v6616 = vld [vmem:[#allocation7 + $0x21c] sm:$0xff]
    %v6617 = vld [vmem:[#allocation7 + $0x224] sm:$0xf]
    %v6618 = vld [vmem:[#allocation7 + $0x228] sm:$0xff]
    %v6619 = vld [vmem:[#allocation7 + $0x230] sm:$0xf]
    %v6620 = vld [vmem:[#allocation7 + $0x234] sm:$0xff]
    %v6621 = vld [vmem:[#allocation7 + $0x23c] sm:$0xf]
    %v6622 = vld [vmem:[#allocation7 + $0x240] sm:$0xff]
    %v6623 = vld [vmem:[#allocation7 + $0x248] sm:$0xf]
    %v6624 = vld [vmem:[#allocation7 + $0x24c] sm:$0xff]
    %v6625 = vld [vmem:[#allocation7 + $0x254] sm:$0xf]
    %v6626 = vld [vmem:[#allocation7 + $0x258] sm:$0xff]
    %v6627 = vld [vmem:[#allocation7 + $0x260] sm:$0xf]
    %v6628 = vld [vmem:[#allocation7 + $0x264] sm:$0xff]
    %v6629 = vld [vmem:[#allocation7 + $0x26c] sm:$0xf]
    %v6630 = vld [vmem:[#allocation7 + $0x270] sm:$0xff]
    %v6631 = vld [vmem:[#allocation7 + $0x278] sm:$0xf]
    %v6632 = vld [vmem:[#allocation7 + $0x27c] sm:$0xff]
    %v6633 = vld [vmem:[#allocation7 + $0x284] sm:$0xf]
    %v6634 = vld [vmem:[#allocation7 + $0x288] sm:$0xff]
    %v6635 = vld [vmem:[#allocation7 + $0x290] sm:$0xf]
    %v6636 = vld [vmem:[#allocation7 + $0x294] sm:$0xff]
    %v6637 = vld [vmem:[#allocation7 + $0x29c] sm:$0xf]
    %v6638 = vld [vmem:[#allocation7 + $0x2a0] sm:$0xff]
    %v6639 = vld [vmem:[#allocation7 + $0x2a8] sm:$0xf]
    %v6640 = vld [vmem:[#allocation7 + $0x2ac] sm:$0xff]
    %v6641 = vld [vmem:[#allocation7 + $0x2b4] sm:$0xf]
    %v6642 = vld [vmem:[#allocation7 + $0x2b8] sm:$0xff]
    %v6643 = vld [vmem:[#allocation7 + $0x2c0] sm:$0xf]
    %v6644 = vld [vmem:[#allocation7 + $0x2c4] sm:$0xff]
    %v6645 = vld [vmem:[#allocation7 + $0x2cc] sm:$0xf]
    %v6646 = vld [vmem:[#allocation7 + $0x2d0] sm:$0xff]
    %v6647 = vld [vmem:[#allocation7 + $0x2d8] sm:$0xf]
    %v6648 = vld [vmem:[#allocation7 + $0x2dc] sm:$0xff]
    %v6649 = vld [vmem:[#allocation7 + $0x2e4] sm:$0xf]
    %v6650 = vld [vmem:[#allocation7 + $0x2e8] sm:$0xff]
    %v6651 = vld [vmem:[#allocation7 + $0x2f0] sm:$0xf]
    %v6652 = vld [vmem:[#allocation7 + $0x2f4] sm:$0xff]
    %v6653 = vld [vmem:[#allocation7 + $0x2fc] sm:$0xf]
    %v6654 = vld [vmem:[#allocation7 + $0x300] sm:$0xff]
    %v6655 = vld [vmem:[#allocation7 + $0x308] sm:$0xf]
    %v6656 = vld [vmem:[#allocation7 + $0x30c] sm:$0xff]
    %v6657 = vld [vmem:[#allocation7 + $0x314] sm:$0xf]
    %v6658 = vld [vmem:[#allocation7 + $0x318] sm:$0xff]
    %v6659 = vld [vmem:[#allocation7 + $0x320] sm:$0xf]
    %v6660 = vld [vmem:[#allocation7 + $0x324] sm:$0xff]
    %v6661 = vld [vmem:[#allocation7 + $0x32c] sm:$0xf]
    %v6662 = vld [vmem:[#allocation7 + $0x330] sm:$0xff]
    %v6663 = vld [vmem:[#allocation7 + $0x338] sm:$0xf]
    %v6664 = vld [vmem:[#allocation7 + $0x33c] sm:$0xff]
    %v6665 = vld [vmem:[#allocation7 + $0x344] sm:$0xf]
    %v6666 = vld [vmem:[#allocation7 + $0x348] sm:$0xff]
    %v6667 = vld [vmem:[#allocation7 + $0x350] sm:$0xf]
    %v6668 = vld [vmem:[#allocation7 + $0x354] sm:$0xff]
    %v6669 = vld [vmem:[#allocation7 + $0x35c] sm:$0xf]
    %v6670 = vld [vmem:[#allocation7 + $0x360] sm:$0xff]
    %v6671 = vld [vmem:[#allocation7 + $0x368] sm:$0xf]
    %v6672 = vld [vmem:[#allocation7 + $0x36c] sm:$0xff]
    %v6673 = vld [vmem:[#allocation7 + $0x374] sm:$0xf]
    %v6674 = vld [vmem:[#allocation7 + $0x378] sm:$0xff]
    %v6675 = vld [vmem:[#allocation7 + $0x380] sm:$0xf]
    %v6676 = vld [vmem:[#allocation7 + $0x384] sm:$0xff]
    %v6677 = vld [vmem:[#allocation7 + $0x38c] sm:$0xf]
    %v6678 = vld [vmem:[#allocation7 + $0x390] sm:$0xff]
    %v6679 = vld [vmem:[#allocation7 + $0x398] sm:$0xf]
    %v6680 = vld [vmem:[#allocation7 + $0x39c] sm:$0xff]
    %v6681 = vld [vmem:[#allocation7 + $0x3a4] sm:$0xf]
    %v6682 = vld [vmem:[#allocation7 + $0x3a8] sm:$0xff]
    %v6683 = vld [vmem:[#allocation7 + $0x3b0] sm:$0xf]
    %v6684 = vld [vmem:[#allocation7 + $0x3b4] sm:$0xff]
    %v6685 = vld [vmem:[#allocation7 + $0x3bc] sm:$0xf]
    %v6686 = vld [vmem:[#allocation7 + $0x3c0] sm:$0xff]
    %v6687 = vld [vmem:[#allocation7 + $0x3c8] sm:$0xf]
    %v6688 = vld [vmem:[#allocation7 + $0x3cc] sm:$0xff]
    %v6689 = vld [vmem:[#allocation7 + $0x3d4] sm:$0xf]
    %v6690 = vld [vmem:[#allocation7 + $0x3d8] sm:$0xff]
    %v6691 = vld [vmem:[#allocation7 + $0x3e0] sm:$0xf]
    %v6692 = vld [vmem:[#allocation7 + $0x3e4] sm:$0xff]
    %v6693 = vld [vmem:[#allocation7 + $0x3ec] sm:$0xf]
    %v6694 = vld [vmem:[#allocation7 + $0x3f0] sm:$0xff]
    %v6695 = vld [vmem:[#allocation7 + $0x3f8] sm:$0xf]
    %v6696 = vld [vmem:[#allocation7 + $0x3fc] sm:$0xff]
    %v6697 = vld [vmem:[#allocation7 + $0x404] sm:$0xf]
    %v6698 = vld [vmem:[#allocation7 + $0x408] sm:$0xff]
    %v6699 = vld [vmem:[#allocation7 + $0x410] sm:$0xf]
    %v6700 = vld [vmem:[#allocation7 + $0x414] sm:$0xff]
    %v6701 = vld [vmem:[#allocation7 + $0x41c] sm:$0xf]
    %v6702 = vld [vmem:[#allocation7 + $0x420] sm:$0xff]
    %v6703 = vld [vmem:[#allocation7 + $0x428] sm:$0xf]
    %v6704 = vld [vmem:[#allocation7 + $0x42c] sm:$0xff]
    %v6705 = vld [vmem:[#allocation7 + $0x434] sm:$0xf]
    %v6706 = vld [vmem:[#allocation7 + $0x438] sm:$0xff]
    %v6707 = vld [vmem:[#allocation7 + $0x440] sm:$0xf]
    %v6708 = vld [vmem:[#allocation7 + $0x444] sm:$0xff]
    %v6709 = vld [vmem:[#allocation7 + $0x44c] sm:$0xf]
    %v6710 = vld [vmem:[#allocation7 + $0x450] sm:$0xff]
    %v6711 = vld [vmem:[#allocation7 + $0x458] sm:$0xf]
    %v6712 = vld [vmem:[#allocation7 + $0x45c] sm:$0xff]
    %v6713 = vld [vmem:[#allocation7 + $0x464] sm:$0xf]
    %v6714 = vld [vmem:[#allocation7 + $0x468] sm:$0xff]
    %v6715 = vld [vmem:[#allocation7 + $0x470] sm:$0xf]
    %v6716 = vld [vmem:[#allocation7 + $0x474] sm:$0xff]
    %v6717 = vld [vmem:[#allocation7 + $0x47c] sm:$0xf]
    %v6718 = vld [vmem:[#allocation7 + $0x480] sm:$0xff]
    %v6719 = vld [vmem:[#allocation7 + $0x488] sm:$0xf]
    %v6720 = vld [vmem:[#allocation7 + $0x48c] sm:$0xff]
    %v6721 = vld [vmem:[#allocation7 + $0x494] sm:$0xf]
    %v6722 = vld [vmem:[#allocation7 + $0x498] sm:$0xff]
    %v6723 = vld [vmem:[#allocation7 + $0x4a0] sm:$0xf]
    %v6724 = vld [vmem:[#allocation7 + $0x4a4] sm:$0xff]
    %v6725 = vld [vmem:[#allocation7 + $0x4ac] sm:$0xf]
    %v6726 = vld [vmem:[#allocation7 + $0x4b0] sm:$0xff]
    %v6727 = vld [vmem:[#allocation7 + $0x4b8] sm:$0xf]
    %v6728 = vld [vmem:[#allocation7 + $0x4bc] sm:$0xff]
    %v6729 = vld [vmem:[#allocation7 + $0x4c4] sm:$0xf]
    %v6730 = vld [vmem:[#allocation7 + $0x4c8] sm:$0xff]
    %v6731 = vld [vmem:[#allocation7 + $0x4d0] sm:$0xf]
    %v6732 = vld [vmem:[#allocation7 + $0x4d4] sm:$0xff]
    %v6733 = vld [vmem:[#allocation7 + $0x4dc] sm:$0xf]
    %v6734 = vld [vmem:[#allocation7 + $0x4e0] sm:$0xff]
    %v6735 = vld [vmem:[#allocation7 + $0x4e8] sm:$0xf]
    %v6736 = vld [vmem:[#allocation7 + $0x4ec] sm:$0xff]
    %v6737 = vld [vmem:[#allocation7 + $0x4f4] sm:$0xf]
    %v6738 = vld [vmem:[#allocation7 + $0x4f8] sm:$0xff]
    %v6739 = vld [vmem:[#allocation7 + $0x500] sm:$0xf]
    %v6740 = vld [vmem:[#allocation7 + $0x504] sm:$0xff]
    %v6741 = vld [vmem:[#allocation7 + $0x50c] sm:$0xf]
    %v6742 = vld [vmem:[#allocation7 + $0x510] sm:$0xff]
    %v6743 = vld [vmem:[#allocation7 + $0x518] sm:$0xf]
    %v6744 = vld [vmem:[#allocation7 + $0x51c] sm:$0xff]
    %v6745 = vld [vmem:[#allocation7 + $0x524] sm:$0xf]
    %v6746 = vld [vmem:[#allocation7 + $0x528] sm:$0xff]
    %v6747 = vld [vmem:[#allocation7 + $0x530] sm:$0xf]
    %v6748 = vld [vmem:[#allocation7 + $0x534] sm:$0xff]
    %v6749 = vld [vmem:[#allocation7 + $0x53c] sm:$0xf]
    %v6750 = vld [vmem:[#allocation7 + $0x540] sm:$0xff]
    %v6751 = vld [vmem:[#allocation7 + $0x548] sm:$0xf]
    %v6752 = vld [vmem:[#allocation7 + $0x54c] sm:$0xff]
    %v6753 = vld [vmem:[#allocation7 + $0x554] sm:$0xf]
    %v6754 = vld [vmem:[#allocation7 + $0x558] sm:$0xff]
    %v6755 = vld [vmem:[#allocation7 + $0x560] sm:$0xf]
    %v6756 = vld [vmem:[#allocation7 + $0x564] sm:$0xff]
    %v6757 = vld [vmem:[#allocation7 + $0x56c] sm:$0xf]
    %v6758 = vld [vmem:[#allocation7 + $0x570] sm:$0xff]
    %v6759 = vld [vmem:[#allocation7 + $0x578] sm:$0xf]
    %v6760 = vld [vmem:[#allocation7 + $0x57c] sm:$0xff]
    %v6761 = vld [vmem:[#allocation7 + $0x584] sm:$0xf]
    %v6762 = vld [vmem:[#allocation7 + $0x588] sm:$0xff]
    %v6763 = vld [vmem:[#allocation7 + $0x590] sm:$0xf]
    %v6764 = vld [vmem:[#allocation7 + $0x594] sm:$0xff]
    %v6765 = vld [vmem:[#allocation7 + $0x59c] sm:$0xf]
    %v6766 = vld [vmem:[#allocation7 + $0x5a0] sm:$0xff]
    %v6767 = vld [vmem:[#allocation7 + $0x5a8] sm:$0xf]
    %v6768 = vld [vmem:[#allocation7 + $0x5ac] sm:$0xff]
    %v6769 = vld [vmem:[#allocation7 + $0x5b4] sm:$0xf]
    %v6770 = vld [vmem:[#allocation7 + $0x5b8] sm:$0xff]
    %v6771 = vld [vmem:[#allocation7 + $0x5c0] sm:$0xf]
    %v6772 = vld [vmem:[#allocation7 + $0x5c4] sm:$0xff]
    %v6773 = vld [vmem:[#allocation7 + $0x5cc] sm:$0xf]
    %v6774 = vld [vmem:[#allocation7 + $0x5d0] sm:$0xff]
    %v6775 = vld [vmem:[#allocation7 + $0x5d8] sm:$0xf]
    %v6776 = vld [vmem:[#allocation7 + $0x5dc] sm:$0xff]
    %v6777 = vld [vmem:[#allocation7 + $0x5e4] sm:$0xf]
    %v6778 = vld [vmem:[#allocation7 + $0x5e8] sm:$0xff]
    %v6779 = vld [vmem:[#allocation7 + $0x5f0] sm:$0xf]
    %v6780 = vld [vmem:[#allocation7 + $0x5f4] sm:$0xff]
    %v6781 = vld [vmem:[#allocation7 + $0x5fc] sm:$0xf]
    %v6782 = vld [vmem:[#allocation7 + $0x600] sm:$0xff]
    %v6783 = vld [vmem:[#allocation7 + $0x608] sm:$0xf]
    %v6784 = vld [vmem:[#allocation7 + $0x60c] sm:$0xff]
    %v6785 = vld [vmem:[#allocation7 + $0x614] sm:$0xf]
    %v6786 = vld [vmem:[#allocation7 + $0x618] sm:$0xff]
    %v6787 = vld [vmem:[#allocation7 + $0x620] sm:$0xf]
    %v6788 = vld [vmem:[#allocation7 + $0x624] sm:$0xff]
    %v6789 = vld [vmem:[#allocation7 + $0x62c] sm:$0xf]
    %v6790 = vld [vmem:[#allocation7 + $0x630] sm:$0xff]
    %v6791 = vld [vmem:[#allocation7 + $0x638] sm:$0xf]
    %v6792 = vld [vmem:[#allocation7 + $0x63c] sm:$0xff]
    %v6793 = vld [vmem:[#allocation7 + $0x644] sm:$0xf]
    %v6794 = vld [vmem:[#allocation7 + $0x648] sm:$0xff]
    %v6795 = vld [vmem:[#allocation7 + $0x650] sm:$0xf]
    %v6796 = vld [vmem:[#allocation7 + $0x654] sm:$0xff]
    %v6797 = vld [vmem:[#allocation7 + $0x65c] sm:$0xf]
    %v6798 = vld [vmem:[#allocation7 + $0x660] sm:$0xff]
    %v6799 = vld [vmem:[#allocation7 + $0x668] sm:$0xf]
    %v6800 = vld [vmem:[#allocation7 + $0x66c] sm:$0xff]
    %v6801 = vld [vmem:[#allocation7 + $0x674] sm:$0xf]
    %v6802 = vld [vmem:[#allocation7 + $0x678] sm:$0xff]
    %v6803 = vld [vmem:[#allocation7 + $0x680] sm:$0xf]
    %v6804 = vld [vmem:[#allocation7 + $0x684] sm:$0xff]
    %v6805 = vld [vmem:[#allocation7 + $0x68c] sm:$0xf]
    %v6806 = vld [vmem:[#allocation7 + $0x690] sm:$0xff]
    %v6807 = vld [vmem:[#allocation7 + $0x698] sm:$0xf]
    %v6808 = vld [vmem:[#allocation7 + $0x69c] sm:$0xff]
    %v6809 = vld [vmem:[#allocation7 + $0x6a4] sm:$0xf]
    %v6810 = vld [vmem:[#allocation7 + $0x6a8] sm:$0xff]
    %v6811 = vld [vmem:[#allocation7 + $0x6b0] sm:$0xf]
    %v6812 = vld [vmem:[#allocation7 + $0x6b4] sm:$0xff]
    %v6813 = vld [vmem:[#allocation7 + $0x6bc] sm:$0xf]
    %v6814 = vld [vmem:[#allocation7 + $0x6c0] sm:$0xff]
    %v6815 = vld [vmem:[#allocation7 + $0x6c8] sm:$0xf]
    %v6816 = vld [vmem:[#allocation7 + $0x6cc] sm:$0xff]
    %v6817 = vld [vmem:[#allocation7 + $0x6d4] sm:$0xf]
    %v6818 = vld [vmem:[#allocation7 + $0x6d8] sm:$0xff]
    %v6819 = vld [vmem:[#allocation7 + $0x6e0] sm:$0xf]
    %v6820 = vld [vmem:[#allocation7 + $0x6e4] sm:$0xff]
    %v6821 = vld [vmem:[#allocation7 + $0x6ec] sm:$0xf]
    %v6822 = vld [vmem:[#allocation7 + $0x6f0] sm:$0xff]
    %v6823 = vld [vmem:[#allocation7 + $0x6f8] sm:$0xf]
    %v6824 = vld [vmem:[#allocation7 + $0x6fc] sm:$0xff]
    %v6825 = vld [vmem:[#allocation7 + $0x704] sm:$0xf]
    %v6826 = vld [vmem:[#allocation7 + $0x708] sm:$0xff]
    %v6827 = vld [vmem:[#allocation7 + $0x710] sm:$0xf]
    %v6828 = vld [vmem:[#allocation7 + $0x714] sm:$0xff]
    %v6829 = vld [vmem:[#allocation7 + $0x71c] sm:$0xf]
    %v6830 = vld [vmem:[#allocation7 + $0x720] sm:$0xff]
    %v6831 = vld [vmem:[#allocation7 + $0x728] sm:$0xf]
    %v6832 = vld [vmem:[#allocation7 + $0x72c] sm:$0xff]
    %v6833 = vld [vmem:[#allocation7 + $0x734] sm:$0xf]
    %v6834 = vld [vmem:[#allocation7 + $0x738] sm:$0xff]
    %v6835 = vld [vmem:[#allocation7 + $0x740] sm:$0xf]
    %v6836 = vld [vmem:[#allocation7 + $0x744] sm:$0xff]
    %v6837 = vld [vmem:[#allocation7 + $0x74c] sm:$0xf]
    %v6838 = vld [vmem:[#allocation7 + $0x750] sm:$0xff]
    %v6839 = vld [vmem:[#allocation7 + $0x758] sm:$0xf]
    %v6840 = vld [vmem:[#allocation7 + $0x75c] sm:$0xff]
    %v6841 = vld [vmem:[#allocation7 + $0x764] sm:$0xf]
    %v6842 = vld [vmem:[#allocation7 + $0x768] sm:$0xff]
    %v6843 = vld [vmem:[#allocation7 + $0x770] sm:$0xf]
    %v6844 = vld [vmem:[#allocation7 + $0x774] sm:$0xff]
    %v6845 = vld [vmem:[#allocation7 + $0x77c] sm:$0xf]
    %v6846 = vld [vmem:[#allocation7 + $0x780] sm:$0xff]
    %v6847 = vld [vmem:[#allocation7 + $0x788] sm:$0xf]
    %v6848 = vld [vmem:[#allocation7 + $0x78c] sm:$0xff]
    %v6849 = vld [vmem:[#allocation7 + $0x794] sm:$0xf]
    %v6850 = vld [vmem:[#allocation7 + $0x798] sm:$0xff]
    %v6851 = vld [vmem:[#allocation7 + $0x7a0] sm:$0xf]
    %v6852 = vld [vmem:[#allocation7 + $0x7a4] sm:$0xff]
    %v6853 = vld [vmem:[#allocation7 + $0x7ac] sm:$0xf]
    %v6854 = vld [vmem:[#allocation7 + $0x7b0] sm:$0xff]
    %v6855 = vld [vmem:[#allocation7 + $0x7b8] sm:$0xf]
    %v6856 = vld [vmem:[#allocation7 + $0x7bc] sm:$0xff]
    %v6857 = vld [vmem:[#allocation7 + $0x7c4] sm:$0xf]
    %v6858 = vld [vmem:[#allocation7 + $0x7c8] sm:$0xff]
    %v6859 = vld [vmem:[#allocation7 + $0x7d0] sm:$0xf]
    %v6860 = vld [vmem:[#allocation7 + $0x7d4] sm:$0xff]
    %v6861 = vld [vmem:[#allocation7 + $0x7dc] sm:$0xf]
    %v6862 = vld [vmem:[#allocation7 + $0x7e0] sm:$0xff]
    %v6863 = vld [vmem:[#allocation7 + $0x7e8] sm:$0xf]
    %v6864 = vld [vmem:[#allocation7 + $0x7ec] sm:$0xff]
    %v6865 = vld [vmem:[#allocation7 + $0x7f4] sm:$0xf]
    %v6866 = vld [vmem:[#allocation7 + $0x7f8] sm:$0xff]
    %v6867 = vld [vmem:[#allocation7 + $0x800] sm:$0xf]
    %v6868 = vld [vmem:[#allocation7 + $0x804] sm:$0xff]
    %v6869 = vld [vmem:[#allocation7 + $0x80c] sm:$0xf]
    %v6870 = vld [vmem:[#allocation7 + $0x810] sm:$0xff]
    %v6871 = vld [vmem:[#allocation7 + $0x818] sm:$0xf]
    %v6872 = vld [vmem:[#allocation7 + $0x81c] sm:$0xff]
    %v6873 = vld [vmem:[#allocation7 + $0x824] sm:$0xf]
    %v6874 = vld [vmem:[#allocation7 + $0x828] sm:$0xff]
    %v6875 = vld [vmem:[#allocation7 + $0x830] sm:$0xf]
    %v6876 = vld [vmem:[#allocation7 + $0x834] sm:$0xff]
    %v6877 = vld [vmem:[#allocation7 + $0x83c] sm:$0xf]
    %v6878 = vld [vmem:[#allocation7 + $0x840] sm:$0xff]
    %v6879 = vld [vmem:[#allocation7 + $0x848] sm:$0xf]
    %v6880 = vld [vmem:[#allocation7 + $0x84c] sm:$0xff]
    %v6881 = vld [vmem:[#allocation7 + $0x854] sm:$0xf]
    %v6882 = vld [vmem:[#allocation7 + $0x858] sm:$0xff]
    %v6883 = vld [vmem:[#allocation7 + $0x860] sm:$0xf]
    %v6884 = vld [vmem:[#allocation7 + $0x864] sm:$0xff]
    %v6885 = vld [vmem:[#allocation7 + $0x86c] sm:$0xf]
    %v6886 = vld [vmem:[#allocation7 + $0x870] sm:$0xff]
    %v6887 = vld [vmem:[#allocation7 + $0x878] sm:$0xf]
    %v6888 = vld [vmem:[#allocation7 + $0x87c] sm:$0xff]
    %v6889 = vld [vmem:[#allocation7 + $0x884] sm:$0xf]
    %v6890 = vld [vmem:[#allocation7 + $0x888] sm:$0xff]
    %v6891 = vld [vmem:[#allocation7 + $0x890] sm:$0xf]
    %v6892 = vld [vmem:[#allocation7 + $0x894] sm:$0xff]
    %v6893 = vld [vmem:[#allocation7 + $0x89c] sm:$0xf]
    %v6894 = vld [vmem:[#allocation7 + $0x8a0] sm:$0xff]
    %v6895 = vld [vmem:[#allocation7 + $0x8a8] sm:$0xf]
    %v6896 = vld [vmem:[#allocation7 + $0x8ac] sm:$0xff]
    %v6897 = vld [vmem:[#allocation7 + $0x8b4] sm:$0xf]
    %v6898 = vld [vmem:[#allocation7 + $0x8b8] sm:$0xff]
    %v6899 = vld [vmem:[#allocation7 + $0x8c0] sm:$0xf]
    %v6900 = vld [vmem:[#allocation7 + $0x8c4] sm:$0xff]
    %v6901 = vld [vmem:[#allocation7 + $0x8cc] sm:$0xf]
    %v6902 = vld [vmem:[#allocation7 + $0x8d0] sm:$0xff]
    %v6903 = vld [vmem:[#allocation7 + $0x8d8] sm:$0xf]
    %v6904 = vld [vmem:[#allocation7 + $0x8dc] sm:$0xff]
    %v6905 = vld [vmem:[#allocation7 + $0x8e4] sm:$0xf]
    %v6906 = vld [vmem:[#allocation7 + $0x8e8] sm:$0xff]
    %v6907 = vld [vmem:[#allocation7 + $0x8f0] sm:$0xf]
    %v6908 = vld [vmem:[#allocation7 + $0x8f4] sm:$0xff]
    %v6909 = vld [vmem:[#allocation7 + $0x8fc] sm:$0xf]
    %v6910 = vld [vmem:[#allocation7 + $0x900] sm:$0xff]
    %v6911 = vld [vmem:[#allocation7 + $0x908] sm:$0xf]
    %v6912 = vld [vmem:[#allocation7 + $0x90c] sm:$0xff]
    %v6913 = vld [vmem:[#allocation7 + $0x914] sm:$0xf]
    %v6914 = vld [vmem:[#allocation7 + $0x918] sm:$0xff]
    %v6915 = vld [vmem:[#allocation7 + $0x920] sm:$0xf]
    %v6916 = vld [vmem:[#allocation7 + $0x924] sm:$0xff]
    %v6917 = vld [vmem:[#allocation7 + $0x92c] sm:$0xf]
    %v6918 = vld [vmem:[#allocation7 + $0x930] sm:$0xff]
    %v6919 = vld [vmem:[#allocation7 + $0x938] sm:$0xf]
    %v6920 = vld [vmem:[#allocation7 + $0x93c] sm:$0xff]
    %v6921 = vld [vmem:[#allocation7 + $0x944] sm:$0xf]
    %v6922 = vld [vmem:[#allocation7 + $0x948] sm:$0xff]
    %v6923 = vld [vmem:[#allocation7 + $0x950] sm:$0xf]
    %v6924 = vld [vmem:[#allocation7 + $0x954] sm:$0xff]
    %v6925 = vld [vmem:[#allocation7 + $0x95c] sm:$0xf]
    %v6926 = vld [vmem:[#allocation7 + $0x960] sm:$0xff]
    %v6927 = vld [vmem:[#allocation7 + $0x968] sm:$0xf]
    %v6928 = vld [vmem:[#allocation7 + $0x96c] sm:$0xff]
    %v6929 = vld [vmem:[#allocation7 + $0x974] sm:$0xf]
    %v6930 = vld [vmem:[#allocation7 + $0x978] sm:$0xff]
    %v6931 = vld [vmem:[#allocation7 + $0x980] sm:$0xf]
    %v6932 = vld [vmem:[#allocation7 + $0x984] sm:$0xff]
    %v6933 = vld [vmem:[#allocation7 + $0x98c] sm:$0xf]
    %v6934 = vld [vmem:[#allocation7 + $0x990] sm:$0xff]
    %v6935 = vld [vmem:[#allocation7 + $0x998] sm:$0xf]
    %v6936 = vld [vmem:[#allocation7 + $0x99c] sm:$0xff]
    %v6937 = vld [vmem:[#allocation7 + $0x9a4] sm:$0xf]
    %v6938 = vld [vmem:[#allocation7 + $0x9a8] sm:$0xff]
    %v6939 = vld [vmem:[#allocation7 + $0x9b0] sm:$0xf]
    %v6940 = vld [vmem:[#allocation7 + $0x9b4] sm:$0xff]
    %v6941 = vld [vmem:[#allocation7 + $0x9bc] sm:$0xf]
    %v6942 = vld [vmem:[#allocation7 + $0x9c0] sm:$0xff]
    %v6943 = vld [vmem:[#allocation7 + $0x9c8] sm:$0xf]
    %v6944 = vld [vmem:[#allocation7 + $0x9cc] sm:$0xff]
    %v6945 = vld [vmem:[#allocation7 + $0x9d4] sm:$0xf]
    %v6946 = vld [vmem:[#allocation7 + $0x9d8] sm:$0xff]
    %v6947 = vld [vmem:[#allocation7 + $0x9e0] sm:$0xf]
    %v6948 = vld [vmem:[#allocation7 + $0x9e4] sm:$0xff]
    %v6949 = vld [vmem:[#allocation7 + $0x9ec] sm:$0xf]
    %v6950 = vld [vmem:[#allocation7 + $0x9f0] sm:$0xff]
    %v6951 = vld [vmem:[#allocation7 + $0x9f8] sm:$0xf]
    %v6952 = vld [vmem:[#allocation7 + $0x9fc] sm:$0xff]
    %v6953 = vld [vmem:[#allocation7 + $0xa04] sm:$0xf]
    %v6954 = vld [vmem:[#allocation7 + $0xa08] sm:$0xff]
    %v6955 = vld [vmem:[#allocation7 + $0xa10] sm:$0xf]
    %v6956 = vld [vmem:[#allocation7 + $0xa14] sm:$0xff]
    %v6957 = vld [vmem:[#allocation7 + $0xa1c] sm:$0xf]
    %v6958 = vld [vmem:[#allocation7 + $0xa20] sm:$0xff]
    %v6959 = vld [vmem:[#allocation7 + $0xa28] sm:$0xf]
    %v6960 = vld [vmem:[#allocation7 + $0xa2c] sm:$0xff]
    %v6961 = vld [vmem:[#allocation7 + $0xa34] sm:$0xf]
    %v6962 = vld [vmem:[#allocation7 + $0xa38] sm:$0xff]
    %v6963 = vld [vmem:[#allocation7 + $0xa40] sm:$0xf]
    %v6964 = vld [vmem:[#allocation7 + $0xa44] sm:$0xff]
    %v6965 = vld [vmem:[#allocation7 + $0xa4c] sm:$0xf]
    %v6966 = vld [vmem:[#allocation7 + $0xa50] sm:$0xff]
    %v6967 = vld [vmem:[#allocation7 + $0xa58] sm:$0xf]
    %v6968 = vld [vmem:[#allocation7 + $0xa5c] sm:$0xff]
    %v6969 = vld [vmem:[#allocation7 + $0xa64] sm:$0xf]
    %v6970 = vld [vmem:[#allocation7 + $0xa68] sm:$0xff]
    %v6971 = vld [vmem:[#allocation7 + $0xa70] sm:$0xf]
    %v6972 = vld [vmem:[#allocation7 + $0xa74] sm:$0xff]
    %v6973 = vld [vmem:[#allocation7 + $0xa7c] sm:$0xf]
    %v6974 = vld [vmem:[#allocation7 + $0xa80] sm:$0xff]
    %v6975 = vld [vmem:[#allocation7 + $0xa88] sm:$0xf]
    %v6976 = vld [vmem:[#allocation7 + $0xa8c] sm:$0xff]
    %v6977 = vld [vmem:[#allocation7 + $0xa94] sm:$0xf]
    %v6978 = vld [vmem:[#allocation7 + $0xa98] sm:$0xff]
    %v6979 = vld [vmem:[#allocation7 + $0xaa0] sm:$0xf]
    %v6980 = vld [vmem:[#allocation7 + $0xaa4] sm:$0xff]
    %v6981 = vld [vmem:[#allocation7 + $0xaac] sm:$0xf]
    %v6982 = vld [vmem:[#allocation7 + $0xab0] sm:$0xff]
    %v6983 = vld [vmem:[#allocation7 + $0xab8] sm:$0xf]
    %v6984 = vld [vmem:[#allocation7 + $0xabc] sm:$0xff]
    %v6985 = vld [vmem:[#allocation7 + $0xac4] sm:$0xf]
    %v6986 = vld [vmem:[#allocation7 + $0xac8] sm:$0xff]
    %v6987 = vld [vmem:[#allocation7 + $0xad0] sm:$0xf]
    %v6988 = vld [vmem:[#allocation7 + $0xad4] sm:$0xff]
    %v6989 = vld [vmem:[#allocation7 + $0xadc] sm:$0xf]
    %v6990 = vld [vmem:[#allocation7 + $0xae0] sm:$0xff]
    %v6991 = vld [vmem:[#allocation7 + $0xae8] sm:$0xf]
    %v6992 = vld [vmem:[#allocation7 + $0xaec] sm:$0xff]
    %v6993 = vld [vmem:[#allocation7 + $0xaf4] sm:$0xf]
    %v6994 = vld [vmem:[#allocation7 + $0xaf8] sm:$0xff]
    %v6995 = vld [vmem:[#allocation7 + $0xb00] sm:$0xf]
    %v6996 = vld [vmem:[#allocation7 + $0xb04] sm:$0xff]
    %v6997 = vld [vmem:[#allocation7 + $0xb0c] sm:$0xf]
    %v6998 = vld [vmem:[#allocation7 + $0xb10] sm:$0xff]
    %v6999 = vld [vmem:[#allocation7 + $0xb18] sm:$0xf]
    %v7000 = vld [vmem:[#allocation7 + $0xb1c] sm:$0xff]
    %v7001 = vld [vmem:[#allocation7 + $0xb24] sm:$0xf]
    %v7002 = vld [vmem:[#allocation7 + $0xb28] sm:$0xff]
    %v7003 = vld [vmem:[#allocation7 + $0xb30] sm:$0xf]
    %v7004 = vld [vmem:[#allocation7 + $0xb34] sm:$0xff]
    %v7005 = vld [vmem:[#allocation7 + $0xb3c] sm:$0xf]
    %v7006 = vld [vmem:[#allocation7 + $0xb40] sm:$0xff]
    %v7007 = vld [vmem:[#allocation7 + $0xb48] sm:$0xf]
    %v7008 = vld [vmem:[#allocation7 + $0xb4c] sm:$0xff]
    %v7009 = vld [vmem:[#allocation7 + $0xb54] sm:$0xf]
    %v7010 = vld [vmem:[#allocation7 + $0xb58] sm:$0xff]
    %v7011 = vld [vmem:[#allocation7 + $0xb60] sm:$0xf]
    %v7012 = vld [vmem:[#allocation7 + $0xb64] sm:$0xff]
    %v7013 = vld [vmem:[#allocation7 + $0xb6c] sm:$0xf]
    %v7014 = vld [vmem:[#allocation7 + $0xb70] sm:$0xff]
    %v7015 = vld [vmem:[#allocation7 + $0xb78] sm:$0xf]
    %v7016 = vld [vmem:[#allocation7 + $0xb7c] sm:$0xff]
    %v7017 = vld [vmem:[#allocation7 + $0xb84] sm:$0xf]
    %v7018 = vld [vmem:[#allocation7 + $0xb88] sm:$0xff]
    %v7019 = vld [vmem:[#allocation7 + $0xb90] sm:$0xf]
    %v7020 = vld [vmem:[#allocation7 + $0xb94] sm:$0xff]
    %v7021 = vld [vmem:[#allocation7 + $0xb9c] sm:$0xf]
    %v7022 = vld [vmem:[#allocation7 + $0xba0] sm:$0xff]
    %v7023 = vld [vmem:[#allocation7 + $0xba8] sm:$0xf]
    %v7024 = vld [vmem:[#allocation7 + $0xbac] sm:$0xff]
    %v7025 = vld [vmem:[#allocation7 + $0xbb4] sm:$0xf]
    %v7026 = vld [vmem:[#allocation7 + $0xbb8] sm:$0xff]
    %v7027 = vld [vmem:[#allocation7 + $0xbc0] sm:$0xf]
    %v7028 = vld [vmem:[#allocation7 + $0xbc4] sm:$0xff]
    %v7029 = vld [vmem:[#allocation7 + $0xbcc] sm:$0xf]
    %v7030 = vld [vmem:[#allocation7 + $0xbd0] sm:$0xff]
    %v7031 = vld [vmem:[#allocation7 + $0xbd8] sm:$0xf]
    %v7032 = vld [vmem:[#allocation7 + $0xbdc] sm:$0xff]
    %v7033 = vld [vmem:[#allocation7 + $0xbe4] sm:$0xf]
    %v7034 = vld [vmem:[#allocation7 + $0xbe8] sm:$0xff]
    %v7035 = vld [vmem:[#allocation7 + $0xbf0] sm:$0xf]
    %v7036 = vld [vmem:[#allocation7 + $0xbf4] sm:$0xff]
    %v7037 = vld [vmem:[#allocation7 + $0xbfc] sm:$0xf]
    %v7038 = vld [vmem:[#allocation7 + $0xc00] sm:$0xff]
    %v7039 = vld [vmem:[#allocation7 + $0xc08] sm:$0xf]
    %v7040 = vld [vmem:[#allocation7 + $0xc0c] sm:$0xff]
    %v7041 = vld [vmem:[#allocation7 + $0xc14] sm:$0xf]
    %v7042 = vld [vmem:[#allocation7 + $0xc18] sm:$0xff]
    %v7043 = vld [vmem:[#allocation7 + $0xc20] sm:$0xf]
    %v7044 = vld [vmem:[#allocation7 + $0xc24] sm:$0xff]
    %v7045 = vld [vmem:[#allocation7 + $0xc2c] sm:$0xf]
    %v7046 = vld [vmem:[#allocation7 + $0xc30] sm:$0xff]
    %v7047 = vld [vmem:[#allocation7 + $0xc38] sm:$0xf]
    %v7048 = vld [vmem:[#allocation7 + $0xc3c] sm:$0xff]
    %v7049 = vld [vmem:[#allocation7 + $0xc44] sm:$0xf]
    %v7050 = vld [vmem:[#allocation7 + $0xc48] sm:$0xff]
    %v7051 = vld [vmem:[#allocation7 + $0xc50] sm:$0xf]
    %v7052 = vld [vmem:[#allocation7 + $0xc54] sm:$0xff]
    %v7053 = vld [vmem:[#allocation7 + $0xc5c] sm:$0xf]
    %v7054 = vld [vmem:[#allocation7 + $0xc60] sm:$0xff]
    %v7055 = vld [vmem:[#allocation7 + $0xc68] sm:$0xf]
    %v7056 = vld [vmem:[#allocation7 + $0xc6c] sm:$0xff]
    %v7057 = vld [vmem:[#allocation7 + $0xc74] sm:$0xf]
    %v7058 = vld [vmem:[#allocation7 + $0xc78] sm:$0xff]
    %v7059 = vld [vmem:[#allocation7 + $0xc80] sm:$0xf]
    %v7060 = vld [vmem:[#allocation7 + $0xc84] sm:$0xff]
    %v7061 = vld [vmem:[#allocation7 + $0xc8c] sm:$0xf]
    %v7062 = vld [vmem:[#allocation7 + $0xc90] sm:$0xff]
    %v7063 = vld [vmem:[#allocation7 + $0xc98] sm:$0xf]
    %v7064 = vld [vmem:[#allocation7 + $0xc9c] sm:$0xff]
    %v7065 = vld [vmem:[#allocation7 + $0xca4] sm:$0xf]
    %v7066 = vld [vmem:[#allocation7 + $0xca8] sm:$0xff]
    %v7067 = vld [vmem:[#allocation7 + $0xcb0] sm:$0xf]
    %v7068 = vld [vmem:[#allocation7 + $0xcb4] sm:$0xff]
    %v7069 = vld [vmem:[#allocation7 + $0xcbc] sm:$0xf]
    %v7070 = vld [vmem:[#allocation7 + $0xcc0] sm:$0xff]
    %v7071 = vld [vmem:[#allocation7 + $0xcc8] sm:$0xf]
    %v7072 = vld [vmem:[#allocation7 + $0xccc] sm:$0xff]
    %v7073 = vld [vmem:[#allocation7 + $0xcd4] sm:$0xf]
    %v7074 = vld [vmem:[#allocation7 + $0xcd8] sm:$0xff]
    %v7075 = vld [vmem:[#allocation7 + $0xce0] sm:$0xf]
    %v7076 = vld [vmem:[#allocation7 + $0xce4] sm:$0xff]
    %v7077 = vld [vmem:[#allocation7 + $0xcec] sm:$0xf]
    %v7078 = vld [vmem:[#allocation7 + $0xcf0] sm:$0xff]
    %v7079 = vld [vmem:[#allocation7 + $0xcf8] sm:$0xf]
    %v7080 = vld [vmem:[#allocation7 + $0xcfc] sm:$0xff]
    %v7081 = vld [vmem:[#allocation7 + $0xd04] sm:$0xf]
    %v7082 = vld [vmem:[#allocation7 + $0xd08] sm:$0xff]
    %v7083 = vld [vmem:[#allocation7 + $0xd10] sm:$0xf]
    %v7084 = vld [vmem:[#allocation7 + $0xd14] sm:$0xff]
    %v7085 = vld [vmem:[#allocation7 + $0xd1c] sm:$0xf]
    %v7086 = vld [vmem:[#allocation7 + $0xd20] sm:$0xff]
    %v7087 = vld [vmem:[#allocation7 + $0xd28] sm:$0xf]
    %v7088 = vld [vmem:[#allocation7 + $0xd2c] sm:$0xff]
    %v7089 = vld [vmem:[#allocation7 + $0xd34] sm:$0xf]
    %v7090 = vld [vmem:[#allocation7 + $0xd38] sm:$0xff]
    %v7091 = vld [vmem:[#allocation7 + $0xd40] sm:$0xf]
    %v7092 = vld [vmem:[#allocation7 + $0xd44] sm:$0xff]
    %v7093 = vld [vmem:[#allocation7 + $0xd4c] sm:$0xf]
    %v7094 = vld [vmem:[#allocation7 + $0xd50] sm:$0xff]
    %v7095 = vld [vmem:[#allocation7 + $0xd58] sm:$0xf]
    %v7096 = vld [vmem:[#allocation7 + $0xd5c] sm:$0xff]
    %v7097 = vld [vmem:[#allocation7 + $0xd64] sm:$0xf]
    %v7098 = vld [vmem:[#allocation7 + $0xd68] sm:$0xff]
    %v7099 = vld [vmem:[#allocation7 + $0xd70] sm:$0xf]
    %v7100 = vld [vmem:[#allocation7 + $0xd74] sm:$0xff]
    %v7101 = vld [vmem:[#allocation7 + $0xd7c] sm:$0xf]
    %v7102 = vld [vmem:[#allocation7 + $0xd80] sm:$0xff]
    %v7103 = vld [vmem:[#allocation7 + $0xd88] sm:$0xf]
    %v7104 = vld [vmem:[#allocation7 + $0xd8c] sm:$0xff]
    %v7105 = vld [vmem:[#allocation7 + $0xd94] sm:$0xf]
    %v7106 = vld [vmem:[#allocation7 + $0xd98] sm:$0xff]
    %v7107 = vld [vmem:[#allocation7 + $0xda0] sm:$0xf]
    %v7108 = vld [vmem:[#allocation7 + $0xda4] sm:$0xff]
    %v7109 = vld [vmem:[#allocation7 + $0xdac] sm:$0xf]
    %v7110 = vld [vmem:[#allocation7 + $0xdb0] sm:$0xff]
    %v7111 = vld [vmem:[#allocation7 + $0xdb8] sm:$0xf]
    %v7112 = vld [vmem:[#allocation7 + $0xdbc] sm:$0xff]
    %v7113 = vld [vmem:[#allocation7 + $0xdc4] sm:$0xf]
    %v7114 = vld [vmem:[#allocation7 + $0xdc8] sm:$0xff]
    %v7115 = vld [vmem:[#allocation7 + $0xdd0] sm:$0xf]
    %v7116 = vld [vmem:[#allocation7 + $0xdd4] sm:$0xff]
    %v7117 = vld [vmem:[#allocation7 + $0xddc] sm:$0xf]
    %v7118 = vld [vmem:[#allocation7 + $0xde0] sm:$0xff]
    %v7119 = vld [vmem:[#allocation7 + $0xde8] sm:$0xf]
    %v7120 = vld [vmem:[#allocation7 + $0xdec] sm:$0xff]
    %v7121 = vld [vmem:[#allocation7 + $0xdf4] sm:$0xf]
    %v7122 = vld [vmem:[#allocation7 + $0xdf8] sm:$0xff]
    %v7123 = vld [vmem:[#allocation7 + $0xe00] sm:$0xf]
    %v7124 = vld [vmem:[#allocation7 + $0xe04] sm:$0xff]
    %v7125 = vld [vmem:[#allocation7 + $0xe0c] sm:$0xf]
    %v7126 = vld [vmem:[#allocation13 + $0x1f] sm:$0x7]
    %v7128 = vlaneseq
    %v7129 = vshrl.u32 %v7128, 7
    %v7130 = vsub.s32 0, %v7129
    %v7131 = vrot.slane %v7126, %v7130
    %v7132 = vlaneseq
    %v7133 = vshrl.u32 %v7132, 7
    %v7134 = vsub.s32 1, %v7133
    %v7135 = vrot.slane %v7126, %v7134
    %v7136 = vlaneseq
    %v7137 = vshrl.u32 %v7136, 7
    %v7138 = vsub.s32 2, %v7137
    %v7139 = vrot.slane %v7126, %v7138
    %v7743 = vunpack.c.l.b16 %v6526
    %v7744 = vunpack.c.h.b16 %v6526
    %v7745 = vunpack.c.l.b16 %v6527
    %v7746 = vunpack.c.l.b16 %v6528
    %v7747 = vunpack.c.h.b16 %v6528
    %v7748 = vunpack.c.l.b16 %v6529
    %v7749 = vunpack.c.l.b16 %v6530
    %v7750 = vunpack.c.h.b16 %v6530
    %v7751 = vunpack.c.l.b16 %v6531
    %v7752 = vunpack.c.l.b16 %v6532
    %v7753 = vunpack.c.h.b16 %v6532
    %v7754 = vunpack.c.l.b16 %v6533
    %v7755 = vunpack.c.l.b16 %v6534
    %v7756 = vunpack.c.h.b16 %v6534
    %v7757 = vunpack.c.l.b16 %v6535
    %v7758 = vunpack.c.l.b16 %v6536
    %v7759 = vunpack.c.h.b16 %v6536
    %v7760 = vunpack.c.l.b16 %v6537
    %v7761 = vunpack.c.l.b16 %v6538
    %v7762 = vunpack.c.h.b16 %v6538
    %v7763 = vunpack.c.l.b16 %v6539
    %v7764 = vunpack.c.l.b16 %v6540
    %v7765 = vunpack.c.h.b16 %v6540
    %v7766 = vunpack.c.l.b16 %v6541
    %v7767 = vunpack.c.l.b16 %v6542
    %v7768 = vunpack.c.h.b16 %v6542
    %v7769 = vunpack.c.l.b16 %v6543
    %v7770 = vunpack.c.l.b16 %v6544
    %v7771 = vunpack.c.h.b16 %v6544
    %v7772 = vunpack.c.l.b16 %v6545
    %v7773 = vunpack.c.l.b16 %v6546
    %v7774 = vunpack.c.h.b16 %v6546
    %v7775 = vunpack.c.l.b16 %v6547
    %v7776 = vunpack.c.l.b16 %v6548
    %v7777 = vunpack.c.h.b16 %v6548
    %v7778 = vunpack.c.l.b16 %v6549
    %v7779 = vunpack.c.l.b16 %v6550
    %v7780 = vunpack.c.h.b16 %v6550
    %v7781 = vunpack.c.l.b16 %v6551
    %v7782 = vunpack.c.l.b16 %v6552
    %v7783 = vunpack.c.h.b16 %v6552
    %v7784 = vunpack.c.l.b16 %v6553
    %v7785 = vunpack.c.l.b16 %v6554
    %v7786 = vunpack.c.h.b16 %v6554
    %v7787 = vunpack.c.l.b16 %v6555
    %v7788 = vunpack.c.l.b16 %v6556
    %v7789 = vunpack.c.h.b16 %v6556
    %v7790 = vunpack.c.l.b16 %v6557
    %v7791 = vunpack.c.l.b16 %v6558
    %v7792 = vunpack.c.h.b16 %v6558
    %v7793 = vunpack.c.l.b16 %v6559
    %v7794 = vunpack.c.l.b16 %v6560
    %v7795 = vunpack.c.h.b16 %v6560
    %v7796 = vunpack.c.l.b16 %v6561
    %v7797 = vunpack.c.l.b16 %v6562
    %v7798 = vunpack.c.h.b16 %v6562
    %v7799 = vunpack.c.l.b16 %v6563
    %v7800 = vunpack.c.l.b16 %v6564
    %v7801 = vunpack.c.h.b16 %v6564
    %v7802 = vunpack.c.l.b16 %v6565
    %v7803 = vunpack.c.l.b16 %v6566
    %v7804 = vunpack.c.h.b16 %v6566
    %v7805 = vunpack.c.l.b16 %v6567
    %v7806 = vunpack.c.l.b16 %v6568
    %v7807 = vunpack.c.h.b16 %v6568
    %v7808 = vunpack.c.l.b16 %v6569
    %v7809 = vunpack.c.l.b16 %v6570
    %v7810 = vunpack.c.h.b16 %v6570
    %v7811 = vunpack.c.l.b16 %v6571
    %v7812 = vunpack.c.l.b16 %v6572
    %v7813 = vunpack.c.h.b16 %v6572
    %v7814 = vunpack.c.l.b16 %v6573
    %v7815 = vunpack.c.l.b16 %v6574
    %v7816 = vunpack.c.h.b16 %v6574
    %v7817 = vunpack.c.l.b16 %v6575
    %v7818 = vunpack.c.l.b16 %v6576
    %v7819 = vunpack.c.h.b16 %v6576
    %v7820 = vunpack.c.l.b16 %v6577
    %v7821 = vunpack.c.l.b16 %v6578
    %v7822 = vunpack.c.h.b16 %v6578
    %v7823 = vunpack.c.l.b16 %v6579
    %v7824 = vunpack.c.l.b16 %v6580
    %v7825 = vunpack.c.h.b16 %v6580
    %v7826 = vunpack.c.l.b16 %v6581
    %v7827 = vunpack.c.l.b16 %v6582
    %v7828 = vunpack.c.h.b16 %v6582
    %v7829 = vunpack.c.l.b16 %v6583
    %v7830 = vunpack.c.l.b16 %v6584
    %v7831 = vunpack.c.h.b16 %v6584
    %v7832 = vunpack.c.l.b16 %v6585
    %v7833 = vunpack.c.l.b16 %v6586
    %v7834 = vunpack.c.h.b16 %v6586
    %v7835 = vunpack.c.l.b16 %v6587
    %v7836 = vunpack.c.l.b16 %v6588
    %v7837 = vunpack.c.h.b16 %v6588
    %v7838 = vunpack.c.l.b16 %v6589
    %v7839 = vunpack.c.l.b16 %v6590
    %v7840 = vunpack.c.h.b16 %v6590
    %v7841 = vunpack.c.l.b16 %v6591
    %v7842 = vunpack.c.l.b16 %v6592
    %v7843 = vunpack.c.h.b16 %v6592
    %v7844 = vunpack.c.l.b16 %v6593
    %v7845 = vunpack.c.l.b16 %v6594
    %v7846 = vunpack.c.h.b16 %v6594
    %v7847 = vunpack.c.l.b16 %v6595
    %v7848 = vunpack.c.l.b16 %v6596
    %v7849 = vunpack.c.h.b16 %v6596
    %v7850 = vunpack.c.l.b16 %v6597
    %v7851 = vunpack.c.l.b16 %v6598
    %v7852 = vunpack.c.h.b16 %v6598
    %v7853 = vunpack.c.l.b16 %v6599
    %v7854 = vunpack.c.l.b16 %v6600
    %v7855 = vunpack.c.h.b16 %v6600
    %v7856 = vunpack.c.l.b16 %v6601
    %v7857 = vunpack.c.l.b16 %v6602
    %v7858 = vunpack.c.h.b16 %v6602
    %v7859 = vunpack.c.l.b16 %v6603
    %v7860 = vunpack.c.l.b16 %v6604
    %v7861 = vunpack.c.h.b16 %v6604
    %v7862 = vunpack.c.l.b16 %v6605
    %v7863 = vunpack.c.l.b16 %v6606
    %v7864 = vunpack.c.h.b16 %v6606
    %v7865 = vunpack.c.l.b16 %v6607
    %v7866 = vunpack.c.l.b16 %v6608
    %v7867 = vunpack.c.h.b16 %v6608
    %v7868 = vunpack.c.l.b16 %v6609
    %v7869 = vunpack.c.l.b16 %v6610
    %v7870 = vunpack.c.h.b16 %v6610
    %v7871 = vunpack.c.l.b16 %v6611
    %v7872 = vunpack.c.l.b16 %v6612
    %v7873 = vunpack.c.h.b16 %v6612
    %v7874 = vunpack.c.l.b16 %v6613
    %v7875 = vunpack.c.l.b16 %v6614
    %v7876 = vunpack.c.h.b16 %v6614
    %v7877 = vunpack.c.l.b16 %v6615
    %v7878 = vunpack.c.l.b16 %v6616
    %v7879 = vunpack.c.h.b16 %v6616
    %v7880 = vunpack.c.l.b16 %v6617
    %v7881 = vunpack.c.l.b16 %v6618
    %v7882 = vunpack.c.h.b16 %v6618
    %v7883 = vunpack.c.l.b16 %v6619
    %v7884 = vunpack.c.l.b16 %v6620
    %v7885 = vunpack.c.h.b16 %v6620
    %v7886 = vunpack.c.l.b16 %v6621
    %v7887 = vunpack.c.l.b16 %v6622
    %v7888 = vunpack.c.h.b16 %v6622
    %v7889 = vunpack.c.l.b16 %v6623
    %v7890 = vunpack.c.l.b16 %v6624
    %v7891 = vunpack.c.h.b16 %v6624
    %v7892 = vunpack.c.l.b16 %v6625
    %v7893 = vunpack.c.l.b16 %v6626
    %v7894 = vunpack.c.h.b16 %v6626
    %v7895 = vunpack.c.l.b16 %v6627
    %v7896 = vunpack.c.l.b16 %v6628
    %v7897 = vunpack.c.h.b16 %v6628
    %v7898 = vunpack.c.l.b16 %v6629
    %v7899 = vunpack.c.l.b16 %v6630
    %v7900 = vunpack.c.h.b16 %v6630
    %v7901 = vunpack.c.l.b16 %v6631
    %v7902 = vunpack.c.l.b16 %v6632
    %v7903 = vunpack.c.h.b16 %v6632
    %v7904 = vunpack.c.l.b16 %v6633
    %v7905 = vunpack.c.l.b16 %v6634
    %v7906 = vunpack.c.h.b16 %v6634
    %v7907 = vunpack.c.l.b16 %v6635
    %v7908 = vunpack.c.l.b16 %v6636
    %v7909 = vunpack.c.h.b16 %v6636
    %v7910 = vunpack.c.l.b16 %v6637
    %v7911 = vunpack.c.l.b16 %v6638
    %v7912 = vunpack.c.h.b16 %v6638
    %v7913 = vunpack.c.l.b16 %v6639
    %v7914 = vunpack.c.l.b16 %v6640
    %v7915 = vunpack.c.h.b16 %v6640
    %v7916 = vunpack.c.l.b16 %v6641
    %v7917 = vunpack.c.l.b16 %v6642
    %v7918 = vunpack.c.h.b16 %v6642
    %v7919 = vunpack.c.l.b16 %v6643
    %v7920 = vunpack.c.l.b16 %v6644
    %v7921 = vunpack.c.h.b16 %v6644
    %v7922 = vunpack.c.l.b16 %v6645
    %v7923 = vunpack.c.l.b16 %v6646
    %v7924 = vunpack.c.h.b16 %v6646
    %v7925 = vunpack.c.l.b16 %v6647
    %v7926 = vunpack.c.l.b16 %v6648
    %v7927 = vunpack.c.h.b16 %v6648
    %v7928 = vunpack.c.l.b16 %v6649
    %v7929 = vunpack.c.l.b16 %v6650
    %v7930 = vunpack.c.h.b16 %v6650
    %v7931 = vunpack.c.l.b16 %v6651
    %v7932 = vunpack.c.l.b16 %v6652
    %v7933 = vunpack.c.h.b16 %v6652
    %v7934 = vunpack.c.l.b16 %v6653
    %v7935 = vunpack.c.l.b16 %v6654
    %v7936 = vunpack.c.h.b16 %v6654
    %v7937 = vunpack.c.l.b16 %v6655
    %v7938 = vunpack.c.l.b16 %v6656
    %v7939 = vunpack.c.h.b16 %v6656
    %v7940 = vunpack.c.l.b16 %v6657
    %v7941 = vunpack.c.l.b16 %v6658
    %v7942 = vunpack.c.h.b16 %v6658
    %v7943 = vunpack.c.l.b16 %v6659
    %v7944 = vunpack.c.l.b16 %v6660
    %v7945 = vunpack.c.h.b16 %v6660
    %v7946 = vunpack.c.l.b16 %v6661
    %v7947 = vunpack.c.l.b16 %v6662
    %v7948 = vunpack.c.h.b16 %v6662
    %v7949 = vunpack.c.l.b16 %v6663
    %v7950 = vunpack.c.l.b16 %v6664
    %v7951 = vunpack.c.h.b16 %v6664
    %v7952 = vunpack.c.l.b16 %v6665
    %v7953 = vunpack.c.l.b16 %v6666
    %v7954 = vunpack.c.h.b16 %v6666
    %v7955 = vunpack.c.l.b16 %v6667
    %v7956 = vunpack.c.l.b16 %v6668
    %v7957 = vunpack.c.h.b16 %v6668
    %v7958 = vunpack.c.l.b16 %v6669
    %v7959 = vunpack.c.l.b16 %v6670
    %v7960 = vunpack.c.h.b16 %v6670
    %v7961 = vunpack.c.l.b16 %v6671
    %v7962 = vunpack.c.l.b16 %v6672
    %v7963 = vunpack.c.h.b16 %v6672
    %v7964 = vunpack.c.l.b16 %v6673
    %v7965 = vunpack.c.l.b16 %v6674
    %v7966 = vunpack.c.h.b16 %v6674
    %v7967 = vunpack.c.l.b16 %v6675
    %v7968 = vunpack.c.l.b16 %v6676
    %v7969 = vunpack.c.h.b16 %v6676
    %v7970 = vunpack.c.l.b16 %v6677
    %v7971 = vunpack.c.l.b16 %v6678
    %v7972 = vunpack.c.h.b16 %v6678
    %v7973 = vunpack.c.l.b16 %v6679
    %v7974 = vunpack.c.l.b16 %v6680
    %v7975 = vunpack.c.h.b16 %v6680
    %v7976 = vunpack.c.l.b16 %v6681
    %v7977 = vunpack.c.l.b16 %v6682
    %v7978 = vunpack.c.h.b16 %v6682
    %v7979 = vunpack.c.l.b16 %v6683
    %v7980 = vunpack.c.l.b16 %v6684
    %v7981 = vunpack.c.h.b16 %v6684
    %v7982 = vunpack.c.l.b16 %v6685
    %v7983 = vunpack.c.l.b16 %v6686
    %v7984 = vunpack.c.h.b16 %v6686
    %v7985 = vunpack.c.l.b16 %v6687
    %v7986 = vunpack.c.l.b16 %v6688
    %v7987 = vunpack.c.h.b16 %v6688
    %v7988 = vunpack.c.l.b16 %v6689
    %v7989 = vunpack.c.l.b16 %v6690
    %v7990 = vunpack.c.h.b16 %v6690
    %v7991 = vunpack.c.l.b16 %v6691
    %v7992 = vunpack.c.l.b16 %v6692
    %v7993 = vunpack.c.h.b16 %v6692
    %v7994 = vunpack.c.l.b16 %v6693
    %v7995 = vunpack.c.l.b16 %v6694
    %v7996 = vunpack.c.h.b16 %v6694
    %v7997 = vunpack.c.l.b16 %v6695
    %v7998 = vunpack.c.l.b16 %v6696
    %v7999 = vunpack.c.h.b16 %v6696
    %v8000 = vunpack.c.l.b16 %v6697
    %v8001 = vunpack.c.l.b16 %v6698
    %v8002 = vunpack.c.h.b16 %v6698
    %v8003 = vunpack.c.l.b16 %v6699
    %v8004 = vunpack.c.l.b16 %v6700
    %v8005 = vunpack.c.h.b16 %v6700
    %v8006 = vunpack.c.l.b16 %v6701
    %v8007 = vunpack.c.l.b16 %v6702
    %v8008 = vunpack.c.h.b16 %v6702
    %v8009 = vunpack.c.l.b16 %v6703
    %v8010 = vunpack.c.l.b16 %v6704
    %v8011 = vunpack.c.h.b16 %v6704
    %v8012 = vunpack.c.l.b16 %v6705
    %v8013 = vunpack.c.l.b16 %v6706
    %v8014 = vunpack.c.h.b16 %v6706
    %v8015 = vunpack.c.l.b16 %v6707
    %v8016 = vunpack.c.l.b16 %v6708
    %v8017 = vunpack.c.h.b16 %v6708
    %v8018 = vunpack.c.l.b16 %v6709
    %v8019 = vunpack.c.l.b16 %v6710
    %v8020 = vunpack.c.h.b16 %v6710
    %v8021 = vunpack.c.l.b16 %v6711
    %v8022 = vunpack.c.l.b16 %v6712
    %v8023 = vunpack.c.h.b16 %v6712
    %v8024 = vunpack.c.l.b16 %v6713
    %v8025 = vunpack.c.l.b16 %v6714
    %v8026 = vunpack.c.h.b16 %v6714
    %v8027 = vunpack.c.l.b16 %v6715
    %v8028 = vunpack.c.l.b16 %v6716
    %v8029 = vunpack.c.h.b16 %v6716
    %v8030 = vunpack.c.l.b16 %v6717
    %v8031 = vunpack.c.l.b16 %v6718
    %v8032 = vunpack.c.h.b16 %v6718
    %v8033 = vunpack.c.l.b16 %v6719
    %v8034 = vunpack.c.l.b16 %v6720
    %v8035 = vunpack.c.h.b16 %v6720
    %v8036 = vunpack.c.l.b16 %v6721
    %v8037 = vunpack.c.l.b16 %v6722
    %v8038 = vunpack.c.h.b16 %v6722
    %v8039 = vunpack.c.l.b16 %v6723
    %v8040 = vunpack.c.l.b16 %v6724
    %v8041 = vunpack.c.h.b16 %v6724
    %v8042 = vunpack.c.l.b16 %v6725
    %v8043 = vunpack.c.l.b16 %v6726
    %v8044 = vunpack.c.h.b16 %v6726
    %v8045 = vunpack.c.l.b16 %v6727
    %v8046 = vunpack.c.l.b16 %v6728
    %v8047 = vunpack.c.h.b16 %v6728
    %v8048 = vunpack.c.l.b16 %v6729
    %v8049 = vunpack.c.l.b16 %v6730
    %v8050 = vunpack.c.h.b16 %v6730
    %v8051 = vunpack.c.l.b16 %v6731
    %v8052 = vunpack.c.l.b16 %v6732
    %v8053 = vunpack.c.h.b16 %v6732
    %v8054 = vunpack.c.l.b16 %v6733
    %v8055 = vunpack.c.l.b16 %v6734
    %v8056 = vunpack.c.h.b16 %v6734
    %v8057 = vunpack.c.l.b16 %v6735
    %v8058 = vunpack.c.l.b16 %v6736
    %v8059 = vunpack.c.h.b16 %v6736
    %v8060 = vunpack.c.l.b16 %v6737
    %v8061 = vunpack.c.l.b16 %v6738
    %v8062 = vunpack.c.h.b16 %v6738
    %v8063 = vunpack.c.l.b16 %v6739
    %v8064 = vunpack.c.l.b16 %v6740
    %v8065 = vunpack.c.h.b16 %v6740
    %v8066 = vunpack.c.l.b16 %v6741
    %v8067 = vunpack.c.l.b16 %v6742
    %v8068 = vunpack.c.h.b16 %v6742
    %v8069 = vunpack.c.l.b16 %v6743
    %v8070 = vunpack.c.l.b16 %v6744
    %v8071 = vunpack.c.h.b16 %v6744
    %v8072 = vunpack.c.l.b16 %v6745
    %v8073 = vunpack.c.l.b16 %v6746
    %v8074 = vunpack.c.h.b16 %v6746
    %v8075 = vunpack.c.l.b16 %v6747
    %v8076 = vunpack.c.l.b16 %v6748
    %v8077 = vunpack.c.h.b16 %v6748
    %v8078 = vunpack.c.l.b16 %v6749
    %v8079 = vunpack.c.l.b16 %v6750
    %v8080 = vunpack.c.h.b16 %v6750
    %v8081 = vunpack.c.l.b16 %v6751
    %v8082 = vunpack.c.l.b16 %v6752
    %v8083 = vunpack.c.h.b16 %v6752
    %v8084 = vunpack.c.l.b16 %v6753
    %v8085 = vunpack.c.l.b16 %v6754
    %v8086 = vunpack.c.h.b16 %v6754
    %v8087 = vunpack.c.l.b16 %v6755
    %v8088 = vunpack.c.l.b16 %v6756
    %v8089 = vunpack.c.h.b16 %v6756
    %v8090 = vunpack.c.l.b16 %v6757
    %v8091 = vunpack.c.l.b16 %v6758
    %v8092 = vunpack.c.h.b16 %v6758
    %v8093 = vunpack.c.l.b16 %v6759
    %v8094 = vunpack.c.l.b16 %v6760
    %v8095 = vunpack.c.h.b16 %v6760
    %v8096 = vunpack.c.l.b16 %v6761
    %v8097 = vunpack.c.l.b16 %v6762
    %v8098 = vunpack.c.h.b16 %v6762
    %v8099 = vunpack.c.l.b16 %v6763
    %v8100 = vunpack.c.l.b16 %v6764
    %v8101 = vunpack.c.h.b16 %v6764
    %v8102 = vunpack.c.l.b16 %v6765
    %v8103 = vunpack.c.l.b16 %v6766
    %v8104 = vunpack.c.h.b16 %v6766
    %v8105 = vunpack.c.l.b16 %v6767
    %v8106 = vunpack.c.l.b16 %v6768
    %v8107 = vunpack.c.h.b16 %v6768
    %v8108 = vunpack.c.l.b16 %v6769
    %v8109 = vunpack.c.l.b16 %v6770
    %v8110 = vunpack.c.h.b16 %v6770
    %v8111 = vunpack.c.l.b16 %v6771
    %v8112 = vunpack.c.l.b16 %v6772
    %v8113 = vunpack.c.h.b16 %v6772
    %v8114 = vunpack.c.l.b16 %v6773
    %v8115 = vunpack.c.l.b16 %v6774
    %v8116 = vunpack.c.h.b16 %v6774
    %v8117 = vunpack.c.l.b16 %v6775
    %v8118 = vunpack.c.l.b16 %v6776
    %v8119 = vunpack.c.h.b16 %v6776
    %v8120 = vunpack.c.l.b16 %v6777
    %v8121 = vunpack.c.l.b16 %v6778
    %v8122 = vunpack.c.h.b16 %v6778
    %v8123 = vunpack.c.l.b16 %v6779
    %v8124 = vunpack.c.l.b16 %v6780
    %v8125 = vunpack.c.h.b16 %v6780
    %v8126 = vunpack.c.l.b16 %v6781
    %v8127 = vunpack.c.l.b16 %v6782
    %v8128 = vunpack.c.h.b16 %v6782
    %v8129 = vunpack.c.l.b16 %v6783
    %v8130 = vunpack.c.l.b16 %v6784
    %v8131 = vunpack.c.h.b16 %v6784
    %v8132 = vunpack.c.l.b16 %v6785
    %v8133 = vunpack.c.l.b16 %v6786
    %v8134 = vunpack.c.h.b16 %v6786
    %v8135 = vunpack.c.l.b16 %v6787
    %v8136 = vunpack.c.l.b16 %v6788
    %v8137 = vunpack.c.h.b16 %v6788
    %v8138 = vunpack.c.l.b16 %v6789
    %v8139 = vunpack.c.l.b16 %v6790
    %v8140 = vunpack.c.h.b16 %v6790
    %v8141 = vunpack.c.l.b16 %v6791
    %v8142 = vunpack.c.l.b16 %v6792
    %v8143 = vunpack.c.h.b16 %v6792
    %v8144 = vunpack.c.l.b16 %v6793
    %v8145 = vunpack.c.l.b16 %v6794
    %v8146 = vunpack.c.h.b16 %v6794
    %v8147 = vunpack.c.l.b16 %v6795
    %v8148 = vunpack.c.l.b16 %v6796
    %v8149 = vunpack.c.h.b16 %v6796
    %v8150 = vunpack.c.l.b16 %v6797
    %v8151 = vunpack.c.l.b16 %v6798
    %v8152 = vunpack.c.h.b16 %v6798
    %v8153 = vunpack.c.l.b16 %v6799
    %v8154 = vunpack.c.l.b16 %v6800
    %v8155 = vunpack.c.h.b16 %v6800
    %v8156 = vunpack.c.l.b16 %v6801
    %v8157 = vunpack.c.l.b16 %v6802
    %v8158 = vunpack.c.h.b16 %v6802
    %v8159 = vunpack.c.l.b16 %v6803
    %v8160 = vunpack.c.l.b16 %v6804
    %v8161 = vunpack.c.h.b16 %v6804
    %v8162 = vunpack.c.l.b16 %v6805
    %v8163 = vunpack.c.l.b16 %v6806
    %v8164 = vunpack.c.h.b16 %v6806
    %v8165 = vunpack.c.l.b16 %v6807
    %v8166 = vunpack.c.l.b16 %v6808
    %v8167 = vunpack.c.h.b16 %v6808
    %v8168 = vunpack.c.l.b16 %v6809
    %v8169 = vunpack.c.l.b16 %v6810
    %v8170 = vunpack.c.h.b16 %v6810
    %v8171 = vunpack.c.l.b16 %v6811
    %v8172 = vunpack.c.l.b16 %v6812
    %v8173 = vunpack.c.h.b16 %v6812
    %v8174 = vunpack.c.l.b16 %v6813
    %v8175 = vunpack.c.l.b16 %v6814
    %v8176 = vunpack.c.h.b16 %v6814
    %v8177 = vunpack.c.l.b16 %v6815
    %v8178 = vunpack.c.l.b16 %v6816
    %v8179 = vunpack.c.h.b16 %v6816
    %v8180 = vunpack.c.l.b16 %v6817
    %v8181 = vunpack.c.l.b16 %v6818
    %v8182 = vunpack.c.h.b16 %v6818
    %v8183 = vunpack.c.l.b16 %v6819
    %v8184 = vunpack.c.l.b16 %v6820
    %v8185 = vunpack.c.h.b16 %v6820
    %v8186 = vunpack.c.l.b16 %v6821
    %v8187 = vunpack.c.l.b16 %v6822
    %v8188 = vunpack.c.h.b16 %v6822
    %v8189 = vunpack.c.l.b16 %v6823
    %v8190 = vunpack.c.l.b16 %v6824
    %v8191 = vunpack.c.h.b16 %v6824
    %v8192 = vunpack.c.l.b16 %v6825
    %v8193 = vunpack.c.l.b16 %v6826
    %v8194 = vunpack.c.h.b16 %v6826
    %v8195 = vunpack.c.l.b16 %v6827
    %v8196 = vunpack.c.l.b16 %v6828
    %v8197 = vunpack.c.h.b16 %v6828
    %v8198 = vunpack.c.l.b16 %v6829
    %v8199 = vunpack.c.l.b16 %v6830
    %v8200 = vunpack.c.h.b16 %v6830
    %v8201 = vunpack.c.l.b16 %v6831
    %v8202 = vunpack.c.l.b16 %v6832
    %v8203 = vunpack.c.h.b16 %v6832
    %v8204 = vunpack.c.l.b16 %v6833
    %v8205 = vunpack.c.l.b16 %v6834
    %v8206 = vunpack.c.h.b16 %v6834
    %v8207 = vunpack.c.l.b16 %v6835
    %v8208 = vunpack.c.l.b16 %v6836
    %v8209 = vunpack.c.h.b16 %v6836
    %v8210 = vunpack.c.l.b16 %v6837
    %v8211 = vunpack.c.l.b16 %v6838
    %v8212 = vunpack.c.h.b16 %v6838
    %v8213 = vunpack.c.l.b16 %v6839
    %v8214 = vunpack.c.l.b16 %v6840
    %v8215 = vunpack.c.h.b16 %v6840
    %v8216 = vunpack.c.l.b16 %v6841
    %v8217 = vunpack.c.l.b16 %v6842
    %v8218 = vunpack.c.h.b16 %v6842
    %v8219 = vunpack.c.l.b16 %v6843
    %v8220 = vunpack.c.l.b16 %v6844
    %v8221 = vunpack.c.h.b16 %v6844
    %v8222 = vunpack.c.l.b16 %v6845
    %v8223 = vunpack.c.l.b16 %v6846
    %v8224 = vunpack.c.h.b16 %v6846
    %v8225 = vunpack.c.l.b16 %v6847
    %v8226 = vunpack.c.l.b16 %v6848
    %v8227 = vunpack.c.h.b16 %v6848
    %v8228 = vunpack.c.l.b16 %v6849
    %v8229 = vunpack.c.l.b16 %v6850
    %v8230 = vunpack.c.h.b16 %v6850
    %v8231 = vunpack.c.l.b16 %v6851
    %v8232 = vunpack.c.l.b16 %v6852
    %v8233 = vunpack.c.h.b16 %v6852
    %v8234 = vunpack.c.l.b16 %v6853
    %v8235 = vunpack.c.l.b16 %v6854
    %v8236 = vunpack.c.h.b16 %v6854
    %v8237 = vunpack.c.l.b16 %v6855
    %v8238 = vunpack.c.l.b16 %v6856
    %v8239 = vunpack.c.h.b16 %v6856
    %v8240 = vunpack.c.l.b16 %v6857
    %v8241 = vunpack.c.l.b16 %v6858
    %v8242 = vunpack.c.h.b16 %v6858
    %v8243 = vunpack.c.l.b16 %v6859
    %v8244 = vunpack.c.l.b16 %v6860
    %v8245 = vunpack.c.h.b16 %v6860
    %v8246 = vunpack.c.l.b16 %v6861
    %v8247 = vunpack.c.l.b16 %v6862
    %v8248 = vunpack.c.h.b16 %v6862
    %v8249 = vunpack.c.l.b16 %v6863
    %v8250 = vunpack.c.l.b16 %v6864
    %v8251 = vunpack.c.h.b16 %v6864
    %v8252 = vunpack.c.l.b16 %v6865
    %v8253 = vunpack.c.l.b16 %v6866
    %v8254 = vunpack.c.h.b16 %v6866
    %v8255 = vunpack.c.l.b16 %v6867
    %v8256 = vunpack.c.l.b16 %v6868
    %v8257 = vunpack.c.h.b16 %v6868
    %v8258 = vunpack.c.l.b16 %v6869
    %v8259 = vunpack.c.l.b16 %v6870
    %v8260 = vunpack.c.h.b16 %v6870
    %v8261 = vunpack.c.l.b16 %v6871
    %v8262 = vunpack.c.l.b16 %v6872
    %v8263 = vunpack.c.h.b16 %v6872
    %v8264 = vunpack.c.l.b16 %v6873
    %v8265 = vunpack.c.l.b16 %v6874
    %v8266 = vunpack.c.h.b16 %v6874
    %v8267 = vunpack.c.l.b16 %v6875
    %v8268 = vunpack.c.l.b16 %v6876
    %v8269 = vunpack.c.h.b16 %v6876
    %v8270 = vunpack.c.l.b16 %v6877
    %v8271 = vunpack.c.l.b16 %v6878
    %v8272 = vunpack.c.h.b16 %v6878
    %v8273 = vunpack.c.l.b16 %v6879
    %v8274 = vunpack.c.l.b16 %v6880
    %v8275 = vunpack.c.h.b16 %v6880
    %v8276 = vunpack.c.l.b16 %v6881
    %v8277 = vunpack.c.l.b16 %v6882
    %v8278 = vunpack.c.h.b16 %v6882
    %v8279 = vunpack.c.l.b16 %v6883
    %v8280 = vunpack.c.l.b16 %v6884
    %v8281 = vunpack.c.h.b16 %v6884
    %v8282 = vunpack.c.l.b16 %v6885
    %v8283 = vunpack.c.l.b16 %v6886
    %v8284 = vunpack.c.h.b16 %v6886
    %v8285 = vunpack.c.l.b16 %v6887
    %v8286 = vunpack.c.l.b16 %v6888
    %v8287 = vunpack.c.h.b16 %v6888
    %v8288 = vunpack.c.l.b16 %v6889
    %v8289 = vunpack.c.l.b16 %v6890
    %v8290 = vunpack.c.h.b16 %v6890
    %v8291 = vunpack.c.l.b16 %v6891
    %v8292 = vunpack.c.l.b16 %v6892
    %v8293 = vunpack.c.h.b16 %v6892
    %v8294 = vunpack.c.l.b16 %v6893
    %v8295 = vunpack.c.l.b16 %v6894
    %v8296 = vunpack.c.h.b16 %v6894
    %v8297 = vunpack.c.l.b16 %v6895
    %v8298 = vunpack.c.l.b16 %v6896
    %v8299 = vunpack.c.h.b16 %v6896
    %v8300 = vunpack.c.l.b16 %v6897
    %v8301 = vunpack.c.l.b16 %v6898
    %v8302 = vunpack.c.h.b16 %v6898
    %v8303 = vunpack.c.l.b16 %v6899
    %v8304 = vunpack.c.l.b16 %v6900
    %v8305 = vunpack.c.h.b16 %v6900
    %v8306 = vunpack.c.l.b16 %v6901
    %v8307 = vunpack.c.l.b16 %v6902
    %v8308 = vunpack.c.h.b16 %v6902
    %v8309 = vunpack.c.l.b16 %v6903
    %v8310 = vunpack.c.l.b16 %v6904
    %v8311 = vunpack.c.h.b16 %v6904
    %v8312 = vunpack.c.l.b16 %v6905
    %v8313 = vunpack.c.l.b16 %v6906
    %v8314 = vunpack.c.h.b16 %v6906
    %v8315 = vunpack.c.l.b16 %v6907
    %v8316 = vunpack.c.l.b16 %v6908
    %v8317 = vunpack.c.h.b16 %v6908
    %v8318 = vunpack.c.l.b16 %v6909
    %v8319 = vunpack.c.l.b16 %v6910
    %v8320 = vunpack.c.h.b16 %v6910
    %v8321 = vunpack.c.l.b16 %v6911
    %v8322 = vunpack.c.l.b16 %v6912
    %v8323 = vunpack.c.h.b16 %v6912
    %v8324 = vunpack.c.l.b16 %v6913
    %v8325 = vunpack.c.l.b16 %v6914
    %v8326 = vunpack.c.h.b16 %v6914
    %v8327 = vunpack.c.l.b16 %v6915
    %v8328 = vunpack.c.l.b16 %v6916
    %v8329 = vunpack.c.h.b16 %v6916
    %v8330 = vunpack.c.l.b16 %v6917
    %v8331 = vunpack.c.l.b16 %v6918
    %v8332 = vunpack.c.h.b16 %v6918
    %v8333 = vunpack.c.l.b16 %v6919
    %v8334 = vunpack.c.l.b16 %v6920
    %v8335 = vunpack.c.h.b16 %v6920
    %v8336 = vunpack.c.l.b16 %v6921
    %v8337 = vunpack.c.l.b16 %v6922
    %v8338 = vunpack.c.h.b16 %v6922
    %v8339 = vunpack.c.l.b16 %v6923
    %v8340 = vunpack.c.l.b16 %v6924
    %v8341 = vunpack.c.h.b16 %v6924
    %v8342 = vunpack.c.l.b16 %v6925
    %v8343 = vunpack.c.l.b16 %v6926
    %v8344 = vunpack.c.h.b16 %v6926
    %v8345 = vunpack.c.l.b16 %v6927
    %v8346 = vunpack.c.l.b16 %v6928
    %v8347 = vunpack.c.h.b16 %v6928
    %v8348 = vunpack.c.l.b16 %v6929
    %v8349 = vunpack.c.l.b16 %v6930
    %v8350 = vunpack.c.h.b16 %v6930
    %v8351 = vunpack.c.l.b16 %v6931
    %v8352 = vunpack.c.l.b16 %v6932
    %v8353 = vunpack.c.h.b16 %v6932
    %v8354 = vunpack.c.l.b16 %v6933
    %v8355 = vunpack.c.l.b16 %v6934
    %v8356 = vunpack.c.h.b16 %v6934
    %v8357 = vunpack.c.l.b16 %v6935
    %v8358 = vunpack.c.l.b16 %v6936
    %v8359 = vunpack.c.h.b16 %v6936
    %v8360 = vunpack.c.l.b16 %v6937
    %v8361 = vunpack.c.l.b16 %v6938
    %v8362 = vunpack.c.h.b16 %v6938
    %v8363 = vunpack.c.l.b16 %v6939
    %v8364 = vunpack.c.l.b16 %v6940
    %v8365 = vunpack.c.h.b16 %v6940
    %v8366 = vunpack.c.l.b16 %v6941
    %v8367 = vunpack.c.l.b16 %v6942
    %v8368 = vunpack.c.h.b16 %v6942
    %v8369 = vunpack.c.l.b16 %v6943
    %v8370 = vunpack.c.l.b16 %v6944
    %v8371 = vunpack.c.h.b16 %v6944
    %v8372 = vunpack.c.l.b16 %v6945
    %v8373 = vunpack.c.l.b16 %v6946
    %v8374 = vunpack.c.h.b16 %v6946
    %v8375 = vunpack.c.l.b16 %v6947
    %v8376 = vunpack.c.l.b16 %v6948
    %v8377 = vunpack.c.h.b16 %v6948
    %v8378 = vunpack.c.l.b16 %v6949
    %v8379 = vunpack.c.l.b16 %v6950
    %v8380 = vunpack.c.h.b16 %v6950
    %v8381 = vunpack.c.l.b16 %v6951
    %v8382 = vunpack.c.l.b16 %v6952
    %v8383 = vunpack.c.h.b16 %v6952
    %v8384 = vunpack.c.l.b16 %v6953
    %v8385 = vunpack.c.l.b16 %v6954
    %v8386 = vunpack.c.h.b16 %v6954
    %v8387 = vunpack.c.l.b16 %v6955
    %v8388 = vunpack.c.l.b16 %v6956
    %v8389 = vunpack.c.h.b16 %v6956
    %v8390 = vunpack.c.l.b16 %v6957
    %v8391 = vunpack.c.l.b16 %v6958
    %v8392 = vunpack.c.h.b16 %v6958
    %v8393 = vunpack.c.l.b16 %v6959
    %v8394 = vunpack.c.l.b16 %v6960
    %v8395 = vunpack.c.h.b16 %v6960
    %v8396 = vunpack.c.l.b16 %v6961
    %v8397 = vunpack.c.l.b16 %v6962
    %v8398 = vunpack.c.h.b16 %v6962
    %v8399 = vunpack.c.l.b16 %v6963
    %v8400 = vunpack.c.l.b16 %v6964
    %v8401 = vunpack.c.h.b16 %v6964
    %v8402 = vunpack.c.l.b16 %v6965
    %v8403 = vunpack.c.l.b16 %v6966
    %v8404 = vunpack.c.h.b16 %v6966
    %v8405 = vunpack.c.l.b16 %v6967
    %v8406 = vunpack.c.l.b16 %v6968
    %v8407 = vunpack.c.h.b16 %v6968
    %v8408 = vunpack.c.l.b16 %v6969
    %v8409 = vunpack.c.l.b16 %v6970
    %v8410 = vunpack.c.h.b16 %v6970
    %v8411 = vunpack.c.l.b16 %v6971
    %v8412 = vunpack.c.l.b16 %v6972
    %v8413 = vunpack.c.h.b16 %v6972
    %v8414 = vunpack.c.l.b16 %v6973
    %v8415 = vunpack.c.l.b16 %v6974
    %v8416 = vunpack.c.h.b16 %v6974
    %v8417 = vunpack.c.l.b16 %v6975
    %v8418 = vunpack.c.l.b16 %v6976
    %v8419 = vunpack.c.h.b16 %v6976
    %v8420 = vunpack.c.l.b16 %v6977
    %v8421 = vunpack.c.l.b16 %v6978
    %v8422 = vunpack.c.h.b16 %v6978
    %v8423 = vunpack.c.l.b16 %v6979
    %v8424 = vunpack.c.l.b16 %v6980
    %v8425 = vunpack.c.h.b16 %v6980
    %v8426 = vunpack.c.l.b16 %v6981
    %v8427 = vunpack.c.l.b16 %v6982
    %v8428 = vunpack.c.h.b16 %v6982
    %v8429 = vunpack.c.l.b16 %v6983
    %v8430 = vunpack.c.l.b16 %v6984
    %v8431 = vunpack.c.h.b16 %v6984
    %v8432 = vunpack.c.l.b16 %v6985
    %v8433 = vunpack.c.l.b16 %v6986
    %v8434 = vunpack.c.h.b16 %v6986
    %v8435 = vunpack.c.l.b16 %v6987
    %v8436 = vunpack.c.l.b16 %v6988
    %v8437 = vunpack.c.h.b16 %v6988
    %v8438 = vunpack.c.l.b16 %v6989
    %v8439 = vunpack.c.l.b16 %v6990
    %v8440 = vunpack.c.h.b16 %v6990
    %v8441 = vunpack.c.l.b16 %v6991
    %v8442 = vunpack.c.l.b16 %v6992
    %v8443 = vunpack.c.h.b16 %v6992
    %v8444 = vunpack.c.l.b16 %v6993
    %v8445 = vunpack.c.l.b16 %v6994
    %v8446 = vunpack.c.h.b16 %v6994
    %v8447 = vunpack.c.l.b16 %v6995
    %v8448 = vunpack.c.l.b16 %v6996
    %v8449 = vunpack.c.h.b16 %v6996
    %v8450 = vunpack.c.l.b16 %v6997
    %v8451 = vunpack.c.l.b16 %v6998
    %v8452 = vunpack.c.h.b16 %v6998
    %v8453 = vunpack.c.l.b16 %v6999
    %v8454 = vunpack.c.l.b16 %v7000
    %v8455 = vunpack.c.h.b16 %v7000
    %v8456 = vunpack.c.l.b16 %v7001
    %v8457 = vunpack.c.l.b16 %v7002
    %v8458 = vunpack.c.h.b16 %v7002
    %v8459 = vunpack.c.l.b16 %v7003
    %v8460 = vunpack.c.l.b16 %v7004
    %v8461 = vunpack.c.h.b16 %v7004
    %v8462 = vunpack.c.l.b16 %v7005
    %v8463 = vunpack.c.l.b16 %v7006
    %v8464 = vunpack.c.h.b16 %v7006
    %v8465 = vunpack.c.l.b16 %v7007
    %v8466 = vunpack.c.l.b16 %v7008
    %v8467 = vunpack.c.h.b16 %v7008
    %v8468 = vunpack.c.l.b16 %v7009
    %v8469 = vunpack.c.l.b16 %v7010
    %v8470 = vunpack.c.h.b16 %v7010
    %v8471 = vunpack.c.l.b16 %v7011
    %v8472 = vunpack.c.l.b16 %v7012
    %v8473 = vunpack.c.h.b16 %v7012
    %v8474 = vunpack.c.l.b16 %v7013
    %v8475 = vunpack.c.l.b16 %v7014
    %v8476 = vunpack.c.h.b16 %v7014
    %v8477 = vunpack.c.l.b16 %v7015
    %v8478 = vunpack.c.l.b16 %v7016
    %v8479 = vunpack.c.h.b16 %v7016
    %v8480 = vunpack.c.l.b16 %v7017
    %v8481 = vunpack.c.l.b16 %v7018
    %v8482 = vunpack.c.h.b16 %v7018
    %v8483 = vunpack.c.l.b16 %v7019
    %v8484 = vunpack.c.l.b16 %v7020
    %v8485 = vunpack.c.h.b16 %v7020
    %v8486 = vunpack.c.l.b16 %v7021
    %v8487 = vunpack.c.l.b16 %v7022
    %v8488 = vunpack.c.h.b16 %v7022
    %v8489 = vunpack.c.l.b16 %v7023
    %v8490 = vunpack.c.l.b16 %v7024
    %v8491 = vunpack.c.h.b16 %v7024
    %v8492 = vunpack.c.l.b16 %v7025
    %v8493 = vunpack.c.l.b16 %v7026
    %v8494 = vunpack.c.h.b16 %v7026
    %v8495 = vunpack.c.l.b16 %v7027
    %v8496 = vunpack.c.l.b16 %v7028
    %v8497 = vunpack.c.h.b16 %v7028
    %v8498 = vunpack.c.l.b16 %v7029
    %v8499 = vunpack.c.l.b16 %v7030
    %v8500 = vunpack.c.h.b16 %v7030
    %v8501 = vunpack.c.l.b16 %v7031
    %v8502 = vunpack.c.l.b16 %v7032
    %v8503 = vunpack.c.h.b16 %v7032
    %v8504 = vunpack.c.l.b16 %v7033
    %v8505 = vunpack.c.l.b16 %v7034
    %v8506 = vunpack.c.h.b16 %v7034
    %v8507 = vunpack.c.l.b16 %v7035
    %v8508 = vunpack.c.l.b16 %v7036
    %v8509 = vunpack.c.h.b16 %v7036
    %v8510 = vunpack.c.l.b16 %v7037
    %v8511 = vunpack.c.l.b16 %v7038
    %v8512 = vunpack.c.h.b16 %v7038
    %v8513 = vunpack.c.l.b16 %v7039
    %v8514 = vunpack.c.l.b16 %v7040
    %v8515 = vunpack.c.h.b16 %v7040
    %v8516 = vunpack.c.l.b16 %v7041
    %v8517 = vunpack.c.l.b16 %v7042
    %v8518 = vunpack.c.h.b16 %v7042
    %v8519 = vunpack.c.l.b16 %v7043
    %v8520 = vunpack.c.l.b16 %v7044
    %v8521 = vunpack.c.h.b16 %v7044
    %v8522 = vunpack.c.l.b16 %v7045
    %v8523 = vunpack.c.l.b16 %v7046
    %v8524 = vunpack.c.h.b16 %v7046
    %v8525 = vunpack.c.l.b16 %v7047
    %v8526 = vunpack.c.l.b16 %v7048
    %v8527 = vunpack.c.h.b16 %v7048
    %v8528 = vunpack.c.l.b16 %v7049
    %v8529 = vunpack.c.l.b16 %v7050
    %v8530 = vunpack.c.h.b16 %v7050
    %v8531 = vunpack.c.l.b16 %v7051
    %v8532 = vunpack.c.l.b16 %v7052
    %v8533 = vunpack.c.h.b16 %v7052
    %v8534 = vunpack.c.l.b16 %v7053
    %v8535 = vunpack.c.l.b16 %v7054
    %v8536 = vunpack.c.h.b16 %v7054
    %v8537 = vunpack.c.l.b16 %v7055
    %v8538 = vunpack.c.l.b16 %v7056
    %v8539 = vunpack.c.h.b16 %v7056
    %v8540 = vunpack.c.l.b16 %v7057
    %v8541 = vunpack.c.l.b16 %v7058
    %v8542 = vunpack.c.h.b16 %v7058
    %v8543 = vunpack.c.l.b16 %v7059
    %v8544 = vunpack.c.l.b16 %v7060
    %v8545 = vunpack.c.h.b16 %v7060
    %v8546 = vunpack.c.l.b16 %v7061
    %v8547 = vunpack.c.l.b16 %v7062
    %v8548 = vunpack.c.h.b16 %v7062
    %v8549 = vunpack.c.l.b16 %v7063
    %v8550 = vunpack.c.l.b16 %v7064
    %v8551 = vunpack.c.h.b16 %v7064
    %v8552 = vunpack.c.l.b16 %v7065
    %v8553 = vunpack.c.l.b16 %v7066
    %v8554 = vunpack.c.h.b16 %v7066
    %v8555 = vunpack.c.l.b16 %v7067
    %v8556 = vunpack.c.l.b16 %v7068
    %v8557 = vunpack.c.h.b16 %v7068
    %v8558 = vunpack.c.l.b16 %v7069
    %v8559 = vunpack.c.l.b16 %v7070
    %v8560 = vunpack.c.h.b16 %v7070
    %v8561 = vunpack.c.l.b16 %v7071
    %v8562 = vunpack.c.l.b16 %v7072
    %v8563 = vunpack.c.h.b16 %v7072
    %v8564 = vunpack.c.l.b16 %v7073
    %v8565 = vunpack.c.l.b16 %v7074
    %v8566 = vunpack.c.h.b16 %v7074
    %v8567 = vunpack.c.l.b16 %v7075
    %v8568 = vunpack.c.l.b16 %v7076
    %v8569 = vunpack.c.h.b16 %v7076
    %v8570 = vunpack.c.l.b16 %v7077
    %v8571 = vunpack.c.l.b16 %v7078
    %v8572 = vunpack.c.h.b16 %v7078
    %v8573 = vunpack.c.l.b16 %v7079
    %v8574 = vunpack.c.l.b16 %v7080
    %v8575 = vunpack.c.h.b16 %v7080
    %v8576 = vunpack.c.l.b16 %v7081
    %v8577 = vunpack.c.l.b16 %v7082
    %v8578 = vunpack.c.h.b16 %v7082
    %v8579 = vunpack.c.l.b16 %v7083
    %v8580 = vunpack.c.l.b16 %v7084
    %v8581 = vunpack.c.h.b16 %v7084
    %v8582 = vunpack.c.l.b16 %v7085
    %v8583 = vunpack.c.l.b16 %v7086
    %v8584 = vunpack.c.h.b16 %v7086
    %v8585 = vunpack.c.l.b16 %v7087
    %v8586 = vunpack.c.l.b16 %v7088
    %v8587 = vunpack.c.h.b16 %v7088
    %v8588 = vunpack.c.l.b16 %v7089
    %v8589 = vunpack.c.l.b16 %v7090
    %v8590 = vunpack.c.h.b16 %v7090
    %v8591 = vunpack.c.l.b16 %v7091
    %v8592 = vunpack.c.l.b16 %v7092
    %v8593 = vunpack.c.h.b16 %v7092
    %v8594 = vunpack.c.l.b16 %v7093
    %v8595 = vunpack.c.l.b16 %v7094
    %v8596 = vunpack.c.h.b16 %v7094
    %v8597 = vunpack.c.l.b16 %v7095
    %v8598 = vunpack.c.l.b16 %v7096
    %v8599 = vunpack.c.h.b16 %v7096
    %v8600 = vunpack.c.l.b16 %v7097
    %v8601 = vunpack.c.l.b16 %v7098
    %v8602 = vunpack.c.h.b16 %v7098
    %v8603 = vunpack.c.l.b16 %v7099
    %v8604 = vunpack.c.l.b16 %v7100
    %v8605 = vunpack.c.h.b16 %v7100
    %v8606 = vunpack.c.l.b16 %v7101
    %v8607 = vunpack.c.l.b16 %v7102
    %v8608 = vunpack.c.h.b16 %v7102
    %v8609 = vunpack.c.l.b16 %v7103
    %v8610 = vunpack.c.l.b16 %v7104
    %v8611 = vunpack.c.h.b16 %v7104
    %v8612 = vunpack.c.l.b16 %v7105
    %v8613 = vunpack.c.l.b16 %v7106
    %v8614 = vunpack.c.h.b16 %v7106
    %v8615 = vunpack.c.l.b16 %v7107
    %v8616 = vunpack.c.l.b16 %v7108
    %v8617 = vunpack.c.h.b16 %v7108
    %v8618 = vunpack.c.l.b16 %v7109
    %v8619 = vunpack.c.l.b16 %v7110
    %v8620 = vunpack.c.h.b16 %v7110
    %v8621 = vunpack.c.l.b16 %v7111
    %v8622 = vunpack.c.l.b16 %v7112
    %v8623 = vunpack.c.h.b16 %v7112
    %v8624 = vunpack.c.l.b16 %v7113
    %v8625 = vunpack.c.l.b16 %v7114
    %v8626 = vunpack.c.h.b16 %v7114
    %v8627 = vunpack.c.l.b16 %v7115
    %v8628 = vunpack.c.l.b16 %v7116
    %v8629 = vunpack.c.h.b16 %v7116
    %v8630 = vunpack.c.l.b16 %v7117
    %v8631 = vunpack.c.l.b16 %v7118
    %v8632 = vunpack.c.h.b16 %v7118
    %v8633 = vunpack.c.l.b16 %v7119
    %v8634 = vunpack.c.l.b16 %v7120
    %v8635 = vunpack.c.h.b16 %v7120
    %v8636 = vunpack.c.l.b16 %v7121
    %v8637 = vunpack.c.l.b16 %v7122
    %v8638 = vunpack.c.h.b16 %v7122
    %v8639 = vunpack.c.l.b16 %v7123
    %v8640 = vunpack.c.l.b16 %v7124
    %v8641 = vunpack.c.h.b16 %v7124
    %v8642 = vunpack.c.l.b16 %v7125
    %v8643 = vpack.c.b16 %v7746, %v7743
    %v8644 = vpack.c.b16 %v7747, %v7744
    %v8645 = vpack.c.b16 %v7748, %v7745
    %v8646 = vpack.c.b16 %v7752, %v7749
    %v8647 = vpack.c.b16 %v7753, %v7750
    %v8648 = vpack.c.b16 %v7754, %v7751
    %v8649 = vpack.c.b16 %v7758, %v7755
    %v8650 = vpack.c.b16 %v7759, %v7756
    %v8651 = vpack.c.b16 %v7760, %v7757
    %v8652 = vpack.c.b16 %v7764, %v7761
    %v8653 = vpack.c.b16 %v7765, %v7762
    %v8654 = vpack.c.b16 %v7766, %v7763
    %v8655 = vpack.c.b16 %v7770, %v7767
    %v8656 = vpack.c.b16 %v7771, %v7768
    %v8657 = vpack.c.b16 %v7772, %v7769
    %v8658 = vpack.c.b16 %v7776, %v7773
    %v8659 = vpack.c.b16 %v7777, %v7774
    %v8660 = vpack.c.b16 %v7778, %v7775
    %v8661 = vpack.c.b16 %v7782, %v7779
    %v8662 = vpack.c.b16 %v7783, %v7780
    %v8663 = vpack.c.b16 %v7784, %v7781
    %v8664 = vpack.c.b16 %v7788, %v7785
    %v8665 = vpack.c.b16 %v7789, %v7786
    %v8666 = vpack.c.b16 %v7790, %v7787
    %v8667 = vpack.c.b16 %v7794, %v7791
    %v8668 = vpack.c.b16 %v7795, %v7792
    %v8669 = vpack.c.b16 %v7796, %v7793
    %v8670 = vpack.c.b16 %v7800, %v7797
    %v8671 = vpack.c.b16 %v7801, %v7798
    %v8672 = vpack.c.b16 %v7802, %v7799
    %v8673 = vpack.c.b16 %v7806, %v7803
    %v8674 = vpack.c.b16 %v7807, %v7804
    %v8675 = vpack.c.b16 %v7808, %v7805
    %v8676 = vpack.c.b16 %v7812, %v7809
    %v8677 = vpack.c.b16 %v7813, %v7810
    %v8678 = vpack.c.b16 %v7814, %v7811
    %v8679 = vpack.c.b16 %v7818, %v7815
    %v8680 = vpack.c.b16 %v7819, %v7816
    %v8681 = vpack.c.b16 %v7820, %v7817
    %v8682 = vpack.c.b16 %v7824, %v7821
    %v8683 = vpack.c.b16 %v7825, %v7822
    %v8684 = vpack.c.b16 %v7826, %v7823
    %v8685 = vpack.c.b16 %v7830, %v7827
    %v8686 = vpack.c.b16 %v7831, %v7828
    %v8687 = vpack.c.b16 %v7832, %v7829
    %v8688 = vpack.c.b16 %v7836, %v7833
    %v8689 = vpack.c.b16 %v7837, %v7834
    %v8690 = vpack.c.b16 %v7838, %v7835
    %v8691 = vpack.c.b16 %v7842, %v7839
    %v8692 = vpack.c.b16 %v7843, %v7840
    %v8693 = vpack.c.b16 %v7844, %v7841
    %v8694 = vpack.c.b16 %v7848, %v7845
    %v8695 = vpack.c.b16 %v7849, %v7846
    %v8696 = vpack.c.b16 %v7850, %v7847
    %v8697 = vpack.c.b16 %v7854, %v7851
    %v8698 = vpack.c.b16 %v7855, %v7852
    %v8699 = vpack.c.b16 %v7856, %v7853
    %v8700 = vpack.c.b16 %v7860, %v7857
    %v8701 = vpack.c.b16 %v7861, %v7858
    %v8702 = vpack.c.b16 %v7862, %v7859
    %v8703 = vpack.c.b16 %v7866, %v7863
    %v8704 = vpack.c.b16 %v7867, %v7864
    %v8705 = vpack.c.b16 %v7868, %v7865
    %v8706 = vpack.c.b16 %v7872, %v7869
    %v8707 = vpack.c.b16 %v7873, %v7870
    %v8708 = vpack.c.b16 %v7874, %v7871
    %v8709 = vpack.c.b16 %v7878, %v7875
    %v8710 = vpack.c.b16 %v7879, %v7876
    %v8711 = vpack.c.b16 %v7880, %v7877
    %v8712 = vpack.c.b16 %v7884, %v7881
    %v8713 = vpack.c.b16 %v7885, %v7882
    %v8714 = vpack.c.b16 %v7886, %v7883
    %v8715 = vpack.c.b16 %v7890, %v7887
    %v8716 = vpack.c.b16 %v7891, %v7888
    %v8717 = vpack.c.b16 %v7892, %v7889
    %v8718 = vpack.c.b16 %v7896, %v7893
    %v8719 = vpack.c.b16 %v7897, %v7894
    %v8720 = vpack.c.b16 %v7898, %v7895
    %v8721 = vpack.c.b16 %v7902, %v7899
    %v8722 = vpack.c.b16 %v7903, %v7900
    %v8723 = vpack.c.b16 %v7904, %v7901
    %v8724 = vpack.c.b16 %v7908, %v7905
    %v8725 = vpack.c.b16 %v7909, %v7906
    %v8726 = vpack.c.b16 %v7910, %v7907
    %v8727 = vpack.c.b16 %v7914, %v7911
    %v8728 = vpack.c.b16 %v7915, %v7912
    %v8729 = vpack.c.b16 %v7916, %v7913
    %v8730 = vpack.c.b16 %v7920, %v7917
    %v8731 = vpack.c.b16 %v7921, %v7918
    %v8732 = vpack.c.b16 %v7922, %v7919
    %v8733 = vpack.c.b16 %v7926, %v7923
    %v8734 = vpack.c.b16 %v7927, %v7924
    %v8735 = vpack.c.b16 %v7928, %v7925
    %v8736 = vpack.c.b16 %v7932, %v7929
    %v8737 = vpack.c.b16 %v7933, %v7930
    %v8738 = vpack.c.b16 %v7934, %v7931
    %v8739 = vpack.c.b16 %v7938, %v7935
    %v8740 = vpack.c.b16 %v7939, %v7936
    %v8741 = vpack.c.b16 %v7940, %v7937
    %v8742 = vpack.c.b16 %v7944, %v7941
    %v8743 = vpack.c.b16 %v7945, %v7942
    %v8744 = vpack.c.b16 %v7946, %v7943
    %v8745 = vpack.c.b16 %v7950, %v7947
    %v8746 = vpack.c.b16 %v7951, %v7948
    %v8747 = vpack.c.b16 %v7952, %v7949
    %v8748 = vpack.c.b16 %v7956, %v7953
    %v8749 = vpack.c.b16 %v7957, %v7954
    %v8750 = vpack.c.b16 %v7958, %v7955
    %v8751 = vpack.c.b16 %v7962, %v7959
    %v8752 = vpack.c.b16 %v7963, %v7960
    %v8753 = vpack.c.b16 %v7964, %v7961
    %v8754 = vpack.c.b16 %v7968, %v7965
    %v8755 = vpack.c.b16 %v7969, %v7966
    %v8756 = vpack.c.b16 %v7970, %v7967
    %v8757 = vpack.c.b16 %v7974, %v7971
    %v8758 = vpack.c.b16 %v7975, %v7972
    %v8759 = vpack.c.b16 %v7976, %v7973
    %v8760 = vpack.c.b16 %v7980, %v7977
    %v8761 = vpack.c.b16 %v7981, %v7978
    %v8762 = vpack.c.b16 %v7982, %v7979
    %v8763 = vpack.c.b16 %v7986, %v7983
    %v8764 = vpack.c.b16 %v7987, %v7984
    %v8765 = vpack.c.b16 %v7988, %v7985
    %v8766 = vpack.c.b16 %v7992, %v7989
    %v8767 = vpack.c.b16 %v7993, %v7990
    %v8768 = vpack.c.b16 %v7994, %v7991
    %v8769 = vpack.c.b16 %v7998, %v7995
    %v8770 = vpack.c.b16 %v7999, %v7996
    %v8771 = vpack.c.b16 %v8000, %v7997
    %v8772 = vpack.c.b16 %v8004, %v8001
    %v8773 = vpack.c.b16 %v8005, %v8002
    %v8774 = vpack.c.b16 %v8006, %v8003
    %v8775 = vpack.c.b16 %v8010, %v8007
    %v8776 = vpack.c.b16 %v8011, %v8008
    %v8777 = vpack.c.b16 %v8012, %v8009
    %v8778 = vpack.c.b16 %v8016, %v8013
    %v8779 = vpack.c.b16 %v8017, %v8014
    %v8780 = vpack.c.b16 %v8018, %v8015
    %v8781 = vpack.c.b16 %v8022, %v8019
    %v8782 = vpack.c.b16 %v8023, %v8020
    %v8783 = vpack.c.b16 %v8024, %v8021
    %v8784 = vpack.c.b16 %v8028, %v8025
    %v8785 = vpack.c.b16 %v8029, %v8026
    %v8786 = vpack.c.b16 %v8030, %v8027
    %v8787 = vpack.c.b16 %v8034, %v8031
    %v8788 = vpack.c.b16 %v8035, %v8032
    %v8789 = vpack.c.b16 %v8036, %v8033
    %v8790 = vpack.c.b16 %v8040, %v8037
    %v8791 = vpack.c.b16 %v8041, %v8038
    %v8792 = vpack.c.b16 %v8042, %v8039
    %v8793 = vpack.c.b16 %v8046, %v8043
    %v8794 = vpack.c.b16 %v8047, %v8044
    %v8795 = vpack.c.b16 %v8048, %v8045
    %v8796 = vpack.c.b16 %v8052, %v8049
    %v8797 = vpack.c.b16 %v8053, %v8050
    %v8798 = vpack.c.b16 %v8054, %v8051
    %v8799 = vpack.c.b16 %v8058, %v8055
    %v8800 = vpack.c.b16 %v8059, %v8056
    %v8801 = vpack.c.b16 %v8060, %v8057
    %v8802 = vpack.c.b16 %v8064, %v8061
    %v8803 = vpack.c.b16 %v8065, %v8062
    %v8804 = vpack.c.b16 %v8066, %v8063
    %v8805 = vpack.c.b16 %v8070, %v8067
    %v8806 = vpack.c.b16 %v8071, %v8068
    %v8807 = vpack.c.b16 %v8072, %v8069
    %v8808 = vpack.c.b16 %v8076, %v8073
    %v8809 = vpack.c.b16 %v8077, %v8074
    %v8810 = vpack.c.b16 %v8078, %v8075
    %v8811 = vpack.c.b16 %v8082, %v8079
    %v8812 = vpack.c.b16 %v8083, %v8080
    %v8813 = vpack.c.b16 %v8084, %v8081
    %v8814 = vpack.c.b16 %v8088, %v8085
    %v8815 = vpack.c.b16 %v8089, %v8086
    %v8816 = vpack.c.b16 %v8090, %v8087
    %v8817 = vpack.c.b16 %v8094, %v8091
    %v8818 = vpack.c.b16 %v8095, %v8092
    %v8819 = vpack.c.b16 %v8096, %v8093
    %v8820 = vpack.c.b16 %v8100, %v8097
    %v8821 = vpack.c.b16 %v8101, %v8098
    %v8822 = vpack.c.b16 %v8102, %v8099
    %v8823 = vpack.c.b16 %v8106, %v8103
    %v8824 = vpack.c.b16 %v8107, %v8104
    %v8825 = vpack.c.b16 %v8108, %v8105
    %v8826 = vpack.c.b16 %v8112, %v8109
    %v8827 = vpack.c.b16 %v8113, %v8110
    %v8828 = vpack.c.b16 %v8114, %v8111
    %v8829 = vpack.c.b16 %v8118, %v8115
    %v8830 = vpack.c.b16 %v8119, %v8116
    %v8831 = vpack.c.b16 %v8120, %v8117
    %v8832 = vpack.c.b16 %v8124, %v8121
    %v8833 = vpack.c.b16 %v8125, %v8122
    %v8834 = vpack.c.b16 %v8126, %v8123
    %v8835 = vpack.c.b16 %v8130, %v8127
    %v8836 = vpack.c.b16 %v8131, %v8128
    %v8837 = vpack.c.b16 %v8132, %v8129
    %v8838 = vpack.c.b16 %v8136, %v8133
    %v8839 = vpack.c.b16 %v8137, %v8134
    %v8840 = vpack.c.b16 %v8138, %v8135
    %v8841 = vpack.c.b16 %v8142, %v8139
    %v8842 = vpack.c.b16 %v8143, %v8140
    %v8843 = vpack.c.b16 %v8144, %v8141
    %v8844 = vpack.c.b16 %v8148, %v8145
    %v8845 = vpack.c.b16 %v8149, %v8146
    %v8846 = vpack.c.b16 %v8150, %v8147
    %v8847 = vpack.c.b16 %v8154, %v8151
    %v8848 = vpack.c.b16 %v8155, %v8152
    %v8849 = vpack.c.b16 %v8156, %v8153
    %v8850 = vpack.c.b16 %v8160, %v8157
    %v8851 = vpack.c.b16 %v8161, %v8158
    %v8852 = vpack.c.b16 %v8162, %v8159
    %v8853 = vpack.c.b16 %v8166, %v8163
    %v8854 = vpack.c.b16 %v8167, %v8164
    %v8855 = vpack.c.b16 %v8168, %v8165
    %v8856 = vpack.c.b16 %v8172, %v8169
    %v8857 = vpack.c.b16 %v8173, %v8170
    %v8858 = vpack.c.b16 %v8174, %v8171
    %v8859 = vpack.c.b16 %v8178, %v8175
    %v8860 = vpack.c.b16 %v8179, %v8176
    %v8861 = vpack.c.b16 %v8180, %v8177
    %v8862 = vpack.c.b16 %v8184, %v8181
    %v8863 = vpack.c.b16 %v8185, %v8182
    %v8864 = vpack.c.b16 %v8186, %v8183
    %v8865 = vpack.c.b16 %v8190, %v8187
    %v8866 = vpack.c.b16 %v8191, %v8188
    %v8867 = vpack.c.b16 %v8192, %v8189
    %v8868 = vpack.c.b16 %v8196, %v8193
    %v8869 = vpack.c.b16 %v8197, %v8194
    %v8870 = vpack.c.b16 %v8198, %v8195
    %v8871 = vpack.c.b16 %v8202, %v8199
    %v8872 = vpack.c.b16 %v8203, %v8200
    %v8873 = vpack.c.b16 %v8204, %v8201
    %v8874 = vpack.c.b16 %v8208, %v8205
    %v8875 = vpack.c.b16 %v8209, %v8206
    %v8876 = vpack.c.b16 %v8210, %v8207
    %v8877 = vpack.c.b16 %v8214, %v8211
    %v8878 = vpack.c.b16 %v8215, %v8212
    %v8879 = vpack.c.b16 %v8216, %v8213
    %v8880 = vpack.c.b16 %v8220, %v8217
    %v8881 = vpack.c.b16 %v8221, %v8218
    %v8882 = vpack.c.b16 %v8222, %v8219
    %v8883 = vpack.c.b16 %v8226, %v8223
    %v8884 = vpack.c.b16 %v8227, %v8224
    %v8885 = vpack.c.b16 %v8228, %v8225
    %v8886 = vpack.c.b16 %v8232, %v8229
    %v8887 = vpack.c.b16 %v8233, %v8230
    %v8888 = vpack.c.b16 %v8234, %v8231
    %v8889 = vpack.c.b16 %v8238, %v8235
    %v8890 = vpack.c.b16 %v8239, %v8236
    %v8891 = vpack.c.b16 %v8240, %v8237
    %v8892 = vpack.c.b16 %v8244, %v8241
    %v8893 = vpack.c.b16 %v8245, %v8242
    %v8894 = vpack.c.b16 %v8246, %v8243
    %v8895 = vpack.c.b16 %v8250, %v8247
    %v8896 = vpack.c.b16 %v8251, %v8248
    %v8897 = vpack.c.b16 %v8252, %v8249
    %v8898 = vpack.c.b16 %v8256, %v8253
    %v8899 = vpack.c.b16 %v8257, %v8254
    %v8900 = vpack.c.b16 %v8258, %v8255
    %v8901 = vpack.c.b16 %v8262, %v8259
    %v8902 = vpack.c.b16 %v8263, %v8260
    %v8903 = vpack.c.b16 %v8264, %v8261
    %v8904 = vpack.c.b16 %v8268, %v8265
    %v8905 = vpack.c.b16 %v8269, %v8266
    %v8906 = vpack.c.b16 %v8270, %v8267
    %v8907 = vpack.c.b16 %v8274, %v8271
    %v8908 = vpack.c.b16 %v8275, %v8272
    %v8909 = vpack.c.b16 %v8276, %v8273
    %v8910 = vpack.c.b16 %v8280, %v8277
    %v8911 = vpack.c.b16 %v8281, %v8278
    %v8912 = vpack.c.b16 %v8282, %v8279
    %v8913 = vpack.c.b16 %v8286, %v8283
    %v8914 = vpack.c.b16 %v8287, %v8284
    %v8915 = vpack.c.b16 %v8288, %v8285
    %v8916 = vpack.c.b16 %v8292, %v8289
    %v8917 = vpack.c.b16 %v8293, %v8290
    %v8918 = vpack.c.b16 %v8294, %v8291
    %v8919 = vpack.c.b16 %v8298, %v8295
    %v8920 = vpack.c.b16 %v8299, %v8296
    %v8921 = vpack.c.b16 %v8300, %v8297
    %v8922 = vpack.c.b16 %v8304, %v8301
    %v8923 = vpack.c.b16 %v8305, %v8302
    %v8924 = vpack.c.b16 %v8306, %v8303
    %v8925 = vpack.c.b16 %v8310, %v8307
    %v8926 = vpack.c.b16 %v8311, %v8308
    %v8927 = vpack.c.b16 %v8312, %v8309
    %v8928 = vpack.c.b16 %v8316, %v8313
    %v8929 = vpack.c.b16 %v8317, %v8314
    %v8930 = vpack.c.b16 %v8318, %v8315
    %v8931 = vpack.c.b16 %v8322, %v8319
    %v8932 = vpack.c.b16 %v8323, %v8320
    %v8933 = vpack.c.b16 %v8324, %v8321
    %v8934 = vpack.c.b16 %v8328, %v8325
    %v8935 = vpack.c.b16 %v8329, %v8326
    %v8936 = vpack.c.b16 %v8330, %v8327
    %v8937 = vpack.c.b16 %v8334, %v8331
    %v8938 = vpack.c.b16 %v8335, %v8332
    %v8939 = vpack.c.b16 %v8336, %v8333
    %v8940 = vpack.c.b16 %v8340, %v8337
    %v8941 = vpack.c.b16 %v8341, %v8338
    %v8942 = vpack.c.b16 %v8342, %v8339
    %v8943 = vpack.c.b16 %v8346, %v8343
    %v8944 = vpack.c.b16 %v8347, %v8344
    %v8945 = vpack.c.b16 %v8348, %v8345
    %v8946 = vpack.c.b16 %v8352, %v8349
    %v8947 = vpack.c.b16 %v8353, %v8350
    %v8948 = vpack.c.b16 %v8354, %v8351
    %v8949 = vpack.c.b16 %v8358, %v8355
    %v8950 = vpack.c.b16 %v8359, %v8356
    %v8951 = vpack.c.b16 %v8360, %v8357
    %v8952 = vpack.c.b16 %v8364, %v8361
    %v8953 = vpack.c.b16 %v8365, %v8362
    %v8954 = vpack.c.b16 %v8366, %v8363
    %v8955 = vpack.c.b16 %v8370, %v8367
    %v8956 = vpack.c.b16 %v8371, %v8368
    %v8957 = vpack.c.b16 %v8372, %v8369
    %v8958 = vpack.c.b16 %v8376, %v8373
    %v8959 = vpack.c.b16 %v8377, %v8374
    %v8960 = vpack.c.b16 %v8378, %v8375
    %v8961 = vpack.c.b16 %v8382, %v8379
    %v8962 = vpack.c.b16 %v8383, %v8380
    %v8963 = vpack.c.b16 %v8384, %v8381
    %v8964 = vpack.c.b16 %v8388, %v8385
    %v8965 = vpack.c.b16 %v8389, %v8386
    %v8966 = vpack.c.b16 %v8390, %v8387
    %v8967 = vpack.c.b16 %v8394, %v8391
    %v8968 = vpack.c.b16 %v8395, %v8392
    %v8969 = vpack.c.b16 %v8396, %v8393
    %v8970 = vpack.c.b16 %v8400, %v8397
    %v8971 = vpack.c.b16 %v8401, %v8398
    %v8972 = vpack.c.b16 %v8402, %v8399
    %v8973 = vpack.c.b16 %v8406, %v8403
    %v8974 = vpack.c.b16 %v8407, %v8404
    %v8975 = vpack.c.b16 %v8408, %v8405
    %v8976 = vpack.c.b16 %v8412, %v8409
    %v8977 = vpack.c.b16 %v8413, %v8410
    %v8978 = vpack.c.b16 %v8414, %v8411
    %v8979 = vpack.c.b16 %v8418, %v8415
    %v8980 = vpack.c.b16 %v8419, %v8416
    %v8981 = vpack.c.b16 %v8420, %v8417
    %v8982 = vpack.c.b16 %v8424, %v8421
    %v8983 = vpack.c.b16 %v8425, %v8422
    %v8984 = vpack.c.b16 %v8426, %v8423
    %v8985 = vpack.c.b16 %v8430, %v8427
    %v8986 = vpack.c.b16 %v8431, %v8428
    %v8987 = vpack.c.b16 %v8432, %v8429
    %v8988 = vpack.c.b16 %v8436, %v8433
    %v8989 = vpack.c.b16 %v8437, %v8434
    %v8990 = vpack.c.b16 %v8438, %v8435
    %v8991 = vpack.c.b16 %v8442, %v8439
    %v8992 = vpack.c.b16 %v8443, %v8440
    %v8993 = vpack.c.b16 %v8444, %v8441
    %v8994 = vpack.c.b16 %v8448, %v8445
    %v8995 = vpack.c.b16 %v8449, %v8446
    %v8996 = vpack.c.b16 %v8450, %v8447
    %v8997 = vpack.c.b16 %v8454, %v8451
    %v8998 = vpack.c.b16 %v8455, %v8452
    %v8999 = vpack.c.b16 %v8456, %v8453
    %v9000 = vpack.c.b16 %v8460, %v8457
    %v9001 = vpack.c.b16 %v8461, %v8458
    %v9002 = vpack.c.b16 %v8462, %v8459
    %v9003 = vpack.c.b16 %v8466, %v8463
    %v9004 = vpack.c.b16 %v8467, %v8464
    %v9005 = vpack.c.b16 %v8468, %v8465
    %v9006 = vpack.c.b16 %v8472, %v8469
    %v9007 = vpack.c.b16 %v8473, %v8470
    %v9008 = vpack.c.b16 %v8474, %v8471
    %v9009 = vpack.c.b16 %v8478, %v8475
    %v9010 = vpack.c.b16 %v8479, %v8476
    %v9011 = vpack.c.b16 %v8480, %v8477
    %v9012 = vpack.c.b16 %v8484, %v8481
    %v9013 = vpack.c.b16 %v8485, %v8482
    %v9014 = vpack.c.b16 %v8486, %v8483
    %v9015 = vpack.c.b16 %v8490, %v8487
    %v9016 = vpack.c.b16 %v8491, %v8488
    %v9017 = vpack.c.b16 %v8492, %v8489
    %v9018 = vpack.c.b16 %v8496, %v8493
    %v9019 = vpack.c.b16 %v8497, %v8494
    %v9020 = vpack.c.b16 %v8498, %v8495
    %v9021 = vpack.c.b16 %v8502, %v8499
    %v9022 = vpack.c.b16 %v8503, %v8500
    %v9023 = vpack.c.b16 %v8504, %v8501
    %v9024 = vpack.c.b16 %v8508, %v8505
    %v9025 = vpack.c.b16 %v8509, %v8506
    %v9026 = vpack.c.b16 %v8510, %v8507
    %v9027 = vpack.c.b16 %v8514, %v8511
    %v9028 = vpack.c.b16 %v8515, %v8512
    %v9029 = vpack.c.b16 %v8516, %v8513
    %v9030 = vpack.c.b16 %v8520, %v8517
    %v9031 = vpack.c.b16 %v8521, %v8518
    %v9032 = vpack.c.b16 %v8522, %v8519
    %v9033 = vpack.c.b16 %v8526, %v8523
    %v9034 = vpack.c.b16 %v8527, %v8524
    %v9035 = vpack.c.b16 %v8528, %v8525
    %v9036 = vpack.c.b16 %v8532, %v8529
    %v9037 = vpack.c.b16 %v8533, %v8530
    %v9038 = vpack.c.b16 %v8534, %v8531
    %v9039 = vpack.c.b16 %v8538, %v8535
    %v9040 = vpack.c.b16 %v8539, %v8536
    %v9041 = vpack.c.b16 %v8540, %v8537
    %v9042 = vpack.c.b16 %v8544, %v8541
    %v9043 = vpack.c.b16 %v8545, %v8542
    %v9044 = vpack.c.b16 %v8546, %v8543
    %v9045 = vpack.c.b16 %v8550, %v8547
    %v9046 = vpack.c.b16 %v8551, %v8548
    %v9047 = vpack.c.b16 %v8552, %v8549
    %v9048 = vpack.c.b16 %v8556, %v8553
    %v9049 = vpack.c.b16 %v8557, %v8554
    %v9050 = vpack.c.b16 %v8558, %v8555
    %v9051 = vpack.c.b16 %v8562, %v8559
    %v9052 = vpack.c.b16 %v8563, %v8560
    %v9053 = vpack.c.b16 %v8564, %v8561
    %v9054 = vpack.c.b16 %v8568, %v8565
    %v9055 = vpack.c.b16 %v8569, %v8566
    %v9056 = vpack.c.b16 %v8570, %v8567
    %v9057 = vpack.c.b16 %v8574, %v8571
    %v9058 = vpack.c.b16 %v8575, %v8572
    %v9059 = vpack.c.b16 %v8576, %v8573
    %v9060 = vpack.c.b16 %v8580, %v8577
    %v9061 = vpack.c.b16 %v8581, %v8578
    %v9062 = vpack.c.b16 %v8582, %v8579
    %v9063 = vpack.c.b16 %v8586, %v8583
    %v9064 = vpack.c.b16 %v8587, %v8584
    %v9065 = vpack.c.b16 %v8588, %v8585
    %v9066 = vpack.c.b16 %v8592, %v8589
    %v9067 = vpack.c.b16 %v8593, %v8590
    %v9068 = vpack.c.b16 %v8594, %v8591
    %v9069 = vpack.c.b16 %v8598, %v8595
    %v9070 = vpack.c.b16 %v8599, %v8596
    %v9071 = vpack.c.b16 %v8600, %v8597
    %v9072 = vpack.c.b16 %v8604, %v8601
    %v9073 = vpack.c.b16 %v8605, %v8602
    %v9074 = vpack.c.b16 %v8606, %v8603
    %v9075 = vpack.c.b16 %v8610, %v8607
    %v9076 = vpack.c.b16 %v8611, %v8608
    %v9077 = vpack.c.b16 %v8612, %v8609
    %v9078 = vpack.c.b16 %v8616, %v8613
    %v9079 = vpack.c.b16 %v8617, %v8614
    %v9080 = vpack.c.b16 %v8618, %v8615
    %v9081 = vpack.c.b16 %v8622, %v8619
    %v9082 = vpack.c.b16 %v8623, %v8620
    %v9083 = vpack.c.b16 %v8624, %v8621
    %v9084 = vpack.c.b16 %v8628, %v8625
    %v9085 = vpack.c.b16 %v8629, %v8626
    %v9086 = vpack.c.b16 %v8630, %v8627
    %v9087 = vpack.c.b16 %v8634, %v8631
    %v9088 = vpack.c.b16 %v8635, %v8632
    %v9089 = vpack.c.b16 %v8636, %v8633
    %v9090 = vpack.c.b16 %v8640, %v8637
    %v9091 = vpack.c.b16 %v8641, %v8638
    %v9092 = vpack.c.b16 %v8642, %v8639
    %vm9543 = vcmask 785408
    %v9545 = vsel %vm9543, %v6525, 0
    %9547 = vmatprep.subr.bf16.mxu0 %v8644
    %9548 = vmatpush1.bf16.msra.mxu0 %v8643
    %9549 = vmatprep.subr.bf16.mxu0 %v8647
    %9550 = vmatpush1.bf16.msra.mxu0 %v8646
    %9551 = vmatprep.subr.bf16.mxu0 %v8650
    %9552 = vmatpush1.bf16.msra.mxu0 %v8649
    %9553 = vmatprep.subr.bf16.mxu0 %v8653
    %9554 = vmatpush1.bf16.msra.mxu0 %v8652
    %9555 = vmatprep.subr.bf16.mxu0 %v8656
    %9556 = vmatpush1.bf16.msra.mxu0 %v8655
    %9557 = vmatprep.subr.bf16.mxu0 %v8659
    %9558 = vmatpush1.bf16.msra.mxu0 %v8658
    %9559 = vmatprep.subr.bf16.mxu0 %v8662
    %9560 = vmatpush1.bf16.msra.mxu0 %v8661
    %9561 = vmatprep.subr.bf16.mxu0 %v8665
    %9562 = vmatpush1.bf16.msra.mxu0 %v8664
    %9563 = vmatprep.subr.bf16.mxu0 %v8668
    %9564 = vmatpush1.bf16.msra.mxu0 %v8667
    %9565 = vmatprep.subr.bf16.mxu0 %v8671
    %9566 = vmatpush1.bf16.msra.mxu0 %v8670
    %9567 = vmatprep.subr.bf16.mxu0 %v8674
    %9568 = vmatpush1.bf16.msra.mxu0 %v8673
    %9569 = vmatprep.subr.bf16.mxu0 %v8677
    %9570 = vmatpush1.bf16.msra.mxu0 %v8676
    %9571 = vmatprep.subr.bf16.mxu0 %v8680
    %9572 = vmatpush1.bf16.msra.mxu0 %v8679
    %9573 = vmatprep.subr.bf16.mxu0 %v8683
    %9574 = vmatpush1.bf16.msra.mxu0 %v8682
    %9575 = vmatprep.subr.bf16.mxu0 %v8686
    %9576 = vmatpush1.bf16.msra.mxu0 %v8685
    %9577 = vmatprep.subr.bf16.mxu0 %v8689
    %9578 = vmatpush1.bf16.msra.mxu0 %v8688
    %9579 = vmatprep.mubr.bf16.mxu0 %v6494
    %9580 = vmatmul.mubr.bf16.gmra.mrb[0].mxu0 %v6493
    %v9581 = vpop.f32.mrb[0].mxu0
    %v9582 = vadd.f32 %v7131, %v9581
    %v9583 = vpop.f32.mrb[0].mxu0
    %v9584 = vadd.f32 %v7135, %v9583
    %v9585 = vpop.f32.mrb[0].mxu0
    %v9586 = vpop.f32.mrb[0].mxu0
    %9587 = vdwg.mxu0
    %9588 = vmatprep.subr.bf16.mxu0 %v8692
    %9589 = vmatpush1.bf16.msra.mxu0 %v8691
    %9590 = vmatprep.subr.bf16.mxu0 %v8695
    %9591 = vmatpush1.bf16.msra.mxu0 %v8694
    %9592 = vmatprep.subr.bf16.mxu0 %v8698
    %9593 = vmatpush1.bf16.msra.mxu0 %v8697
    %9594 = vmatprep.subr.bf16.mxu0 %v8701
    %9595 = vmatpush1.bf16.msra.mxu0 %v8700
    %9596 = vmatprep.subr.bf16.mxu0 %v8704
    %9597 = vmatpush1.bf16.msra.mxu0 %v8703
    %9598 = vmatprep.subr.bf16.mxu0 %v8707
    %9599 = vmatpush1.bf16.msra.mxu0 %v8706
    %9600 = vmatprep.subr.bf16.mxu0 %v8710
    %9601 = vmatpush1.bf16.msra.mxu0 %v8709
    %9602 = vmatprep.subr.bf16.mxu0 %v8713
    %9603 = vmatpush1.bf16.msra.mxu0 %v8712
    %9604 = vmatprep.subr.bf16.mxu0 %v8716
    %9605 = vmatpush1.bf16.msra.mxu0 %v8715
    %9606 = vmatprep.subr.bf16.mxu0 %v8719
    %9607 = vmatpush1.bf16.msra.mxu0 %v8718
    %9608 = vmatprep.subr.bf16.mxu0 %v8722
    %9609 = vmatpush1.bf16.msra.mxu0 %v8721
    %9610 = vmatprep.subr.bf16.mxu0 %v8725
    %9611 = vmatpush1.bf16.msra.mxu0 %v8724
    %9612 = vmatprep.subr.bf16.mxu0 %v8728
    %9613 = vmatpush1.bf16.msra.mxu0 %v8727
    %9614 = vmatprep.subr.bf16.mxu0 %v8731
    %9615 = vmatpush1.bf16.msra.mxu0 %v8730
    %9616 = vmatprep.subr.bf16.mxu0 %v8734
    %9617 = vmatpush1.bf16.msra.mxu0 %v8733
    %9618 = vmatprep.subr.bf16.mxu0 %v8737
    %9619 = vmatpush1.bf16.msra.mxu0 %v8736
    %9620 = vmatprep.mubr.bf16.mxu0 %v6496
    %9621 = vmatmul.mubr.bf16.gmra.mrb[0].mxu0 %v6495
    %v9622 = vpop.f32.mrb[0].mxu0
    %v9623 = vadd.f32 %v9582, %v9622
    %v9624 = vpop.f32.mrb[0].mxu0
    %v9625 = vadd.f32 %v9584, %v9624
    %v9626 = vpop.f32.mrb[0].mxu0
    %v9627 = vpop.f32.mrb[0].mxu0
    %9628 = vdwg.mxu0
    %9629 = vmatprep.subr.bf16.mxu0 %v8740
    %9630 = vmatpush1.bf16.msra.mxu0 %v8739
    %9631 = vmatprep.subr.bf16.mxu0 %v8743
    %9632 = vmatpush1.bf16.msra.mxu0 %v8742
    %9633 = vmatprep.subr.bf16.mxu0 %v8746
    %9634 = vmatpush1.bf16.msra.mxu0 %v8745
    %9635 = vmatprep.subr.bf16.mxu0 %v8749
    %9636 = vmatpush1.bf16.msra.mxu0 %v8748
    %9637 = vmatprep.subr.bf16.mxu0 %v8752
    %9638 = vmatpush1.bf16.msra.mxu0 %v8751
    %9639 = vmatprep.subr.bf16.mxu0 %v8755
    %9640 = vmatpush1.bf16.msra.mxu0 %v8754
    %9641 = vmatprep.subr.bf16.mxu0 %v8758
    %9642 = vmatpush1.bf16.msra.mxu0 %v8757
    %9643 = vmatprep.subr.bf16.mxu0 %v8761
    %9644 = vmatpush1.bf16.msra.mxu0 %v8760
    %9645 = vmatprep.subr.bf16.mxu0 %v8764
    %9646 = vmatpush1.bf16.msra.mxu0 %v8763
    %9647 = vmatprep.subr.bf16.mxu0 %v8767
    %9648 = vmatpush1.bf16.msra.mxu0 %v8766
    %9649 = vmatprep.subr.bf16.mxu0 %v8770
    %9650 = vmatpush1.bf16.msra.mxu0 %v8769
    %9651 = vmatprep.subr.bf16.mxu0 %v8773
    %9652 = vmatpush1.bf16.msra.mxu0 %v8772
    %9653 = vmatprep.subr.bf16.mxu0 %v8776
    %9654 = vmatpush1.bf16.msra.mxu0 %v8775
    %9655 = vmatprep.subr.bf16.mxu0 %v8779
    %9656 = vmatpush1.bf16.msra.mxu0 %v8778
    %9657 = vmatprep.subr.bf16.mxu0 %v8782
    %9658 = vmatpush1.bf16.msra.mxu0 %v8781
    %9659 = vmatprep.subr.bf16.mxu0 %v8785
    %9660 = vmatpush1.bf16.msra.mxu0 %v8784
    %9661 = vmatprep.mubr.bf16.mxu0 %v6503
    %9662 = vmatmul.mubr.bf16.gmra.mrb[0].mxu0 %v6497
    %v9663 = vpop.f32.mrb[0].mxu0
    %v9664 = vadd.f32 %v9623, %v9663
    %v9665 = vpop.f32.mrb[0].mxu0
    %v9666 = vadd.f32 %v9625, %v9665
    %v9667 = vpop.f32.mrb[0].mxu0
    %v9668 = vpop.f32.mrb[0].mxu0
    %9669 = vdwg.mxu0
    %9670 = vmatprep.subr.bf16.mxu0 %v8788
    %9671 = vmatpush1.bf16.msra.mxu0 %v8787
    %9672 = vmatprep.subr.bf16.mxu0 %v8791
    %9673 = vmatpush1.bf16.msra.mxu0 %v8790
    %9674 = vmatprep.subr.bf16.mxu0 %v8794
    %9675 = vmatpush1.bf16.msra.mxu0 %v8793
    %9676 = vmatprep.subr.bf16.mxu0 %v8797
    %9677 = vmatpush1.bf16.msra.mxu0 %v8796
    %9678 = vmatprep.subr.bf16.mxu0 %v8800
    %9679 = vmatpush1.bf16.msra.mxu0 %v8799
    %9680 = vmatprep.subr.bf16.mxu0 %v8803
    %9681 = vmatpush1.bf16.msra.mxu0 %v8802
    %9682 = vmatprep.subr.bf16.mxu0 %v8806
    %9683 = vmatpush1.bf16.msra.mxu0 %v8805
    %9684 = vmatprep.subr.bf16.mxu0 %v8809
    %9685 = vmatpush1.bf16.msra.mxu0 %v8808
    %9686 = vmatprep.subr.bf16.mxu0 %v8812
    %9687 = vmatpush1.bf16.msra.mxu0 %v8811
    %9688 = vmatprep.subr.bf16.mxu0 %v8815
    %9689 = vmatpush1.bf16.msra.mxu0 %v8814
    %9690 = vmatprep.subr.bf16.mxu0 %v8818
    %9691 = vmatpush1.bf16.msra.mxu0 %v8817
    %9692 = vmatprep.subr.bf16.mxu0 %v8821
    %9693 = vmatpush1.bf16.msra.mxu0 %v8820
    %9694 = vmatprep.subr.bf16.mxu0 %v8824
    %9695 = vmatpush1.bf16.msra.mxu0 %v8823
    %9696 = vmatprep.subr.bf16.mxu0 %v8827
    %9697 = vmatpush1.bf16.msra.mxu0 %v8826
    %9698 = vmatprep.subr.bf16.mxu0 %v8830
    %9699 = vmatpush1.bf16.msra.mxu0 %v8829
    %9700 = vmatprep.subr.bf16.mxu0 %v8833
    %9701 = vmatpush1.bf16.msra.mxu0 %v8832
    %9702 = vmatprep.mubr.bf16.mxu0 %v6505
    %9703 = vmatmul.mubr.bf16.gmra.mrb[0].mxu0 %v6504
    %v9704 = vpop.f32.mrb[0].mxu0
    %v9705 = vadd.f32 %v9664, %v9704
    %v9706 = vpop.f32.mrb[0].mxu0
    %v9707 = vadd.f32 %v9666, %v9706
    %v9708 = vpop.f32.mrb[0].mxu0
    %v9709 = vpop.f32.mrb[0].mxu0
    %9710 = vdwg.mxu0
    %9711 = vmatprep.subr.bf16.mxu0 %v8836
    %9712 = vmatpush1.bf16.msra.mxu0 %v8835
    %9713 = vmatprep.subr.bf16.mxu0 %v8839
    %9714 = vmatpush1.bf16.msra.mxu0 %v8838
    %9715 = vmatprep.subr.bf16.mxu0 %v8842
    %9716 = vmatpush1.bf16.msra.mxu0 %v8841
    %9717 = vmatprep.subr.bf16.mxu0 %v8845
    %9718 = vmatpush1.bf16.msra.mxu0 %v8844
    %9719 = vmatprep.subr.bf16.mxu0 %v8848
    %9720 = vmatpush1.bf16.msra.mxu0 %v8847
    %9721 = vmatprep.subr.bf16.mxu0 %v8851
    %9722 = vmatpush1.bf16.msra.mxu0 %v8850
    %9723 = vmatprep.subr.bf16.mxu0 %v8854
    %9724 = vmatpush1.bf16.msra.mxu0 %v8853
    %9725 = vmatprep.subr.bf16.mxu0 %v8857
    %9726 = vmatpush1.bf16.msra.mxu0 %v8856
    %9727 = vmatprep.subr.bf16.mxu0 %v8860
    %9728 = vmatpush1.bf16.msra.mxu0 %v8859
    %9729 = vmatprep.subr.bf16.mxu0 %v8863
    %9730 = vmatpush1.bf16.msra.mxu0 %v8862
    %9731 = vmatprep.subr.bf16.mxu0 %v8866
    %9732 = vmatpush1.bf16.msra.mxu0 %v8865
    %9733 = vmatprep.subr.bf16.mxu0 %v8869
    %9734 = vmatpush1.bf16.msra.mxu0 %v8868
    %9735 = vmatprep.subr.bf16.mxu0 %v8872
    %9736 = vmatpush1.bf16.msra.mxu0 %v8871
    %9737 = vmatprep.subr.bf16.mxu0 %v8875
    %9738 = vmatpush1.bf16.msra.mxu0 %v8874
    %9739 = vmatprep.subr.bf16.mxu0 %v8878
    %9740 = vmatpush1.bf16.msra.mxu0 %v8877
    %9741 = vmatprep.subr.bf16.mxu0 %v8881
    %9742 = vmatpush1.bf16.msra.mxu0 %v8880
    %9743 = vmatprep.mubr.bf16.mxu0 %v6507
    %9744 = vmatmul.mubr.bf16.gmra.mrb[0].mxu0 %v6506
    %v9745 = vpop.f32.mrb[0].mxu0
    %v9746 = vadd.f32 %v9705, %v9745
    %v9747 = vpop.f32.mrb[0].mxu0
    %v9748 = vadd.f32 %v9707, %v9747
    %v9749 = vpop.f32.mrb[0].mxu0
    %v9750 = vpop.f32.mrb[0].mxu0
    %9751 = vdwg.mxu0
    %9752 = vmatprep.subr.bf16.mxu0 %v8884
    %9753 = vmatpush1.bf16.msra.mxu0 %v8883
    %9754 = vmatprep.subr.bf16.mxu0 %v8887
    %9755 = vmatpush1.bf16.msra.mxu0 %v8886
    %9756 = vmatprep.subr.bf16.mxu0 %v8890
    %9757 = vmatpush1.bf16.msra.mxu0 %v8889
    %9758 = vmatprep.subr.bf16.mxu0 %v8893
    %9759 = vmatpush1.bf16.msra.mxu0 %v8892
    %9760 = vmatprep.subr.bf16.mxu0 %v8896
    %9761 = vmatpush1.bf16.msra.mxu0 %v8895
    %9762 = vmatprep.subr.bf16.mxu0 %v8899
    %9763 = vmatpush1.bf16.msra.mxu0 %v8898
    %9764 = vmatprep.subr.bf16.mxu0 %v8902
    %9765 = vmatpush1.bf16.msra.mxu0 %v8901
    %9766 = vmatprep.subr.bf16.mxu0 %v8905
    %9767 = vmatpush1.bf16.msra.mxu0 %v8904
    %9768 = vmatprep.subr.bf16.mxu0 %v8908
    %9769 = vmatpush1.bf16.msra.mxu0 %v8907
    %9770 = vmatprep.subr.bf16.mxu0 %v8911
    %9771 = vmatpush1.bf16.msra.mxu0 %v8910
    %9772 = vmatprep.subr.bf16.mxu0 %v8914
    %9773 = vmatpush1.bf16.msra.mxu0 %v8913
    %9774 = vmatprep.subr.bf16.mxu0 %v8917
    %9775 = vmatpush1.bf16.msra.mxu0 %v8916
    %9776 = vmatprep.subr.bf16.mxu0 %v8920
    %9777 = vmatpush1.bf16.msra.mxu0 %v8919
    %9778 = vmatprep.subr.bf16.mxu0 %v8923
    %9779 = vmatpush1.bf16.msra.mxu0 %v8922
    %9780 = vmatprep.subr.bf16.mxu0 %v8926
    %9781 = vmatpush1.bf16.msra.mxu0 %v8925
    %9782 = vmatprep.subr.bf16.mxu0 %v8929
    %9783 = vmatpush1.bf16.msra.mxu0 %v8928
    %9784 = vmatprep.mubr.bf16.mxu0 %v6518
    %9785 = vmatmul.mubr.bf16.gmra.mrb[0].mxu0 %v6517
    %v9786 = vpop.f32.mrb[0].mxu0
    %v9787 = vadd.f32 %v9746, %v9786
    %v9788 = vpop.f32.mrb[0].mxu0
    %v9789 = vadd.f32 %v9748, %v9788
    %v9790 = vpop.f32.mrb[0].mxu0
    %v9791 = vpop.f32.mrb[0].mxu0
    %9792 = vdwg.mxu0
    %9793 = vmatprep.subr.bf16.mxu0 %v8932
    %9794 = vmatpush1.bf16.msra.mxu0 %v8931
    %9795 = vmatprep.subr.bf16.mxu0 %v8935
    %9796 = vmatpush1.bf16.msra.mxu0 %v8934
    %9797 = vmatprep.subr.bf16.mxu0 %v8938
    %9798 = vmatpush1.bf16.msra.mxu0 %v8937
    %9799 = vmatprep.subr.bf16.mxu0 %v8941
    %9800 = vmatpush1.bf16.msra.mxu0 %v8940
    %9801 = vmatprep.subr.bf16.mxu0 %v8944
    %9802 = vmatpush1.bf16.msra.mxu0 %v8943
    %9803 = vmatprep.subr.bf16.mxu0 %v8947
    %9804 = vmatpush1.bf16.msra.mxu0 %v8946
    %9805 = vmatprep.subr.bf16.mxu0 %v8950
    %9806 = vmatpush1.bf16.msra.mxu0 %v8949
    %9807 = vmatprep.subr.bf16.mxu0 %v8953
    %9808 = vmatpush1.bf16.msra.mxu0 %v8952
    %9809 = vmatprep.subr.bf16.mxu0 %v8956
    %9810 = vmatpush1.bf16.msra.mxu0 %v8955
    %9811 = vmatprep.subr.bf16.mxu0 %v8959
    %9812 = vmatpush1.bf16.msra.mxu0 %v8958
    %9813 = vmatprep.subr.bf16.mxu0 %v8962
    %9814 = vmatpush1.bf16.msra.mxu0 %v8961
    %9815 = vmatprep.subr.bf16.mxu0 %v8965
    %9816 = vmatpush1.bf16.msra.mxu0 %v8964
    %9817 = vmatprep.subr.bf16.mxu0 %v8968
    %9818 = vmatpush1.bf16.msra.mxu0 %v8967
    %9819 = vmatprep.subr.bf16.mxu0 %v8971
    %9820 = vmatpush1.bf16.msra.mxu0 %v8970
    %9821 = vmatprep.subr.bf16.mxu0 %v8974
    %9822 = vmatpush1.bf16.msra.mxu0 %v8973
    %9823 = vmatprep.subr.bf16.mxu0 %v8977
    %9824 = vmatpush1.bf16.msra.mxu0 %v8976
    %9825 = vmatprep.mubr.bf16.mxu0 %v6520
    %9826 = vmatmul.mubr.bf16.gmra.mrb[0].mxu0 %v6519
    %v9827 = vpop.f32.mrb[0].mxu0
    %v9828 = vadd.f32 %v9787, %v9827
    %v9829 = vpop.f32.mrb[0].mxu0
    %v9830 = vadd.f32 %v9789, %v9829
    %v9831 = vpop.f32.mrb[0].mxu0
    %v9832 = vpop.f32.mrb[0].mxu0
    %9833 = vdwg.mxu0
    %9834 = vmatprep.subr.bf16.mxu0 %v8980
    %9835 = vmatpush1.bf16.msra.mxu0 %v8979
    %9836 = vmatprep.subr.bf16.mxu0 %v8983
    %9837 = vmatpush1.bf16.msra.mxu0 %v8982
    %9838 = vmatprep.subr.bf16.mxu0 %v8986
    %9839 = vmatpush1.bf16.msra.mxu0 %v8985
    %9840 = vmatprep.subr.bf16.mxu0 %v8989
    %9841 = vmatpush1.bf16.msra.mxu0 %v8988
    %9842 = vmatprep.subr.bf16.mxu0 %v8992
    %9843 = vmatpush1.bf16.msra.mxu0 %v8991
    %9844 = vmatprep.subr.bf16.mxu0 %v8995
    %9845 = vmatpush1.bf16.msra.mxu0 %v8994
    %9846 = vmatprep.subr.bf16.mxu0 %v8998
    %9847 = vmatpush1.bf16.msra.mxu0 %v8997
    %9848 = vmatprep.subr.bf16.mxu0 %v9001
    %9849 = vmatpush1.bf16.msra.mxu0 %v9000
    %9850 = vmatprep.subr.bf16.mxu0 %v9004
    %9851 = vmatpush1.bf16.msra.mxu0 %v9003
    %9852 = vmatprep.subr.bf16.mxu0 %v9007
    %9853 = vmatpush1.bf16.msra.mxu0 %v9006
    %9854 = vmatprep.subr.bf16.mxu0 %v9010
    %9855 = vmatpush1.bf16.msra.mxu0 %v9009
    %9856 = vmatprep.subr.bf16.mxu0 %v9013
    %9857 = vmatpush1.bf16.msra.mxu0 %v9012
    %9858 = vmatprep.subr.bf16.mxu0 %v9016
    %9859 = vmatpush1.bf16.msra.mxu0 %v9015
    %9860 = vmatprep.subr.bf16.mxu0 %v9019
    %9861 = vmatpush1.bf16.msra.mxu0 %v9018
    %9862 = vmatprep.subr.bf16.mxu0 %v9022
    %9863 = vmatpush1.bf16.msra.mxu0 %v9021
    %9864 = vmatprep.subr.bf16.mxu0 %v9025
    %9865 = vmatpush1.bf16.msra.mxu0 %v9024
    %9866 = vmatprep.mubr.bf16.mxu0 %v6522
    %9867 = vmatmul.mubr.bf16.gmra.mrb[0].mxu0 %v6521
    %v9868 = vpop.f32.mrb[0].mxu0
    %v9869 = vadd.f32 %v9828, %v9868
    %v9870 = vpop.f32.mrb[0].mxu0
    %v9871 = vadd.f32 %v9830, %v9870
    %v9872 = vpop.f32.mrb[0].mxu0
    %v9873 = vpop.f32.mrb[0].mxu0
    %9874 = vdwg.mxu0
    %9875 = vmatprep.subr.bf16.mxu0 %v9028
    %9876 = vmatpush1.bf16.msra.mxu0 %v9027
    %9877 = vmatprep.subr.bf16.mxu0 %v9031
    %9878 = vmatpush1.bf16.msra.mxu0 %v9030
    %9879 = vmatprep.subr.bf16.mxu0 %v9034
    %9880 = vmatpush1.bf16.msra.mxu0 %v9033
    %9881 = vmatprep.subr.bf16.mxu0 %v9037
    %9882 = vmatpush1.bf16.msra.mxu0 %v9036
    %9883 = vmatprep.subr.bf16.mxu0 %v9040
    %9884 = vmatpush1.bf16.msra.mxu0 %v9039
    %9885 = vmatprep.subr.bf16.mxu0 %v9043
    %9886 = vmatpush1.bf16.msra.mxu0 %v9042
    %9887 = vmatprep.subr.bf16.mxu0 %v9046
    %9888 = vmatpush1.bf16.msra.mxu0 %v9045
    %9889 = vmatprep.subr.bf16.mxu0 %v9049
    %9890 = vmatpush1.bf16.msra.mxu0 %v9048
    %9891 = vmatprep.subr.bf16.mxu0 %v9052
    %9892 = vmatpush1.bf16.msra.mxu0 %v9051
    %9893 = vmatprep.subr.bf16.mxu0 %v9055
    %9894 = vmatpush1.bf16.msra.mxu0 %v9054
    %9895 = vmatprep.subr.bf16.mxu0 %v9058
    %9896 = vmatpush1.bf16.msra.mxu0 %v9057
    %9897 = vmatprep.subr.bf16.mxu0 %v9061
    %9898 = vmatpush1.bf16.msra.mxu0 %v9060
    %9899 = vmatprep.subr.bf16.mxu0 %v9064
    %9900 = vmatpush1.bf16.msra.mxu0 %v9063
    %9901 = vmatprep.subr.bf16.mxu0 %v9067
    %9902 = vmatpush1.bf16.msra.mxu0 %v9066
    %9903 = vmatprep.subr.bf16.mxu0 %v9070
    %9904 = vmatpush1.bf16.msra.mxu0 %v9069
    %9905 = vmatprep.subr.bf16.mxu0 %v9073
    %9906 = vmatpush1.bf16.msra.mxu0 %v9072
    %9907 = vmatprep.mubr.bf16.mxu0 %v6524
    %9908 = vmatmul.mubr.bf16.gmra.mrb[0].mxu0 %v6523
    %v9909 = vpop.f32.mrb[0].mxu0
    %v9910 = vadd.f32 %v9869, %v9909
    %v9911 = vpop.f32.mrb[0].mxu0
    %v9912 = vadd.f32 %v9871, %v9911
    %v9913 = vpop.f32.mrb[0].mxu0
    %v9914 = vpop.f32.mrb[0].mxu0
    %9915 = vdwg.mxu0
    %9916 = vmatprep.subr.bf16.mxu0 %v9076
    %9917 = vmatpush1.bf16.msra.mxu0 %v9075
    %9918 = vmatprep.subr.bf16.mxu0 %v9079
    %9919 = vmatpush1.bf16.msra.mxu0 %v9078
    %9920 = vmatprep.subr.bf16.mxu0 %v9082
    %9921 = vmatpush1.bf16.msra.mxu0 %v9081
    %9922 = vmatprep.subr.bf16.mxu0 %v9085
    %9923 = vmatpush1.bf16.msra.mxu0 %v9084
    %9924 = vmatprep.subr.bf16.mxu0 %v9088
    %9925 = vmatpush1.bf16.msra.mxu0 %v9087
    %9926 = vmatprep.subr.bf16.mxu0 %v9091
    %9927 = vmatpush1.bf16.msra.mxu0 %v9090
    %9928 = vmatprep.subr.bf16.mxu0 0
    %9929 = vmatpush1.bf16.msra.mxu0 0
    %9930 = vmatprep.subr.bf16.mxu0 0
    %9931 = vmatpush1.bf16.msra.mxu0 0
    %9932 = vmatprep.subr.bf16.mxu0 0
    %9933 = vmatpush1.bf16.msra.mxu0 0
    %9934 = vmatprep.subr.bf16.mxu0 0
    %9935 = vmatpush1.bf16.msra.mxu0 0
    %9936 = vmatprep.subr.bf16.mxu0 0
    %9937 = vmatpush1.bf16.msra.mxu0 0
    %9938 = vmatprep.subr.bf16.mxu0 0
    %9939 = vmatpush1.bf16.msra.mxu0 0
    %9940 = vmatprep.subr.bf16.mxu0 0
    %9941 = vmatpush1.bf16.msra.mxu0 0
    %9942 = vmatprep.subr.bf16.mxu0 0
    %9943 = vmatpush1.bf16.msra.mxu0 0
    %9944 = vmatprep.subr.bf16.mxu0 0
    %9945 = vmatpush1.bf16.msra.mxu0 0
    %9946 = vmatprep.subr.bf16.mxu0 0
    %9947 = vmatpush1.bf16.msra.mxu0 0
    %9948 = vmatprep.mubr.bf16.mxu0 0
    %9949 = vmatmul.mubr.bf16.gmra.mrb[0].mxu0 %v9545
    %v9950 = vpop.f32.mrb[0].mxu0
    %v9951 = vadd.f32 %v9910, %v9950
    %v9952 = vpop.f32.mrb[0].mxu0
    %v9953 = vadd.f32 %v9912, %v9952
    %v9954 = vpop.f32.mrb[0].mxu0
    %v9955 = vpop.f32.mrb[0].mxu0
    %9956 = vdwg.mxu0
    %9957 = vmatprep.subr.bf16.mxu0 0
    %9958 = vmatpush1.bf16.msra.mxu0 %v8645
    %9959 = vmatprep.subr.bf16.mxu0 0
    %9960 = vmatpush1.bf16.msra.mxu0 %v8648
    %9961 = vmatprep.subr.bf16.mxu0 0
    %9962 = vmatpush1.bf16.msra.mxu0 %v8651
    %9963 = vmatprep.subr.bf16.mxu0 0
    %9964 = vmatpush1.bf16.msra.mxu0 %v8654
    %9965 = vmatprep.subr.bf16.mxu0 0
    %9966 = vmatpush1.bf16.msra.mxu0 %v8657
    %9967 = vmatprep.subr.bf16.mxu0 0
    %9968 = vmatpush1.bf16.msra.mxu0 %v8660
    %9969 = vmatprep.subr.bf16.mxu0 0
    %9970 = vmatpush1.bf16.msra.mxu0 %v8663
    %9971 = vmatprep.subr.bf16.mxu0 0
    %9972 = vmatpush1.bf16.msra.mxu0 %v8666
    %9973 = vmatprep.subr.bf16.mxu0 0
    %9974 = vmatpush1.bf16.msra.mxu0 %v8669
    %9975 = vmatprep.subr.bf16.mxu0 0
    %9976 = vmatpush1.bf16.msra.mxu0 %v8672
    %9977 = vmatprep.subr.bf16.mxu0 0
    %9978 = vmatpush1.bf16.msra.mxu0 %v8675
    %9979 = vmatprep.subr.bf16.mxu0 0
    %9980 = vmatpush1.bf16.msra.mxu0 %v8678
    %9981 = vmatprep.subr.bf16.mxu0 0
    %9982 = vmatpush1.bf16.msra.mxu0 %v8681
    %9983 = vmatprep.subr.bf16.mxu0 0
    %9984 = vmatpush1.bf16.msra.mxu0 %v8684
    %9985 = vmatprep.subr.bf16.mxu0 0
    %9986 = vmatpush1.bf16.msra.mxu0 %v8687
    %9987 = vmatprep.subr.bf16.mxu0 0
    %9988 = vmatpush1.bf16.msra.mxu0 %v8690
    %9989 = vmatprep.mubr.bf16.mxu0 %v6494
    %9990 = vmatmul.mubr.bf16.gmra.mrb[0].mxu0 %v6493
    %v9991 = vpop.f32.mrb[0].mxu0
    %v9992 = vadd.f32 %v7139, %v9991
    %v9993 = vpop.f32.mrb[0].mxu0
    %v9994 = vpop.f32.mrb[0].mxu0
    %v9995 = vpop.f32.mrb[0].mxu0
    %9996 = vdwg.mxu0
    %9997 = vmatprep.subr.bf16.mxu0 0
    %9998 = vmatpush1.bf16.msra.mxu0 %v8693
    %9999 = vmatprep.subr.bf16.mxu0 0
    %10000 = vmatpush1.bf16.msra.mxu0 %v8696
    %10001 = vmatprep.subr.bf16.mxu0 0
    %10002 = vmatpush1.bf16.msra.mxu0 %v8699
    %10003 = vmatprep.subr.bf16.mxu0 0
    %10004 = vmatpush1.bf16.msra.mxu0 %v8702
    %10005 = vmatprep.subr.bf16.mxu0 0
    %10006 = vmatpush1.bf16.msra.mxu0 %v8705
    %10007 = vmatprep.subr.bf16.mxu0 0
    %10008 = vmatpush1.bf16.msra.mxu0 %v8708
    %10009 = vmatprep.subr.bf16.mxu0 0
    %10010 = vmatpush1.bf16.msra.mxu0 %v8711
    %10011 = vmatprep.subr.bf16.mxu0 0
    %10012 = vmatpush1.bf16.msra.mxu0 %v8714
    %10013 = vmatprep.subr.bf16.mxu0 0
    %10014 = vmatpush1.bf16.msra.mxu0 %v8717
    %10015 = vmatprep.subr.bf16.mxu0 0
    %10016 = vmatpush1.bf16.msra.mxu0 %v8720
    %10017 = vmatprep.subr.bf16.mxu0 0
    %10018 = vmatpush1.bf16.msra.mxu0 %v8723
    %10019 = vmatprep.subr.bf16.mxu0 0
    %10020 = vmatpush1.bf16.msra.mxu0 %v8726
    %10021 = vmatprep.subr.bf16.mxu0 0
    %10022 = vmatpush1.bf16.msra.mxu0 %v8729
    %10023 = vmatprep.subr.bf16.mxu0 0
    %10024 = vmatpush1.bf16.msra.mxu0 %v8732
    %10025 = vmatprep.subr.bf16.mxu0 0
    %10026 = vmatpush1.bf16.msra.mxu0 %v8735
    %10027 = vmatprep.subr.bf16.mxu0 0
    %10028 = vmatpush1.bf16.msra.mxu0 %v8738
    %10029 = vmatprep.mubr.bf16.mxu0 %v6496
    %10030 = vmatmul.mubr.bf16.gmra.mrb[0].mxu0 %v6495
    %v10031 = vpop.f32.mrb[0].mxu0
    %v10032 = vadd.f32 %v9992, %v10031
    %v10033 = vpop.f32.mrb[0].mxu0
    %v10034 = vpop.f32.mrb[0].mxu0
    %v10035 = vpop.f32.mrb[0].mxu0
    %10036 = vdwg.mxu0
    %10037 = vmatprep.subr.bf16.mxu0 0
    %10038 = vmatpush1.bf16.msra.mxu0 %v8741
    %10039 = vmatprep.subr.bf16.mxu0 0
    %10040 = vmatpush1.bf16.msra.mxu0 %v8744
    %10041 = vmatprep.subr.bf16.mxu0 0
    %10042 = vmatpush1.bf16.msra.mxu0 %v8747
    %10043 = vmatprep.subr.bf16.mxu0 0
    %10044 = vmatpush1.bf16.msra.mxu0 %v8750
    %10045 = vmatprep.subr.bf16.mxu0 0
    %10046 = vmatpush1.bf16.msra.mxu0 %v8753
    %10047 = vmatprep.subr.bf16.mxu0 0
    %10048 = vmatpush1.bf16.msra.mxu0 %v8756
    %10049 = vmatprep.subr.bf16.mxu0 0
    %10050 = vmatpush1.bf16.msra.mxu0 %v8759
    %10051 = vmatprep.subr.bf16.mxu0 0
    %10052 = vmatpush1.bf16.msra.mxu0 %v8762
    %10053 = vmatprep.subr.bf16.mxu0 0
    %10054 = vmatpush1.bf16.msra.mxu0 %v8765
    %10055 = vmatprep.subr.bf16.mxu0 0
    %10056 = vmatpush1.bf16.msra.mxu0 %v8768
    %10057 = vmatprep.subr.bf16.mxu0 0
    %10058 = vmatpush1.bf16.msra.mxu0 %v8771
    %10059 = vmatprep.subr.bf16.mxu0 0
    %10060 = vmatpush1.bf16.msra.mxu0 %v8774
    %10061 = vmatprep.subr.bf16.mxu0 0
    %10062 = vmatpush1.bf16.msra.mxu0 %v8777
    %10063 = vmatprep.subr.bf16.mxu0 0
    %10064 = vmatpush1.bf16.msra.mxu0 %v8780
    %10065 = vmatprep.subr.bf16.mxu0 0
    %10066 = vmatpush1.bf16.msra.mxu0 %v8783
    %10067 = vmatprep.subr.bf16.mxu0 0
    %10068 = vmatpush1.bf16.msra.mxu0 %v8786
    %10069 = vmatprep.mubr.bf16.mxu0 %v6503
    %10070 = vmatmul.mubr.bf16.gmra.mrb[0].mxu0 %v6497
    %v10071 = vpop.f32.mrb[0].mxu0
    %v10072 = vadd.f32 %v10032, %v10071
    %v10073 = vpop.f32.mrb[0].mxu0
    %v10074 = vpop.f32.mrb[0].mxu0
    %v10075 = vpop.f32.mrb[0].mxu0
    %10076 = vdwg.mxu0
    %10077 = vmatprep.subr.bf16.mxu0 0
    %10078 = vmatpush1.bf16.msra.mxu0 %v8789
    %10079 = vmatprep.subr.bf16.mxu0 0
    %10080 = vmatpush1.bf16.msra.mxu0 %v8792
    %10081 = vmatprep.subr.bf16.mxu0 0
    %10082 = vmatpush1.bf16.msra.mxu0 %v8795
    %10083 = vmatprep.subr.bf16.mxu0 0
    %10084 = vmatpush1.bf16.msra.mxu0 %v8798
    %10085 = vmatprep.subr.bf16.mxu0 0
    %10086 = vmatpush1.bf16.msra.mxu0 %v8801
    %10087 = vmatprep.subr.bf16.mxu0 0
    %10088 = vmatpush1.bf16.msra.mxu0 %v8804
    %10089 = vmatprep.subr.bf16.mxu0 0
    %10090 = vmatpush1.bf16.msra.mxu0 %v8807
    %10091 = vmatprep.subr.bf16.mxu0 0
    %10092 = vmatpush1.bf16.msra.mxu0 %v8810
    %10093 = vmatprep.subr.bf16.mxu0 0
    %10094 = vmatpush1.bf16.msra.mxu0 %v8813
    %10095 = vmatprep.subr.bf16.mxu0 0
    %10096 = vmatpush1.bf16.msra.mxu0 %v8816
    %10097 = vmatprep.subr.bf16.mxu0 0
    %10098 = vmatpush1.bf16.msra.mxu0 %v8819
    %10099 = vmatprep.subr.bf16.mxu0 0
    %10100 = vmatpush1.bf16.msra.mxu0 %v8822
    %10101 = vmatprep.subr.bf16.mxu0 0
    %10102 = vmatpush1.bf16.msra.mxu0 %v8825
    %10103 = vmatprep.subr.bf16.mxu0 0
    %10104 = vmatpush1.bf16.msra.mxu0 %v8828
    %10105 = vmatprep.subr.bf16.mxu0 0
    %10106 = vmatpush1.bf16.msra.mxu0 %v8831
    %10107 = vmatprep.subr.bf16.mxu0 0
    %10108 = vmatpush1.bf16.msra.mxu0 %v8834
    %10109 = vmatprep.mubr.bf16.mxu0 %v6505
    %10110 = vmatmul.mubr.bf16.gmra.mrb[0].mxu0 %v6504
    %v10111 = vpop.f32.mrb[0].mxu0
    %v10112 = vadd.f32 %v10072, %v10111
    %v10113 = vpop.f32.mrb[0].mxu0
    %v10114 = vpop.f32.mrb[0].mxu0
    %v10115 = vpop.f32.mrb[0].mxu0
    %10116 = vdwg.mxu0
    %10117 = vmatprep.subr.bf16.mxu0 0
    %10118 = vmatpush1.bf16.msra.mxu0 %v8837
    %10119 = vmatprep.subr.bf16.mxu0 0
    %10120 = vmatpush1.bf16.msra.mxu0 %v8840
    %10121 = vmatprep.subr.bf16.mxu0 0
    %10122 = vmatpush1.bf16.msra.mxu0 %v8843
    %10123 = vmatprep.subr.bf16.mxu0 0
    %10124 = vmatpush1.bf16.msra.mxu0 %v8846
    %10125 = vmatprep.subr.bf16.mxu0 0
    %10126 = vmatpush1.bf16.msra.mxu0 %v8849
    %10127 = vmatprep.subr.bf16.mxu0 0
    %10128 = vmatpush1.bf16.msra.mxu0 %v8852
    %10129 = vmatprep.subr.bf16.mxu0 0
    %10130 = vmatpush1.bf16.msra.mxu0 %v8855
    %10131 = vmatprep.subr.bf16.mxu0 0
    %10132 = vmatpush1.bf16.msra.mxu0 %v8858
    %10133 = vmatprep.subr.bf16.mxu0 0
    %10134 = vmatpush1.bf16.msra.mxu0 %v8861
    %10135 = vmatprep.subr.bf16.mxu0 0
    %10136 = vmatpush1.bf16.msra.mxu0 %v8864
    %10137 = vmatprep.subr.bf16.mxu0 0
    %10138 = vmatpush1.bf16.msra.mxu0 %v8867
    %10139 = vmatprep.subr.bf16.mxu0 0
    %10140 = vmatpush1.bf16.msra.mxu0 %v8870
    %10141 = vmatprep.subr.bf16.mxu0 0
    %10142 = vmatpush1.bf16.msra.mxu0 %v8873
    %10143 = vmatprep.subr.bf16.mxu0 0
    %10144 = vmatpush1.bf16.msra.mxu0 %v8876
    %10145 = vmatprep.subr.bf16.mxu0 0
    %10146 = vmatpush1.bf16.msra.mxu0 %v8879
    %10147 = vmatprep.subr.bf16.mxu0 0
    %10148 = vmatpush1.bf16.msra.mxu0 %v8882
    %10149 = vmatprep.mubr.bf16.mxu0 %v6507
    %10150 = vmatmul.mubr.bf16.gmra.mrb[0].mxu0 %v6506
    %v10151 = vpop.f32.mrb[0].mxu0
    %v10152 = vadd.f32 %v10112, %v10151
    %v10153 = vpop.f32.mrb[0].mxu0
    %v10154 = vpop.f32.mrb[0].mxu0
    %v10155 = vpop.f32.mrb[0].mxu0
    %10156 = vdwg.mxu0
    %10157 = vmatprep.subr.bf16.mxu0 0
    %10158 = vmatpush1.bf16.msra.mxu0 %v8885
    %10159 = vmatprep.subr.bf16.mxu0 0
    %10160 = vmatpush1.bf16.msra.mxu0 %v8888
    %10161 = vmatprep.subr.bf16.mxu0 0
    %10162 = vmatpush1.bf16.msra.mxu0 %v8891
    %10163 = vmatprep.subr.bf16.mxu0 0
    %10164 = vmatpush1.bf16.msra.mxu0 %v8894
    %10165 = vmatprep.subr.bf16.mxu0 0
    %10166 = vmatpush1.bf16.msra.mxu0 %v8897
    %10167 = vmatprep.subr.bf16.mxu0 0
    %10168 = vmatpush1.bf16.msra.mxu0 %v8900
    %10169 = vmatprep.subr.bf16.mxu0 0
    %10170 = vmatpush1.bf16.msra.mxu0 %v8903
    %10171 = vmatprep.subr.bf16.mxu0 0
    %10172 = vmatpush1.bf16.msra.mxu0 %v8906
    %10173 = vmatprep.subr.bf16.mxu0 0
    %10174 = vmatpush1.bf16.msra.mxu0 %v8909
    %10175 = vmatprep.subr.bf16.mxu0 0
    %10176 = vmatpush1.bf16.msra.mxu0 %v8912
    %10177 = vmatprep.subr.bf16.mxu0 0
    %10178 = vmatpush1.bf16.msra.mxu0 %v8915
    %10179 = vmatprep.subr.bf16.mxu0 0
    %10180 = vmatpush1.bf16.msra.mxu0 %v8918
    %10181 = vmatprep.subr.bf16.mxu0 0
    %10182 = vmatpush1.bf16.msra.mxu0 %v8921
    %10183 = vmatprep.subr.bf16.mxu0 0
    %10184 = vmatpush1.bf16.msra.mxu0 %v8924
    %10185 = vmatprep.subr.bf16.mxu0 0
    %10186 = vmatpush1.bf16.msra.mxu0 %v8927
    %10187 = vmatprep.subr.bf16.mxu0 0
    %10188 = vmatpush1.bf16.msra.mxu0 %v8930
    %10189 = vmatprep.mubr.bf16.mxu0 %v6518
    %10190 = vmatmul.mubr.bf16.gmra.mrb[0].mxu0 %v6517
    %v10191 = vpop.f32.mrb[0].mxu0
    %v10192 = vadd.f32 %v10152, %v10191
    %v10193 = vpop.f32.mrb[0].mxu0
    %v10194 = vpop.f32.mrb[0].mxu0
    %v10195 = vpop.f32.mrb[0].mxu0
    %10196 = vdwg.mxu0
    %10197 = vmatprep.subr.bf16.mxu0 0
    %10198 = vmatpush1.bf16.msra.mxu0 %v8933
    %10199 = vmatprep.subr.bf16.mxu0 0
    %10200 = vmatpush1.bf16.msra.mxu0 %v8936
    %10201 = vmatprep.subr.bf16.mxu0 0
    %10202 = vmatpush1.bf16.msra.mxu0 %v8939
    %10203 = vmatprep.subr.bf16.mxu0 0
    %10204 = vmatpush1.bf16.msra.mxu0 %v8942
    %10205 = vmatprep.subr.bf16.mxu0 0
    %10206 = vmatpush1.bf16.msra.mxu0 %v8945
    %10207 = vmatprep.subr.bf16.mxu0 0
    %10208 = vmatpush1.bf16.msra.mxu0 %v8948
    %10209 = vmatprep.subr.bf16.mxu0 0
    %10210 = vmatpush1.bf16.msra.mxu0 %v8951
    %10211 = vmatprep.subr.bf16.mxu0 0
    %10212 = vmatpush1.bf16.msra.mxu0 %v8954
    %10213 = vmatprep.subr.bf16.mxu0 0
    %10214 = vmatpush1.bf16.msra.mxu0 %v8957
    %10215 = vmatprep.subr.bf16.mxu0 0
    %10216 = vmatpush1.bf16.msra.mxu0 %v8960
    %10217 = vmatprep.subr.bf16.mxu0 0
    %10218 = vmatpush1.bf16.msra.mxu0 %v8963
    %10219 = vmatprep.subr.bf16.mxu0 0
    %10220 = vmatpush1.bf16.msra.mxu0 %v8966
    %10221 = vmatprep.subr.bf16.mxu0 0
    %10222 = vmatpush1.bf16.msra.mxu0 %v8969
    %10223 = vmatprep.subr.bf16.mxu0 0
    %10224 = vmatpush1.bf16.msra.mxu0 %v8972
    %10225 = vmatprep.subr.bf16.mxu0 0
    %10226 = vmatpush1.bf16.msra.mxu0 %v8975
    %10227 = vmatprep.subr.bf16.mxu0 0
    %10228 = vmatpush1.bf16.msra.mxu0 %v8978
    %10229 = vmatprep.mubr.bf16.mxu0 %v6520
    %10230 = vmatmul.mubr.bf16.gmra.mrb[0].mxu0 %v6519
    %v10231 = vpop.f32.mrb[0].mxu0
    %v10232 = vadd.f32 %v10192, %v10231
    %v10233 = vpop.f32.mrb[0].mxu0
    %v10234 = vpop.f32.mrb[0].mxu0
    %v10235 = vpop.f32.mrb[0].mxu0
    %10236 = vdwg.mxu0
    %10237 = vmatprep.subr.bf16.mxu0 0
    %10238 = vmatpush1.bf16.msra.mxu0 %v8981
    %10239 = vmatprep.subr.bf16.mxu0 0
    %10240 = vmatpush1.bf16.msra.mxu0 %v8984
    %10241 = vmatprep.subr.bf16.mxu0 0
    %10242 = vmatpush1.bf16.msra.mxu0 %v8987
    %10243 = vmatprep.subr.bf16.mxu0 0
    %10244 = vmatpush1.bf16.msra.mxu0 %v8990
    %10245 = vmatprep.subr.bf16.mxu0 0
    %10246 = vmatpush1.bf16.msra.mxu0 %v8993
    %10247 = vmatprep.subr.bf16.mxu0 0
    %10248 = vmatpush1.bf16.msra.mxu0 %v8996
    %10249 = vmatprep.subr.bf16.mxu0 0
    %10250 = vmatpush1.bf16.msra.mxu0 %v8999
    %10251 = vmatprep.subr.bf16.mxu0 0
    %10252 = vmatpush1.bf16.msra.mxu0 %v9002
    %10253 = vmatprep.subr.bf16.mxu0 0
    %10254 = vmatpush1.bf16.msra.mxu0 %v9005
    %10255 = vmatprep.subr.bf16.mxu0 0
    %10256 = vmatpush1.bf16.msra.mxu0 %v9008
    %10257 = vmatprep.subr.bf16.mxu0 0
    %10258 = vmatpush1.bf16.msra.mxu0 %v9011
    %10259 = vmatprep.subr.bf16.mxu0 0
    %10260 = vmatpush1.bf16.msra.mxu0 %v9014
    %10261 = vmatprep.subr.bf16.mxu0 0
    %10262 = vmatpush1.bf16.msra.mxu0 %v9017
    %10263 = vmatprep.subr.bf16.mxu0 0
    %10264 = vmatpush1.bf16.msra.mxu0 %v9020
    %10265 = vmatprep.subr.bf16.mxu0 0
    %10266 = vmatpush1.bf16.msra.mxu0 %v9023
    %10267 = vmatprep.subr.bf16.mxu0 0
    %10268 = vmatpush1.bf16.msra.mxu0 %v9026
    %10269 = vmatprep.mubr.bf16.mxu0 %v6522
    %10270 = vmatmul.mubr.bf16.gmra.mrb[0].mxu0 %v6521
    %v10271 = vpop.f32.mrb[0].mxu0
    %v10272 = vadd.f32 %v10232, %v10271
    %v10273 = vpop.f32.mrb[0].mxu0
    %v10274 = vpop.f32.mrb[0].mxu0
    %v10275 = vpop.f32.mrb[0].mxu0
    %10276 = vdwg.mxu0
    %10277 = vmatprep.subr.bf16.mxu0 0
    %10278 = vmatpush1.bf16.msra.mxu0 %v9029
    %10279 = vmatprep.subr.bf16.mxu0 0
    %10280 = vmatpush1.bf16.msra.mxu0 %v9032
    %10281 = vmatprep.subr.bf16.mxu0 0
    %10282 = vmatpush1.bf16.msra.mxu0 %v9035
    %10283 = vmatprep.subr.bf16.mxu0 0
    %10284 = vmatpush1.bf16.msra.mxu0 %v9038
    %10285 = vmatprep.subr.bf16.mxu0 0
    %10286 = vmatpush1.bf16.msra.mxu0 %v9041
    %10287 = vmatprep.subr.bf16.mxu0 0
    %10288 = vmatpush1.bf16.msra.mxu0 %v9044
    %10289 = vmatprep.subr.bf16.mxu0 0
    %10290 = vmatpush1.bf16.msra.mxu0 %v9047
    %10291 = vmatprep.subr.bf16.mxu0 0
    %10292 = vmatpush1.bf16.msra.mxu0 %v9050
    %10293 = vmatprep.subr.bf16.mxu0 0
    %10294 = vmatpush1.bf16.msra.mxu0 %v9053
    %10295 = vmatprep.subr.bf16.mxu0 0
    %10296 = vmatpush1.bf16.msra.mxu0 %v9056
    %10297 = vmatprep.subr.bf16.mxu0 0
    %10298 = vmatpush1.bf16.msra.mxu0 %v9059
    %10299 = vmatprep.subr.bf16.mxu0 0
    %10300 = vmatpush1.bf16.msra.mxu0 %v9062
    %10301 = vmatprep.subr.bf16.mxu0 0
    %10302 = vmatpush1.bf16.msra.mxu0 %v9065
    %10303 = vmatprep.subr.bf16.mxu0 0
    %10304 = vmatpush1.bf16.msra.mxu0 %v9068
    %10305 = vmatprep.subr.bf16.mxu0 0
    %10306 = vmatpush1.bf16.msra.mxu0 %v9071
    %10307 = vmatprep.subr.bf16.mxu0 0
    %10308 = vmatpush1.bf16.msra.mxu0 %v9074
    %10309 = vmatprep.mubr.bf16.mxu0 %v6524
    %10310 = vmatmul.mubr.bf16.gmra.mrb[0].mxu0 %v6523
    %v10311 = vpop.f32.mrb[0].mxu0
    %v10312 = vadd.f32 %v10272, %v10311
    %v10313 = vpop.f32.mrb[0].mxu0
    %v10314 = vpop.f32.mrb[0].mxu0
    %v10315 = vpop.f32.mrb[0].mxu0
    %10316 = vdwg.mxu0
    %10317 = vmatprep.subr.bf16.mxu0 0
    %10318 = vmatpush1.bf16.msra.mxu0 %v9077
    %10319 = vmatprep.subr.bf16.mxu0 0
    %10320 = vmatpush1.bf16.msra.mxu0 %v9080
    %10321 = vmatprep.subr.bf16.mxu0 0
    %10322 = vmatpush1.bf16.msra.mxu0 %v9083
    %10323 = vmatprep.subr.bf16.mxu0 0
    %10324 = vmatpush1.bf16.msra.mxu0 %v9086
    %10325 = vmatprep.subr.bf16.mxu0 0
    %10326 = vmatpush1.bf16.msra.mxu0 %v9089
    %10327 = vmatprep.subr.bf16.mxu0 0
    %10328 = vmatpush1.bf16.msra.mxu0 %v9092
    %10329 = vmatprep.subr.bf16.mxu0 0
    %10330 = vmatpush1.bf16.msra.mxu0 0
    %10331 = vmatprep.subr.bf16.mxu0 0
    %10332 = vmatpush1.bf16.msra.mxu0 0
    %10333 = vmatprep.subr.bf16.mxu0 0
    %10334 = vmatpush1.bf16.msra.mxu0 0
    %10335 = vmatprep.subr.bf16.mxu0 0
    %10336 = vmatpush1.bf16.msra.mxu0 0
    %10337 = vmatprep.subr.bf16.mxu0 0
    %10338 = vmatpush1.bf16.msra.mxu0 0
    %10339 = vmatprep.subr.bf16.mxu0 0
    %10340 = vmatpush1.bf16.msra.mxu0 0
    %10341 = vmatprep.subr.bf16.mxu0 0
    %10342 = vmatpush1.bf16.msra.mxu0 0
    %10343 = vmatprep.subr.bf16.mxu0 0
    %10344 = vmatpush1.bf16.msra.mxu0 0
    %10345 = vmatprep.subr.bf16.mxu0 0
    %10346 = vmatpush1.bf16.msra.mxu0 0
    %10347 = vmatprep.subr.bf16.mxu0 0
    %10348 = vmatpush1.bf16.msra.mxu0 0
    %10349 = vmatprep.mubr.bf16.mxu0 0
    %10350 = vmatmul.mubr.bf16.gmra.mrb[0].mxu0 %v9545
    %v10351 = vpop.f32.mrb[0].mxu0
    %v10352 = vadd.f32 %v10312, %v10351
    %v10353 = vpop.f32.mrb[0].mxu0
    %v10354 = vpop.f32.mrb[0].mxu0
    %v10355 = vpop.f32.mrb[0].mxu0
    %10356 = vdwg.mxu0
    %v10357 = vmax.f32 %v9951, 0.0
    %v10358 = vmax.f32 %v9953, 0.0
    %v10359 = vmax.f32 %v10352, 0.0
    %v10360 = vpack.c.bf16 %v10357, %v10357
    %v10361 = vpack.c.bf16 %v10358, %v10358
    %v10362 = vpack.c.bf16 %v10359, %v10359
    %v10363 = vld [vmem:[#allocation9] sm:$0xff]
    %v10364 = vld [vmem:[#allocation9 + $0x8] sm:$0xf]
    %v10365 = vld [vmem:[#allocation9 + $0xc] sm:$0xff]
    %v10366 = vld [vmem:[#allocation9 + $0x14] sm:$0xf]
    %v10367 = vld [vmem:[#allocation9 + $0x18] sm:$0xff]
    %v10368 = vld [vmem:[#allocation9 + $0x20] sm:$0xf]
    %v10369 = vld [vmem:[#allocation9 + $0x24] sm:$0xff]
    %v10370 = vld [vmem:[#allocation9 + $0x2c] sm:$0xf]
    %v10371 = vld [vmem:[#allocation9 + $0x30] sm:$0xff]
    %v10372 = vld [vmem:[#allocation9 + $0x38] sm:$0xf]
    %v10373 = vld [vmem:[#allocation9 + $0x3c] sm:$0xff]
    %v10374 = vld [vmem:[#allocation9 + $0x44] sm:$0xf]
    %v10375 = vld [vmem:[#allocation9 + $0x48] sm:$0xff]
    %v10376 = vld [vmem:[#allocation9 + $0x50] sm:$0xf]
    %v10377 = vld [vmem:[#allocation9 + $0x54] sm:$0xff]
    %v10378 = vld [vmem:[#allocation9 + $0x5c] sm:$0xf]
    %v10379 = vld [vmem:[#allocation9 + $0x60] sm:$0xff]
    %v10380 = vld [vmem:[#allocation9 + $0x68] sm:$0xf]
    %v10381 = vld [vmem:[#allocation9 + $0x6c] sm:$0xff]
    %v10382 = vld [vmem:[#allocation9 + $0x74] sm:$0xf]
    %v10383 = vld [vmem:[#allocation9 + $0x78] sm:$0xff]
    %v10384 = vld [vmem:[#allocation9 + $0x80] sm:$0xf]
    %v10385 = vld [vmem:[#allocation9 + $0x84] sm:$0xff]
    %v10386 = vld [vmem:[#allocation9 + $0x8c] sm:$0xf]
    %v10387 = vld [vmem:[#allocation9 + $0x90] sm:$0xff]
    %v10388 = vld [vmem:[#allocation9 + $0x98] sm:$0xf]
    %v10389 = vld [vmem:[#allocation9 + $0x9c] sm:$0xff]
    %v10390 = vld [vmem:[#allocation9 + $0xa4] sm:$0xf]
    %v10391 = vld [vmem:[#allocation9 + $0xa8] sm:$0xff]
    %v10392 = vld [vmem:[#allocation9 + $0xb0] sm:$0xf]
    %v10393 = vld [vmem:[#allocation9 + $0xb4] sm:$0xff]
    %v10394 = vld [vmem:[#allocation9 + $0xbc] sm:$0xf]
    %v10395 = vld [vmem:[#allocation9 + $0xc0] sm:$0xff]
    %v10396 = vld [vmem:[#allocation9 + $0xc8] sm:$0xf]
    %v10397 = vld [vmem:[#allocation9 + $0xcc] sm:$0xff]
    %v10398 = vld [vmem:[#allocation9 + $0xd4] sm:$0xf]
    %v10399 = vld [vmem:[#allocation9 + $0xd8] sm:$0xff]
    %v10400 = vld [vmem:[#allocation9 + $0xe0] sm:$0xf]
    %v10401 = vld [vmem:[#allocation9 + $0xe4] sm:$0xff]
    %v10402 = vld [vmem:[#allocation9 + $0xec] sm:$0xf]
    %v10403 = vld [vmem:[#allocation9 + $0xf0] sm:$0xff]
    %v10404 = vld [vmem:[#allocation9 + $0xf8] sm:$0xf]
    %v10405 = vld [vmem:[#allocation9 + $0xfc] sm:$0xff]
    %v10406 = vld [vmem:[#allocation9 + $0x104] sm:$0xf]
    %v10407 = vld [vmem:[#allocation9 + $0x108] sm:$0xff]
    %v10408 = vld [vmem:[#allocation9 + $0x110] sm:$0xf]
    %v10409 = vld [vmem:[#allocation9 + $0x114] sm:$0xff]
    %v10410 = vld [vmem:[#allocation9 + $0x11c] sm:$0xf]
    %v10411 = vld [vmem:[#allocation9 + $0x120] sm:$0xff]
    %v10412 = vld [vmem:[#allocation9 + $0x128] sm:$0xf]
    %v10413 = vld [vmem:[#allocation9 + $0x12c] sm:$0xff]
    %v10414 = vld [vmem:[#allocation9 + $0x134] sm:$0xf]
    %v10415 = vld [vmem:[#allocation9 + $0x138] sm:$0xff]
    %v10416 = vld [vmem:[#allocation9 + $0x140] sm:$0xf]
    %v10417 = vld [vmem:[#allocation9 + $0x144] sm:$0xff]
    %v10418 = vld [vmem:[#allocation9 + $0x14c] sm:$0xf]
    %v10419 = vld [vmem:[#allocation9 + $0x150] sm:$0xff]
    %v10420 = vld [vmem:[#allocation9 + $0x158] sm:$0xf]
    %v10421 = vld [vmem:[#allocation9 + $0x15c] sm:$0xff]
    %v10422 = vld [vmem:[#allocation9 + $0x164] sm:$0xf]
    %v10423 = vld [vmem:[#allocation9 + $0x168] sm:$0xff]
    %v10424 = vld [vmem:[#allocation9 + $0x170] sm:$0xf]
    %v10425 = vld [vmem:[#allocation9 + $0x174] sm:$0xff]
    %v10426 = vld [vmem:[#allocation9 + $0x17c] sm:$0xf]
    %v10427 = vld [vmem:[#allocation9 + $0x180] sm:$0xff]
    %v10428 = vld [vmem:[#allocation9 + $0x188] sm:$0xf]
    %v10429 = vld [vmem:[#allocation9 + $0x18c] sm:$0xff]
    %v10430 = vld [vmem:[#allocation9 + $0x194] sm:$0xf]
    %v10431 = vld [vmem:[#allocation9 + $0x198] sm:$0xff]
    %v10432 = vld [vmem:[#allocation9 + $0x1a0] sm:$0xf]
    %v10433 = vld [vmem:[#allocation9 + $0x1a4] sm:$0xff]
    %v10434 = vld [vmem:[#allocation9 + $0x1ac] sm:$0xf]
    %v10435 = vld [vmem:[#allocation9 + $0x1b0] sm:$0xff]
    %v10436 = vld [vmem:[#allocation9 + $0x1b8] sm:$0xf]
    %v10437 = vld [vmem:[#allocation9 + $0x1bc] sm:$0xff]
    %v10438 = vld [vmem:[#allocation9 + $0x1c4] sm:$0xf]
    %v10439 = vld [vmem:[#allocation9 + $0x1c8] sm:$0xff]
    %v10440 = vld [vmem:[#allocation9 + $0x1d0] sm:$0xf]
    %v10441 = vld [vmem:[#allocation9 + $0x1d4] sm:$0xff]
    %v10442 = vld [vmem:[#allocation9 + $0x1dc] sm:$0xf]
    %v10443 = vld [vmem:[#allocation9 + $0x1e0] sm:$0xff]
    %v10444 = vld [vmem:[#allocation9 + $0x1e8] sm:$0xf]
    %v10445 = vld [vmem:[#allocation9 + $0x1ec] sm:$0xff]
    %v10446 = vld [vmem:[#allocation9 + $0x1f4] sm:$0xf]
    %v10447 = vld [vmem:[#allocation9 + $0x1f8] sm:$0xff]
    %v10448 = vld [vmem:[#allocation9 + $0x200] sm:$0xf]
    %v10449 = vld [vmem:[#allocation9 + $0x204] sm:$0xff]
    %v10450 = vld [vmem:[#allocation9 + $0x20c] sm:$0xf]
    %v10451 = vld [vmem:[#allocation9 + $0x210] sm:$0xff]
    %v10452 = vld [vmem:[#allocation9 + $0x218] sm:$0xf]
    %v10453 = vld [vmem:[#allocation9 + $0x21c] sm:$0xff]
    %v10454 = vld [vmem:[#allocation9 + $0x224] sm:$0xf]
    %v10455 = vld [vmem:[#allocation9 + $0x228] sm:$0xff]
    %v10456 = vld [vmem:[#allocation9 + $0x230] sm:$0xf]
    %v10457 = vld [vmem:[#allocation9 + $0x234] sm:$0xff]
    %v10458 = vld [vmem:[#allocation9 + $0x23c] sm:$0xf]
    %v10459 = vld [vmem:[#allocation13 + $0x22] sm:$0x7]
    %v10461 = vlaneseq
    %v10462 = vshrl.u32 %v10461, 7
    %v10463 = vsub.s32 0, %v10462
    %v10464 = vrot.slane %v10459, %v10463
    %v10465 = vlaneseq
    %v10466 = vshrl.u32 %v10465, 7
    %v10467 = vsub.s32 1, %v10466
    %v10468 = vrot.slane %v10459, %v10467
    %v10469 = vlaneseq
    %v10470 = vshrl.u32 %v10469, 7
    %v10471 = vsub.s32 2, %v10470
    %v10472 = vrot.slane %v10459, %v10471
    %v10572 = vunpack.c.l.b16 %v10363
    %v10573 = vunpack.c.h.b16 %v10363
    %v10574 = vunpack.c.l.b16 %v10364
    %v10575 = vunpack.c.l.b16 %v10365
    %v10576 = vunpack.c.h.b16 %v10365
    %v10577 = vunpack.c.l.b16 %v10366
    %v10578 = vunpack.c.l.b16 %v10367
    %v10579 = vunpack.c.h.b16 %v10367
    %v10580 = vunpack.c.l.b16 %v10368
    %v10581 = vunpack.c.l.b16 %v10369
    %v10582 = vunpack.c.h.b16 %v10369
    %v10583 = vunpack.c.l.b16 %v10370
    %v10584 = vunpack.c.l.b16 %v10371
    %v10585 = vunpack.c.h.b16 %v10371
    %v10586 = vunpack.c.l.b16 %v10372
    %v10587 = vunpack.c.l.b16 %v10373
    %v10588 = vunpack.c.h.b16 %v10373
    %v10589 = vunpack.c.l.b16 %v10374
    %v10590 = vunpack.c.l.b16 %v10375
    %v10591 = vunpack.c.h.b16 %v10375
    %v10592 = vunpack.c.l.b16 %v10376
    %v10593 = vunpack.c.l.b16 %v10377
    %v10594 = vunpack.c.h.b16 %v10377
    %v10595 = vunpack.c.l.b16 %v10378
    %v10596 = vunpack.c.l.b16 %v10379
    %v10597 = vunpack.c.h.b16 %v10379
    %v10598 = vunpack.c.l.b16 %v10380
    %v10599 = vunpack.c.l.b16 %v10381
    %v10600 = vunpack.c.h.b16 %v10381
    %v10601 = vunpack.c.l.b16 %v10382
    %v10602 = vunpack.c.l.b16 %v10383
    %v10603 = vunpack.c.h.b16 %v10383
    %v10604 = vunpack.c.l.b16 %v10384
    %v10605 = vunpack.c.l.b16 %v10385
    %v10606 = vunpack.c.h.b16 %v10385
    %v10607 = vunpack.c.l.b16 %v10386
    %v10608 = vunpack.c.l.b16 %v10387
    %v10609 = vunpack.c.h.b16 %v10387
    %v10610 = vunpack.c.l.b16 %v10388
    %v10611 = vunpack.c.l.b16 %v10389
    %v10612 = vunpack.c.h.b16 %v10389
    %v10613 = vunpack.c.l.b16 %v10390
    %v10614 = vunpack.c.l.b16 %v10391
    %v10615 = vunpack.c.h.b16 %v10391
    %v10616 = vunpack.c.l.b16 %v10392
    %v10617 = vunpack.c.l.b16 %v10393
    %v10618 = vunpack.c.h.b16 %v10393
    %v10619 = vunpack.c.l.b16 %v10394
    %v10620 = vunpack.c.l.b16 %v10395
    %v10621 = vunpack.c.h.b16 %v10395
    %v10622 = vunpack.c.l.b16 %v10396
    %v10623 = vunpack.c.l.b16 %v10397
    %v10624 = vunpack.c.h.b16 %v10397
    %v10625 = vunpack.c.l.b16 %v10398
    %v10626 = vunpack.c.l.b16 %v10399
    %v10627 = vunpack.c.h.b16 %v10399
    %v10628 = vunpack.c.l.b16 %v10400
    %v10629 = vunpack.c.l.b16 %v10401
    %v10630 = vunpack.c.h.b16 %v10401
    %v10631 = vunpack.c.l.b16 %v10402
    %v10632 = vunpack.c.l.b16 %v10403
    %v10633 = vunpack.c.h.b16 %v10403
    %v10634 = vunpack.c.l.b16 %v10404
    %v10635 = vunpack.c.l.b16 %v10405
    %v10636 = vunpack.c.h.b16 %v10405
    %v10637 = vunpack.c.l.b16 %v10406
    %v10638 = vunpack.c.l.b16 %v10407
    %v10639 = vunpack.c.h.b16 %v10407
    %v10640 = vunpack.c.l.b16 %v10408
    %v10641 = vunpack.c.l.b16 %v10409
    %v10642 = vunpack.c.h.b16 %v10409
    %v10643 = vunpack.c.l.b16 %v10410
    %v10644 = vunpack.c.l.b16 %v10411
    %v10645 = vunpack.c.h.b16 %v10411
    %v10646 = vunpack.c.l.b16 %v10412
    %v10647 = vunpack.c.l.b16 %v10413
    %v10648 = vunpack.c.h.b16 %v10413
    %v10649 = vunpack.c.l.b16 %v10414
    %v10650 = vunpack.c.l.b16 %v10415
    %v10651 = vunpack.c.h.b16 %v10415
    %v10652 = vunpack.c.l.b16 %v10416
    %v10653 = vunpack.c.l.b16 %v10417
    %v10654 = vunpack.c.h.b16 %v10417
    %v10655 = vunpack.c.l.b16 %v10418
    %v10656 = vunpack.c.l.b16 %v10419
    %v10657 = vunpack.c.h.b16 %v10419
    %v10658 = vunpack.c.l.b16 %v10420
    %v10659 = vunpack.c.l.b16 %v10421
    %v10660 = vunpack.c.h.b16 %v10421
    %v10661 = vunpack.c.l.b16 %v10422
    %v10662 = vunpack.c.l.b16 %v10423
    %v10663 = vunpack.c.h.b16 %v10423
    %v10664 = vunpack.c.l.b16 %v10424
    %v10665 = vunpack.c.l.b16 %v10425
    %v10666 = vunpack.c.h.b16 %v10425
    %v10667 = vunpack.c.l.b16 %v10426
    %v10668 = vunpack.c.l.b16 %v10427
    %v10669 = vunpack.c.h.b16 %v10427
    %v10670 = vunpack.c.l.b16 %v10428
    %v10671 = vunpack.c.l.b16 %v10429
    %v10672 = vunpack.c.h.b16 %v10429
    %v10673 = vunpack.c.l.b16 %v10430
    %v10674 = vunpack.c.l.b16 %v10431
    %v10675 = vunpack.c.h.b16 %v10431
    %v10676 = vunpack.c.l.b16 %v10432
    %v10677 = vunpack.c.l.b16 %v10433
    %v10678 = vunpack.c.h.b16 %v10433
    %v10679 = vunpack.c.l.b16 %v10434
    %v10680 = vunpack.c.l.b16 %v10435
    %v10681 = vunpack.c.h.b16 %v10435
    %v10682 = vunpack.c.l.b16 %v10436
    %v10683 = vunpack.c.l.b16 %v10437
    %v10684 = vunpack.c.h.b16 %v10437
    %v10685 = vunpack.c.l.b16 %v10438
    %v10686 = vunpack.c.l.b16 %v10439
    %v10687 = vunpack.c.h.b16 %v10439
    %v10688 = vunpack.c.l.b16 %v10440
    %v10689 = vunpack.c.l.b16 %v10441
    %v10690 = vunpack.c.h.b16 %v10441
    %v10691 = vunpack.c.l.b16 %v10442
    %v10692 = vunpack.c.l.b16 %v10443
    %v10693 = vunpack.c.h.b16 %v10443
    %v10694 = vunpack.c.l.b16 %v10444
    %v10695 = vunpack.c.l.b16 %v10445
    %v10696 = vunpack.c.h.b16 %v10445
    %v10697 = vunpack.c.l.b16 %v10446
    %v10698 = vunpack.c.l.b16 %v10447
    %v10699 = vunpack.c.h.b16 %v10447
    %v10700 = vunpack.c.l.b16 %v10448
    %v10701 = vunpack.c.l.b16 %v10449
    %v10702 = vunpack.c.h.b16 %v10449
    %v10703 = vunpack.c.l.b16 %v10450
    %v10704 = vunpack.c.l.b16 %v10451
    %v10705 = vunpack.c.h.b16 %v10451
    %v10706 = vunpack.c.l.b16 %v10452
    %v10707 = vunpack.c.l.b16 %v10453
    %v10708 = vunpack.c.h.b16 %v10453
    %v10709 = vunpack.c.l.b16 %v10454
    %v10710 = vunpack.c.l.b16 %v10455
    %v10711 = vunpack.c.h.b16 %v10455
    %v10712 = vunpack.c.l.b16 %v10456
    %v10713 = vunpack.c.l.b16 %v10457
    %v10714 = vunpack.c.h.b16 %v10457
    %v10715 = vunpack.c.l.b16 %v10458
    %v10716 = vpack.c.b16 %v10575, %v10572
    %v10717 = vpack.c.b16 %v10576, %v10573
    %v10718 = vpack.c.b16 %v10577, %v10574
    %v10719 = vpack.c.b16 %v10581, %v10578
    %v10720 = vpack.c.b16 %v10582, %v10579
    %v10721 = vpack.c.b16 %v10583, %v10580
    %v10722 = vpack.c.b16 %v10587, %v10584
    %v10723 = vpack.c.b16 %v10588, %v10585
    %v10724 = vpack.c.b16 %v10589, %v10586
    %v10725 = vpack.c.b16 %v10593, %v10590
    %v10726 = vpack.c.b16 %v10594, %v10591
    %v10727 = vpack.c.b16 %v10595, %v10592
    %v10728 = vpack.c.b16 %v10599, %v10596
    %v10729 = vpack.c.b16 %v10600, %v10597
    %v10730 = vpack.c.b16 %v10601, %v10598
    %v10731 = vpack.c.b16 %v10605, %v10602
    %v10732 = vpack.c.b16 %v10606, %v10603
    %v10733 = vpack.c.b16 %v10607, %v10604
    %v10734 = vpack.c.b16 %v10611, %v10608
    %v10735 = vpack.c.b16 %v10612, %v10609
    %v10736 = vpack.c.b16 %v10613, %v10610
    %v10737 = vpack.c.b16 %v10617, %v10614
    %v10738 = vpack.c.b16 %v10618, %v10615
    %v10739 = vpack.c.b16 %v10619, %v10616
    %v10740 = vpack.c.b16 %v10623, %v10620
    %v10741 = vpack.c.b16 %v10624, %v10621
    %v10742 = vpack.c.b16 %v10625, %v10622
    %v10743 = vpack.c.b16 %v10629, %v10626
    %v10744 = vpack.c.b16 %v10630, %v10627
    %v10745 = vpack.c.b16 %v10631, %v10628
    %v10746 = vpack.c.b16 %v10635, %v10632
    %v10747 = vpack.c.b16 %v10636, %v10633
    %v10748 = vpack.c.b16 %v10637, %v10634
    %v10749 = vpack.c.b16 %v10641, %v10638
    %v10750 = vpack.c.b16 %v10642, %v10639
    %v10751 = vpack.c.b16 %v10643, %v10640
    %v10752 = vpack.c.b16 %v10647, %v10644
    %v10753 = vpack.c.b16 %v10648, %v10645
    %v10754 = vpack.c.b16 %v10649, %v10646
    %v10755 = vpack.c.b16 %v10653, %v10650
    %v10756 = vpack.c.b16 %v10654, %v10651
    %v10757 = vpack.c.b16 %v10655, %v10652
    %v10758 = vpack.c.b16 %v10659, %v10656
    %v10759 = vpack.c.b16 %v10660, %v10657
    %v10760 = vpack.c.b16 %v10661, %v10658
    %v10761 = vpack.c.b16 %v10665, %v10662
    %v10762 = vpack.c.b16 %v10666, %v10663
    %v10763 = vpack.c.b16 %v10667, %v10664
    %v10764 = vpack.c.b16 %v10671, %v10668
    %v10765 = vpack.c.b16 %v10672, %v10669
    %v10766 = vpack.c.b16 %v10673, %v10670
    %v10767 = vpack.c.b16 %v10677, %v10674
    %v10768 = vpack.c.b16 %v10678, %v10675
    %v10769 = vpack.c.b16 %v10679, %v10676
    %v10770 = vpack.c.b16 %v10683, %v10680
    %v10771 = vpack.c.b16 %v10684, %v10681
    %v10772 = vpack.c.b16 %v10685, %v10682
    %v10773 = vpack.c.b16 %v10689, %v10686
    %v10774 = vpack.c.b16 %v10690, %v10687
    %v10775 = vpack.c.b16 %v10691, %v10688
    %v10776 = vpack.c.b16 %v10695, %v10692
    %v10777 = vpack.c.b16 %v10696, %v10693
    %v10778 = vpack.c.b16 %v10697, %v10694
    %v10779 = vpack.c.b16 %v10701, %v10698
    %v10780 = vpack.c.b16 %v10702, %v10699
    %v10781 = vpack.c.b16 %v10703, %v10700
    %v10782 = vpack.c.b16 %v10707, %v10704
    %v10783 = vpack.c.b16 %v10708, %v10705
    %v10784 = vpack.c.b16 %v10709, %v10706
    %v10785 = vpack.c.b16 %v10713, %v10710
    %v10786 = vpack.c.b16 %v10714, %v10711
    %v10787 = vpack.c.b16 %v10715, %v10712
    %10860 = vmatprep.subr.bf16.mxu0 %v10717
    %10861 = vmatpush1.bf16.msra.mxu0 %v10716
    %10862 = vmatprep.subr.bf16.mxu0 %v10720
    %10863 = vmatpush1.bf16.msra.mxu0 %v10719
    %10864 = vmatprep.subr.bf16.mxu0 %v10723
    %10865 = vmatpush1.bf16.msra.mxu0 %v10722
    %10866 = vmatprep.subr.bf16.mxu0 %v10726
    %10867 = vmatpush1.bf16.msra.mxu0 %v10725
    %10868 = vmatprep.subr.bf16.mxu0 %v10729
    %10869 = vmatpush1.bf16.msra.mxu0 %v10728
    %10870 = vmatprep.subr.bf16.mxu0 %v10732
    %10871 = vmatpush1.bf16.msra.mxu0 %v10731
    %10872 = vmatprep.subr.bf16.mxu0 %v10735
    %10873 = vmatpush1.bf16.msra.mxu0 %v10734
    %10874 = vmatprep.subr.bf16.mxu0 %v10738
    %10875 = vmatpush1.bf16.msra.mxu0 %v10737
    %10876 = vmatprep.subr.bf16.mxu0 %v10741
    %10877 = vmatpush1.bf16.msra.mxu0 %v10740
    %10878 = vmatprep.subr.bf16.mxu0 %v10744
    %10879 = vmatpush1.bf16.msra.mxu0 %v10743
    %10880 = vmatprep.subr.bf16.mxu0 %v10747
    %10881 = vmatpush1.bf16.msra.mxu0 %v10746
    %10882 = vmatprep.subr.bf16.mxu0 %v10750
    %10883 = vmatpush1.bf16.msra.mxu0 %v10749
    %10884 = vmatprep.subr.bf16.mxu0 %v10753
    %10885 = vmatpush1.bf16.msra.mxu0 %v10752
    %10886 = vmatprep.subr.bf16.mxu0 %v10756
    %10887 = vmatpush1.bf16.msra.mxu0 %v10755
    %10888 = vmatprep.subr.bf16.mxu0 %v10759
    %10889 = vmatpush1.bf16.msra.mxu0 %v10758
    %10890 = vmatprep.subr.bf16.mxu0 %v10762
    %10891 = vmatpush1.bf16.msra.mxu0 %v10761
    %10892 = vmatprep.mubr.bf16.mxu0 %v10361
    %10893 = vmatmul.mubr.bf16.gmra.mrb[0].mxu0 %v10360
    %v10894 = vpop.f32.mrb[0].mxu0
    %v10895 = vadd.f32 %v10464, %v10894
    %v10896 = vpop.f32.mrb[0].mxu0
    %v10897 = vadd.f32 %v10468, %v10896
    %v10898 = vpop.f32.mrb[0].mxu0
    %v10899 = vpop.f32.mrb[0].mxu0
    %10900 = vdwg.mxu0
    %10901 = vmatprep.subr.bf16.mxu0 %v10765
    %10902 = vmatpush1.bf16.msra.mxu0 %v10764
    %10903 = vmatprep.subr.bf16.mxu0 %v10768
    %10904 = vmatpush1.bf16.msra.mxu0 %v10767
    %10905 = vmatprep.subr.bf16.mxu0 %v10771
    %10906 = vmatpush1.bf16.msra.mxu0 %v10770
    %10907 = vmatprep.subr.bf16.mxu0 %v10774
    %10908 = vmatpush1.bf16.msra.mxu0 %v10773
    %10909 = vmatprep.subr.bf16.mxu0 %v10777
    %10910 = vmatpush1.bf16.msra.mxu0 %v10776
    %10911 = vmatprep.subr.bf16.mxu0 %v10780
    %10912 = vmatpush1.bf16.msra.mxu0 %v10779
    %10913 = vmatprep.subr.bf16.mxu0 %v10783
    %10914 = vmatpush1.bf16.msra.mxu0 %v10782
    %10915 = vmatprep.subr.bf16.mxu0 %v10786
    %10916 = vmatpush1.bf16.msra.mxu0 %v10785
    %10917 = vmatprep.subr.bf16.mxu0 0
    %10918 = vmatpush1.bf16.msra.mxu0 0
    %10919 = vmatprep.subr.bf16.mxu0 0
    %10920 = vmatpush1.bf16.msra.mxu0 0
    %10921 = vmatprep.subr.bf16.mxu0 0
    %10922 = vmatpush1.bf16.msra.mxu0 0
    %10923 = vmatprep.subr.bf16.mxu0 0
    %10924 = vmatpush1.bf16.msra.mxu0 0
    %10925 = vmatprep.subr.bf16.mxu0 0
    %10926 = vmatpush1.bf16.msra.mxu0 0
    %10927 = vmatprep.subr.bf16.mxu0 0
    %10928 = vmatpush1.bf16.msra.mxu0 0
    %10929 = vmatprep.subr.bf16.mxu0 0
    %10930 = vmatpush1.bf16.msra.mxu0 0
    %10931 = vmatprep.subr.bf16.mxu0 0
    %10932 = vmatpush1.bf16.msra.mxu0 0
    %10933 = vmatprep.mubr.bf16.mxu0 0
    %10934 = vmatmul.mubr.bf16.gmra.mrb[0].mxu0 %v10362
    %v10935 = vpop.f32.mrb[0].mxu0
    %v10936 = vadd.f32 %v10895, %v10935
    %v10937 = vpop.f32.mrb[0].mxu0
    %v10938 = vadd.f32 %v10897, %v10937
    %v10939 = vpop.f32.mrb[0].mxu0
    %v10940 = vpop.f32.mrb[0].mxu0
    %10941 = vdwg.mxu0
    %10942 = vmatprep.subr.bf16.mxu0 0
    %10943 = vmatpush1.bf16.msra.mxu0 %v10718
    %10944 = vmatprep.subr.bf16.mxu0 0
    %10945 = vmatpush1.bf16.msra.mxu0 %v10721
    %10946 = vmatprep.subr.bf16.mxu0 0
    %10947 = vmatpush1.bf16.msra.mxu0 %v10724
    %10948 = vmatprep.subr.bf16.mxu0 0
    %10949 = vmatpush1.bf16.msra.mxu0 %v10727
    %10950 = vmatprep.subr.bf16.mxu0 0
    %10951 = vmatpush1.bf16.msra.mxu0 %v10730
    %10952 = vmatprep.subr.bf16.mxu0 0
    %10953 = vmatpush1.bf16.msra.mxu0 %v10733
    %10954 = vmatprep.subr.bf16.mxu0 0
    %10955 = vmatpush1.bf16.msra.mxu0 %v10736
    %10956 = vmatprep.subr.bf16.mxu0 0
    %10957 = vmatpush1.bf16.msra.mxu0 %v10739
    %10958 = vmatprep.subr.bf16.mxu0 0
    %10959 = vmatpush1.bf16.msra.mxu0 %v10742
    %10960 = vmatprep.subr.bf16.mxu0 0
    %10961 = vmatpush1.bf16.msra.mxu0 %v10745
    %10962 = vmatprep.subr.bf16.mxu0 0
    %10963 = vmatpush1.bf16.msra.mxu0 %v10748
    %10964 = vmatprep.subr.bf16.mxu0 0
    %10965 = vmatpush1.bf16.msra.mxu0 %v10751
    %10966 = vmatprep.subr.bf16.mxu0 0
    %10967 = vmatpush1.bf16.msra.mxu0 %v10754
    %10968 = vmatprep.subr.bf16.mxu0 0
    %10969 = vmatpush1.bf16.msra.mxu0 %v10757
    %10970 = vmatprep.subr.bf16.mxu0 0
    %10971 = vmatpush1.bf16.msra.mxu0 %v10760
    %10972 = vmatprep.subr.bf16.mxu0 0
    %10973 = vmatpush1.bf16.msra.mxu0 %v10763
    %10974 = vmatprep.mubr.bf16.mxu0 %v10361
    %10975 = vmatmul.mubr.bf16.gmra.mrb[0].mxu0 %v10360
    %v10976 = vpop.f32.mrb[0].mxu0
    %v10977 = vadd.f32 %v10472, %v10976
    %v10978 = vpop.f32.mrb[0].mxu0
    %v10979 = vpop.f32.mrb[0].mxu0
    %v10980 = vpop.f32.mrb[0].mxu0
    %10981 = vdwg.mxu0
    %10982 = vmatprep.subr.bf16.mxu0 0
    %10983 = vmatpush1.bf16.msra.mxu0 %v10766
    %10984 = vmatprep.subr.bf16.mxu0 0
    %10985 = vmatpush1.bf16.msra.mxu0 %v10769
    %10986 = vmatprep.subr.bf16.mxu0 0
    %10987 = vmatpush1.bf16.msra.mxu0 %v10772
    %10988 = vmatprep.subr.bf16.mxu0 0
    %10989 = vmatpush1.bf16.msra.mxu0 %v10775
    %10990 = vmatprep.subr.bf16.mxu0 0
    %10991 = vmatpush1.bf16.msra.mxu0 %v10778
    %10992 = vmatprep.subr.bf16.mxu0 0
    %10993 = vmatpush1.bf16.msra.mxu0 %v10781
    %10994 = vmatprep.subr.bf16.mxu0 0
    %10995 = vmatpush1.bf16.msra.mxu0 %v10784
    %10996 = vmatprep.subr.bf16.mxu0 0
    %10997 = vmatpush1.bf16.msra.mxu0 %v10787
    %10998 = vmatprep.subr.bf16.mxu0 0
    %10999 = vmatpush1.bf16.msra.mxu0 0
    %11000 = vmatprep.subr.bf16.mxu0 0
    %11001 = vmatpush1.bf16.msra.mxu0 0
    %11002 = vmatprep.subr.bf16.mxu0 0
    %11003 = vmatpush1.bf16.msra.mxu0 0
    %11004 = vmatprep.subr.bf16.mxu0 0
    %11005 = vmatpush1.bf16.msra.mxu0 0
    %11006 = vmatprep.subr.bf16.mxu0 0
    %11007 = vmatpush1.bf16.msra.mxu0 0
    %11008 = vmatprep.subr.bf16.mxu0 0
    %11009 = vmatpush1.bf16.msra.mxu0 0
    %11010 = vmatprep.subr.bf16.mxu0 0
    %11011 = vmatpush1.bf16.msra.mxu0 0
    %11012 = vmatprep.subr.bf16.mxu0 0
    %11013 = vmatpush1.bf16.msra.mxu0 0
    %11014 = vmatprep.mubr.bf16.mxu0 0
    %11015 = vmatmul.mubr.bf16.gmra.mrb[0].mxu0 %v10362
    %v11016 = vpop.f32.mrb[0].mxu0
    %v11017 = vadd.f32 %v10977, %v11016
    %v11018 = vpop.f32.mrb[0].mxu0
    %v11019 = vpop.f32.mrb[0].mxu0
    %v11020 = vpop.f32.mrb[0].mxu0
    %11021 = vdwg.mxu0
    %v11022 = vmax.f32 %v10936, 0.0
    %v11023 = vmax.f32 %v10938, 0.0
    %v11024 = vmax.f32 %v11017, 0.0
    %v11025 = vpack.c.bf16 %v11022, %v11022
    %v11026 = vpack.c.bf16 %v11023, %v11023
    %v11027 = vpack.c.bf16 %v11024, %v11024
    %v11028 = vld [vmem:[#allocation10] sm:$0xff]
    %v11029 = vld [vmem:[#allocation10 + $0x8] sm:$0xff]
    %v11030 = vld [vmem:[#allocation10 + $0x10] sm:$0xff]
    %v11031 = vld [vmem:[#allocation10 + $0x18] sm:$0xff]
    %v11032 = vld [vmem:[#allocation10 + $0x20] sm:$0xff]
    %v11033 = vld [vmem:[#allocation10 + $0x28] sm:$0xff]
    %v11034 = vld [vmem:[#allocation10 + $0x30] sm:$0xff]
    %v11035 = vld [vmem:[#allocation10 + $0x38] sm:$0xff]
    %v11036 = vld [vmem:[#allocation10 + $0x40] sm:$0xff]
    %v11037 = vld [vmem:[#allocation10 + $0x48] sm:$0xff]
    %v11038 = vld [vmem:[#allocation10 + $0x50] sm:$0xff]
    %v11039 = vld [vmem:[#allocation10 + $0x58] sm:$0xff]
    %v11040 = vld [vmem:[#allocation10 + $0x60] sm:$0xff]
    %v11041 = vld [vmem:[#allocation10 + $0x68] sm:$0xff]
    %v11042 = vld [vmem:[#allocation10 + $0x70] sm:$0xff]
    %v11043 = vld [vmem:[#allocation10 + $0x78] sm:$0xff]
    %v11044 = vld [vmem:[#allocation10 + $0x80] sm:$0xff]
    %v11045 = vld [vmem:[#allocation10 + $0x88] sm:$0xff]
    %v11046 = vld [vmem:[#allocation10 + $0x90] sm:$0xff]
    %v11047 = vld [vmem:[#allocation10 + $0x98] sm:$0xff]
    %v11048 = vld [vmem:[#allocation10 + $0xa0] sm:$0xff]
    %v11049 = vld [vmem:[#allocation10 + $0xa8] sm:$0xff]
    %v11050 = vld [vmem:[#allocation10 + $0xb0] sm:$0xff]
    %v11051 = vld [vmem:[#allocation10 + $0xb8] sm:$0xff]
    %v11052 = vld [vmem:[#allocation10 + $0xc0] sm:$0xff]
    %v11053 = vld [vmem:[#allocation10 + $0xc8] sm:$0xff]
    %v11054 = vld [vmem:[#allocation10 + $0xd0] sm:$0xff]
    %v11055 = vld [vmem:[#allocation10 + $0xd8] sm:$0xff]
    %v11056 = vld [vmem:[#allocation10 + $0xe0] sm:$0xff]
    %v11057 = vld [vmem:[#allocation10 + $0xe8] sm:$0xff]
    %v11058 = vld [vmem:[#allocation10 + $0xf0] sm:$0xff]
    %v11059 = vld [vmem:[#allocation10 + $0xf8] sm:$0xff]
    %v11060 = vld [vmem:[#allocation10 + $0x100] sm:$0xff]
    %v11061 = vld [vmem:[#allocation10 + $0x108] sm:$0xff]
    %v11062 = vld [vmem:[#allocation10 + $0x110] sm:$0xff]
    %v11063 = vld [vmem:[#allocation10 + $0x118] sm:$0xff]
    %v11064 = vld [vmem:[#allocation10 + $0x120] sm:$0xff]
    %v11065 = vld [vmem:[#allocation10 + $0x128] sm:$0xff]
    %v11066 = vld [vmem:[#allocation10 + $0x130] sm:$0xff]
    %v11067 = vld [vmem:[#allocation10 + $0x138] sm:$0xff]
    %v11068 = vld [vmem:[#allocation10 + $0x140] sm:$0xff]
    %v11069 = vld [vmem:[#allocation10 + $0x148] sm:$0xff]
    %v11070 = vld [vmem:[#allocation10 + $0x150] sm:$0xff]
    %v11071 = vld [vmem:[#allocation10 + $0x158] sm:$0xff]
    %v11072 = vld [vmem:[#allocation10 + $0x160] sm:$0xff]
    %v11073 = vld [vmem:[#allocation10 + $0x168] sm:$0xff]
    %v11074 = vld [vmem:[#allocation10 + $0x170] sm:$0xff]
    %v11075 = vld [vmem:[#allocation10 + $0x178] sm:$0xff]
    %v11076 = vld [vmem:[#allocation13 + $0x25] sm:$0x3]
    %v11078 = vlaneseq
    %v11079 = vshrl.u32 %v11078, 7
    %v11080 = vsub.s32 0, %v11079
    %v11081 = vrot.slane %v11076, %v11080
    %v11082 = vlaneseq
    %v11083 = vshrl.u32 %v11082, 7
    %v11084 = vsub.s32 1, %v11083
    %v11085 = vrot.slane %v11076, %v11084
    %v11136 = vunpack.c.l.b16 %v11028
    %v11137 = vunpack.c.h.b16 %v11028
    %v11138 = vunpack.c.l.b16 %v11029
    %v11139 = vunpack.c.h.b16 %v11029
    %v11140 = vunpack.c.l.b16 %v11030
    %v11141 = vunpack.c.h.b16 %v11030
    %v11142 = vunpack.c.l.b16 %v11031
    %v11143 = vunpack.c.h.b16 %v11031
    %v11144 = vunpack.c.l.b16 %v11032
    %v11145 = vunpack.c.h.b16 %v11032
    %v11146 = vunpack.c.l.b16 %v11033
    %v11147 = vunpack.c.h.b16 %v11033
    %v11148 = vunpack.c.l.b16 %v11034
    %v11149 = vunpack.c.h.b16 %v11034
    %v11150 = vunpack.c.l.b16 %v11035
    %v11151 = vunpack.c.h.b16 %v11035
    %v11152 = vunpack.c.l.b16 %v11036
    %v11153 = vunpack.c.h.b16 %v11036
    %v11154 = vunpack.c.l.b16 %v11037
    %v11155 = vunpack.c.h.b16 %v11037
    %v11156 = vunpack.c.l.b16 %v11038
    %v11157 = vunpack.c.h.b16 %v11038
    %v11158 = vunpack.c.l.b16 %v11039
    %v11159 = vunpack.c.h.b16 %v11039
    %v11160 = vunpack.c.l.b16 %v11040
    %v11161 = vunpack.c.h.b16 %v11040
    %v11162 = vunpack.c.l.b16 %v11041
    %v11163 = vunpack.c.h.b16 %v11041
    %v11164 = vunpack.c.l.b16 %v11042
    %v11165 = vunpack.c.h.b16 %v11042
    %v11166 = vunpack.c.l.b16 %v11043
    %v11167 = vunpack.c.h.b16 %v11043
    %v11168 = vunpack.c.l.b16 %v11044
    %v11169 = vunpack.c.h.b16 %v11044
    %v11170 = vunpack.c.l.b16 %v11045
    %v11171 = vunpack.c.h.b16 %v11045
    %v11172 = vunpack.c.l.b16 %v11046
    %v11173 = vunpack.c.h.b16 %v11046
    %v11174 = vunpack.c.l.b16 %v11047
    %v11175 = vunpack.c.h.b16 %v11047
    %v11176 = vunpack.c.l.b16 %v11048
    %v11177 = vunpack.c.h.b16 %v11048
    %v11178 = vunpack.c.l.b16 %v11049
    %v11179 = vunpack.c.h.b16 %v11049
    %v11180 = vunpack.c.l.b16 %v11050
    %v11181 = vunpack.c.h.b16 %v11050
    %v11182 = vunpack.c.l.b16 %v11051
    %v11183 = vunpack.c.h.b16 %v11051
    %v11184 = vunpack.c.l.b16 %v11052
    %v11185 = vunpack.c.h.b16 %v11052
    %v11186 = vunpack.c.l.b16 %v11053
    %v11187 = vunpack.c.h.b16 %v11053
    %v11188 = vunpack.c.l.b16 %v11054
    %v11189 = vunpack.c.h.b16 %v11054
    %v11190 = vunpack.c.l.b16 %v11055
    %v11191 = vunpack.c.h.b16 %v11055
    %v11192 = vunpack.c.l.b16 %v11056
    %v11193 = vunpack.c.h.b16 %v11056
    %v11194 = vunpack.c.l.b16 %v11057
    %v11195 = vunpack.c.h.b16 %v11057
    %v11196 = vunpack.c.l.b16 %v11058
    %v11197 = vunpack.c.h.b16 %v11058
    %v11198 = vunpack.c.l.b16 %v11059
    %v11199 = vunpack.c.h.b16 %v11059
    %v11200 = vunpack.c.l.b16 %v11060
    %v11201 = vunpack.c.h.b16 %v11060
    %v11202 = vunpack.c.l.b16 %v11061
    %v11203 = vunpack.c.h.b16 %v11061
    %v11204 = vunpack.c.l.b16 %v11062
    %v11205 = vunpack.c.h.b16 %v11062
    %v11206 = vunpack.c.l.b16 %v11063
    %v11207 = vunpack.c.h.b16 %v11063
    %v11208 = vunpack.c.l.b16 %v11064
    %v11209 = vunpack.c.h.b16 %v11064
    %v11210 = vunpack.c.l.b16 %v11065
    %v11211 = vunpack.c.h.b16 %v11065
    %v11212 = vunpack.c.l.b16 %v11066
    %v11213 = vunpack.c.h.b16 %v11066
    %v11214 = vunpack.c.l.b16 %v11067
    %v11215 = vunpack.c.h.b16 %v11067
    %v11216 = vunpack.c.l.b16 %v11068
    %v11217 = vunpack.c.h.b16 %v11068
    %v11218 = vunpack.c.l.b16 %v11069
    %v11219 = vunpack.c.h.b16 %v11069
    %v11220 = vunpack.c.l.b16 %v11070
    %v11221 = vunpack.c.h.b16 %v11070
    %v11222 = vunpack.c.l.b16 %v11071
    %v11223 = vunpack.c.h.b16 %v11071
    %v11224 = vunpack.c.l.b16 %v11072
    %v11225 = vunpack.c.h.b16 %v11072
    %v11226 = vunpack.c.l.b16 %v11073
    %v11227 = vunpack.c.h.b16 %v11073
    %v11228 = vunpack.c.l.b16 %v11074
    %v11229 = vunpack.c.h.b16 %v11074
    %v11230 = vunpack.c.l.b16 %v11075
    %v11231 = vunpack.c.h.b16 %v11075
    %v11232 = vpack.c.b16 %v11138, %v11136
    %v11233 = vpack.c.b16 %v11139, %v11137
    %v11234 = vpack.c.b16 %v11142, %v11140
    %v11235 = vpack.c.b16 %v11143, %v11141
    %v11236 = vpack.c.b16 %v11146, %v11144
    %v11237 = vpack.c.b16 %v11147, %v11145
    %v11238 = vpack.c.b16 %v11150, %v11148
    %v11239 = vpack.c.b16 %v11151, %v11149
    %v11240 = vpack.c.b16 %v11154, %v11152
    %v11241 = vpack.c.b16 %v11155, %v11153
    %v11242 = vpack.c.b16 %v11158, %v11156
    %v11243 = vpack.c.b16 %v11159, %v11157
    %v11244 = vpack.c.b16 %v11162, %v11160
    %v11245 = vpack.c.b16 %v11163, %v11161
    %v11246 = vpack.c.b16 %v11166, %v11164
    %v11247 = vpack.c.b16 %v11167, %v11165
    %v11248 = vpack.c.b16 %v11170, %v11168
    %v11249 = vpack.c.b16 %v11171, %v11169
    %v11250 = vpack.c.b16 %v11174, %v11172
    %v11251 = vpack.c.b16 %v11175, %v11173
    %v11252 = vpack.c.b16 %v11178, %v11176
    %v11253 = vpack.c.b16 %v11179, %v11177
    %v11254 = vpack.c.b16 %v11182, %v11180
    %v11255 = vpack.c.b16 %v11183, %v11181
    %v11256 = vpack.c.b16 %v11186, %v11184
    %v11257 = vpack.c.b16 %v11187, %v11185
    %v11258 = vpack.c.b16 %v11190, %v11188
    %v11259 = vpack.c.b16 %v11191, %v11189
    %v11260 = vpack.c.b16 %v11194, %v11192
    %v11261 = vpack.c.b16 %v11195, %v11193
    %v11262 = vpack.c.b16 %v11198, %v11196
    %v11263 = vpack.c.b16 %v11199, %v11197
    %v11264 = vpack.c.b16 %v11202, %v11200
    %v11265 = vpack.c.b16 %v11203, %v11201
    %v11266 = vpack.c.b16 %v11206, %v11204
    %v11267 = vpack.c.b16 %v11207, %v11205
    %v11268 = vpack.c.b16 %v11210, %v11208
    %v11269 = vpack.c.b16 %v11211, %v11209
    %v11270 = vpack.c.b16 %v11214, %v11212
    %v11271 = vpack.c.b16 %v11215, %v11213
    %v11272 = vpack.c.b16 %v11218, %v11216
    %v11273 = vpack.c.b16 %v11219, %v11217
    %v11274 = vpack.c.b16 %v11222, %v11220
    %v11275 = vpack.c.b16 %v11223, %v11221
    %v11276 = vpack.c.b16 %v11226, %v11224
    %v11277 = vpack.c.b16 %v11227, %v11225
    %v11278 = vpack.c.b16 %v11230, %v11228
    %v11279 = vpack.c.b16 %v11231, %v11229
    %11328 = vmatprep.subr.bf16.mxu0 %v11233
    %11329 = vmatpush1.bf16.msra.mxu0 %v11232
    %11330 = vmatprep.subr.bf16.mxu0 %v11235
    %11331 = vmatpush1.bf16.msra.mxu0 %v11234
    %11332 = vmatprep.subr.bf16.mxu0 %v11237
    %11333 = vmatpush1.bf16.msra.mxu0 %v11236
    %11334 = vmatprep.subr.bf16.mxu0 %v11239
    %11335 = vmatpush1.bf16.msra.mxu0 %v11238
    %11336 = vmatprep.subr.bf16.mxu0 %v11241
    %11337 = vmatpush1.bf16.msra.mxu0 %v11240
    %11338 = vmatprep.subr.bf16.mxu0 %v11243
    %11339 = vmatpush1.bf16.msra.mxu0 %v11242
    %11340 = vmatprep.subr.bf16.mxu0 %v11245
    %11341 = vmatpush1.bf16.msra.mxu0 %v11244
    %11342 = vmatprep.subr.bf16.mxu0 %v11247
    %11343 = vmatpush1.bf16.msra.mxu0 %v11246
    %11344 = vmatprep.subr.bf16.mxu0 %v11249
    %11345 = vmatpush1.bf16.msra.mxu0 %v11248
    %11346 = vmatprep.subr.bf16.mxu0 %v11251
    %11347 = vmatpush1.bf16.msra.mxu0 %v11250
    %11348 = vmatprep.subr.bf16.mxu0 %v11253
    %11349 = vmatpush1.bf16.msra.mxu0 %v11252
    %11350 = vmatprep.subr.bf16.mxu0 %v11255
    %11351 = vmatpush1.bf16.msra.mxu0 %v11254
    %11352 = vmatprep.subr.bf16.mxu0 %v11257
    %11353 = vmatpush1.bf16.msra.mxu0 %v11256
    %11354 = vmatprep.subr.bf16.mxu0 %v11259
    %11355 = vmatpush1.bf16.msra.mxu0 %v11258
    %11356 = vmatprep.subr.bf16.mxu0 %v11261
    %11357 = vmatpush1.bf16.msra.mxu0 %v11260
    %11358 = vmatprep.subr.bf16.mxu0 %v11263
    %11359 = vmatpush1.bf16.msra.mxu0 %v11262
    %11360 = vmatprep.mubr.bf16.mxu0 %v11026
    %11361 = vmatmul.mubr.bf16.gmra.mrb[0].mxu0 %v11025
    %v11362 = vpop.f32.mrb[0].mxu0
    %v11363 = vadd.f32 %v11081, %v11362
    %v11364 = vpop.f32.mrb[0].mxu0
    %v11365 = vadd.f32 %v11085, %v11364
    %v11366 = vpop.f32.mrb[0].mxu0
    %v11367 = vpop.f32.mrb[0].mxu0
    %11368 = vdwg.mxu0
    %11369 = vmatprep.subr.bf16.mxu0 %v11265
    %11370 = vmatpush1.bf16.msra.mxu0 %v11264
    %11371 = vmatprep.subr.bf16.mxu0 %v11267
    %11372 = vmatpush1.bf16.msra.mxu0 %v11266
    %11373 = vmatprep.subr.bf16.mxu0 %v11269
    %11374 = vmatpush1.bf16.msra.mxu0 %v11268
    %11375 = vmatprep.subr.bf16.mxu0 %v11271
    %11376 = vmatpush1.bf16.msra.mxu0 %v11270
    %11377 = vmatprep.subr.bf16.mxu0 %v11273
    %11378 = vmatpush1.bf16.msra.mxu0 %v11272
    %11379 = vmatprep.subr.bf16.mxu0 %v11275
    %11380 = vmatpush1.bf16.msra.mxu0 %v11274
    %11381 = vmatprep.subr.bf16.mxu0 %v11277
    %11382 = vmatpush1.bf16.msra.mxu0 %v11276
    %11383 = vmatprep.subr.bf16.mxu0 %v11279
    %11384 = vmatpush1.bf16.msra.mxu0 %v11278
    %11385 = vmatprep.subr.bf16.mxu0 0
    %11386 = vmatpush1.bf16.msra.mxu0 0
    %11387 = vmatprep.subr.bf16.mxu0 0
    %11388 = vmatpush1.bf16.msra.mxu0 0
    %11389 = vmatprep.subr.bf16.mxu0 0
    %11390 = vmatpush1.bf16.msra.mxu0 0
    %11391 = vmatprep.subr.bf16.mxu0 0
    %11392 = vmatpush1.bf16.msra.mxu0 0
    %11393 = vmatprep.subr.bf16.mxu0 0
    %11394 = vmatpush1.bf16.msra.mxu0 0
    %11395 = vmatprep.subr.bf16.mxu0 0
    %11396 = vmatpush1.bf16.msra.mxu0 0
    %11397 = vmatprep.subr.bf16.mxu0 0
    %11398 = vmatpush1.bf16.msra.mxu0 0
    %11399 = vmatprep.subr.bf16.mxu0 0
    %11400 = vmatpush1.bf16.msra.mxu0 0
    %11401 = vmatprep.mubr.bf16.mxu0 0
    %11402 = vmatmul.mubr.bf16.gmra.mrb[0].mxu0 %v11027
    %v11403 = vpop.f32.mrb[0].mxu0
    %v11404 = vadd.f32 %v11363, %v11403
    %v11405 = vpop.f32.mrb[0].mxu0
    %v11406 = vadd.f32 %v11365, %v11405
    %v11407 = vpop.f32.mrb[0].mxu0
    %v11408 = vpop.f32.mrb[0].mxu0
    %11409 = vdwg.mxu0
    %v11410 = vmax.f32 %v11404, 0.0
    %v11411 = vmax.f32 %v11406, 0.0
    %v11412 = vpack.c.bf16 %v11410, %v11410
    %v11413 = vpack.c.bf16 %v11411, %v11411
    %v11414 = vld [vmem:[#allocation12] sm:$0xf]
    %v11415 = vld [vmem:[#allocation12 + $0x4] sm:$0xf]
    %v11416 = vld [vmem:[#allocation12 + $0x8] sm:$0xf]
    %v11417 = vld [vmem:[#allocation12 + $0xc] sm:$0xf]
    %v11418 = vld [vmem:[#allocation12 + $0x10] sm:$0xf]
    %v11419 = vld [vmem:[#allocation12 + $0x14] sm:$0xf]
    %v11420 = vld [vmem:[#allocation12 + $0x18] sm:$0xf]
    %v11421 = vld [vmem:[#allocation12 + $0x1c] sm:$0xf]
    %v11422 = vld [vmem:[#allocation12 + $0x20] sm:$0xf]
    %v11423 = vld [vmem:[#allocation12 + $0x24] sm:$0xf]
    %v11424 = vld [vmem:[#allocation12 + $0x28] sm:$0xf]
    %v11425 = vld [vmem:[#allocation12 + $0x2c] sm:$0xf]
    %v11426 = vld [vmem:[#allocation12 + $0x30] sm:$0xf]
    %v11427 = vld [vmem:[#allocation12 + $0x34] sm:$0xf]
    %v11428 = vld [vmem:[#allocation12 + $0x38] sm:$0xf]
    %v11429 = vld [vmem:[#allocation12 + $0x3c] sm:$0xf]
    %v11430 = vld [vmem:[#allocation12 + $0x40] sm:$0xf]
    %v11431 = vld [vmem:[#allocation12 + $0x44] sm:$0xf]
    %v11432 = vld [vmem:[#allocation12 + $0x48] sm:$0xf]
    %v11433 = vld [vmem:[#allocation12 + $0x4c] sm:$0xf]
    %v11434 = vld [vmem:[#allocation12 + $0x50] sm:$0xf]
    %v11435 = vld [vmem:[#allocation12 + $0x54] sm:$0xf]
    %v11436 = vld [vmem:[#allocation12 + $0x58] sm:$0xf]
    %v11437 = vld [vmem:[#allocation12 + $0x5c] sm:$0xf]
    %v11438 = vld [vmem:[#allocation12 + $0x60] sm:$0xf]
    %v11439 = vld [vmem:[#allocation12 + $0x64] sm:$0xf]
    %v11440 = vld [vmem:[#allocation12 + $0x68] sm:$0xf]
    %v11441 = vld [vmem:[#allocation12 + $0x6c] sm:$0xf]
    %v11442 = vld [vmem:[#allocation12 + $0x70] sm:$0xf]
    %v11443 = vld [vmem:[#allocation12 + $0x74] sm:$0xf]
    %v11444 = vld [vmem:[#allocation12 + $0x78] sm:$0xf]
    %v11445 = vld [vmem:[#allocation12 + $0x7c] sm:$0xf]
    %v11446 = vld [vmem:[#allocation13 + $0x27] sm:$0x1]
    %v11448 = vlaneseq
    %v11449 = vshrl.u32 %v11448, 7
    %v11450 = vsub.s32 0, %v11449
    %v11451 = vrot.slane %v11446, %v11450
    %v11485 = vunpack.c.l.b16 %v11414
    %v11486 = vunpack.c.l.b16 %v11415
    %v11487 = vunpack.c.l.b16 %v11416
    %v11488 = vunpack.c.l.b16 %v11417
    %v11489 = vunpack.c.l.b16 %v11418
    %v11490 = vunpack.c.l.b16 %v11419
    %v11491 = vunpack.c.l.b16 %v11420
    %v11492 = vunpack.c.l.b16 %v11421
    %v11493 = vunpack.c.l.b16 %v11422
    %v11494 = vunpack.c.l.b16 %v11423
    %v11495 = vunpack.c.l.b16 %v11424
    %v11496 = vunpack.c.l.b16 %v11425
    %v11497 = vunpack.c.l.b16 %v11426
    %v11498 = vunpack.c.l.b16 %v11427
    %v11499 = vunpack.c.l.b16 %v11428
    %v11500 = vunpack.c.l.b16 %v11429
    %v11501 = vunpack.c.l.b16 %v11430
    %v11502 = vunpack.c.l.b16 %v11431
    %v11503 = vunpack.c.l.b16 %v11432
    %v11504 = vunpack.c.l.b16 %v11433
    %v11505 = vunpack.c.l.b16 %v11434
    %v11506 = vunpack.c.l.b16 %v11435
    %v11507 = vunpack.c.l.b16 %v11436
    %v11508 = vunpack.c.l.b16 %v11437
    %v11509 = vunpack.c.l.b16 %v11438
    %v11510 = vunpack.c.l.b16 %v11439
    %v11511 = vunpack.c.l.b16 %v11440
    %v11512 = vunpack.c.l.b16 %v11441
    %v11513 = vunpack.c.l.b16 %v11442
    %v11514 = vunpack.c.l.b16 %v11443
    %v11515 = vunpack.c.l.b16 %v11444
    %v11516 = vunpack.c.l.b16 %v11445
    %v11517 = vpack.c.b16 %v11486, %v11485
    %v11518 = vpack.c.b16 %v11488, %v11487
    %v11519 = vpack.c.b16 %v11490, %v11489
    %v11520 = vpack.c.b16 %v11492, %v11491
    %v11521 = vpack.c.b16 %v11494, %v11493
    %v11522 = vpack.c.b16 %v11496, %v11495
    %v11523 = vpack.c.b16 %v11498, %v11497
    %v11524 = vpack.c.b16 %v11500, %v11499
    %v11525 = vpack.c.b16 %v11502, %v11501
    %v11526 = vpack.c.b16 %v11504, %v11503
    %v11527 = vpack.c.b16 %v11506, %v11505
    %v11528 = vpack.c.b16 %v11508, %v11507
    %v11529 = vpack.c.b16 %v11510, %v11509
    %v11530 = vpack.c.b16 %v11512, %v11511
    %v11531 = vpack.c.b16 %v11514, %v11513
    %v11532 = vpack.c.b16 %v11516, %v11515
    %11549 = vmatprep.subr.bf16.mxu0 0
    %11550 = vmatpush1.bf16.msra.mxu0 %v11517
    %11551 = vmatprep.subr.bf16.mxu0 0
    %11552 = vmatpush1.bf16.msra.mxu0 %v11518
    %11553 = vmatprep.subr.bf16.mxu0 0
    %11554 = vmatpush1.bf16.msra.mxu0 %v11519
    %11555 = vmatprep.subr.bf16.mxu0 0
    %11556 = vmatpush1.bf16.msra.mxu0 %v11520
    %11557 = vmatprep.subr.bf16.mxu0 0
    %11558 = vmatpush1.bf16.msra.mxu0 %v11521
    %11559 = vmatprep.subr.bf16.mxu0 0
    %11560 = vmatpush1.bf16.msra.mxu0 %v11522
    %11561 = vmatprep.subr.bf16.mxu0 0
    %11562 = vmatpush1.bf16.msra.mxu0 %v11523
    %11563 = vmatprep.subr.bf16.mxu0 0
    %11564 = vmatpush1.bf16.msra.mxu0 %v11524
    %11565 = vmatprep.subr.bf16.mxu0 0
    %11566 = vmatpush1.bf16.msra.mxu0 %v11525
    %11567 = vmatprep.subr.bf16.mxu0 0
    %11568 = vmatpush1.bf16.msra.mxu0 %v11526
    %11569 = vmatprep.subr.bf16.mxu0 0
    %11570 = vmatpush1.bf16.msra.mxu0 %v11527
    %11571 = vmatprep.subr.bf16.mxu0 0
    %11572 = vmatpush1.bf16.msra.mxu0 %v11528
    %11573 = vmatprep.subr.bf16.mxu0 0
    %11574 = vmatpush1.bf16.msra.mxu0 %v11529
    %11575 = vmatprep.subr.bf16.mxu0 0
    %11576 = vmatpush1.bf16.msra.mxu0 %v11530
    %11577 = vmatprep.subr.bf16.mxu0 0
    %11578 = vmatpush1.bf16.msra.mxu0 %v11531
    %11579 = vmatprep.subr.bf16.mxu0 0
    %11580 = vmatpush1.bf16.msra.mxu0 %v11532
    %11581 = vmatprep.mubr.bf16.mxu0 %v11413
    %11582 = vmatmul.mubr.bf16.gmra.mrb[0].mxu0 %v11412
    %v11583 = vpop.f32.mrb[0].mxu0
    %v11584 = vadd.f32 %v11451, %v11583
    %v11585 = vpop.f32.mrb[0].mxu0
    %v11586 = vpop.f32.mrb[0].mxu0
    %v11587 = vpop.f32.mrb[0].mxu0
    %11588 = vdwg.mxu0
    %11589 = vst [vmem:[%s9] sm:$0x3] %v11584
    // Predicated region
    $region70: #{dueling_placenet_forward.1} parent=1 // pred_check
      _
    $region71: #{dueling_placenet_forward.1} parent=1 // pred_check_branch
      %11591 = sbr.rel (0) target = $region73
    $region72: #{dueling_placenet_forward.1} parent=1 // pred_region
      _
    $region73: #{dueling_placenet_forward.1} parent=1 // pred_fallthru
      _
    // Predicated region
    $region74: #{dueling_placenet_forward.1} parent=1 // pred_check
      _
    $region75: #{dueling_placenet_forward.1} parent=1 // pred_check_branch
      %11593 = sbr.rel (0) target = $region77
    $region76: #{dueling_placenet_forward.1} parent=1 // pred_region
      _
    $region77: #{dueling_placenet_forward.1} parent=1 // pred_fallthru
      _
    %11594 = vsyncpa [#allocation3], 1
    %11595 = vsyncpa [#allocation5], 1
    %11596 = vsyncpa [#allocation8], 1
    %11597 = vsyncpa [#allocation11], 1
    %11598 = vsyncpa [#allocation14], 1

</llo_original>
